<compile_context>
chip_gen: v7x
topology: tpu7x:2x2x1
jax: 0.10.0
libtpu: 0.0.40
codegen_flags: <defaults>
</compile_context>

<pallas_src>
import functools

import jax
import jax.numpy as jnp
from jax import lax
from jax.experimental import pallas as pl
from jax.experimental.pallas import tpu as pltpu

BF16 = jnp.bfloat16
F32 = jnp.float32


def _bn_relu(y, ss_ref):
    """relu(y * scale + shift); ss_ref is a (2, N) ref: row 0 scale, row 1 shift."""
    return jnp.maximum(y * ss_ref[0:1, :] + ss_ref[1:2, :], 0.0)


# ---------------------------------------------------------------------------
# Kernel 1: per-batch "front" kernel
#   pixel_representations (3x3 conv+bias+ReLU), soft_object_regions (aux head),
#   SpatialGather, and the to_k / to_v projections of ObjectAttentionBlock2D.
# ---------------------------------------------------------------------------
def _front_kernel(a_ref, w3_ref, bpix_ref,
                  ws1_ref, bs1_ref, ws2_ref, bs2_ref,
                  wk1_ref, ssk1_ref, wk2_ref, ssk2_ref, wv_ref, ssv_ref,
                  aux_ref, feats_ref, key_ref, val_ref,
                  *, H, W, K):
    HW = H * W
    MID = w3_ref.shape[-1]

    # ---- 3x3 conv, pad=1: 9 shifted matmuls over the H-padded, row-flattened
    #      image.  Output row r reads input row r + (dy+1)*W + (dx-1); W-edge
    #      taps are masked, H edges are covered by the zero pad rows.
    w_idx = lax.broadcasted_iota(jnp.int32, (HW, 1), 0) % W
    acc = jnp.zeros((HW, MID), F32)
    for dy in range(3):
        for dx in range(3):
            start = (dy + 1) * W + dx - 1
            blk = a_ref[0, pl.ds(start, HW), :].astype(BF16)          # (HW, C)
            if dx == 0:
                blk = jnp.where(w_idx >= 1, blk, jnp.zeros_like(blk))
            elif dx == 2:
                blk = jnp.where(w_idx <= W - 2, blk, jnp.zeros_like(blk))
            acc = acc + jnp.dot(blk, w3_ref[dy * 3 + dx],
                                preferred_element_type=F32)
    feats = jnp.maximum(acc + bpix_ref[...], 0.0)                     # (HW, MID) f32
    feats_ref[0] = feats.astype(BF16)

    # ---- soft_object_regions: 1x1+bias+ReLU -> 1x1+bias (aux head).
    x_int = a_ref[0, pl.ds(2 * W, HW), :].astype(BF16)                # un-padded rows
    h1 = jnp.maximum(jnp.dot(x_int, ws1_ref[...], preferred_element_type=F32)
                     + bs1_ref[...], 0.0)
    aux = jnp.dot(h1.astype(BF16), ws2_ref[...],
                  preferred_element_type=F32) + bs2_ref[...]          # (HW, K) f32
    aux_ref[0] = aux

    # ---- SpatialGather: softmax over HW per class, ctx[k] = sum_hw p[hw,k]*feats[hw].
    p = aux - jnp.max(aux, axis=0, keepdims=True)
    e = jnp.exp(p)
    probs = e * pl.reciprocal(jnp.sum(e, axis=0, keepdims=True), approx=True)
    ctx_rows = []
    for k in range(K):                      # num_classes is tiny -> VPU loop, exact f32
        pk = probs[:, k:k + 1]                                        # (HW, 1)
        ctx_rows.append(jnp.sum(pk * feats, axis=0, keepdims=True))   # (1, MID)
    ctx = jnp.concatenate(ctx_rows, axis=0).astype(BF16)              # (K, MID)

    # ---- to_k (2 x conv1x1-noBias+BN+ReLU) and to_v (1 layer) on the context.
    k1 = _bn_relu(jnp.dot(ctx, wk1_ref[...], preferred_element_type=F32), ssk1_ref)
    keym = _bn_relu(jnp.dot(k1.astype(BF16), wk2_ref[...],
                            preferred_element_type=F32), ssk2_ref)
    vm = _bn_relu(jnp.dot(ctx, wv_ref[...], preferred_element_type=F32), ssv_ref)
    key_ref[0] = keym.astype(BF16)
    val_ref[0] = vm.astype(BF16)


# ---------------------------------------------------------------------------
# Kernel 2: per-(batch, HW-tile) "tail" kernel
#   to_q, object attention, f_up, concat-conv (split, no concat), final head.
# ---------------------------------------------------------------------------
def _tail_kernel(f_ref, k_ref, v_ref,
                 wq1_ref, ssq1_ref, wq2_ref, ssq2_ref,
                 wfu_ref, ssfu_ref,
                 wcc_ref, wcf_ref, sscat_ref,
                 waug_ref, baug_ref,
                 o_ref, *, inv_sqrt):
    feats = f_ref[0]                                                  # (thw, MID) bf16

    # query = to_q(feats)
    q1 = _bn_relu(jnp.dot(feats, wq1_ref[...], preferred_element_type=F32), ssq1_ref)
    q = _bn_relu(jnp.dot(q1.astype(BF16), wq2_ref[...],
                         preferred_element_type=F32), ssq2_ref)       # (thw, KEY)

    # sim = q @ key^T * key_channels^-0.5 ; softmax over classes
    sim = lax.dot_general(q.astype(BF16), k_ref[0],
                          (((1,), (1,)), ((), ())),
                          preferred_element_type=F32) * inv_sqrt      # (thw, K)
    sim = sim - jnp.max(sim, axis=-1, keepdims=True)
    e = jnp.exp(sim)
    p = e * pl.reciprocal(jnp.sum(e, axis=-1, keepdims=True), approx=True)
    attn = jnp.dot(p.astype(BF16), v_ref[0], preferred_element_type=F32)  # (thw, KEY)

    # f_up, then concat-conv without materialising the concat:
    #   relu(BN([ctx_up, feats] @ Wcat)) == relu(BN(ctx_up@Wc_ctx + feats@Wc_feat))
    ctx_up = _bn_relu(jnp.dot(attn.astype(BF16), wfu_ref[...],
                              preferred_element_type=F32), ssfu_ref)  # (thw, MID)
    pre = (jnp.dot(ctx_up.astype(BF16), wcc_ref[...], preferred_element_type=F32)
           + jnp.dot(feats, wcf_ref[...], preferred_element_type=F32))
    fused = _bn_relu(pre, sscat_ref)                                  # (thw, MID)

    # augmented_representation: 1x1 conv + bias
    o_ref[0] = (jnp.dot(fused.astype(BF16), waug_ref[...],
                        preferred_element_type=F32) + baug_ref[...])


# ---------------------------------------------------------------------------
# Forward wrapper
# ---------------------------------------------------------------------------
def ocrnet_forward(x_nchw, params, num_classes, mid_channels, key_channels):
    p = params
    B, C, H, W = x_nchw.shape
    HW = H * W
    K = num_classes
    MID = mid_channels
    KEY = key_channels

    # NCHW -> channels-last, pad H by 2 on each side (3x3 halo + keeps all
    # in-kernel row offsets non-negative), flatten rows.  Kept f32 so the
    # shifted in-kernel loads stay on the simple (8,128) layout; slices are
    # cast to bf16 right before the MXU.
    x_nhwc = jnp.transpose(x_nchw, (0, 2, 3, 1)).astype(F32)
    xpad = jnp.pad(x_nhwc, ((0, 0), (2, 2), (0, 0), (0, 0)))          # (B, H+4, W, C)
    a = xpad.reshape(B, (H + 4) * W, C)

    def rep2(shape):    # replicated 2-D operand, grid = (b,)
        return pl.BlockSpec(shape, lambda b: (0, 0))

    def rep3(shape):    # replicated 3-D operand, grid = (b,)
        return pl.BlockSpec(shape, lambda b: (0, 0, 0))

    out_aux_flat, feats, keym, valm = pl.pallas_call(
        functools.partial(_front_kernel, H=H, W=W, K=K),
        grid=(B,),
        in_specs=[
            pl.BlockSpec((1, (H + 4) * W, C), lambda b: (b, 0, 0)),   # padded image
            rep3((9, C, MID)), rep2((1, MID)),                        # 3x3 conv
            rep2((C, C)), rep2((1, C)),                               # sor layer 1
            rep2((C, K)), rep2((1, K)),                               # sor layer 2
            rep2((MID, KEY)), rep2((2, KEY)),                         # to_k layer 1
            rep2((KEY, KEY)), rep2((2, KEY)),                         # to_k layer 2
            rep2((MID, KEY)), rep2((2, KEY)),                         # to_v
        ],
        out_specs=[
            pl.BlockSpec((1, HW, K), lambda b: (b, 0, 0)),
            pl.BlockSpec((1, HW, MID), lambda b: (b, 0, 0)),
            pl.BlockSpec((1, K, KEY), lambda b: (b, 0, 0)),
            pl.BlockSpec((1, K, KEY), lambda b: (b, 0, 0)),
        ],
        out_shape=[
            jax.ShapeDtypeStruct((B, HW, K), F32),      # out_aux
            jax.ShapeDtypeStruct((B, HW, MID), BF16),   # pixel representations
            jax.ShapeDtypeStruct((B, K, KEY), BF16),    # attention keys
            jax.ShapeDtypeStruct((B, K, KEY), BF16),    # attention values
        ],
        compiler_params=pltpu.CompilerParams(dimension_semantics=("parallel",)),
    )(a, p["w_pix"], p["b_pix"],
      p["w_sor1"], p["b_sor1"], p["w_sor2"], p["b_sor2"],
      p["w_k1"], p["ss_k1"], p["w_k2"], p["ss_k2"], p["w_v"], p["ss_v"])

    # HW tile for the tail: biggest power-of-two tile that divides HW.
    thw = HW
    for cand in (1024, 512, 256, 128):
        if HW % cand == 0:
            thw = cand
            break
    assert HW % thw == 0

    def rep2t(shape):   # replicated 2-D operand, grid = (b, t)
        return pl.BlockSpec(shape, lambda b, t: (0, 0))

    out_flat = pl.pallas_call(
        functools.partial(_tail_kernel, inv_sqrt=float(key_channels) ** -0.5),
        grid=(B, HW // thw),
        in_specs=[
            pl.BlockSpec((1, thw, MID), lambda b, t: (b, t, 0)),
            pl.BlockSpec((1, K, KEY), lambda b, t: (b, 0, 0)),
            pl.BlockSpec((1, K, KEY), lambda b, t: (b, 0, 0)),
            rep2t((MID, KEY)), rep2t((2, KEY)),        # to_q layer 1
            rep2t((KEY, KEY)), rep2t((2, KEY)),        # to_q layer 2
            rep2t((KEY, MID)), rep2t((2, MID)),        # f_up
            rep2t((MID, MID)), rep2t((MID, MID)),      # concat conv (ctx / feats halves)
            rep2t((2, MID)),                           # concat conv BN
            rep2t((MID, K)), rep2t((1, K)),            # augmented_representation
        ],
        out_specs=pl.BlockSpec((1, thw, K), lambda b, t: (b, t, 0)),
        out_shape=jax.ShapeDtypeStruct((B, HW, K), F32),
        compiler_params=pltpu.CompilerParams(
            dimension_semantics=("parallel", "parallel")),
    )(feats, keym, valm,
      p["w_q1"], p["ss_q1"], p["w_q2"], p["ss_q2"],
      p["w_fup"], p["ss_fup"],
      p["w_cat_ctx"], p["w_cat_feat"], p["ss_cat"],
      p["w_aug"], p["b_aug"])

    out_aux = out_aux_flat.reshape(B, H, W, K).transpose(0, 3, 1, 2)
    out = out_flat.reshape(B, H, W, K).transpose(0, 3, 1, 2)
    return out_aux, out


# ---------------------------------------------------------------------------
# main
# ---------------------------------------------------------------------------
if __name__ == "__main__":
    B, C, H, W = 2, 128, 16, 16         # batch, channels, spatial (small)
    NUM_CLASSES = 4
    MID = 128                           # ocr_mid_channels (scaled down, lane-dense)
    KEY = 128                           # ocr_key_channels (scaled down, lane-dense)

    root = jax.random.PRNGKey(0)
    keys = iter(jax.random.split(root, 64))

    def rnd(shape, s=0.1):
        return jax.random.normal(next(keys), shape, F32) * s

    def bn_fold(n, eps=1e-5):
        gamma = 1.0 + rnd((n,), 0.05)
        beta = rnd((n,), 0.05)
        mean = rnd((n,), 0.05)
        var = jnp.abs(rnd((n,), 0.05)) + 1.0
        scale = gamma / jnp.sqrt(var + eps)
        shift = beta - mean * scale
        return jnp.stack([scale, shift]).astype(F32)      # (2, n)

    # NOTE: with real PyTorch weights, 1x1 Conv2d (C_out, C_in, 1, 1) must be
    # transposed to (C_in, C_out); the 3x3 weight (C_out, C_in, 3, 3) permuted
    # to (ky, kx, C_in, C_out) then reshaped to (9, C_in, C_out); the concat
    # conv weight splits as [:, :MID] -> w_cat_ctx and [:, MID:] -> w_cat_feat.
    params = {
        # soft_object_regions: ConvModule(C,C,1)[bias+ReLU] -> Conv2d(C,K,1)[bias]
        "w_sor1": rnd((C, C)).astype(BF16), "b_sor1": rnd((1, C)),
        "w_sor2": rnd((C, NUM_CLASSES)).astype(BF16), "b_sor2": rnd((1, NUM_CLASSES)),
        # pixel_representations: 3x3 conv + bias + ReLU
        "w_pix": rnd((9, C, MID)).astype(BF16), "b_pix": rnd((1, MID)),
        # ObjectAttentionBlock2D (conv no-bias + BN + ReLU stacks)
        "w_q1": rnd((MID, KEY)).astype(BF16), "ss_q1": bn_fold(KEY),
        "w_q2": rnd((KEY, KEY)).astype(BF16), "ss_q2": bn_fold(KEY),
        "w_k1": rnd((MID, KEY)).astype(BF16), "ss_k1": bn_fold(KEY),
        "w_k2": rnd((KEY, KEY)).astype(BF16), "ss_k2": bn_fold(KEY),
        "w_v":  rnd((MID, KEY)).astype(BF16), "ss_v":  bn_fold(KEY),
        "w_fup": rnd((KEY, MID)).astype(BF16), "ss_fup": bn_fold(MID),
        # SpatialOCR conv_bn_dropout (concat conv split into two halves)
        "w_cat_ctx": rnd((MID, MID)).astype(BF16),
        "w_cat_feat": rnd((MID, MID)).astype(BF16),
        "ss_cat": bn_fold(MID),
        # augmented_representation: Conv2d(MID, K, 1) with bias
        "w_aug": rnd((MID, NUM_CLASSES)).astype(BF16), "b_aug": rnd((1, NUM_CLASSES)),
    }

    x = jax.random.normal(next(keys), (B, C, H, W), F32)

    fwd = jax.jit(functools.partial(ocrnet_forward,
                                    num_classes=NUM_CLASSES,
                                    mid_channels=MID,
                                    key_channels=KEY))
    out_aux, out = fwd(x, params)
    jax.block_until_ready((out_aux, out))

    assert out_aux.shape == (B, NUM_CLASSES, H, W)
    assert out.shape == (B, NUM_CLASSES, H, W)
    assert bool(jnp.isfinite(out_aux).all()) and bool(jnp.isfinite(out).all())
    print("KERNEL_OK")
</pallas_src>

<mosaic_0001>
module attributes {stable_mosaic.version = 11 : i64} {
  func.func @_tail_kernel(%arg0: i32, %arg1: i32, %arg2: memref<1x256x128xbf16, #tpu.memory_space<vmem>>, %arg3: memref<1x4x128xbf16, #tpu.memory_space<vmem>>, %arg4: memref<1x4x128xbf16, #tpu.memory_space<vmem>>, %arg5: memref<128x128xbf16, #tpu.memory_space<vmem>>, %arg6: memref<2x128xf32, #tpu.memory_space<vmem>>, %arg7: memref<128x128xbf16, #tpu.memory_space<vmem>>, %arg8: memref<2x128xf32, #tpu.memory_space<vmem>>, %arg9: memref<128x128xbf16, #tpu.memory_space<vmem>>, %arg10: memref<2x128xf32, #tpu.memory_space<vmem>>, %arg11: memref<128x128xbf16, #tpu.memory_space<vmem>>, %arg12: memref<128x128xbf16, #tpu.memory_space<vmem>>, %arg13: memref<2x128xf32, #tpu.memory_space<vmem>>, %arg14: memref<128x4xbf16, #tpu.memory_space<vmem>>, %arg15: memref<1x4xf32, #tpu.memory_space<vmem>>, %arg16: memref<1x256x4xf32, #tpu.memory_space<vmem>>) attributes {dimension_semantics = [#tpu.dimension_semantics<parallel>, #tpu.dimension_semantics<parallel>], iteration_bounds = array<i64: 2, 1>, scalar_prefetch = 0 : i64, scratch_operands = 0 : i64, tpu.core_type = #tpu.core_type<tc>, window_params = [{transform_indices = @transform_0, window_bounds = array<i64: 1, 256, 128>}, {transform_indices = @transform_1, window_bounds = array<i64: 1, 4, 128>}, {transform_indices = @transform_2, window_bounds = array<i64: 1, 4, 128>}, {pipeline_mode = #tpu.pipeline_mode<synchronous>, transform_indices = @transform_3, window_bounds = array<i64: 128, 128>}, {pipeline_mode = #tpu.pipeline_mode<synchronous>, transform_indices = @transform_4, window_bounds = array<i64: 2, 128>}, {pipeline_mode = #tpu.pipeline_mode<synchronous>, transform_indices = @transform_5, window_bounds = array<i64: 128, 128>}, {pipeline_mode = #tpu.pipeline_mode<synchronous>, transform_indices = @transform_6, window_bounds = array<i64: 2, 128>}, {pipeline_mode = #tpu.pipeline_mode<synchronous>, transform_indices = @transform_7, window_bounds = array<i64: 128, 128>}, {pipeline_mode = #tpu.pipeline_mode<synchronous>, transform_indices = @transform_8, window_bounds = array<i64: 2, 128>}, {pipeline_mode = #tpu.pipeline_mode<synchronous>, transform_indices = @transform_9, window_bounds = array<i64: 128, 128>}, {pipeline_mode = #tpu.pipeline_mode<synchronous>, transform_indices = @transform_10, window_bounds = array<i64: 128, 128>}, {pipeline_mode = #tpu.pipeline_mode<synchronous>, transform_indices = @transform_11, window_bounds = array<i64: 2, 128>}, {pipeline_mode = #tpu.pipeline_mode<synchronous>, transform_indices = @transform_12, window_bounds = array<i64: 128, 4>}, {pipeline_mode = #tpu.pipeline_mode<synchronous>, transform_indices = @transform_13, window_bounds = array<i64: 1, 4>}, {transform_indices = @transform_14, window_bounds = array<i64: 1, 256, 4>}]} {
    %c0 = arith.constant 0 : index
    %c0_0 = arith.constant 0 : index
    %c0_1 = arith.constant 0 : index
    %0 = vector.load %arg2[%c0, %c0_0, %c0_1] : memref<1x256x128xbf16, #tpu.memory_space<vmem>>, vector<1x256x128xbf16>
    %1 = vector.shape_cast %0 : vector<1x256x128xbf16> to vector<256x128xbf16>
    %c0_2 = arith.constant 0 : index
    %c0_3 = arith.constant 0 : index
    %2 = vector.load %arg5[%c0_2, %c0_3] : memref<128x128xbf16, #tpu.memory_space<vmem>>, vector<128x128xbf16>
    %cst = arith.constant dense<0.000000e+00> : vector<256x128xf32>
    %3 = tpu.matmul %1, %2, %cst {dimension_numbers = #tpu.dot_dimension_numbers<[1], [0], [0], [1], [0, 0, 1, 1], [], []>} : vector<256x128xbf16>, vector<128x128xbf16>, vector<256x128xf32> -> vector<256x128xf32>
    %c0_4 = arith.constant 0 : index
    %c0_5 = arith.constant 0 : index
    %4 = vector.load %arg6[%c0_4, %c0_5] : memref<2x128xf32, #tpu.memory_space<vmem>>, vector<1x128xf32>
    %5 = vector.broadcast %4 : vector<1x128xf32> to vector<256x128xf32>
    %6 = arith.mulf %3, %5 : vector<256x128xf32>
    %c1 = arith.constant 1 : index
    %c0_6 = arith.constant 0 : index
    %7 = vector.load %arg6[%c1, %c0_6] : memref<2x128xf32, #tpu.memory_space<vmem>>, vector<1x128xf32>
    %8 = vector.broadcast %7 : vector<1x128xf32> to vector<256x128xf32>
    %9 = arith.addf %6, %8 : vector<256x128xf32>
    %cst_7 = arith.constant 0.000000e+00 : f32
    %10 = vector.broadcast %cst_7 : f32 to vector<256x128xf32>
    %11 = arith.maximumf %9, %10 : vector<256x128xf32>
    %12 = arith.truncf %11 : vector<256x128xf32> to vector<256x128xbf16>
    %c0_8 = arith.constant 0 : index
    %c0_9 = arith.constant 0 : index
    %13 = vector.load %arg7[%c0_8, %c0_9] : memref<128x128xbf16, #tpu.memory_space<vmem>>, vector<128x128xbf16>
    %cst_10 = arith.constant dense<0.000000e+00> : vector<256x128xf32>
    %14 = tpu.matmul %12, %13, %cst_10 {dimension_numbers = #tpu.dot_dimension_numbers<[1], [0], [0], [1], [0, 0, 1, 1], [], []>} : vector<256x128xbf16>, vector<128x128xbf16>, vector<256x128xf32> -> vector<256x128xf32>
    %c0_11 = arith.constant 0 : index
    %c0_12 = arith.constant 0 : index
    %15 = vector.load %arg8[%c0_11, %c0_12] : memref<2x128xf32, #tpu.memory_space<vmem>>, vector<1x128xf32>
    %16 = vector.broadcast %15 : vector<1x128xf32> to vector<256x128xf32>
    %17 = arith.mulf %14, %16 : vector<256x128xf32>
    %c1_13 = arith.constant 1 : index
    %c0_14 = arith.constant 0 : index
    %18 = vector.load %arg8[%c1_13, %c0_14] : memref<2x128xf32, #tpu.memory_space<vmem>>, vector<1x128xf32>
    %19 = vector.broadcast %18 : vector<1x128xf32> to vector<256x128xf32>
    %20 = arith.addf %17, %19 : vector<256x128xf32>
    %cst_15 = arith.constant 0.000000e+00 : f32
    %21 = vector.broadcast %cst_15 : f32 to vector<256x128xf32>
    %22 = arith.maximumf %20, %21 : vector<256x128xf32>
    %23 = arith.truncf %22 : vector<256x128xf32> to vector<256x128xbf16>
    %c0_16 = arith.constant 0 : index
    %c0_17 = arith.constant 0 : index
    %c0_18 = arith.constant 0 : index
    %24 = vector.load %arg3[%c0_16, %c0_17, %c0_18] : memref<1x4x128xbf16, #tpu.memory_space<vmem>>, vector<1x4x128xbf16>
    %25 = vector.shape_cast %24 : vector<1x4x128xbf16> to vector<4x128xbf16>
    %cst_19 = arith.constant dense<0.000000e+00> : vector<256x4xf32>
    %26 = tpu.matmul %23, %25, %cst_19 {dimension_numbers = #tpu.dot_dimension_numbers<[1], [1], [0], [0], [0, 0, 1, 0], [], []>} : vector<256x128xbf16>, vector<4x128xbf16>, vector<256x4xf32> -> vector<256x4xf32>
    %cst_20 = arith.constant 0.0883883461 : f32
    %27 = vector.broadcast %cst_20 : f32 to vector<256x4xf32>
    %28 = arith.mulf %26, %27 : vector<256x4xf32>
    %cst_21 = arith.constant dense<0xFF800000> : vector<256xf32>
    %29 = vector.multi_reduction <maximumf>, %28, %cst_21 [1] : vector<256x4xf32> to vector<256xf32>
    %30 = vector.shape_cast %29 : vector<256xf32> to vector<256x1xf32>
    %31 = vector.broadcast %30 : vector<256x1xf32> to vector<256x4xf32>
    %32 = arith.subf %28, %31 : vector<256x4xf32>
    %33 = math.exp %32 : vector<256x4xf32>
    %cst_22 = arith.constant dense<0.000000e+00> : vector<256xf32>
    %34 = vector.multi_reduction <add>, %33, %cst_22 [1] : vector<256x4xf32> to vector<256xf32>
    %35 = vector.shape_cast %34 : vector<256xf32> to vector<256x1xf32>
    %36 = tpu.reciprocal %35 {approx = true} : vector<256x1xf32> -> vector<256x1xf32>
    %37 = vector.broadcast %36 : vector<256x1xf32> to vector<256x4xf32>
    %38 = arith.mulf %33, %37 : vector<256x4xf32>
    %39 = arith.truncf %38 : vector<256x4xf32> to vector<256x4xbf16>
    %c0_23 = arith.constant 0 : index
    %c0_24 = arith.constant 0 : index
    %c0_25 = arith.constant 0 : index
    %40 = vector.load %arg4[%c0_23, %c0_24, %c0_25] : memref<1x4x128xbf16, #tpu.memory_space<vmem>>, vector<1x4x128xbf16>
    %41 = vector.shape_cast %40 : vector<1x4x128xbf16> to vector<4x128xbf16>
    %cst_26 = arith.constant dense<0.000000e+00> : vector<256x128xf32>
    %42 = tpu.matmul %39, %41, %cst_26 {dimension_numbers = #tpu.dot_dimension_numbers<[1], [0], [0], [1], [0, 0, 1, 1], [], []>} : vector<256x4xbf16>, vector<4x128xbf16>, vector<256x128xf32> -> vector<256x128xf32>
    %43 = arith.truncf %42 : vector<256x128xf32> to vector<256x128xbf16>
    %c0_27 = arith.constant 0 : index
    %c0_28 = arith.constant 0 : index
    %44 = vector.load %arg9[%c0_27, %c0_28] : memref<128x128xbf16, #tpu.memory_space<vmem>>, vector<128x128xbf16>
    %cst_29 = arith.constant dense<0.000000e+00> : vector<256x128xf32>
    %45 = tpu.matmul %43, %44, %cst_29 {dimension_numbers = #tpu.dot_dimension_numbers<[1], [0], [0], [1], [0, 0, 1, 1], [], []>} : vector<256x128xbf16>, vector<128x128xbf16>, vector<256x128xf32> -> vector<256x128xf32>
    %c0_30 = arith.constant 0 : index
    %c0_31 = arith.constant 0 : index
    %46 = vector.load %arg10[%c0_30, %c0_31] : memref<2x128xf32, #tpu.memory_space<vmem>>, vector<1x128xf32>
    %47 = vector.broadcast %46 : vector<1x128xf32> to vector<256x128xf32>
    %48 = arith.mulf %45, %47 : vector<256x128xf32>
    %c1_32 = arith.constant 1 : index
    %c0_33 = arith.constant 0 : index
    %49 = vector.load %arg10[%c1_32, %c0_33] : memref<2x128xf32, #tpu.memory_space<vmem>>, vector<1x128xf32>
    %50 = vector.broadcast %49 : vector<1x128xf32> to vector<256x128xf32>
    %51 = arith.addf %48, %50 : vector<256x128xf32>
    %cst_34 = arith.constant 0.000000e+00 : f32
    %52 = vector.broadcast %cst_34 : f32 to vector<256x128xf32>
    %53 = arith.maximumf %51, %52 : vector<256x128xf32>
    %54 = arith.truncf %53 : vector<256x128xf32> to vector<256x128xbf16>
    %c0_35 = arith.constant 0 : index
    %c0_36 = arith.constant 0 : index
    %55 = vector.load %arg11[%c0_35, %c0_36] : memref<128x128xbf16, #tpu.memory_space<vmem>>, vector<128x128xbf16>
    %cst_37 = arith.constant dense<0.000000e+00> : vector<256x128xf32>
    %56 = tpu.matmul %54, %55, %cst_37 {dimension_numbers = #tpu.dot_dimension_numbers<[1], [0], [0], [1], [0, 0, 1, 1], [], []>} : vector<256x128xbf16>, vector<128x128xbf16>, vector<256x128xf32> -> vector<256x128xf32>
    %c0_38 = arith.constant 0 : index
    %c0_39 = arith.constant 0 : index
    %57 = vector.load %arg12[%c0_38, %c0_39] : memref<128x128xbf16, #tpu.memory_space<vmem>>, vector<128x128xbf16>
    %cst_40 = arith.constant dense<0.000000e+00> : vector<256x128xf32>
    %58 = tpu.matmul %1, %57, %cst_40 {dimension_numbers = #tpu.dot_dimension_numbers<[1], [0], [0], [1], [0, 0, 1, 1], [], []>} : vector<256x128xbf16>, vector<128x128xbf16>, vector<256x128xf32> -> vector<256x128xf32>
    %59 = arith.addf %56, %58 : vector<256x128xf32>
    %c0_41 = arith.constant 0 : index
    %c0_42 = arith.constant 0 : index
    %60 = vector.load %arg13[%c0_41, %c0_42] : memref<2x128xf32, #tpu.memory_space<vmem>>, vector<1x128xf32>
    %61 = vector.broadcast %60 : vector<1x128xf32> to vector<256x128xf32>
    %62 = arith.mulf %59, %61 : vector<256x128xf32>
    %c1_43 = arith.constant 1 : index
    %c0_44 = arith.constant 0 : index
    %63 = vector.load %arg13[%c1_43, %c0_44] : memref<2x128xf32, #tpu.memory_space<vmem>>, vector<1x128xf32>
    %64 = vector.broadcast %63 : vector<1x128xf32> to vector<256x128xf32>
    %65 = arith.addf %62, %64 : vector<256x128xf32>
    %cst_45 = arith.constant 0.000000e+00 : f32
    %66 = vector.broadcast %cst_45 : f32 to vector<256x128xf32>
    %67 = arith.maximumf %65, %66 : vector<256x128xf32>
    %68 = arith.truncf %67 : vector<256x128xf32> to vector<256x128xbf16>
    %c0_46 = arith.constant 0 : index
    %c0_47 = arith.constant 0 : index
    %69 = vector.load %arg14[%c0_46, %c0_47] : memref<128x4xbf16, #tpu.memory_space<vmem>>, vector<128x4xbf16>
    %cst_48 = arith.constant dense<0.000000e+00> : vector<256x4xf32>
    %70 = tpu.matmul %68, %69, %cst_48 {dimension_numbers = #tpu.dot_dimension_numbers<[1], [0], [0], [1], [0, 0, 1, 1], [], []>} : vector<256x128xbf16>, vector<128x4xbf16>, vector<256x4xf32> -> vector<256x4xf32>
    %c0_49 = arith.constant 0 : index
    %c0_50 = arith.constant 0 : index
    %71 = vector.load %arg15[%c0_49, %c0_50] : memref<1x4xf32, #tpu.memory_space<vmem>>, vector<1x4xf32>
    %72 = vector.broadcast %71 : vector<1x4xf32> to vector<256x4xf32>
    %73 = arith.addf %70, %72 : vector<256x4xf32>
    %c0_51 = arith.constant 0 : index
    %c0_52 = arith.constant 0 : index
    %c0_53 = arith.constant 0 : index
    %74 = vector.load %arg16[%c0_51, %c0_52, %c0_53] : memref<1x256x4xf32, #tpu.memory_space<vmem>>, vector<1x256x4xf32>
    %75 = vector.shape_cast %74 : vector<1x256x4xf32> to vector<256x4xf32>
    %76 = vector.shape_cast %73 : vector<256x4xf32> to vector<1x256x4xf32>
    tpu.vector_store %arg16[%c0_51, %c0_52, %c0_53], %76 {strides = array<i32>} : memref<1x256x4xf32, #tpu.memory_space<vmem>>, vector<1x256x4xf32>,
    return
  }
  func.func @transform_0(%arg0: i32, %arg1: i32) -> (i32, i32, i32) {
    %c0_i32 = arith.constant 0 : i32
    %c0_i32_0 = arith.constant 0 : i32
    return %arg0, %arg1, %c0_i32 : i32, i32, i32
  }
  func.func @transform_1(%arg0: i32, %arg1: i32) -> (i32, i32, i32) {
    %c0_i32 = arith.constant 0 : i32
    %c0_i32_0 = arith.constant 0 : i32
    %c0_i32_1 = arith.constant 0 : i32
    return %arg0, %c0_i32, %c0_i32_0 : i32, i32, i32
  }
  func.func @transform_2(%arg0: i32, %arg1: i32) -> (i32, i32, i32) {
    %c0_i32 = arith.constant 0 : i32
    %c0_i32_0 = arith.constant 0 : i32
    %c0_i32_1 = arith.constant 0 : i32
    return %arg0, %c0_i32, %c0_i32_0 : i32, i32, i32
  }
  func.func @transform_3(%arg0: i32, %arg1: i32) -> (i32, i32) {
    %c0_i32 = arith.constant 0 : i32
    %c0_i32_0 = arith.constant 0 : i32
    %c0_i32_1 = arith.constant 0 : i32
    return %c0_i32, %c0_i32_0 : i32, i32
  }
  func.func @transform_4(%arg0: i32, %arg1: i32) -> (i32, i32) {
    %c0_i32 = arith.constant 0 : i32
    %c0_i32_0 = arith.constant 0 : i32
    %c0_i32_1 = arith.constant 0 : i32
    return %c0_i32, %c0_i32_0 : i32, i32
  }
  func.func @transform_5(%arg0: i32, %arg1: i32) -> (i32, i32) {
    %c0_i32 = arith.constant 0 : i32
    %c0_i32_0 = arith.constant 0 : i32
    %c0_i32_1 = arith.constant 0 : i32
    return %c0_i32, %c0_i32_0 : i32, i32
  }
  func.func @transform_6(%arg0: i32, %arg1: i32) -> (i32, i32) {
    %c0_i32 = arith.constant 0 : i32
    %c0_i32_0 = arith.constant 0 : i32
    %c0_i32_1 = arith.constant 0 : i32
    return %c0_i32, %c0_i32_0 : i32, i32
  }
  func.func @transform_7(%arg0: i32, %arg1: i32) -> (i32, i32) {
    %c0_i32 = arith.constant 0 : i32
    %c0_i32_0 = arith.constant 0 : i32
    %c0_i32_1 = arith.constant 0 : i32
    return %c0_i32, %c0_i32_0 : i32, i32
  }
  func.func @transform_8(%arg0: i32, %arg1: i32) -> (i32, i32) {
    %c0_i32 = arith.constant 0 : i32
    %c0_i32_0 = arith.constant 0 : i32
    %c0_i32_1 = arith.constant 0 : i32
    return %c0_i32, %c0_i32_0 : i32, i32
  }
  func.func @transform_9(%arg0: i32, %arg1: i32) -> (i32, i32) {
    %c0_i32 = arith.constant 0 : i32
    %c0_i32_0 = arith.constant 0 : i32
    %c0_i32_1 = arith.constant 0 : i32
    return %c0_i32, %c0_i32_0 : i32, i32
  }
  func.func @transform_10(%arg0: i32, %arg1: i32) -> (i32, i32) {
    %c0_i32 = arith.constant 0 : i32
    %c0_i32_0 = arith.constant 0 : i32
    %c0_i32_1 = arith.constant 0 : i32
    return %c0_i32, %c0_i32_0 : i32, i32
  }
  func.func @transform_11(%arg0: i32, %arg1: i32) -> (i32, i32) {
    %c0_i32 = arith.constant 0 : i32
    %c0_i32_0 = arith.constant 0 : i32
    %c0_i32_1 = arith.constant 0 : i32
    return %c0_i32, %c0_i32_0 : i32, i32
  }
  func.func @transform_12(%arg0: i32, %arg1: i32) -> (i32, i32) {
    %c0_i32 = arith.constant 0 : i32
    %c0_i32_0 = arith.constant 0 : i32
    %c0_i32_1 = arith.constant 0 : i32
    return %c0_i32, %c0_i32_0 : i32, i32
  }
  func.func @transform_13(%arg0: i32, %arg1: i32) -> (i32, i32) {
    %c0_i32 = arith.constant 0 : i32
    %c0_i32_0 = arith.constant 0 : i32
    %c0_i32_1 = arith.constant 0 : i32
    return %c0_i32, %c0_i32_0 : i32, i32
  }
  func.func @transform_14(%arg0: i32, %arg1: i32) -> (i32, i32, i32) {
    %c0_i32 = arith.constant 0 : i32
    %c0_i32_0 = arith.constant 0 : i32
    return %arg0, %arg1, %c0_i32 : i32, i32, i32
  }
}

module attributes {stable_mosaic.version = 11 : i64} {
  func.func @_front_kernel(%arg0: i32, %arg1: memref<1x320x128xf32, #tpu.memory_space<vmem>>, %arg2: memref<9x128x128xbf16, #tpu.memory_space<vmem>>, %arg3: memref<1x128xf32, #tpu.memory_space<vmem>>, %arg4: memref<128x128xbf16, #tpu.memory_space<vmem>>, %arg5: memref<1x128xf32, #tpu.memory_space<vmem>>, %arg6: memref<128x4xbf16, #tpu.memory_space<vmem>>, %arg7: memref<1x4xf32, #tpu.memory_space<vmem>>, %arg8: memref<128x128xbf16, #tpu.memory_space<vmem>>, %arg9: memref<2x128xf32, #tpu.memory_space<vmem>>, %arg10: memref<128x128xbf16, #tpu.memory_space<vmem>>, %arg11: memref<2x128xf32, #tpu.memory_space<vmem>>, %arg12: memref<128x128xbf16, #tpu.memory_space<vmem>>, %arg13: memref<2x128xf32, #tpu.memory_space<vmem>>, %arg14: memref<1x256x4xf32, #tpu.memory_space<vmem>>, %arg15: memref<1x256x128xbf16, #tpu.memory_space<vmem>>, %arg16: memref<1x4x128xbf16, #tpu.memory_space<vmem>>, %arg17: memref<1x4x128xbf16, #tpu.memory_space<vmem>>) attributes {dimension_semantics = [#tpu.dimension_semantics<parallel>], iteration_bounds = array<i64: 2>, scalar_prefetch = 0 : i64, scratch_operands = 0 : i64, tpu.core_type = #tpu.core_type<tc>, window_params = [{transform_indices = @transform_0, window_bounds = array<i64: 1, 320, 128>}, {pipeline_mode = #tpu.pipeline_mode<synchronous>, transform_indices = @transform_1, window_bounds = array<i64: 9, 128, 128>}, {pipeline_mode = #tpu.pipeline_mode<synchronous>, transform_indices = @transform_2, window_bounds = array<i64: 1, 128>}, {pipeline_mode = #tpu.pipeline_mode<synchronous>, transform_indices = @transform_3, window_bounds = array<i64: 128, 128>}, {pipeline_mode = #tpu.pipeline_mode<synchronous>, transform_indices = @transform_4, window_bounds = array<i64: 1, 128>}, {pipeline_mode = #tpu.pipeline_mode<synchronous>, transform_indices = @transform_5, window_bounds = array<i64: 128, 4>}, {pipeline_mode = #tpu.pipeline_mode<synchronous>, transform_indices = @transform_6, window_bounds = array<i64: 1, 4>}, {pipeline_mode = #tpu.pipeline_mode<synchronous>, transform_indices = @transform_7, window_bounds = array<i64: 128, 128>}, {pipeline_mode = #tpu.pipeline_mode<synchronous>, transform_indices = @transform_8, window_bounds = array<i64: 2, 128>}, {pipeline_mode = #tpu.pipeline_mode<synchronous>, transform_indices = @transform_9, window_bounds = array<i64: 128, 128>}, {pipeline_mode = #tpu.pipeline_mode<synchronous>, transform_indices = @transform_10, window_bounds = array<i64: 2, 128>}, {pipeline_mode = #tpu.pipeline_mode<synchronous>, transform_indices = @transform_11, window_bounds = array<i64: 128, 128>}, {pipeline_mode = #tpu.pipeline_mode<synchronous>, transform_indices = @transform_12, window_bounds = array<i64: 2, 128>}, {transform_indices = @transform_13, window_bounds = array<i64: 1, 256, 4>}, {transform_indices = @transform_14, window_bounds = array<i64: 1, 256, 128>}, {transform_indices = @transform_15, window_bounds = array<i64: 1, 4, 128>}, {transform_indices = @transform_16, window_bounds = array<i64: 1, 4, 128>}]} {
    %0 = tpu.iota {dimensions = array<i32: 0>} : vector<256x1xi32>
    %c16_i32 = arith.constant 16 : i32
    %c0_i32 = arith.constant 0 : i32
    %1 = arith.cmpi eq, %c16_i32, %c0_i32 : i32
    %c1_i32 = arith.constant 1 : i32
    %2 = arith.select %1, %c1_i32, %c16_i32 : i32
    %3 = vector.broadcast %2 : i32 to vector<256x1xi32>
    %4 = arith.remsi %0, %3 : vector<256x1xi32>
    %c0_i32_0 = arith.constant 0 : i32
    %5 = vector.broadcast %c0_i32_0 : i32 to vector<256x1xi32>
    %6 = arith.cmpi ne, %4, %5 : vector<256x1xi32>
    %c0_i32_1 = arith.constant 0 : i32
    %7 = vector.broadcast %c0_i32_1 : i32 to vector<256x1xi32>
    %8 = arith.cmpi slt, %4, %7 : vector<256x1xi32>
    %c0_i32_2 = arith.constant 0 : i32
    %9 = arith.cmpi slt, %2, %c0_i32_2 : i32
    %10 = vector.broadcast %9 : i1 to vector<256x1xi1>
    %11 = vector.broadcast %10 : vector<256x1xi1> to vector<256x1xi1>
    %12 = arith.xori %8, %11 : vector<256x1xi1>
    %13 = arith.andi %12, %6 : vector<256x1xi1>
    %14 = vector.broadcast %2 : i32 to vector<256x1xi32>
    %15 = arith.addi %4, %14 : vector<256x1xi32>
    %16 = arith.select %13, %15, %4 : vector<256x1xi1>, vector<256x1xi32>
    %cst = arith.constant 0.000000e+00 : f32
    %17 = vector.broadcast %cst : f32 to vector<256x128xf32>
    %c0 = arith.constant 0 : index
    %c15 = arith.constant 15 : index
    %c0_3 = arith.constant 0 : index
    %18 = vector.load %arg1[%c0, %c15, %c0_3] : memref<1x320x128xf32, #tpu.memory_space<vmem>>, vector<1x256x128xf32>
    %19 = vector.shape_cast %18 : vector<1x256x128xf32> to vector<256x128xf32>
    %20 = arith.truncf %19 : vector<256x128xf32> to vector<256x128xbf16>
    %c1_i32_4 = arith.constant 1 : i32
    %21 = vector.broadcast %c1_i32_4 : i32 to vector<256x1xi32>
    %22 = arith.cmpi sge, %16, %21 : vector<256x1xi32>
    %cst_5 = arith.constant 0.000000e+00 : bf16
    %23 = vector.broadcast %cst_5 : bf16 to vector<256x128xbf16>
    %24 = vector.shape_cast %22 : vector<256x1xi1> to vector<256x1xi1>
    %25 = vector.broadcast %24 : vector<256x1xi1> to vector<256x128xi1>
    %26 = arith.select %25, %20, %23 : vector<256x128xi1>, vector<256x128xbf16>
    %c0_6 = arith.constant 0 : index
    %c0_7 = arith.constant 0 : index
    %c0_8 = arith.constant 0 : index
    %27 = vector.load %arg2[%c0_6, %c0_7, %c0_8] : memref<9x128x128xbf16, #tpu.memory_space<vmem>>, vector<1x128x128xbf16>
    %28 = vector.shape_cast %27 : vector<1x128x128xbf16> to vector<128x128xbf16>
    %cst_9 = arith.constant dense<0.000000e+00> : vector<256x128xf32>
    %29 = tpu.matmul %26, %28, %cst_9 {dimension_numbers = #tpu.dot_dimension_numbers<[1], [0], [0], [1], [0, 0, 1, 1], [], []>} : vector<256x128xbf16>, vector<128x128xbf16>, vector<256x128xf32> -> vector<256x128xf32>
    %30 = arith.addf %17, %29 : vector<256x128xf32>
    %c0_10 = arith.constant 0 : index
    %c16 = arith.constant 16 : index
    %c0_11 = arith.constant 0 : index
    %31 = vector.load %arg1[%c0_10, %c16, %c0_11] : memref<1x320x128xf32, #tpu.memory_space<vmem>>, vector<1x256x128xf32>
    %32 = vector.shape_cast %31 : vector<1x256x128xf32> to vector<256x128xf32>
    %33 = arith.truncf %32 : vector<256x128xf32> to vector<256x128xbf16>
    %c1 = arith.constant 1 : index
    %c0_12 = arith.constant 0 : index
    %c0_13 = arith.constant 0 : index
    %34 = vector.load %arg2[%c1, %c0_12, %c0_13] : memref<9x128x128xbf16, #tpu.memory_space<vmem>>, vector<1x128x128xbf16>
    %35 = vector.shape_cast %34 : vector<1x128x128xbf16> to vector<128x128xbf16>
    %cst_14 = arith.constant dense<0.000000e+00> : vector<256x128xf32>
    %36 = tpu.matmul %33, %35, %cst_14 {dimension_numbers = #tpu.dot_dimension_numbers<[1], [0], [0], [1], [0, 0, 1, 1], [], []>} : vector<256x128xbf16>, vector<128x128xbf16>, vector<256x128xf32> -> vector<256x128xf32>
    %37 = arith.addf %30, %36 : vector<256x128xf32>
    %c0_15 = arith.constant 0 : index
    %c17 = arith.constant 17 : index
    %c0_16 = arith.constant 0 : index
    %38 = vector.load %arg1[%c0_15, %c17, %c0_16] : memref<1x320x128xf32, #tpu.memory_space<vmem>>, vector<1x256x128xf32>
    %39 = vector.shape_cast %38 : vector<1x256x128xf32> to vector<256x128xf32>
    %40 = arith.truncf %39 : vector<256x128xf32> to vector<256x128xbf16>
    %c14_i32 = arith.constant 14 : i32
    %41 = vector.broadcast %c14_i32 : i32 to vector<256x1xi32>
    %42 = arith.cmpi sle, %16, %41 : vector<256x1xi32>
    %cst_17 = arith.constant 0.000000e+00 : bf16
    %43 = vector.broadcast %cst_17 : bf16 to vector<256x128xbf16>
    %44 = vector.shape_cast %42 : vector<256x1xi1> to vector<256x1xi1>
    %45 = vector.broadcast %44 : vector<256x1xi1> to vector<256x128xi1>
    %46 = arith.select %45, %40, %43 : vector<256x128xi1>, vector<256x128xbf16>
    %c2 = arith.constant 2 : index
    %c0_18 = arith.constant 0 : index
    %c0_19 = arith.constant 0 : index
    %47 = vector.load %arg2[%c2, %c0_18, %c0_19] : memref<9x128x128xbf16, #tpu.memory_space<vmem>>, vector<1x128x128xbf16>
    %48 = vector.shape_cast %47 : vector<1x128x128xbf16> to vector<128x128xbf16>
    %cst_20 = arith.constant dense<0.000000e+00> : vector<256x128xf32>
    %49 = tpu.matmul %46, %48, %cst_20 {dimension_numbers = #tpu.dot_dimension_numbers<[1], [0], [0], [1], [0, 0, 1, 1], [], []>} : vector<256x128xbf16>, vector<128x128xbf16>, vector<256x128xf32> -> vector<256x128xf32>
    %50 = arith.addf %37, %49 : vector<256x128xf32>
    %c0_21 = arith.constant 0 : index
    %c31 = arith.constant 31 : index
    %c0_22 = arith.constant 0 : index
    %51 = vector.load %arg1[%c0_21, %c31, %c0_22] : memref<1x320x128xf32, #tpu.memory_space<vmem>>, vector<1x256x128xf32>
    %52 = vector.shape_cast %51 : vector<1x256x128xf32> to vector<256x128xf32>
    %53 = arith.truncf %52 : vector<256x128xf32> to vector<256x128xbf16>
    %c1_i32_23 = arith.constant 1 : i32
    %54 = vector.broadcast %c1_i32_23 : i32 to vector<256x1xi32>
    %55 = arith.cmpi sge, %16, %54 : vector<256x1xi32>
    %cst_24 = arith.constant 0.000000e+00 : bf16
    %56 = vector.broadcast %cst_24 : bf16 to vector<256x128xbf16>
    %57 = vector.shape_cast %55 : vector<256x1xi1> to vector<256x1xi1>
    %58 = vector.broadcast %57 : vector<256x1xi1> to vector<256x128xi1>
    %59 = arith.select %58, %53, %56 : vector<256x128xi1>, vector<256x128xbf16>
    %c3 = arith.constant 3 : index
    %c0_25 = arith.constant 0 : index
    %c0_26 = arith.constant 0 : index
    %60 = vector.load %arg2[%c3, %c0_25, %c0_26] : memref<9x128x128xbf16, #tpu.memory_space<vmem>>, vector<1x128x128xbf16>
    %61 = vector.shape_cast %60 : vector<1x128x128xbf16> to vector<128x128xbf16>
    %cst_27 = arith.constant dense<0.000000e+00> : vector<256x128xf32>
    %62 = tpu.matmul %59, %61, %cst_27 {dimension_numbers = #tpu.dot_dimension_numbers<[1], [0], [0], [1], [0, 0, 1, 1], [], []>} : vector<256x128xbf16>, vector<128x128xbf16>, vector<256x128xf32> -> vector<256x128xf32>
    %63 = arith.addf %50, %62 : vector<256x128xf32>
    %c0_28 = arith.constant 0 : index
    %c32 = arith.constant 32 : index
    %c0_29 = arith.constant 0 : index
    %64 = vector.load %arg1[%c0_28, %c32, %c0_29] : memref<1x320x128xf32, #tpu.memory_space<vmem>>, vector<1x256x128xf32>
    %65 = vector.shape_cast %64 : vector<1x256x128xf32> to vector<256x128xf32>
    %66 = arith.truncf %65 : vector<256x128xf32> to vector<256x128xbf16>
    %c4 = arith.constant 4 : index
    %c0_30 = arith.constant 0 : index
    %c0_31 = arith.constant 0 : index
    %67 = vector.load %arg2[%c4, %c0_30, %c0_31] : memref<9x128x128xbf16, #tpu.memory_space<vmem>>, vector<1x128x128xbf16>
    %68 = vector.shape_cast %67 : vector<1x128x128xbf16> to vector<128x128xbf16>
    %cst_32 = arith.constant dense<0.000000e+00> : vector<256x128xf32>
    %69 = tpu.matmul %66, %68, %cst_32 {dimension_numbers = #tpu.dot_dimension_numbers<[1], [0], [0], [1], [0, 0, 1, 1], [], []>} : vector<256x128xbf16>, vector<128x128xbf16>, vector<256x128xf32> -> vector<256x128xf32>
    %70 = arith.addf %63, %69 : vector<256x128xf32>
    %c0_33 = arith.constant 0 : index
    %c33 = arith.constant 33 : index
    %c0_34 = arith.constant 0 : index
    %71 = vector.load %arg1[%c0_33, %c33, %c0_34] : memref<1x320x128xf32, #tpu.memory_space<vmem>>, vector<1x256x128xf32>
    %72 = vector.shape_cast %71 : vector<1x256x128xf32> to vector<256x128xf32>
    %73 = arith.truncf %72 : vector<256x128xf32> to vector<256x128xbf16>
    %c14_i32_35 = arith.constant 14 : i32
    %74 = vector.broadcast %c14_i32_35 : i32 to vector<256x1xi32>
    %75 = arith.cmpi sle, %16, %74 : vector<256x1xi32>
    %cst_36 = arith.constant 0.000000e+00 : bf16
    %76 = vector.broadcast %cst_36 : bf16 to vector<256x128xbf16>
    %77 = vector.shape_cast %75 : vector<256x1xi1> to vector<256x1xi1>
    %78 = vector.broadcast %77 : vector<256x1xi1> to vector<256x128xi1>
    %79 = arith.select %78, %73, %76 : vector<256x128xi1>, vector<256x128xbf16>
    %c5 = arith.constant 5 : index
    %c0_37 = arith.constant 0 : index
    %c0_38 = arith.constant 0 : index
    %80 = vector.load %arg2[%c5, %c0_37, %c0_38] : memref<9x128x128xbf16, #tpu.memory_space<vmem>>, vector<1x128x128xbf16>
    %81 = vector.shape_cast %80 : vector<1x128x128xbf16> to vector<128x128xbf16>
    %cst_39 = arith.constant dense<0.000000e+00> : vector<256x128xf32>
    %82 = tpu.matmul %79, %81, %cst_39 {dimension_numbers = #tpu.dot_dimension_numbers<[1], [0], [0], [1], [0, 0, 1, 1], [], []>} : vector<256x128xbf16>, vector<128x128xbf16>, vector<256x128xf32> -> vector<256x128xf32>
    %83 = arith.addf %70, %82 : vector<256x128xf32>
    %c0_40 = arith.constant 0 : index
    %c47 = arith.constant 47 : index
    %c0_41 = arith.constant 0 : index
    %84 = vector.load %arg1[%c0_40, %c47, %c0_41] : memref<1x320x128xf32, #tpu.memory_space<vmem>>, vector<1x256x128xf32>
    %85 = vector.shape_cast %84 : vector<1x256x128xf32> to vector<256x128xf32>
    %86 = arith.truncf %85 : vector<256x128xf32> to vector<256x128xbf16>
    %c1_i32_42 = arith.constant 1 : i32
    %87 = vector.broadcast %c1_i32_42 : i32 to vector<256x1xi32>
    %88 = arith.cmpi sge, %16, %87 : vector<256x1xi32>
    %cst_43 = arith.constant 0.000000e+00 : bf16
    %89 = vector.broadcast %cst_43 : bf16 to vector<256x128xbf16>
    %90 = vector.shape_cast %88 : vector<256x1xi1> to vector<256x1xi1>
    %91 = vector.broadcast %90 : vector<256x1xi1> to vector<256x128xi1>
    %92 = arith.select %91, %86, %89 : vector<256x128xi1>, vector<256x128xbf16>
    %c6 = arith.constant 6 : index
    %c0_44 = arith.constant 0 : index
    %c0_45 = arith.constant 0 : index
    %93 = vector.load %arg2[%c6, %c0_44, %c0_45] : memref<9x128x128xbf16, #tpu.memory_space<vmem>>, vector<1x128x128xbf16>
    %94 = vector.shape_cast %93 : vector<1x128x128xbf16> to vector<128x128xbf16>
    %cst_46 = arith.constant dense<0.000000e+00> : vector<256x128xf32>
    %95 = tpu.matmul %92, %94, %cst_46 {dimension_numbers = #tpu.dot_dimension_numbers<[1], [0], [0], [1], [0, 0, 1, 1], [], []>} : vector<256x128xbf16>, vector<128x128xbf16>, vector<256x128xf32> -> vector<256x128xf32>
    %96 = arith.addf %83, %95 : vector<256x128xf32>
    %c0_47 = arith.constant 0 : index
    %c48 = arith.constant 48 : index
    %c0_48 = arith.constant 0 : index
    %97 = vector.load %arg1[%c0_47, %c48, %c0_48] : memref<1x320x128xf32, #tpu.memory_space<vmem>>, vector<1x256x128xf32>
    %98 = vector.shape_cast %97 : vector<1x256x128xf32> to vector<256x128xf32>
    %99 = arith.truncf %98 : vector<256x128xf32> to vector<256x128xbf16>
    %c7 = arith.constant 7 : index
    %c0_49 = arith.constant 0 : index
    %c0_50 = arith.constant 0 : index
    %100 = vector.load %arg2[%c7, %c0_49, %c0_50] : memref<9x128x128xbf16, #tpu.memory_space<vmem>>, vector<1x128x128xbf16>
    %101 = vector.shape_cast %100 : vector<1x128x128xbf16> to vector<128x128xbf16>
    %cst_51 = arith.constant dense<0.000000e+00> : vector<256x128xf32>
    %102 = tpu.matmul %99, %101, %cst_51 {dimension_numbers = #tpu.dot_dimension_numbers<[1], [0], [0], [1], [0, 0, 1, 1], [], []>} : vector<256x128xbf16>, vector<128x128xbf16>, vector<256x128xf32> -> vector<256x128xf32>
    %103 = arith.addf %96, %102 : vector<256x128xf32>
    %c0_52 = arith.constant 0 : index
    %c49 = arith.constant 49 : index
    %c0_53 = arith.constant 0 : index
    %104 = vector.load %arg1[%c0_52, %c49, %c0_53] : memref<1x320x128xf32, #tpu.memory_space<vmem>>, vector<1x256x128xf32>
    %105 = vector.shape_cast %104 : vector<1x256x128xf32> to vector<256x128xf32>
    %106 = arith.truncf %105 : vector<256x128xf32> to vector<256x128xbf16>
    %c14_i32_54 = arith.constant 14 : i32
    %107 = vector.broadcast %c14_i32_54 : i32 to vector<256x1xi32>
    %108 = arith.cmpi sle, %16, %107 : vector<256x1xi32>
    %cst_55 = arith.constant 0.000000e+00 : bf16
    %109 = vector.broadcast %cst_55 : bf16 to vector<256x128xbf16>
    %110 = vector.shape_cast %108 : vector<256x1xi1> to vector<256x1xi1>
    %111 = vector.broadcast %110 : vector<256x1xi1> to vector<256x128xi1>
    %112 = arith.select %111, %106, %109 : vector<256x128xi1>, vector<256x128xbf16>
    %c8 = arith.constant 8 : index
    %c0_56 = arith.constant 0 : index
    %c0_57 = arith.constant 0 : index
    %113 = vector.load %arg2[%c8, %c0_56, %c0_57] : memref<9x128x128xbf16, #tpu.memory_space<vmem>>, vector<1x128x128xbf16>
    %114 = vector.shape_cast %113 : vector<1x128x128xbf16> to vector<128x128xbf16>
    %cst_58 = arith.constant dense<0.000000e+00> : vector<256x128xf32>
    %115 = tpu.matmul %112, %114, %cst_58 {dimension_numbers = #tpu.dot_dimension_numbers<[1], [0], [0], [1], [0, 0, 1, 1], [], []>} : vector<256x128xbf16>, vector<128x128xbf16>, vector<256x128xf32> -> vector<256x128xf32>
    %116 = arith.addf %103, %115 : vector<256x128xf32>
    %c0_59 = arith.constant 0 : index
    %c0_60 = arith.constant 0 : index
    %117 = vector.load %arg3[%c0_59, %c0_60] : memref<1x128xf32, #tpu.memory_space<vmem>>, vector<1x128xf32>
    %118 = vector.broadcast %117 : vector<1x128xf32> to vector<256x128xf32>
    %119 = arith.addf %116, %118 : vector<256x128xf32>
    %cst_61 = arith.constant 0.000000e+00 : f32
    %120 = vector.broadcast %cst_61 : f32 to vector<256x128xf32>
    %121 = arith.maximumf %119, %120 : vector<256x128xf32>
    %122 = arith.truncf %121 : vector<256x128xf32> to vector<256x128xbf16>
    %c0_62 = arith.constant 0 : index
    %c0_63 = arith.constant 0 : index
    %c0_64 = arith.constant 0 : index
    %123 = vector.load %arg15[%c0_62, %c0_63, %c0_64] : memref<1x256x128xbf16, #tpu.memory_space<vmem>>, vector<1x256x128xbf16>
    %124 = vector.shape_cast %123 : vector<1x256x128xbf16> to vector<256x128xbf16>
    %125 = vector.shape_cast %122 : vector<256x128xbf16> to vector<1x256x128xbf16>
    tpu.vector_store %arg15[%c0_62, %c0_63, %c0_64], %125 {strides = array<i32>} : memref<1x256x128xbf16, #tpu.memory_space<vmem>>, vector<1x256x128xbf16>,
    %c0_65 = arith.constant 0 : index
    %c32_66 = arith.constant 32 : index
    %c0_67 = arith.constant 0 : index
    %126 = vector.load %arg1[%c0_65, %c32_66, %c0_67] : memref<1x320x128xf32, #tpu.memory_space<vmem>>, vector<1x256x128xf32>
    %127 = vector.shape_cast %126 : vector<1x256x128xf32> to vector<256x128xf32>
    %128 = arith.truncf %127 : vector<256x128xf32> to vector<256x128xbf16>
    %c0_68 = arith.constant 0 : index
    %c0_69 = arith.constant 0 : index
    %129 = vector.load %arg4[%c0_68, %c0_69] : memref<128x128xbf16, #tpu.memory_space<vmem>>, vector<128x128xbf16>
    %cst_70 = arith.constant dense<0.000000e+00> : vector<256x128xf32>
    %130 = tpu.matmul %128, %129, %cst_70 {dimension_numbers = #tpu.dot_dimension_numbers<[1], [0], [0], [1], [0, 0, 1, 1], [], []>} : vector<256x128xbf16>, vector<128x128xbf16>, vector<256x128xf32> -> vector<256x128xf32>
    %c0_71 = arith.constant 0 : index
    %c0_72 = arith.constant 0 : index
    %131 = vector.load %arg5[%c0_71, %c0_72] : memref<1x128xf32, #tpu.memory_space<vmem>>, vector<1x128xf32>
    %132 = vector.broadcast %131 : vector<1x128xf32> to vector<256x128xf32>
    %133 = arith.addf %130, %132 : vector<256x128xf32>
    %cst_73 = arith.constant 0.000000e+00 : f32
    %134 = vector.broadcast %cst_73 : f32 to vector<256x128xf32>
    %135 = arith.maximumf %133, %134 : vector<256x128xf32>
    %136 = arith.truncf %135 : vector<256x128xf32> to vector<256x128xbf16>
    %c0_74 = arith.constant 0 : index
    %c0_75 = arith.constant 0 : index
    %137 = vector.load %arg6[%c0_74, %c0_75] : memref<128x4xbf16, #tpu.memory_space<vmem>>, vector<128x4xbf16>
    %cst_76 = arith.constant dense<0.000000e+00> : vector<256x4xf32>
    %138 = tpu.matmul %136, %137, %cst_76 {dimension_numbers = #tpu.dot_dimension_numbers<[1], [0], [0], [1], [0, 0, 1, 1], [], []>} : vector<256x128xbf16>, vector<128x4xbf16>, vector<256x4xf32> -> vector<256x4xf32>
    %c0_77 = arith.constant 0 : index
    %c0_78 = arith.constant 0 : index
    %139 = vector.load %arg7[%c0_77, %c0_78] : memref<1x4xf32, #tpu.memory_space<vmem>>, vector<1x4xf32>
    %140 = vector.broadcast %139 : vector<1x4xf32> to vector<256x4xf32>
    %141 = arith.addf %138, %140 : vector<256x4xf32>
    %c0_79 = arith.constant 0 : index
    %c0_80 = arith.constant 0 : index
    %c0_81 = arith.constant 0 : index
    %142 = vector.load %arg14[%c0_79, %c0_80, %c0_81] : memref<1x256x4xf32, #tpu.memory_space<vmem>>, vector<1x256x4xf32>
    %143 = vector.shape_cast %142 : vector<1x256x4xf32> to vector<256x4xf32>
    %144 = vector.shape_cast %141 : vector<256x4xf32> to vector<1x256x4xf32>
    tpu.vector_store %arg14[%c0_79, %c0_80, %c0_81], %144 {strides = array<i32>} : memref<1x256x4xf32, #tpu.memory_space<vmem>>, vector<1x256x4xf32>,
    %cst_82 = arith.constant dense<0xFF800000> : vector<4xf32>
    %145 = vector.multi_reduction <maximumf>, %141, %cst_82 [0] : vector<256x4xf32> to vector<4xf32>
    %146 = vector.shape_cast %145 : vector<4xf32> to vector<1x4xf32>
    %147 = vector.broadcast %146 : vector<1x4xf32> to vector<256x4xf32>
    %148 = arith.subf %141, %147 : vector<256x4xf32>
    %149 = math.exp %148 : vector<256x4xf32>
    %cst_83 = arith.constant dense<0.000000e+00> : vector<4xf32>
    %150 = vector.multi_reduction <add>, %149, %cst_83 [0] : vector<256x4xf32> to vector<4xf32>
    %151 = vector.shape_cast %150 : vector<4xf32> to vector<1x4xf32>
    %152 = tpu.reciprocal %151 {approx = true} : vector<1x4xf32> -> vector<1x4xf32>
    %153 = vector.broadcast %152 : vector<1x4xf32> to vector<256x4xf32>
    %154 = arith.mulf %149, %153 : vector<256x4xf32>
    %155 = vector.extract_strided_slice %154 {offsets = [0, 0], sizes = [256, 1], strides = [1, 1]} : vector<256x4xf32> to vector<256x1xf32>
    %156 = vector.broadcast %155 : vector<256x1xf32> to vector<256x128xf32>
    %157 = arith.mulf %156, %121 : vector<256x128xf32>
    %cst_84 = arith.constant dense<0.000000e+00> : vector<128xf32>
    %158 = vector.multi_reduction <add>, %157, %cst_84 [0] : vector<256x128xf32> to vector<128xf32>
    %159 = vector.shape_cast %158 : vector<128xf32> to vector<1x128xf32>
    %160 = vector.extract_strided_slice %154 {offsets = [0, 1], sizes = [256, 1], strides = [1, 1]} : vector<256x4xf32> to vector<256x1xf32>
    %161 = vector.broadcast %160 : vector<256x1xf32> to vector<256x128xf32>
    %162 = arith.mulf %161, %121 : vector<256x128xf32>
    %cst_85 = arith.constant dense<0.000000e+00> : vector<128xf32>
    %163 = vector.multi_reduction <add>, %162, %cst_85 [0] : vector<256x128xf32> to vector<128xf32>
    %164 = vector.shape_cast %163 : vector<128xf32> to vector<1x128xf32>
    %165 = vector.extract_strided_slice %154 {offsets = [0, 2], sizes = [256, 1], strides = [1, 1]} : vector<256x4xf32> to vector<256x1xf32>
    %166 = vector.broadcast %165 : vector<256x1xf32> to vector<256x128xf32>
    %167 = arith.mulf %166, %121 : vector<256x128xf32>
    %cst_86 = arith.constant dense<0.000000e+00> : vector<128xf32>
    %168 = vector.multi_reduction <add>, %167, %cst_86 [0] : vector<256x128xf32> to vector<128xf32>
    %169 = vector.shape_cast %168 : vector<128xf32> to vector<1x128xf32>
    %170 = vector.extract_strided_slice %154 {offsets = [0, 3], sizes = [256, 1], strides = [1, 1]} : vector<256x4xf32> to vector<256x1xf32>
    %171 = vector.broadcast %170 : vector<256x1xf32> to vector<256x128xf32>
    %172 = arith.mulf %171, %121 : vector<256x128xf32>
    %cst_87 = arith.constant dense<0.000000e+00> : vector<128xf32>
    %173 = vector.multi_reduction <add>, %172, %cst_87 [0] : vector<256x128xf32> to vector<128xf32>
    %174 = vector.shape_cast %173 : vector<128xf32> to vector<1x128xf32>
    %175 = tpu.concatenate %159, %164, %169, %174 in 0 : vector<1x128xf32>, vector<1x128xf32>, vector<1x128xf32>, vector<1x128xf32> -> vector<4x128xf32>
    %176 = arith.truncf %175 : vector<4x128xf32> to vector<4x128xbf16>
    %c0_88 = arith.constant 0 : index
    %c0_89 = arith.constant 0 : index
    %177 = vector.load %arg8[%c0_88, %c0_89] : memref<128x128xbf16, #tpu.memory_space<vmem>>, vector<128x128xbf16>
    %cst_90 = arith.constant dense<0.000000e+00> : vector<4x128xf32>
    %178 = tpu.matmul %176, %177, %cst_90 {dimension_numbers = #tpu.dot_dimension_numbers<[1], [0], [0], [1], [0, 0, 1, 1], [], []>} : vector<4x128xbf16>, vector<128x128xbf16>, vector<4x128xf32> -> vector<4x128xf32>
    %c0_91 = arith.constant 0 : index
    %c0_92 = arith.constant 0 : index
    %179 = vector.load %arg9[%c0_91, %c0_92] : memref<2x128xf32, #tpu.memory_space<vmem>>, vector<1x128xf32>
    %180 = vector.broadcast %179 : vector<1x128xf32> to vector<4x128xf32>
    %181 = arith.mulf %178, %180 : vector<4x128xf32>
    %c1_93 = arith.constant 1 : index
    %c0_94 = arith.constant 0 : index
    %182 = vector.load %arg9[%c1_93, %c0_94] : memref<2x128xf32, #tpu.memory_space<vmem>>, vector<1x128xf32>
    %183 = vector.broadcast %182 : vector<1x128xf32> to vector<4x128xf32>
    %184 = arith.addf %181, %183 : vector<4x128xf32>
    %cst_95 = arith.constant 0.000000e+00 : f32
    %185 = vector.broadcast %cst_95 : f32 to vector<4x128xf32>
    %186 = arith.maximumf %184, %185 : vector<4x128xf32>
    %187 = arith.truncf %186 : vector<4x128xf32> to vector<4x128xbf16>
    %c0_96 = arith.constant 0 : index
    %c0_97 = arith.constant 0 : index
    %188 = vector.load %arg10[%c0_96, %c0_97] : memref<128x128xbf16, #tpu.memory_space<vmem>>, vector<128x128xbf16>
    %cst_98 = arith.constant dense<0.000000e+00> : vector<4x128xf32>
    %189 = tpu.matmul %187, %188, %cst_98 {dimension_numbers = #tpu.dot_dimension_numbers<[1], [0], [0], [1], [0, 0, 1, 1], [], []>} : vector<4x128xbf16>, vector<128x128xbf16>, vector<4x128xf32> -> vector<4x128xf32>
    %c0_99 = arith.constant 0 : index
    %c0_100 = arith.constant 0 : index
    %190 = vector.load %arg11[%c0_99, %c0_100] : memref<2x128xf32, #tpu.memory_space<vmem>>, vector<1x128xf32>
    %191 = vector.broadcast %190 : vector<1x128xf32> to vector<4x128xf32>
    %192 = arith.mulf %189, %191 : vector<4x128xf32>
    %c1_101 = arith.constant 1 : index
    %c0_102 = arith.constant 0 : index
    %193 = vector.load %arg11[%c1_101, %c0_102] : memref<2x128xf32, #tpu.memory_space<vmem>>, vector<1x128xf32>
    %194 = vector.broadcast %193 : vector<1x128xf32> to vector<4x128xf32>
    %195 = arith.addf %192, %194 : vector<4x128xf32>
    %cst_103 = arith.constant 0.000000e+00 : f32
    %196 = vector.broadcast %cst_103 : f32 to vector<4x128xf32>
    %197 = arith.maximumf %195, %196 : vector<4x128xf32>
    %c0_104 = arith.constant 0 : index
    %c0_105 = arith.constant 0 : index
    %198 = vector.load %arg12[%c0_104, %c0_105] : memref<128x128xbf16, #tpu.memory_space<vmem>>, vector<128x128xbf16>
    %cst_106 = arith.constant dense<0.000000e+00> : vector<4x128xf32>
    %199 = tpu.matmul %176, %198, %cst_106 {dimension_numbers = #tpu.dot_dimension_numbers<[1], [0], [0], [1], [0, 0, 1, 1], [], []>} : vector<4x128xbf16>, vector<128x128xbf16>, vector<4x128xf32> -> vector<4x128xf32>
    %c0_107 = arith.constant 0 : index
    %c0_108 = arith.constant 0 : index
    %200 = vector.load %arg13[%c0_107, %c0_108] : memref<2x128xf32, #tpu.memory_space<vmem>>, vector<1x128xf32>
    %201 = vector.broadcast %200 : vector<1x128xf32> to vector<4x128xf32>
    %202 = arith.mulf %199, %201 : vector<4x128xf32>
    %c1_109 = arith.constant 1 : index
    %c0_110 = arith.constant 0 : index
    %203 = vector.load %arg13[%c1_109, %c0_110] : memref<2x128xf32, #tpu.memory_space<vmem>>, vector<1x128xf32>
    %204 = vector.broadcast %203 : vector<1x128xf32> to vector<4x128xf32>
    %205 = arith.addf %202, %204 : vector<4x128xf32>
    %cst_111 = arith.constant 0.000000e+00 : f32
    %206 = vector.broadcast %cst_111 : f32 to vector<4x128xf32>
    %207 = arith.maximumf %205, %206 : vector<4x128xf32>
    %208 = arith.truncf %197 : vector<4x128xf32> to vector<4x128xbf16>
    %c0_112 = arith.constant 0 : index
    %c0_113 = arith.constant 0 : index
    %c0_114 = arith.constant 0 : index
    %209 = vector.load %arg16[%c0_112, %c0_113, %c0_114] : memref<1x4x128xbf16, #tpu.memory_space<vmem>>, vector<1x4x128xbf16>
    %210 = vector.shape_cast %209 : vector<1x4x128xbf16> to vector<4x128xbf16>
    %211 = vector.shape_cast %208 : vector<4x128xbf16> to vector<1x4x128xbf16>
    tpu.vector_store %arg16[%c0_112, %c0_113, %c0_114], %211 {strides = array<i32>} : memref<1x4x128xbf16, #tpu.memory_space<vmem>>, vector<1x4x128xbf16>,
    %212 = arith.truncf %207 : vector<4x128xf32> to vector<4x128xbf16>
    %c0_115 = arith.constant 0 : index
    %c0_116 = arith.constant 0 : index
    %c0_117 = arith.constant 0 : index
    %213 = vector.load %arg17[%c0_115, %c0_116, %c0_117] : memref<1x4x128xbf16, #tpu.memory_space<vmem>>, vector<1x4x128xbf16>
    %214 = vector.shape_cast %213 : vector<1x4x128xbf16> to vector<4x128xbf16>
    %215 = vector.shape_cast %212 : vector<4x128xbf16> to vector<1x4x128xbf16>
    tpu.vector_store %arg17[%c0_115, %c0_116, %c0_117], %215 {strides = array<i32>} : memref<1x4x128xbf16, #tpu.memory_space<vmem>>, vector<1x4x128xbf16>,
    return
  }
  func.func @transform_0(%arg0: i32) -> (i32, i32, i32) {
    %c0_i32 = arith.constant 0 : i32
    %c0_i32_0 = arith.constant 0 : i32
    %c0_i32_1 = arith.constant 0 : i32
    return %arg0, %c0_i32, %c0_i32_0 : i32, i32, i32
  }
  func.func @transform_1(%arg0: i32) -> (i32, i32, i32) {
    %c0_i32 = arith.constant 0 : i32
    %c0_i32_0 = arith.constant 0 : i32
    %c0_i32_1 = arith.constant 0 : i32
    %c0_i32_2 = arith.constant 0 : i32
    return %c0_i32, %c0_i32_0, %c0_i32_1 : i32, i32, i32
  }
  func.func @transform_2(%arg0: i32) -> (i32, i32) {
    %c0_i32 = arith.constant 0 : i32
    %c0_i32_0 = arith.constant 0 : i32
    %c0_i32_1 = arith.constant 0 : i32
    return %c0_i32, %c0_i32_0 : i32, i32
  }
  func.func @transform_3(%arg0: i32) -> (i32, i32) {
    %c0_i32 = arith.constant 0 : i32
    %c0_i32_0 = arith.constant 0 : i32
    %c0_i32_1 = arith.constant 0 : i32
    return %c0_i32, %c0_i32_0 : i32, i32
  }
  func.func @transform_4(%arg0: i32) -> (i32, i32) {
    %c0_i32 = arith.constant 0 : i32
    %c0_i32_0 = arith.constant 0 : i32
    %c0_i32_1 = arith.constant 0 : i32
    return %c0_i32, %c0_i32_0 : i32, i32
  }
  func.func @transform_5(%arg0: i32) -> (i32, i32) {
    %c0_i32 = arith.constant 0 : i32
    %c0_i32_0 = arith.constant 0 : i32
    %c0_i32_1 = arith.constant 0 : i32
    return %c0_i32, %c0_i32_0 : i32, i32
  }
  func.func @transform_6(%arg0: i32) -> (i32, i32) {
    %c0_i32 = arith.constant 0 : i32
    %c0_i32_0 = arith.constant 0 : i32
    %c0_i32_1 = arith.constant 0 : i32
    return %c0_i32, %c0_i32_0 : i32, i32
  }
  func.func @transform_7(%arg0: i32) -> (i32, i32) {
    %c0_i32 = arith.constant 0 : i32
    %c0_i32_0 = arith.constant 0 : i32
    %c0_i32_1 = arith.constant 0 : i32
    return %c0_i32, %c0_i32_0 : i32, i32
  }
  func.func @transform_8(%arg0: i32) -> (i32, i32) {
    %c0_i32 = arith.constant 0 : i32
    %c0_i32_0 = arith.constant 0 : i32
    %c0_i32_1 = arith.constant 0 : i32
    return %c0_i32, %c0_i32_0 : i32, i32
  }
  func.func @transform_9(%arg0: i32) -> (i32, i32) {
    %c0_i32 = arith.constant 0 : i32
    %c0_i32_0 = arith.constant 0 : i32
    %c0_i32_1 = arith.constant 0 : i32
    return %c0_i32, %c0_i32_0 : i32, i32
  }
  func.func @transform_10(%arg0: i32) -> (i32, i32) {
    %c0_i32 = arith.constant 0 : i32
    %c0_i32_0 = arith.constant 0 : i32
    %c0_i32_1 = arith.constant 0 : i32
    return %c0_i32, %c0_i32_0 : i32, i32
  }
  func.func @transform_11(%arg0: i32) -> (i32, i32) {
    %c0_i32 = arith.constant 0 : i32
    %c0_i32_0 = arith.constant 0 : i32
    %c0_i32_1 = arith.constant 0 : i32
    return %c0_i32, %c0_i32_0 : i32, i32
  }
  func.func @transform_12(%arg0: i32) -> (i32, i32) {
    %c0_i32 = arith.constant 0 : i32
    %c0_i32_0 = arith.constant 0 : i32
    %c0_i32_1 = arith.constant 0 : i32
    return %c0_i32, %c0_i32_0 : i32, i32
  }
  func.func @transform_13(%arg0: i32) -> (i32, i32, i32) {
    %c0_i32 = arith.constant 0 : i32
    %c0_i32_0 = arith.constant 0 : i32
    %c0_i32_1 = arith.constant 0 : i32
    return %arg0, %c0_i32, %c0_i32_0 : i32, i32, i32
  }
  func.func @transform_14(%arg0: i32) -> (i32, i32, i32) {
    %c0_i32 = arith.constant 0 : i32
    %c0_i32_0 = arith.constant 0 : i32
    %c0_i32_1 = arith.constant 0 : i32
    return %arg0, %c0_i32, %c0_i32_0 : i32, i32, i32
  }
  func.func @transform_15(%arg0: i32) -> (i32, i32, i32) {
    %c0_i32 = arith.constant 0 : i32
    %c0_i32_0 = arith.constant 0 : i32
    %c0_i32_1 = arith.constant 0 : i32
    return %arg0, %c0_i32, %c0_i32_0 : i32, i32, i32
  }
  func.func @transform_16(%arg0: i32) -> (i32, i32, i32) {
    %c0_i32 = arith.constant 0 : i32
    %c0_i32_0 = arith.constant 0 : i32
    %c0_i32_1 = arith.constant 0 : i32
    return %arg0, %c0_i32, %c0_i32_0 : i32, i32, i32
  }
}

</mosaic_0001>

<llo_original>
// kernel: ocrnet_forward.3
$region0: #{ocrnet_forward.3}
  #allocation0 [shape = 'u32[]', space=smem, size = 0x4, offset = 0x4, fixed_abs, tag = 'smem constant byte address 0x4 - core index']
  #allocation1 [shape = 'u32[144,128]{1,0:T(1,128)}', space=vmem, size = 0x12000, scoped, tag = 'internal scratch']
  %s0 = inlined_call_operand.vmem [shape: bf16[2,256,128], index: 0, kind: input, shape index: {}]
  %s1 = inlined_call_operand.vmem [shape: bf16[2,4,128], index: 1, kind: input, shape index: {}]
  %s2 = inlined_call_operand.vmem [shape: bf16[2,4,128], index: 2, kind: input, shape index: {}]
  %s3 = inlined_call_operand.vmem [shape: bf16[128,128], index: 3, kind: input, shape index: {}]
  %s4 = inlined_call_operand.vmem [shape: f32[2,128], index: 4, kind: input, shape index: {}]
  %s5 = inlined_call_operand.vmem [shape: bf16[128,128], index: 5, kind: input, shape index: {}]
  %s6 = inlined_call_operand.vmem [shape: f32[2,128], index: 6, kind: input, shape index: {}]
  %s7 = inlined_call_operand.vmem [shape: bf16[128,128], index: 7, kind: input, shape index: {}]
  %s8 = inlined_call_operand.vmem [shape: f32[2,128], index: 8, kind: input, shape index: {}]
  %s9 = inlined_call_operand.vmem [shape: bf16[128,128], index: 9, kind: input, shape index: {}]
  %s10 = inlined_call_operand.vmem [shape: bf16[128,128], index: 10, kind: input, shape index: {}]
  %s11 = inlined_call_operand.vmem [shape: f32[2,128], index: 11, kind: input, shape index: {}]
  %s12 = inlined_call_operand.vmem [shape: bf16[128,4], index: 12, kind: input, shape index: {}]
  %s13 = inlined_call_operand.vmem [shape: f32[1,4], index: 13, kind: input, shape index: {}]
  %s14 = inlined_call_operand.vmem [shape: f32[2,256,4], index: 14, kind: output, shape index: {}]
  %s15 = sld [smem:[#allocation0]]
  $region89: #{ocrnet_forward.3} parent=0
    _
  %s17 = ssub.s32 1, %s15
  %s18 = scalar_select 0, %s17, %s15
  loop: start=0, step=1, limit=4
  $region2: #{ocrnet_forward.3} parent=0 // loop_pre_header
    _
  $region3: #{ocrnet_forward.3} parent=0 // loop_header
    %s20 = sphi 0, %s24
    %p21 = scmp.ge.s32.totalorder %s20, 4
    %s27 = sphi 0, %s39
    %s28 = sphi 0, %s35
    %s29 = sphi 0, %s27
    %s30 = sphi 0, %s28
    %s31 = sphi 0, %s29
    %s32 = sphi 0, %s30
    %s44 = sphi 0, %s46
    %s47 = sphi 0, %s44
    %s48 = sphi 0, %s47
    %s64 = sphi 0, %s48
    %s70 = sphi 0, %s72
    %s73 = sphi 0, %s70
    %s74 = sphi 0, %s73
    %s90 = sphi 0, %s74
    %s96 = sphi 0, %s98
    %s99 = sphi 0, %s96
    %s100 = sphi 0, %s99
    %s116 = sphi 0, %s100
    %s120 = sphi 0, %s120
    %s122 = sphi 0, %s120
    %s123 = sphi 0, %s122
    %s137 = sphi 0, %s123
    %s141 = sphi 0, %s141
    %s143 = sphi 0, %s141
    %s144 = sphi 0, %s143
    %s158 = sphi 0, %s144
    %s162 = sphi 0, %s162
    %s164 = sphi 0, %s162
    %s165 = sphi 0, %s164
    %s179 = sphi 0, %s165
    %s183 = sphi 0, %s183
    %s185 = sphi 0, %s183
    %s186 = sphi 0, %s185
    %s200 = sphi 0, %s186
    %s204 = sphi 0, %s204
    %s206 = sphi 0, %s204
    %s207 = sphi 0, %s206
    %s221 = sphi 0, %s207
    %s225 = sphi 0, %s225
    %s227 = sphi 0, %s225
    %s228 = sphi 0, %s227
    %s242 = sphi 0, %s228
    %s246 = sphi 0, %s246
    %s248 = sphi 0, %s246
    %s249 = sphi 0, %s248
    %s263 = sphi 0, %s249
    %s267 = sphi 0, %s267
    %s269 = sphi 0, %s267
    %s270 = sphi 0, %s269
    %s284 = sphi 0, %s270
    %s288 = sphi 0, %s288
    %s290 = sphi 0, %s288
    %s291 = sphi 0, %s290
    %s305 = sphi 0, %s291
    %s309 = sphi 0, %s309
    %s311 = sphi 0, %s309
    %s312 = sphi 0, %s311
    %s326 = sphi 0, %s312
    %s330 = sphi 0, %s330
    %s332 = sphi 0, %s330
    %s333 = sphi 0, %s332
    %s347 = sphi 0, %s333
    %s355 = sphi 0, %s357
    %s358 = sphi 0, %s355
    %s359 = sphi 0, %s358
    %s375 = sphi 0, %s359
  $region4: #{ocrnet_forward.3} parent=0 // loop_header_branch
    %23 = sbr.rel (%p21) target = $region8
  $region5: #{ocrnet_forward.3} parent=0 // loop_body
    %s25 = ssub.s32 %s20, 1
    %s26 = ssub.s32 %s20, 2
    %s33 = sadd.s32 1, %s28
    %p34 = scmp.ge.s32.totalorder %s33, 1
    %s35 = scalar_select %p34, 0, %s33
    %s36 = sadd.s32 1, %s27
    %s37 = scalar_select %p34, %s36, %s27
    %p38 = scmp.ge.s32.totalorder %s37, 2
    %s39 = scalar_select %p38, 0, %s37
    %s40 = ssub.s32 %s27, %s39
    %s41 = ssub.s32 %s28, %s35
    %s42 = sor.u32 %s40, %s41
    %p43 = scmp.eq.s32.totalorder %s42, 0
    %s45 = sadd.s32 %s44, 1
    %s46 = scalar_select %p43, %s44, %s45
    %p49 = pneg %p43
    %p50 = scmp.eq.s32.totalorder %s20, 1
    %p51 = por %p49, %p50
    %p52 = scmp.ne.s32.totalorder %s44, %s47
    %p53 = scmp.eq.s32.totalorder %s20, 0
    %p54 = por %p52, %p53
    %p55 = scmp.ne.s32.totalorder %s44, %s47
    %p56 = scmp.eq.s32.totalorder %s25, 1
    %p57 = por %p55, %p56
    %p58 = scmp.ne.s32.totalorder %s47, %s48
    %p59 = scmp.eq.s32.totalorder %s25, 0
    %p60 = por %p58, %p59
    %p61 = scmp.ne.s32.totalorder %s47, %s48
    %p62 = scmp.eq.s32.totalorder %s26, 1
    %p63 = por %p61, %p62
    %p65 = scmp.ne.s32.totalorder %s48, %s64
    %p66 = scmp.eq.s32.totalorder %s26, 0
    %p67 = por %p65, %p66
    %s68 = ssub.s32 %s27, %s39
    %p69 = scmp.eq.s32.totalorder %s68, 0
    %s71 = sadd.s32 %s70, 1
    %s72 = scalar_select %p69, %s70, %s71
    %p75 = pneg %p69
    %p76 = scmp.eq.s32.totalorder %s20, 1
    %p77 = por %p75, %p76
    %p78 = scmp.ne.s32.totalorder %s70, %s73
    %p79 = scmp.eq.s32.totalorder %s20, 0
    %p80 = por %p78, %p79
    %p81 = scmp.ne.s32.totalorder %s70, %s73
    %p82 = scmp.eq.s32.totalorder %s25, 1
    %p83 = por %p81, %p82
    %p84 = scmp.ne.s32.totalorder %s73, %s74
    %p85 = scmp.eq.s32.totalorder %s25, 0
    %p86 = por %p84, %p85
    %p87 = scmp.ne.s32.totalorder %s73, %s74
    %p88 = scmp.eq.s32.totalorder %s26, 1
    %p89 = por %p87, %p88
    %p91 = scmp.ne.s32.totalorder %s74, %s90
    %p92 = scmp.eq.s32.totalorder %s26, 0
    %p93 = por %p91, %p92
    %s94 = ssub.s32 %s27, %s39
    %p95 = scmp.eq.s32.totalorder %s94, 0
    %s97 = sadd.s32 %s96, 1
    %s98 = scalar_select %p95, %s96, %s97
    %p101 = pneg %p95
    %p102 = scmp.eq.s32.totalorder %s20, 1
    %p103 = por %p101, %p102
    %p104 = scmp.ne.s32.totalorder %s96, %s99
    %p105 = scmp.eq.s32.totalorder %s20, 0
    %p106 = por %p104, %p105
    %p107 = scmp.ne.s32.totalorder %s96, %s99
    %p108 = scmp.eq.s32.totalorder %s25, 1
    %p109 = por %p107, %p108
    %p110 = scmp.ne.s32.totalorder %s99, %s100
    %p111 = scmp.eq.s32.totalorder %s25, 0
    %p112 = por %p110, %p111
    %p113 = scmp.ne.s32.totalorder %s99, %s100
    %p114 = scmp.eq.s32.totalorder %s26, 1
    %p115 = por %p113, %p114
    %p117 = scmp.ne.s32.totalorder %s100, %s116
    %p118 = scmp.eq.s32.totalorder %s26, 0
    %p119 = por %p117, %p118
    %s121 = sadd.s32 %s120, 1
    %p124 = scmp.eq.s32.totalorder %s20, 1
    %p125 = scmp.ne.s32.totalorder %s120, %s122
    %p126 = scmp.eq.s32.totalorder %s20, 0
    %p127 = por %p125, %p126
    %p128 = scmp.ne.s32.totalorder %s120, %s122
    %p129 = scmp.eq.s32.totalorder %s25, 1
    %p130 = por %p128, %p129
    %p131 = scmp.ne.s32.totalorder %s122, %s123
    %p132 = scmp.eq.s32.totalorder %s25, 0
    %p133 = por %p131, %p132
    %p134 = scmp.ne.s32.totalorder %s122, %s123
    %p135 = scmp.eq.s32.totalorder %s26, 1
    %p136 = por %p134, %p135
    %p138 = scmp.ne.s32.totalorder %s123, %s137
    %p139 = scmp.eq.s32.totalorder %s26, 0
    %p140 = por %p138, %p139
    %s142 = sadd.s32 %s141, 1
    %p145 = scmp.eq.s32.totalorder %s20, 1
    %p146 = scmp.ne.s32.totalorder %s141, %s143
    %p147 = scmp.eq.s32.totalorder %s20, 0
    %p148 = por %p146, %p147
    %p149 = scmp.ne.s32.totalorder %s141, %s143
    %p150 = scmp.eq.s32.totalorder %s25, 1
    %p151 = por %p149, %p150
    %p152 = scmp.ne.s32.totalorder %s143, %s144
    %p153 = scmp.eq.s32.totalorder %s25, 0
    %p154 = por %p152, %p153
    %p155 = scmp.ne.s32.totalorder %s143, %s144
    %p156 = scmp.eq.s32.totalorder %s26, 1
    %p157 = por %p155, %p156
    %p159 = scmp.ne.s32.totalorder %s144, %s158
    %p160 = scmp.eq.s32.totalorder %s26, 0
    %p161 = por %p159, %p160
    %s163 = sadd.s32 %s162, 1
    %p166 = scmp.eq.s32.totalorder %s20, 1
    %p167 = scmp.ne.s32.totalorder %s162, %s164
    %p168 = scmp.eq.s32.totalorder %s20, 0
    %p169 = por %p167, %p168
    %p170 = scmp.ne.s32.totalorder %s162, %s164
    %p171 = scmp.eq.s32.totalorder %s25, 1
    %p172 = por %p170, %p171
    %p173 = scmp.ne.s32.totalorder %s164, %s165
    %p174 = scmp.eq.s32.totalorder %s25, 0
    %p175 = por %p173, %p174
    %p176 = scmp.ne.s32.totalorder %s164, %s165
    %p177 = scmp.eq.s32.totalorder %s26, 1
    %p178 = por %p176, %p177
    %p180 = scmp.ne.s32.totalorder %s165, %s179
    %p181 = scmp.eq.s32.totalorder %s26, 0
    %p182 = por %p180, %p181
    %s184 = sadd.s32 %s183, 1
    %p187 = scmp.eq.s32.totalorder %s20, 1
    %p188 = scmp.ne.s32.totalorder %s183, %s185
    %p189 = scmp.eq.s32.totalorder %s20, 0
    %p190 = por %p188, %p189
    %p191 = scmp.ne.s32.totalorder %s183, %s185
    %p192 = scmp.eq.s32.totalorder %s25, 1
    %p193 = por %p191, %p192
    %p194 = scmp.ne.s32.totalorder %s185, %s186
    %p195 = scmp.eq.s32.totalorder %s25, 0
    %p196 = por %p194, %p195
    %p197 = scmp.ne.s32.totalorder %s185, %s186
    %p198 = scmp.eq.s32.totalorder %s26, 1
    %p199 = por %p197, %p198
    %p201 = scmp.ne.s32.totalorder %s186, %s200
    %p202 = scmp.eq.s32.totalorder %s26, 0
    %p203 = por %p201, %p202
    %s205 = sadd.s32 %s204, 1
    %p208 = scmp.eq.s32.totalorder %s20, 1
    %p209 = scmp.ne.s32.totalorder %s204, %s206
    %p210 = scmp.eq.s32.totalorder %s20, 0
    %p211 = por %p209, %p210
    %p212 = scmp.ne.s32.totalorder %s204, %s206
    %p213 = scmp.eq.s32.totalorder %s25, 1
    %p214 = por %p212, %p213
    %p215 = scmp.ne.s32.totalorder %s206, %s207
    %p216 = scmp.eq.s32.totalorder %s25, 0
    %p217 = por %p215, %p216
    %p218 = scmp.ne.s32.totalorder %s206, %s207
    %p219 = scmp.eq.s32.totalorder %s26, 1
    %p220 = por %p218, %p219
    %p222 = scmp.ne.s32.totalorder %s207, %s221
    %p223 = scmp.eq.s32.totalorder %s26, 0
    %p224 = por %p222, %p223
    %s226 = sadd.s32 %s225, 1
    %p229 = scmp.eq.s32.totalorder %s20, 1
    %p230 = scmp.ne.s32.totalorder %s225, %s227
    %p231 = scmp.eq.s32.totalorder %s20, 0
    %p232 = por %p230, %p231
    %p233 = scmp.ne.s32.totalorder %s225, %s227
    %p234 = scmp.eq.s32.totalorder %s25, 1
    %p235 = por %p233, %p234
    %p236 = scmp.ne.s32.totalorder %s227, %s228
    %p237 = scmp.eq.s32.totalorder %s25, 0
    %p238 = por %p236, %p237
    %p239 = scmp.ne.s32.totalorder %s227, %s228
    %p240 = scmp.eq.s32.totalorder %s26, 1
    %p241 = por %p239, %p240
    %p243 = scmp.ne.s32.totalorder %s228, %s242
    %p244 = scmp.eq.s32.totalorder %s26, 0
    %p245 = por %p243, %p244
    %s247 = sadd.s32 %s246, 1
    %p250 = scmp.eq.s32.totalorder %s20, 1
    %p251 = scmp.ne.s32.totalorder %s246, %s248
    %p252 = scmp.eq.s32.totalorder %s20, 0
    %p253 = por %p251, %p252
    %p254 = scmp.ne.s32.totalorder %s246, %s248
    %p255 = scmp.eq.s32.totalorder %s25, 1
    %p256 = por %p254, %p255
    %p257 = scmp.ne.s32.totalorder %s248, %s249
    %p258 = scmp.eq.s32.totalorder %s25, 0
    %p259 = por %p257, %p258
    %p260 = scmp.ne.s32.totalorder %s248, %s249
    %p261 = scmp.eq.s32.totalorder %s26, 1
    %p262 = por %p260, %p261
    %p264 = scmp.ne.s32.totalorder %s249, %s263
    %p265 = scmp.eq.s32.totalorder %s26, 0
    %p266 = por %p264, %p265
    %s268 = sadd.s32 %s267, 1
    %p271 = scmp.eq.s32.totalorder %s20, 1
    %p272 = scmp.ne.s32.totalorder %s267, %s269
    %p273 = scmp.eq.s32.totalorder %s20, 0
    %p274 = por %p272, %p273
    %p275 = scmp.ne.s32.totalorder %s267, %s269
    %p276 = scmp.eq.s32.totalorder %s25, 1
    %p277 = por %p275, %p276
    %p278 = scmp.ne.s32.totalorder %s269, %s270
    %p279 = scmp.eq.s32.totalorder %s25, 0
    %p280 = por %p278, %p279
    %p281 = scmp.ne.s32.totalorder %s269, %s270
    %p282 = scmp.eq.s32.totalorder %s26, 1
    %p283 = por %p281, %p282
    %p285 = scmp.ne.s32.totalorder %s270, %s284
    %p286 = scmp.eq.s32.totalorder %s26, 0
    %p287 = por %p285, %p286
    %s289 = sadd.s32 %s288, 1
    %p292 = scmp.eq.s32.totalorder %s20, 1
    %p293 = scmp.ne.s32.totalorder %s288, %s290
    %p294 = scmp.eq.s32.totalorder %s20, 0
    %p295 = por %p293, %p294
    %p296 = scmp.ne.s32.totalorder %s288, %s290
    %p297 = scmp.eq.s32.totalorder %s25, 1
    %p298 = por %p296, %p297
    %p299 = scmp.ne.s32.totalorder %s290, %s291
    %p300 = scmp.eq.s32.totalorder %s25, 0
    %p301 = por %p299, %p300
    %p302 = scmp.ne.s32.totalorder %s290, %s291
    %p303 = scmp.eq.s32.totalorder %s26, 1
    %p304 = por %p302, %p303
    %p306 = scmp.ne.s32.totalorder %s291, %s305
    %p307 = scmp.eq.s32.totalorder %s26, 0
    %p308 = por %p306, %p307
    %s310 = sadd.s32 %s309, 1
    %p313 = scmp.eq.s32.totalorder %s20, 1
    %p314 = scmp.ne.s32.totalorder %s309, %s311
    %p315 = scmp.eq.s32.totalorder %s20, 0
    %p316 = por %p314, %p315
    %p317 = scmp.ne.s32.totalorder %s309, %s311
    %p318 = scmp.eq.s32.totalorder %s25, 1
    %p319 = por %p317, %p318
    %p320 = scmp.ne.s32.totalorder %s311, %s312
    %p321 = scmp.eq.s32.totalorder %s25, 0
    %p322 = por %p320, %p321
    %p323 = scmp.ne.s32.totalorder %s311, %s312
    %p324 = scmp.eq.s32.totalorder %s26, 1
    %p325 = por %p323, %p324
    %p327 = scmp.ne.s32.totalorder %s312, %s326
    %p328 = scmp.eq.s32.totalorder %s26, 0
    %p329 = por %p327, %p328
    %s331 = sadd.s32 %s330, 1
    %p334 = scmp.eq.s32.totalorder %s20, 1
    %p335 = scmp.ne.s32.totalorder %s330, %s332
    %p336 = scmp.eq.s32.totalorder %s20, 0
    %p337 = por %p335, %p336
    %p338 = scmp.ne.s32.totalorder %s330, %s332
    %p339 = scmp.eq.s32.totalorder %s25, 1
    %p340 = por %p338, %p339
    %p341 = scmp.ne.s32.totalorder %s332, %s333
    %p342 = scmp.eq.s32.totalorder %s25, 0
    %p343 = por %p341, %p342
    %p344 = scmp.ne.s32.totalorder %s332, %s333
    %p345 = scmp.eq.s32.totalorder %s26, 1
    %p346 = por %p344, %p345
    %p348 = scmp.ne.s32.totalorder %s333, %s347
    %p349 = scmp.eq.s32.totalorder %s26, 0
    %p350 = por %p348, %p349
    %s351 = ssub.s32 %s27, %s39
    %s352 = ssub.s32 %s28, %s35
    %s353 = sor.u32 %s351, %s352
    %p354 = scmp.eq.s32.totalorder %s353, 0
    %s356 = sadd.s32 %s355, 1
    %s357 = scalar_select %p354, %s355, %s356
    %p360 = pneg %p354
    %p361 = scmp.eq.s32.totalorder %s20, 1
    %p362 = por %p360, %p361
    %p363 = scmp.ne.s32.totalorder %s355, %s358
    %p364 = scmp.eq.s32.totalorder %s20, 0
    %p365 = por %p363, %p364
    %p366 = scmp.ne.s32.totalorder %s355, %s358
    %p367 = scmp.eq.s32.totalorder %s25, 1
    %p368 = por %p366, %p367
    %p369 = scmp.ne.s32.totalorder %s358, %s359
    %p370 = scmp.eq.s32.totalorder %s25, 0
    %p371 = por %p369, %p370
    %p372 = scmp.ne.s32.totalorder %s358, %s359
    %p373 = scmp.eq.s32.totalorder %s26, 1
    %p374 = por %p372, %p373
    %p376 = scmp.ne.s32.totalorder %s359, %s375
    %p377 = scmp.eq.s32.totalorder %s26, 0
    %p378 = por %p376, %p377
    %p379 = scmp.le.s32.totalorder 1, %s20
    %p380 = scmp.lt.s32.totalorder %s20, 3
    %p381 = pnand %p379, %p380
    %p382 = pneg %p381
    // Predicated region
    $region9: #{ocrnet_forward.3} parent=5 // pred_check
      _
    $region10: #{ocrnet_forward.3} parent=5 // pred_check_branch
      %384 = sbr.rel (%p381) target = $region12
    $region11: #{ocrnet_forward.3} parent=5 // pred_region
      %s385 = ssub.s32 %s20, 1
      // Predicated region
      $region13: #{ocrnet_forward.3} parent=11 // pred_check
        %p386 = pneg %p133
      $region14: #{ocrnet_forward.3} parent=11 // pred_check_branch
        %388 = sbr.rel (%p386) target = $region16
      $region15: #{ocrnet_forward.3} parent=11 // pred_region
        _
      $region16: #{ocrnet_forward.3} parent=11 // pred_fallthru
        _
      // Predicated region
      $region17: #{ocrnet_forward.3} parent=11 // pred_check
        %p389 = pneg %p154
      $region18: #{ocrnet_forward.3} parent=11 // pred_check_branch
        %391 = sbr.rel (%p389) target = $region20
      $region19: #{ocrnet_forward.3} parent=11 // pred_region
        _
      $region20: #{ocrnet_forward.3} parent=11 // pred_fallthru
        _
      // Predicated region
      $region21: #{ocrnet_forward.3} parent=11 // pred_check
        %p392 = pneg %p175
      $region22: #{ocrnet_forward.3} parent=11 // pred_check_branch
        %394 = sbr.rel (%p392) target = $region24
      $region23: #{ocrnet_forward.3} parent=11 // pred_region
        _
      $region24: #{ocrnet_forward.3} parent=11 // pred_fallthru
        _
      // Predicated region
      $region25: #{ocrnet_forward.3} parent=11 // pred_check
        %p395 = pneg %p196
      $region26: #{ocrnet_forward.3} parent=11 // pred_check_branch
        %397 = sbr.rel (%p395) target = $region28
      $region27: #{ocrnet_forward.3} parent=11 // pred_region
        _
      $region28: #{ocrnet_forward.3} parent=11 // pred_fallthru
        _
      // Predicated region
      $region29: #{ocrnet_forward.3} parent=11 // pred_check
        %p398 = pneg %p217
      $region30: #{ocrnet_forward.3} parent=11 // pred_check_branch
        %400 = sbr.rel (%p398) target = $region32
      $region31: #{ocrnet_forward.3} parent=11 // pred_region
        _
      $region32: #{ocrnet_forward.3} parent=11 // pred_fallthru
        _
      // Predicated region
      $region33: #{ocrnet_forward.3} parent=11 // pred_check
        %p401 = pneg %p238
      $region34: #{ocrnet_forward.3} parent=11 // pred_check_branch
        %403 = sbr.rel (%p401) target = $region36
      $region35: #{ocrnet_forward.3} parent=11 // pred_region
        _
      $region36: #{ocrnet_forward.3} parent=11 // pred_fallthru
        _
      // Predicated region
      $region37: #{ocrnet_forward.3} parent=11 // pred_check
        %p404 = pneg %p259
      $region38: #{ocrnet_forward.3} parent=11 // pred_check_branch
        %406 = sbr.rel (%p404) target = $region40
      $region39: #{ocrnet_forward.3} parent=11 // pred_region
        _
      $region40: #{ocrnet_forward.3} parent=11 // pred_fallthru
        _
      // Predicated region
      $region41: #{ocrnet_forward.3} parent=11 // pred_check
        %p407 = pneg %p280
      $region42: #{ocrnet_forward.3} parent=11 // pred_check_branch
        %409 = sbr.rel (%p407) target = $region44
      $region43: #{ocrnet_forward.3} parent=11 // pred_region
        _
      $region44: #{ocrnet_forward.3} parent=11 // pred_fallthru
        _
      // Predicated region
      $region45: #{ocrnet_forward.3} parent=11 // pred_check
        %p410 = pneg %p301
      $region46: #{ocrnet_forward.3} parent=11 // pred_check_branch
        %412 = sbr.rel (%p410) target = $region48
      $region47: #{ocrnet_forward.3} parent=11 // pred_region
        _
      $region48: #{ocrnet_forward.3} parent=11 // pred_fallthru
        _
      // Predicated region
      $region49: #{ocrnet_forward.3} parent=11 // pred_check
        %p413 = pneg %p322
      $region50: #{ocrnet_forward.3} parent=11 // pred_check_branch
        %415 = sbr.rel (%p413) target = $region52
      $region51: #{ocrnet_forward.3} parent=11 // pred_region
        _
      $region52: #{ocrnet_forward.3} parent=11 // pred_fallthru
        _
      // Predicated region
      $region53: #{ocrnet_forward.3} parent=11 // pred_check
        %p416 = pneg %p343
      $region54: #{ocrnet_forward.3} parent=11 // pred_check_branch
        %418 = sbr.rel (%p416) target = $region56
      $region55: #{ocrnet_forward.3} parent=11 // pred_region
        _
      $region56: #{ocrnet_forward.3} parent=11 // pred_fallthru
        _
    $region12: #{ocrnet_forward.3} parent=5 // pred_fallthru
      _
    %p419 = scmp.lt.s32.totalorder %s20, 2
    // Predicated region
    $region57: #{ocrnet_forward.3} parent=5 // pred_check
      %p420 = pneg %p419
    $region58: #{ocrnet_forward.3} parent=5 // pred_check_branch
      %422 = sbr.rel (%p420) target = $region60
    $region59: #{ocrnet_forward.3} parent=5 // pred_region
      // Predicated region
      $region61: #{ocrnet_forward.3} parent=59 // pred_check
        %p423 = pneg %p54
      $region62: #{ocrnet_forward.3} parent=59 // pred_check_branch
        %425 = sbr.rel (%p423) target = $region64
      $region63: #{ocrnet_forward.3} parent=59 // pred_region
        %s426 = smul.u32 32, %s28
        %p427 = scmp.lt.s32.totalorder %s27, 1
        %s428 = scalar_select %p427, %s27, 1
        %p429 = scmp.lt.s32.totalorder %s426, 31
        %s430 = scalar_select %p429, %s426, 31
        %s431 = smul.addr %s428, 32
        %s432 = sadd.s32 %s430, %s431
        %s433 = smul.addr %s432, 4
        %s434 = scalar_lea.vmem %s0, %s433
        %s435 = smul.u32 32, %s28
      $region64: #{ocrnet_forward.3} parent=59 // pred_fallthru
        _
      // Predicated region
      $region65: #{ocrnet_forward.3} parent=59 // pred_check
        %p436 = pneg %p80
      $region66: #{ocrnet_forward.3} parent=59 // pred_check_branch
        %438 = sbr.rel (%p436) target = $region68
      $region67: #{ocrnet_forward.3} parent=59 // pred_region
        %p439 = scmp.lt.s32.totalorder %s27, 1
        %s440 = scalar_select %p439, %s27, 1
        %s441 = smul.addr %s440, 2
        %s442 = scalar_lea.vmem %s1, %s441
      $region68: #{ocrnet_forward.3} parent=59 // pred_fallthru
        _
      // Predicated region
      $region69: #{ocrnet_forward.3} parent=59 // pred_check
        %p443 = pneg %p106
      $region70: #{ocrnet_forward.3} parent=59 // pred_check_branch
        %445 = sbr.rel (%p443) target = $region72
      $region71: #{ocrnet_forward.3} parent=59 // pred_region
        %p446 = scmp.lt.s32.totalorder %s27, 1
        %s447 = scalar_select %p446, %s27, 1
        %s448 = smul.addr %s447, 2
        %s449 = scalar_lea.vmem %s2, %s448
      $region72: #{ocrnet_forward.3} parent=59 // pred_fallthru
        _
    $region60: #{ocrnet_forward.3} parent=5 // pred_fallthru
      _
    %p450 = scmp.le.s32.totalorder 1, %s20
    %p451 = scmp.lt.s32.totalorder %s20, 3
    %p452 = pnand %p450, %p451
    %p453 = pneg %p452
    // Predicated region
    $region73: #{ocrnet_forward.3} parent=5 // pred_check
      _
    $region74: #{ocrnet_forward.3} parent=5 // pred_check_branch
      %455 = sbr.rel (%p452) target = $region76
    $region75: #{ocrnet_forward.3} parent=5 // pred_region
      %s456 = ssub.s32 %s20, 1
      %s457 = smul.u32 32, %s30
      %p458 = scmp.lt.s32.totalorder %s29, 1
      %s459 = scalar_select %p458, %s29, 1
      %p460 = scmp.lt.s32.totalorder %s457, 31
      %s461 = scalar_select %p460, %s457, 31
      %s462 = smul.addr %s459, 32
      %s463 = sadd.s32 %s461, %s462
      %s464 = smul.addr %s463, 4
      %s465 = scalar_lea.vmem %s0, %s464
      %p466 = pneg %p60
      %p467 = pneg %p57
      %p468 = scmp.lt.s32.totalorder %s29, 1
      %s469 = scalar_select %p468, %s29, 1
      %s470 = smul.addr %s469, 2
      %s471 = scalar_lea.vmem %s1, %s470
      %p472 = pneg %p86
      %p473 = pneg %p83
      %p474 = scmp.lt.s32.totalorder %s29, 1
      %s475 = scalar_select %p474, %s29, 1
      %s476 = smul.addr %s475, 2
      %s477 = scalar_lea.vmem %s2, %s476
      %p478 = pneg %p112
      %p479 = pneg %p109
      %p480 = pneg %p133
      %p481 = pneg %p130
      %p482 = pneg %p154
      %p483 = pneg %p151
      %p484 = pneg %p175
      %p485 = pneg %p172
      %p486 = pneg %p196
      %p487 = pneg %p193
      %p488 = pneg %p217
      %p489 = pneg %p214
      %p490 = pneg %p238
      %p491 = pneg %p235
      %p492 = pneg %p259
      %p493 = pneg %p256
      %p494 = pneg %p280
      %p495 = pneg %p277
      %p496 = pneg %p301
      %p497 = pneg %p298
      %p498 = pneg %p322
      %p499 = pneg %p319
      %p500 = pneg %p343
      %p501 = pneg %p340
      %p502 = pneg %p371
      %p503 = pneg %p368
      %s504 = smul.u32 32, %s30
      %p505 = scmp.lt.s32.totalorder %s29, 1
      %s506 = scalar_select %p505, %s29, 1
      %p507 = scmp.lt.s32.totalorder %s504, 31
      %s508 = scalar_select %p507, %s504, 31
      %s509 = smul.addr %s506, 32
      %s510 = sadd.s32 %s508, %s509
      %s511 = smul.addr %s510, 8
      %s512 = scalar_lea.vmem %s14, %s511
      %s513 = smul.u32 32, %s30
      %p514 = scmp.lt.s32.totalorder %s29, 1
      %s515 = scalar_select %p514, %s29, 1
      %p516 = scmp.lt.s32.totalorder %s513, 31
      %s517 = scalar_select %p516, %s513, 31
      %s518 = smul.addr %s515, 32
      %s519 = sadd.s32 %s517, %s518
      %s520 = smul.addr %s519, 4
      %s521 = scalar_lea.vmem %s0, %s520
      %s522 = smul.u32 32, %s30
      %p523 = scmp.lt.s32.totalorder %s29, 1
      %s524 = scalar_select %p523, %s29, 1
      %s525 = smul.addr %s524, 2
      %s526 = scalar_lea.vmem %s1, %s525
      %p527 = scmp.lt.s32.totalorder %s29, 1
      %s528 = scalar_select %p527, %s29, 1
      %s529 = smul.addr %s528, 2
      %s530 = scalar_lea.vmem %s2, %s529
      %s531 = smul.u32 32, %s30
      %p532 = scmp.lt.s32.totalorder %s29, 1
      %s533 = scalar_select %p532, %s29, 1
      %p534 = scmp.lt.s32.totalorder %s531, 31
      %s535 = scalar_select %p534, %s531, 31
      %s536 = smul.addr %s533, 32
      %s537 = sadd.s32 %s535, %s536
      %s538 = smul.addr %s537, 8
      %s539 = scalar_lea.vmem %s14, %s538
      %s540 = smul.u32 32, %s30
      %v542 = vld [vmem:[%s521] sm:$0xf]
      %v543 = vld [vmem:[%s521 + $0x4] sm:$0xf]
      %v544 = vld [vmem:[%s521 + $0x8] sm:$0xf]
      %v545 = vld [vmem:[%s521 + $0xc] sm:$0xf]
      %v546 = vld [vmem:[%s521 + $0x10] sm:$0xf]
      %v547 = vld [vmem:[%s521 + $0x14] sm:$0xf]
      %v548 = vld [vmem:[%s521 + $0x18] sm:$0xf]
      %v549 = vld [vmem:[%s521 + $0x1c] sm:$0xf]
      %v550 = vld [vmem:[%s521 + $0x20] sm:$0xf]
      %v551 = vld [vmem:[%s521 + $0x24] sm:$0xf]
      %v552 = vld [vmem:[%s521 + $0x28] sm:$0xf]
      %v553 = vld [vmem:[%s521 + $0x2c] sm:$0xf]
      %v554 = vld [vmem:[%s521 + $0x30] sm:$0xf]
      %v555 = vld [vmem:[%s521 + $0x34] sm:$0xf]
      %v556 = vld [vmem:[%s521 + $0x38] sm:$0xf]
      %v557 = vld [vmem:[%s521 + $0x3c] sm:$0xf]
      %v558 = vld [vmem:[%s521 + $0x40] sm:$0xf]
      %v559 = vld [vmem:[%s521 + $0x44] sm:$0xf]
      %v560 = vld [vmem:[%s521 + $0x48] sm:$0xf]
      %v561 = vld [vmem:[%s521 + $0x4c] sm:$0xf]
      %v562 = vld [vmem:[%s521 + $0x50] sm:$0xf]
      %v563 = vld [vmem:[%s521 + $0x54] sm:$0xf]
      %v564 = vld [vmem:[%s521 + $0x58] sm:$0xf]
      %v565 = vld [vmem:[%s521 + $0x5c] sm:$0xf]
      %v566 = vld [vmem:[%s521 + $0x60] sm:$0xf]
      %v567 = vld [vmem:[%s521 + $0x64] sm:$0xf]
      %v568 = vld [vmem:[%s521 + $0x68] sm:$0xf]
      %v569 = vld [vmem:[%s521 + $0x6c] sm:$0xf]
      %v570 = vld [vmem:[%s521 + $0x70] sm:$0xf]
      %v571 = vld [vmem:[%s521 + $0x74] sm:$0xf]
      %v572 = vld [vmem:[%s521 + $0x78] sm:$0xf]
      %v573 = vld [vmem:[%s521 + $0x7c] sm:$0xf]
      %v574 = vld [vmem:[%s3] sm:$0xf]
      %v575 = vld [vmem:[%s3 + $0x4] sm:$0xf]
      %v576 = vld [vmem:[%s3 + $0x8] sm:$0xf]
      %v577 = vld [vmem:[%s3 + $0xc] sm:$0xf]
      %v578 = vld [vmem:[%s3 + $0x10] sm:$0xf]
      %v579 = vld [vmem:[%s3 + $0x14] sm:$0xf]
      %v580 = vld [vmem:[%s3 + $0x18] sm:$0xf]
      %v581 = vld [vmem:[%s3 + $0x1c] sm:$0xf]
      %v582 = vld [vmem:[%s3 + $0x20] sm:$0xf]
      %v583 = vld [vmem:[%s3 + $0x24] sm:$0xf]
      %v584 = vld [vmem:[%s3 + $0x28] sm:$0xf]
      %v585 = vld [vmem:[%s3 + $0x2c] sm:$0xf]
      %v586 = vld [vmem:[%s3 + $0x30] sm:$0xf]
      %v587 = vld [vmem:[%s3 + $0x34] sm:$0xf]
      %v588 = vld [vmem:[%s3 + $0x38] sm:$0xf]
      %v589 = vld [vmem:[%s3 + $0x3c] sm:$0xf]
      %v622 = vunpack.c.l.b16 %v542
      %v623 = vunpack.c.l.b16 %v543
      %v624 = vunpack.c.l.b16 %v544
      %v625 = vunpack.c.l.b16 %v545
      %v626 = vunpack.c.l.b16 %v546
      %v627 = vunpack.c.l.b16 %v547
      %v628 = vunpack.c.l.b16 %v548
      %v629 = vunpack.c.l.b16 %v549
      %v630 = vunpack.c.l.b16 %v550
      %v631 = vunpack.c.l.b16 %v551
      %v632 = vunpack.c.l.b16 %v552
      %v633 = vunpack.c.l.b16 %v553
      %v634 = vunpack.c.l.b16 %v554
      %v635 = vunpack.c.l.b16 %v555
      %v636 = vunpack.c.l.b16 %v556
      %v637 = vunpack.c.l.b16 %v557
      %v638 = vunpack.c.l.b16 %v558
      %v639 = vunpack.c.l.b16 %v559
      %v640 = vunpack.c.l.b16 %v560
      %v641 = vunpack.c.l.b16 %v561
      %v642 = vunpack.c.l.b16 %v562
      %v643 = vunpack.c.l.b16 %v563
      %v644 = vunpack.c.l.b16 %v564
      %v645 = vunpack.c.l.b16 %v565
      %v646 = vunpack.c.l.b16 %v566
      %v647 = vunpack.c.l.b16 %v567
      %v648 = vunpack.c.l.b16 %v568
      %v649 = vunpack.c.l.b16 %v569
      %v650 = vunpack.c.l.b16 %v570
      %v651 = vunpack.c.l.b16 %v571
      %v652 = vunpack.c.l.b16 %v572
      %v653 = vunpack.c.l.b16 %v573
      %v654 = vpack.c.b16 %v623, %v622
      %v655 = vpack.c.b16 %v625, %v624
      %v656 = vpack.c.b16 %v627, %v626
      %v657 = vpack.c.b16 %v629, %v628
      %v658 = vpack.c.b16 %v631, %v630
      %v659 = vpack.c.b16 %v633, %v632
      %v660 = vpack.c.b16 %v635, %v634
      %v661 = vpack.c.b16 %v637, %v636
      %v662 = vpack.c.b16 %v639, %v638
      %v663 = vpack.c.b16 %v641, %v640
      %v664 = vpack.c.b16 %v643, %v642
      %v665 = vpack.c.b16 %v645, %v644
      %v666 = vpack.c.b16 %v647, %v646
      %v667 = vpack.c.b16 %v649, %v648
      %v668 = vpack.c.b16 %v651, %v650
      %v669 = vpack.c.b16 %v653, %v652
      %v702 = vunpack.c.l.b16 %v574
      %v703 = vunpack.c.l.b16 %v575
      %v704 = vunpack.c.l.b16 %v576
      %v705 = vunpack.c.l.b16 %v577
      %v706 = vunpack.c.l.b16 %v578
      %v707 = vunpack.c.l.b16 %v579
      %v708 = vunpack.c.l.b16 %v580
      %v709 = vunpack.c.l.b16 %v581
      %v710 = vunpack.c.l.b16 %v582
      %v711 = vunpack.c.l.b16 %v583
      %v712 = vunpack.c.l.b16 %v584
      %v713 = vunpack.c.l.b16 %v585
      %v714 = vunpack.c.l.b16 %v586
      %v715 = vunpack.c.l.b16 %v587
      %v716 = vunpack.c.l.b16 %v588
      %v717 = vunpack.c.l.b16 %v589
      %v718 = vpack.c.b16 %v703, %v702
      %v719 = vpack.c.b16 %v705, %v704
      %v720 = vpack.c.b16 %v707, %v706
      %v721 = vpack.c.b16 %v709, %v708
      %v722 = vpack.c.b16 %v711, %v710
      %v723 = vpack.c.b16 %v713, %v712
      %v724 = vpack.c.b16 %v715, %v714
      %v725 = vpack.c.b16 %v717, %v716
      %734 = vmatprep.subr.bf16.mxu0 0
      %735 = vmatpush1.bf16.msra.mxu0 %v718
      %736 = vmatprep.subr.bf16.mxu0 0
      %737 = vmatpush1.bf16.msra.mxu0 %v719
      %738 = vmatprep.subr.bf16.mxu0 0
      %739 = vmatpush1.bf16.msra.mxu0 %v720
      %740 = vmatprep.subr.bf16.mxu0 0
      %741 = vmatpush1.bf16.msra.mxu0 %v721
      %742 = vmatprep.subr.bf16.mxu0 0
      %743 = vmatpush1.bf16.msra.mxu0 %v722
      %744 = vmatprep.subr.bf16.mxu0 0
      %745 = vmatpush1.bf16.msra.mxu0 %v723
      %746 = vmatprep.subr.bf16.mxu0 0
      %747 = vmatpush1.bf16.msra.mxu0 %v724
      %748 = vmatprep.subr.bf16.mxu0 0
      %749 = vmatpush1.bf16.msra.mxu0 %v725
      %750 = vmatprep.subr.bf16.mxu0 0
      %751 = vmatpush1.bf16.msra.mxu0 0
      %752 = vmatprep.subr.bf16.mxu0 0
      %753 = vmatpush1.bf16.msra.mxu0 0
      %754 = vmatprep.subr.bf16.mxu0 0
      %755 = vmatpush1.bf16.msra.mxu0 0
      %756 = vmatprep.subr.bf16.mxu0 0
      %757 = vmatpush1.bf16.msra.mxu0 0
      %758 = vmatprep.subr.bf16.mxu0 0
      %759 = vmatpush1.bf16.msra.mxu0 0
      %760 = vmatprep.subr.bf16.mxu0 0
      %761 = vmatpush1.bf16.msra.mxu0 0
      %762 = vmatprep.subr.bf16.mxu0 0
      %763 = vmatpush1.bf16.msra.mxu0 0
      %764 = vmatprep.subr.bf16.mxu0 0
      %765 = vmatpush1.bf16.msra.mxu0 0
      %766 = vmatprep.mubr.bf16.mxu0 0
      %767 = vmatmul.mubr.bf16.gmra.mrb[0].mxu0 %v654
      %v768 = vpop.f32.mrb[0].mxu0
      %v769 = vadd.f32 0.0, %v768
      %v770 = vpop.f32.mrb[0].mxu0
      %v771 = vpop.f32.mrb[0].mxu0
      %v772 = vadd.f32 0.0, %v771
      %v773 = vpop.f32.mrb[0].mxu0
      %774 = vmatprep.mubr.bf16.mxu0 0
      %775 = vmatmul.mubr.bf16.gmra.mrb[0].mxu0 %v655
      %v776 = vpop.f32.mrb[0].mxu0
      %v777 = vadd.f32 0.0, %v776
      %v778 = vpop.f32.mrb[0].mxu0
      %v779 = vpop.f32.mrb[0].mxu0
      %v780 = vadd.f32 0.0, %v779
      %v781 = vpop.f32.mrb[0].mxu0
      %782 = vmatprep.mubr.bf16.mxu0 0
      %783 = vmatmul.mubr.bf16.gmra.mrb[0].mxu0 %v656
      %v784 = vpop.f32.mrb[0].mxu0
      %v785 = vadd.f32 0.0, %v784
      %v786 = vpop.f32.mrb[0].mxu0
      %v787 = vpop.f32.mrb[0].mxu0
      %v788 = vadd.f32 0.0, %v787
      %v789 = vpop.f32.mrb[0].mxu0
      %790 = vmatprep.mubr.bf16.mxu0 0
      %791 = vmatmul.mubr.bf16.gmra.mrb[0].mxu0 %v657
      %v792 = vpop.f32.mrb[0].mxu0
      %v793 = vadd.f32 0.0, %v792
      %v794 = vpop.f32.mrb[0].mxu0
      %v795 = vpop.f32.mrb[0].mxu0
      %v796 = vadd.f32 0.0, %v795
      %v797 = vpop.f32.mrb[0].mxu0
      %798 = vmatprep.mubr.bf16.mxu0 0
      %799 = vmatmul.mubr.bf16.gmra.mrb[0].mxu0 %v658
      %v800 = vpop.f32.mrb[0].mxu0
      %v801 = vadd.f32 0.0, %v800
      %v802 = vpop.f32.mrb[0].mxu0
      %v803 = vpop.f32.mrb[0].mxu0
      %v804 = vadd.f32 0.0, %v803
      %v805 = vpop.f32.mrb[0].mxu0
      %806 = vmatprep.mubr.bf16.mxu0 0
      %807 = vmatmul.mubr.bf16.gmra.mrb[0].mxu0 %v659
      %v808 = vpop.f32.mrb[0].mxu0
      %v809 = vadd.f32 0.0, %v808
      %v810 = vpop.f32.mrb[0].mxu0
      %v811 = vpop.f32.mrb[0].mxu0
      %v812 = vadd.f32 0.0, %v811
      %v813 = vpop.f32.mrb[0].mxu0
      %814 = vmatprep.mubr.bf16.mxu0 0
      %815 = vmatmul.mubr.bf16.gmra.mrb[0].mxu0 %v660
      %v816 = vpop.f32.mrb[0].mxu0
      %v817 = vadd.f32 0.0, %v816
      %v818 = vpop.f32.mrb[0].mxu0
      %v819 = vpop.f32.mrb[0].mxu0
      %v820 = vadd.f32 0.0, %v819
      %v821 = vpop.f32.mrb[0].mxu0
      %822 = vmatprep.mubr.bf16.mxu0 0
      %823 = vmatmul.mubr.bf16.gmra.mrb[0].mxu0 %v661
      %v824 = vpop.f32.mrb[0].mxu0
      %v825 = vadd.f32 0.0, %v824
      %v826 = vpop.f32.mrb[0].mxu0
      %v827 = vpop.f32.mrb[0].mxu0
      %v828 = vadd.f32 0.0, %v827
      %v829 = vpop.f32.mrb[0].mxu0
      %830 = vmatprep.mubr.bf16.mxu0 0
      %831 = vmatmul.mubr.bf16.gmra.mrb[0].mxu0 %v662
      %v832 = vpop.f32.mrb[0].mxu0
      %v833 = vadd.f32 0.0, %v832
      %v834 = vpop.f32.mrb[0].mxu0
      %v835 = vpop.f32.mrb[0].mxu0
      %v836 = vadd.f32 0.0, %v835
      %v837 = vpop.f32.mrb[0].mxu0
      %838 = vmatprep.mubr.bf16.mxu0 0
      %839 = vmatmul.mubr.bf16.gmra.mrb[0].mxu0 %v663
      %v840 = vpop.f32.mrb[0].mxu0
      %v841 = vadd.f32 0.0, %v840
      %v842 = vpop.f32.mrb[0].mxu0
      %v843 = vpop.f32.mrb[0].mxu0
      %v844 = vadd.f32 0.0, %v843
      %v845 = vpop.f32.mrb[0].mxu0
      %846 = vmatprep.mubr.bf16.mxu0 0
      %847 = vmatmul.mubr.bf16.gmra.mrb[0].mxu0 %v664
      %v848 = vpop.f32.mrb[0].mxu0
      %v849 = vadd.f32 0.0, %v848
      %v850 = vpop.f32.mrb[0].mxu0
      %v851 = vpop.f32.mrb[0].mxu0
      %v852 = vadd.f32 0.0, %v851
      %v853 = vpop.f32.mrb[0].mxu0
      %854 = vmatprep.mubr.bf16.mxu0 0
      %855 = vmatmul.mubr.bf16.gmra.mrb[0].mxu0 %v665
      %v856 = vpop.f32.mrb[0].mxu0
      %v857 = vadd.f32 0.0, %v856
      %v858 = vpop.f32.mrb[0].mxu0
      %v859 = vpop.f32.mrb[0].mxu0
      %v860 = vadd.f32 0.0, %v859
      %v861 = vpop.f32.mrb[0].mxu0
      %862 = vmatprep.mubr.bf16.mxu0 0
      %863 = vmatmul.mubr.bf16.gmra.mrb[0].mxu0 %v666
      %v864 = vpop.f32.mrb[0].mxu0
      %v865 = vadd.f32 0.0, %v864
      %v866 = vpop.f32.mrb[0].mxu0
      %v867 = vpop.f32.mrb[0].mxu0
      %v868 = vadd.f32 0.0, %v867
      %v869 = vpop.f32.mrb[0].mxu0
      %870 = vmatprep.mubr.bf16.mxu0 0
      %871 = vmatmul.mubr.bf16.gmra.mrb[0].mxu0 %v667
      %v872 = vpop.f32.mrb[0].mxu0
      %v873 = vadd.f32 0.0, %v872
      %v874 = vpop.f32.mrb[0].mxu0
      %v875 = vpop.f32.mrb[0].mxu0
      %v876 = vadd.f32 0.0, %v875
      %v877 = vpop.f32.mrb[0].mxu0
      %878 = vmatprep.mubr.bf16.mxu0 0
      %879 = vmatmul.mubr.bf16.gmra.mrb[0].mxu0 %v668
      %v880 = vpop.f32.mrb[0].mxu0
      %v881 = vadd.f32 0.0, %v880
      %v882 = vpop.f32.mrb[0].mxu0
      %v883 = vpop.f32.mrb[0].mxu0
      %v884 = vadd.f32 0.0, %v883
      %v885 = vpop.f32.mrb[0].mxu0
      %886 = vmatprep.mubr.bf16.mxu0 0
      %887 = vmatmul.mubr.bf16.gmra.mrb[0].mxu0 %v669
      %v888 = vpop.f32.mrb[0].mxu0
      %v889 = vadd.f32 0.0, %v888
      %v890 = vpop.f32.mrb[0].mxu0
      %v891 = vpop.f32.mrb[0].mxu0
      %v892 = vadd.f32 0.0, %v891
      %v893 = vpop.f32.mrb[0].mxu0
      %894 = vdwg.mxu0
      %v895 = vld [vmem:[%s4] sm:$0x1]
      %v896 = vlaneseq
      %v897 = vshrl.u32 %v896, 7
      %v898 = vsub.s32 0, %v897
      %v899 = vrot.slane %v895, %v898
      %v900 = vmul.f32 %v769, %v899
      %v901 = vmul.f32 %v772, %v899
      %v902 = vmul.f32 %v777, %v899
      %v903 = vmul.f32 %v780, %v899
      %v904 = vmul.f32 %v785, %v899
      %v905 = vmul.f32 %v788, %v899
      %v906 = vmul.f32 %v793, %v899
      %v907 = vmul.f32 %v796, %v899
      %v908 = vmul.f32 %v801, %v899
      %v909 = vmul.f32 %v804, %v899
      %v910 = vmul.f32 %v809, %v899
      %v911 = vmul.f32 %v812, %v899
      %v912 = vmul.f32 %v817, %v899
      %v913 = vmul.f32 %v820, %v899
      %v914 = vmul.f32 %v825, %v899
      %v915 = vmul.f32 %v828, %v899
      %v916 = vmul.f32 %v833, %v899
      %v917 = vmul.f32 %v836, %v899
      %v918 = vmul.f32 %v841, %v899
      %v919 = vmul.f32 %v844, %v899
      %v920 = vmul.f32 %v849, %v899
      %v921 = vmul.f32 %v852, %v899
      %v922 = vmul.f32 %v857, %v899
      %v923 = vmul.f32 %v860, %v899
      %v924 = vmul.f32 %v865, %v899
      %v925 = vmul.f32 %v868, %v899
      %v926 = vmul.f32 %v873, %v899
      %v927 = vmul.f32 %v876, %v899
      %v928 = vmul.f32 %v881, %v899
      %v929 = vmul.f32 %v884, %v899
      %v930 = vmul.f32 %v889, %v899
      %v931 = vmul.f32 %v892, %v899
      %v932 = vld [vmem:[%s4 + $0x1] sm:$0x1]
      %v933 = vlaneseq
      %v934 = vshrl.u32 %v933, 7
      %v935 = vsub.s32 0, %v934
      %v936 = vrot.slane %v932, %v935
      %v937 = vadd.f32 %v900, %v936
      %v938 = vadd.f32 %v901, %v936
      %v939 = vadd.f32 %v902, %v936
      %v940 = vadd.f32 %v903, %v936
      %v941 = vadd.f32 %v904, %v936
      %v942 = vadd.f32 %v905, %v936
      %v943 = vadd.f32 %v906, %v936
      %v944 = vadd.f32 %v907, %v936
      %v945 = vadd.f32 %v908, %v936
      %v946 = vadd.f32 %v909, %v936
      %v947 = vadd.f32 %v910, %v936
      %v948 = vadd.f32 %v911, %v936
      %v949 = vadd.f32 %v912, %v936
      %v950 = vadd.f32 %v913, %v936
      %v951 = vadd.f32 %v914, %v936
      %v952 = vadd.f32 %v915, %v936
      %v953 = vadd.f32 %v916, %v936
      %v954 = vadd.f32 %v917, %v936
      %v955 = vadd.f32 %v918, %v936
      %v956 = vadd.f32 %v919, %v936
      %v957 = vadd.f32 %v920, %v936
      %v958 = vadd.f32 %v921, %v936
      %v959 = vadd.f32 %v922, %v936
      %v960 = vadd.f32 %v923, %v936
      %v961 = vadd.f32 %v924, %v936
      %v962 = vadd.f32 %v925, %v936
      %v963 = vadd.f32 %v926, %v936
      %v964 = vadd.f32 %v927, %v936
      %v965 = vadd.f32 %v928, %v936
      %v966 = vadd.f32 %v929, %v936
      %v967 = vadd.f32 %v930, %v936
      %v968 = vadd.f32 %v931, %v936
      %v969 = vmax.f32 %v937, 0.0
      %v970 = vmax.f32 %v938, 0.0
      %v971 = vmax.f32 %v939, 0.0
      %v972 = vmax.f32 %v940, 0.0
      %v973 = vmax.f32 %v941, 0.0
      %v974 = vmax.f32 %v942, 0.0
      %v975 = vmax.f32 %v943, 0.0
      %v976 = vmax.f32 %v944, 0.0
      %v977 = vmax.f32 %v945, 0.0
      %v978 = vmax.f32 %v946, 0.0
      %v979 = vmax.f32 %v947, 0.0
      %v980 = vmax.f32 %v948, 0.0
      %v981 = vmax.f32 %v949, 0.0
      %v982 = vmax.f32 %v950, 0.0
      %v983 = vmax.f32 %v951, 0.0
      %v984 = vmax.f32 %v952, 0.0
      %v985 = vmax.f32 %v953, 0.0
      %v986 = vmax.f32 %v954, 0.0
      %v987 = vmax.f32 %v955, 0.0
      %v988 = vmax.f32 %v956, 0.0
      %v989 = vmax.f32 %v957, 0.0
      %v990 = vmax.f32 %v958, 0.0
      %v991 = vmax.f32 %v959, 0.0
      %v992 = vmax.f32 %v960, 0.0
      %v993 = vmax.f32 %v961, 0.0
      %v994 = vmax.f32 %v962, 0.0
      %v995 = vmax.f32 %v963, 0.0
      %v996 = vmax.f32 %v964, 0.0
      %v997 = vmax.f32 %v965, 0.0
      %v998 = vmax.f32 %v966, 0.0
      %v999 = vmax.f32 %v967, 0.0
      %v1000 = vmax.f32 %v968, 0.0
      %v1001 = vpack.c.bf16 %v970, %v969
      %v1002 = vpack.c.bf16 %v972, %v971
      %v1003 = vpack.c.bf16 %v974, %v973
      %v1004 = vpack.c.bf16 %v976, %v975
      %v1005 = vpack.c.bf16 %v978, %v977
      %v1006 = vpack.c.bf16 %v980, %v979
      %v1007 = vpack.c.bf16 %v982, %v981
      %v1008 = vpack.c.bf16 %v984, %v983
      %v1009 = vpack.c.bf16 %v986, %v985
      %v1010 = vpack.c.bf16 %v988, %v987
      %v1011 = vpack.c.bf16 %v990, %v989
      %v1012 = vpack.c.bf16 %v992, %v991
      %v1013 = vpack.c.bf16 %v994, %v993
      %v1014 = vpack.c.bf16 %v996, %v995
      %v1015 = vpack.c.bf16 %v998, %v997
      %v1016 = vpack.c.bf16 %v1000, %v999
      %v1017 = vld [vmem:[%s5] sm:$0xf]
      %v1018 = vld [vmem:[%s5 + $0x4] sm:$0xf]
      %v1019 = vld [vmem:[%s5 + $0x8] sm:$0xf]
      %v1020 = vld [vmem:[%s5 + $0xc] sm:$0xf]
      %v1021 = vld [vmem:[%s5 + $0x10] sm:$0xf]
      %v1022 = vld [vmem:[%s5 + $0x14] sm:$0xf]
      %v1023 = vld [vmem:[%s5 + $0x18] sm:$0xf]
      %v1024 = vld [vmem:[%s5 + $0x1c] sm:$0xf]
      %v1025 = vld [vmem:[%s5 + $0x20] sm:$0xf]
      %v1026 = vld [vmem:[%s5 + $0x24] sm:$0xf]
      %v1027 = vld [vmem:[%s5 + $0x28] sm:$0xf]
      %v1028 = vld [vmem:[%s5 + $0x2c] sm:$0xf]
      %v1029 = vld [vmem:[%s5 + $0x30] sm:$0xf]
      %v1030 = vld [vmem:[%s5 + $0x34] sm:$0xf]
      %v1031 = vld [vmem:[%s5 + $0x38] sm:$0xf]
      %v1032 = vld [vmem:[%s5 + $0x3c] sm:$0xf]
      %v1049 = vunpack.c.l.b16 %v1017
      %v1050 = vunpack.c.l.b16 %v1018
      %v1051 = vunpack.c.l.b16 %v1019
      %v1052 = vunpack.c.l.b16 %v1020
      %v1053 = vunpack.c.l.b16 %v1021
      %v1054 = vunpack.c.l.b16 %v1022
      %v1055 = vunpack.c.l.b16 %v1023
      %v1056 = vunpack.c.l.b16 %v1024
      %v1057 = vunpack.c.l.b16 %v1025
      %v1058 = vunpack.c.l.b16 %v1026
      %v1059 = vunpack.c.l.b16 %v1027
      %v1060 = vunpack.c.l.b16 %v1028
      %v1061 = vunpack.c.l.b16 %v1029
      %v1062 = vunpack.c.l.b16 %v1030
      %v1063 = vunpack.c.l.b16 %v1031
      %v1064 = vunpack.c.l.b16 %v1032
      %v1065 = vpack.c.b16 %v1050, %v1049
      %v1066 = vpack.c.b16 %v1052, %v1051
      %v1067 = vpack.c.b16 %v1054, %v1053
      %v1068 = vpack.c.b16 %v1056, %v1055
      %v1069 = vpack.c.b16 %v1058, %v1057
      %v1070 = vpack.c.b16 %v1060, %v1059
      %v1071 = vpack.c.b16 %v1062, %v1061
      %v1072 = vpack.c.b16 %v1064, %v1063
      %1081 = vmatprep.subr.bf16.mxu0 0
      %1082 = vmatpush1.bf16.msra.mxu0 %v1065
      %1083 = vmatprep.subr.bf16.mxu0 0
      %1084 = vmatpush1.bf16.msra.mxu0 %v1066
      %1085 = vmatprep.subr.bf16.mxu0 0
      %1086 = vmatpush1.bf16.msra.mxu0 %v1067
      %1087 = vmatprep.subr.bf16.mxu0 0
      %1088 = vmatpush1.bf16.msra.mxu0 %v1068
      %1089 = vmatprep.subr.bf16.mxu0 0
      %1090 = vmatpush1.bf16.msra.mxu0 %v1069
      %1091 = vmatprep.subr.bf16.mxu0 0
      %1092 = vmatpush1.bf16.msra.mxu0 %v1070
      %1093 = vmatprep.subr.bf16.mxu0 0
      %1094 = vmatpush1.bf16.msra.mxu0 %v1071
      %1095 = vmatprep.subr.bf16.mxu0 0
      %1096 = vmatpush1.bf16.msra.mxu0 %v1072
      %1097 = vmatprep.subr.bf16.mxu0 0
      %1098 = vmatpush1.bf16.msra.mxu0 0
      %1099 = vmatprep.subr.bf16.mxu0 0
      %1100 = vmatpush1.bf16.msra.mxu0 0
      %1101 = vmatprep.subr.bf16.mxu0 0
      %1102 = vmatpush1.bf16.msra.mxu0 0
      %1103 = vmatprep.subr.bf16.mxu0 0
      %1104 = vmatpush1.bf16.msra.mxu0 0
      %1105 = vmatprep.subr.bf16.mxu0 0
      %1106 = vmatpush1.bf16.msra.mxu0 0
      %1107 = vmatprep.subr.bf16.mxu0 0
      %1108 = vmatpush1.bf16.msra.mxu0 0
      %1109 = vmatprep.subr.bf16.mxu0 0
      %1110 = vmatpush1.bf16.msra.mxu0 0
      %1111 = vmatprep.subr.bf16.mxu0 0
      %1112 = vmatpush1.bf16.msra.mxu0 0
      %1113 = vmatprep.mubr.bf16.mxu0 0
      %1114 = vmatmul.mubr.bf16.gmra.mrb[0].mxu0 %v1001
      %v1115 = vpop.f32.mrb[0].mxu0
      %v1116 = vadd.f32 0.0, %v1115
      %v1117 = vpop.f32.mrb[0].mxu0
      %v1118 = vpop.f32.mrb[0].mxu0
      %v1119 = vadd.f32 0.0, %v1118
      %v1120 = vpop.f32.mrb[0].mxu0
      %1121 = vmatprep.mubr.bf16.mxu0 0
      %1122 = vmatmul.mubr.bf16.gmra.mrb[0].mxu0 %v1002
      %v1123 = vpop.f32.mrb[0].mxu0
      %v1124 = vadd.f32 0.0, %v1123
      %v1125 = vpop.f32.mrb[0].mxu0
      %v1126 = vpop.f32.mrb[0].mxu0
      %v1127 = vadd.f32 0.0, %v1126
      %v1128 = vpop.f32.mrb[0].mxu0
      %1129 = vmatprep.mubr.bf16.mxu0 0
      %1130 = vmatmul.mubr.bf16.gmra.mrb[0].mxu0 %v1003
      %v1131 = vpop.f32.mrb[0].mxu0
      %v1132 = vadd.f32 0.0, %v1131
      %v1133 = vpop.f32.mrb[0].mxu0
      %v1134 = vpop.f32.mrb[0].mxu0
      %v1135 = vadd.f32 0.0, %v1134
      %v1136 = vpop.f32.mrb[0].mxu0
      %1137 = vmatprep.mubr.bf16.mxu0 0
      %1138 = vmatmul.mubr.bf16.gmra.mrb[0].mxu0 %v1004
      %v1139 = vpop.f32.mrb[0].mxu0
      %v1140 = vadd.f32 0.0, %v1139
      %v1141 = vpop.f32.mrb[0].mxu0
      %v1142 = vpop.f32.mrb[0].mxu0
      %v1143 = vadd.f32 0.0, %v1142
      %v1144 = vpop.f32.mrb[0].mxu0
      %1145 = vmatprep.mubr.bf16.mxu0 0
      %1146 = vmatmul.mubr.bf16.gmra.mrb[0].mxu0 %v1005
      %v1147 = vpop.f32.mrb[0].mxu0
      %v1148 = vadd.f32 0.0, %v1147
      %v1149 = vpop.f32.mrb[0].mxu0
      %v1150 = vpop.f32.mrb[0].mxu0
      %v1151 = vadd.f32 0.0, %v1150
      %v1152 = vpop.f32.mrb[0].mxu0
      %1153 = vmatprep.mubr.bf16.mxu0 0
      %1154 = vmatmul.mubr.bf16.gmra.mrb[0].mxu0 %v1006
      %v1155 = vpop.f32.mrb[0].mxu0
      %v1156 = vadd.f32 0.0, %v1155
      %v1157 = vpop.f32.mrb[0].mxu0
      %v1158 = vpop.f32.mrb[0].mxu0
      %v1159 = vadd.f32 0.0, %v1158
      %v1160 = vpop.f32.mrb[0].mxu0
      %1161 = vmatprep.mubr.bf16.mxu0 0
      %1162 = vmatmul.mubr.bf16.gmra.mrb[0].mxu0 %v1007
      %v1163 = vpop.f32.mrb[0].mxu0
      %v1164 = vadd.f32 0.0, %v1163
      %v1165 = vpop.f32.mrb[0].mxu0
      %v1166 = vpop.f32.mrb[0].mxu0
      %v1167 = vadd.f32 0.0, %v1166
      %v1168 = vpop.f32.mrb[0].mxu0
      %1169 = vmatprep.mubr.bf16.mxu0 0
      %1170 = vmatmul.mubr.bf16.gmra.mrb[0].mxu0 %v1008
      %v1171 = vpop.f32.mrb[0].mxu0
      %v1172 = vadd.f32 0.0, %v1171
      %v1173 = vpop.f32.mrb[0].mxu0
      %v1174 = vpop.f32.mrb[0].mxu0
      %v1175 = vadd.f32 0.0, %v1174
      %v1176 = vpop.f32.mrb[0].mxu0
      %1177 = vmatprep.mubr.bf16.mxu0 0
      %1178 = vmatmul.mubr.bf16.gmra.mrb[0].mxu0 %v1009
      %v1179 = vpop.f32.mrb[0].mxu0
      %v1180 = vadd.f32 0.0, %v1179
      %v1181 = vpop.f32.mrb[0].mxu0
      %v1182 = vpop.f32.mrb[0].mxu0
      %v1183 = vadd.f32 0.0, %v1182
      %v1184 = vpop.f32.mrb[0].mxu0
      %1185 = vmatprep.mubr.bf16.mxu0 0
      %1186 = vmatmul.mubr.bf16.gmra.mrb[0].mxu0 %v1010
      %v1187 = vpop.f32.mrb[0].mxu0
      %v1188 = vadd.f32 0.0, %v1187
      %v1189 = vpop.f32.mrb[0].mxu0
      %v1190 = vpop.f32.mrb[0].mxu0
      %v1191 = vadd.f32 0.0, %v1190
      %v1192 = vpop.f32.mrb[0].mxu0
      %1193 = vmatprep.mubr.bf16.mxu0 0
      %1194 = vmatmul.mubr.bf16.gmra.mrb[0].mxu0 %v1011
      %v1195 = vpop.f32.mrb[0].mxu0
      %v1196 = vadd.f32 0.0, %v1195
      %v1197 = vpop.f32.mrb[0].mxu0
      %v1198 = vpop.f32.mrb[0].mxu0
      %v1199 = vadd.f32 0.0, %v1198
      %v1200 = vpop.f32.mrb[0].mxu0
      %1201 = vmatprep.mubr.bf16.mxu0 0
      %1202 = vmatmul.mubr.bf16.gmra.mrb[0].mxu0 %v1012
      %v1203 = vpop.f32.mrb[0].mxu0
      %v1204 = vadd.f32 0.0, %v1203
      %v1205 = vpop.f32.mrb[0].mxu0
      %v1206 = vpop.f32.mrb[0].mxu0
      %v1207 = vadd.f32 0.0, %v1206
      %v1208 = vpop.f32.mrb[0].mxu0
      %1209 = vmatprep.mubr.bf16.mxu0 0
      %1210 = vmatmul.mubr.bf16.gmra.mrb[0].mxu0 %v1013
      %v1211 = vpop.f32.mrb[0].mxu0
      %v1212 = vadd.f32 0.0, %v1211
      %v1213 = vpop.f32.mrb[0].mxu0
      %v1214 = vpop.f32.mrb[0].mxu0
      %v1215 = vadd.f32 0.0, %v1214
      %v1216 = vpop.f32.mrb[0].mxu0
      %1217 = vmatprep.mubr.bf16.mxu0 0
      %1218 = vmatmul.mubr.bf16.gmra.mrb[0].mxu0 %v1014
      %v1219 = vpop.f32.mrb[0].mxu0
      %v1220 = vadd.f32 0.0, %v1219
      %v1221 = vpop.f32.mrb[0].mxu0
      %v1222 = vpop.f32.mrb[0].mxu0
      %v1223 = vadd.f32 0.0, %v1222
      %v1224 = vpop.f32.mrb[0].mxu0
      %1225 = vmatprep.mubr.bf16.mxu0 0
      %1226 = vmatmul.mubr.bf16.gmra.mrb[0].mxu0 %v1015
      %v1227 = vpop.f32.mrb[0].mxu0
      %v1228 = vadd.f32 0.0, %v1227
      %v1229 = vpop.f32.mrb[0].mxu0
      %v1230 = vpop.f32.mrb[0].mxu0
      %v1231 = vadd.f32 0.0, %v1230
      %v1232 = vpop.f32.mrb[0].mxu0
      %1233 = vmatprep.mubr.bf16.mxu0 0
      %1234 = vmatmul.mubr.bf16.gmra.mrb[0].mxu0 %v1016
      %v1235 = vpop.f32.mrb[0].mxu0
      %v1236 = vadd.f32 0.0, %v1235
      %v1237 = vpop.f32.mrb[0].mxu0
      %v1238 = vpop.f32.mrb[0].mxu0
      %v1239 = vadd.f32 0.0, %v1238
      %v1240 = vpop.f32.mrb[0].mxu0
      %1241 = vdwg.mxu0
      %v1242 = vld [vmem:[%s6] sm:$0x1]
      %v1243 = vlaneseq
      %v1244 = vshrl.u32 %v1243, 7
      %v1245 = vsub.s32 0, %v1244
      %v1246 = vrot.slane %v1242, %v1245
      %v1247 = vmul.f32 %v1116, %v1246
      %v1248 = vmul.f32 %v1119, %v1246
      %v1249 = vmul.f32 %v1124, %v1246
      %v1250 = vmul.f32 %v1127, %v1246
      %v1251 = vmul.f32 %v1132, %v1246
      %v1252 = vmul.f32 %v1135, %v1246
      %v1253 = vmul.f32 %v1140, %v1246
      %v1254 = vmul.f32 %v1143, %v1246
      %v1255 = vmul.f32 %v1148, %v1246
      %v1256 = vmul.f32 %v1151, %v1246
      %v1257 = vmul.f32 %v1156, %v1246
      %v1258 = vmul.f32 %v1159, %v1246
      %v1259 = vmul.f32 %v1164, %v1246
      %v1260 = vmul.f32 %v1167, %v1246
      %v1261 = vmul.f32 %v1172, %v1246
      %v1262 = vmul.f32 %v1175, %v1246
      %v1263 = vmul.f32 %v1180, %v1246
      %v1264 = vmul.f32 %v1183, %v1246
      %v1265 = vmul.f32 %v1188, %v1246
      %v1266 = vmul.f32 %v1191, %v1246
      %v1267 = vmul.f32 %v1196, %v1246
      %v1268 = vmul.f32 %v1199, %v1246
      %v1269 = vmul.f32 %v1204, %v1246
      %v1270 = vmul.f32 %v1207, %v1246
      %v1271 = vmul.f32 %v1212, %v1246
      %v1272 = vmul.f32 %v1215, %v1246
      %v1273 = vmul.f32 %v1220, %v1246
      %v1274 = vmul.f32 %v1223, %v1246
      %v1275 = vmul.f32 %v1228, %v1246
      %v1276 = vmul.f32 %v1231, %v1246
      %v1277 = vmul.f32 %v1236, %v1246
      %v1278 = vmul.f32 %v1239, %v1246
      %v1279 = vld [vmem:[%s6 + $0x1] sm:$0x1]
      %v1280 = vlaneseq
      %v1281 = vshrl.u32 %v1280, 7
      %v1282 = vsub.s32 0, %v1281
      %v1283 = vrot.slane %v1279, %v1282
      %v1284 = vadd.f32 %v1247, %v1283
      %v1285 = vadd.f32 %v1248, %v1283
      %v1286 = vadd.f32 %v1249, %v1283
      %v1287 = vadd.f32 %v1250, %v1283
      %v1288 = vadd.f32 %v1251, %v1283
      %v1289 = vadd.f32 %v1252, %v1283
      %v1290 = vadd.f32 %v1253, %v1283
      %v1291 = vadd.f32 %v1254, %v1283
      %v1292 = vadd.f32 %v1255, %v1283
      %v1293 = vadd.f32 %v1256, %v1283
      %v1294 = vadd.f32 %v1257, %v1283
      %v1295 = vadd.f32 %v1258, %v1283
      %v1296 = vadd.f32 %v1259, %v1283
      %v1297 = vadd.f32 %v1260, %v1283
      %v1298 = vadd.f32 %v1261, %v1283
      %v1299 = vadd.f32 %v1262, %v1283
      %v1300 = vadd.f32 %v1263, %v1283
      %v1301 = vadd.f32 %v1264, %v1283
      %v1302 = vadd.f32 %v1265, %v1283
      %v1303 = vadd.f32 %v1266, %v1283
      %v1304 = vadd.f32 %v1267, %v1283
      %v1305 = vadd.f32 %v1268, %v1283
      %v1306 = vadd.f32 %v1269, %v1283
      %v1307 = vadd.f32 %v1270, %v1283
      %v1308 = vadd.f32 %v1271, %v1283
      %v1309 = vadd.f32 %v1272, %v1283
      %v1310 = vadd.f32 %v1273, %v1283
      %v1311 = vadd.f32 %v1274, %v1283
      %v1312 = vadd.f32 %v1275, %v1283
      %v1313 = vadd.f32 %v1276, %v1283
      %v1314 = vadd.f32 %v1277, %v1283
      %v1315 = vadd.f32 %v1278, %v1283
      %v1316 = vmax.f32 %v1284, 0.0
      %v1317 = vmax.f32 %v1285, 0.0
      %v1318 = vmax.f32 %v1286, 0.0
      %v1319 = vmax.f32 %v1287, 0.0
      %v1320 = vmax.f32 %v1288, 0.0
      %v1321 = vmax.f32 %v1289, 0.0
      %v1322 = vmax.f32 %v1290, 0.0
      %v1323 = vmax.f32 %v1291, 0.0
      %v1324 = vmax.f32 %v1292, 0.0
      %v1325 = vmax.f32 %v1293, 0.0
      %v1326 = vmax.f32 %v1294, 0.0
      %v1327 = vmax.f32 %v1295, 0.0
      %v1328 = vmax.f32 %v1296, 0.0
      %v1329 = vmax.f32 %v1297, 0.0
      %v1330 = vmax.f32 %v1298, 0.0
      %v1331 = vmax.f32 %v1299, 0.0
      %v1332 = vmax.f32 %v1300, 0.0
      %v1333 = vmax.f32 %v1301, 0.0
      %v1334 = vmax.f32 %v1302, 0.0
      %v1335 = vmax.f32 %v1303, 0.0
      %v1336 = vmax.f32 %v1304, 0.0
      %v1337 = vmax.f32 %v1305, 0.0
      %v1338 = vmax.f32 %v1306, 0.0
      %v1339 = vmax.f32 %v1307, 0.0
      %v1340 = vmax.f32 %v1308, 0.0
      %v1341 = vmax.f32 %v1309, 0.0
      %v1342 = vmax.f32 %v1310, 0.0
      %v1343 = vmax.f32 %v1311, 0.0
      %v1344 = vmax.f32 %v1312, 0.0
      %v1345 = vmax.f32 %v1313, 0.0
      %v1346 = vmax.f32 %v1314, 0.0
      %v1347 = vmax.f32 %v1315, 0.0
      %v1348 = vpack.c.bf16 %v1317, %v1316
      %v1349 = vpack.c.bf16 %v1319, %v1318
      %v1350 = vpack.c.bf16 %v1321, %v1320
      %v1351 = vpack.c.bf16 %v1323, %v1322
      %v1352 = vpack.c.bf16 %v1325, %v1324
      %v1353 = vpack.c.bf16 %v1327, %v1326
      %v1354 = vpack.c.bf16 %v1329, %v1328
      %v1355 = vpack.c.bf16 %v1331, %v1330
      %v1356 = vpack.c.bf16 %v1333, %v1332
      %v1357 = vpack.c.bf16 %v1335, %v1334
      %v1358 = vpack.c.bf16 %v1337, %v1336
      %v1359 = vpack.c.bf16 %v1339, %v1338
      %v1360 = vpack.c.bf16 %v1341, %v1340
      %v1361 = vpack.c.bf16 %v1343, %v1342
      %v1362 = vpack.c.bf16 %v1345, %v1344
      %v1363 = vpack.c.bf16 %v1347, %v1346
      %v1364 = vld [vmem:[%s526] sm:$0x3]
      %1365 = vmatprep.subr.bf16.mxu0 0
      %1366 = vmatpush1.bf16.xpose.msra.mxu0 %v1364
      %1367 = vmatprep.subr.bf16.mxu0 0
      %1368 = vmatpush1.bf16.xpose.msra.mxu0 0
      %1369 = vmatprep.subr.bf16.mxu0 0
      %1370 = vmatpush1.bf16.xpose.msra.mxu0 0
      %1371 = vmatprep.subr.bf16.mxu0 0
      %1372 = vmatpush1.bf16.xpose.msra.mxu0 0
      %1373 = vmatprep.subr.bf16.mxu0 0
      %1374 = vmatpush1.bf16.xpose.msra.mxu0 0
      %1375 = vmatprep.subr.bf16.mxu0 0
      %1376 = vmatpush1.bf16.xpose.msra.mxu0 0
      %1377 = vmatprep.subr.bf16.mxu0 0
      %1378 = vmatpush1.bf16.xpose.msra.mxu0 0
      %1379 = vmatprep.subr.bf16.mxu0 0
      %1380 = vmatpush1.bf16.xpose.msra.mxu0 0
      %1381 = vmatprep.subr.bf16.mxu0 0
      %1382 = vmatpush1.bf16.xpose.msra.mxu0 0
      %1383 = vmatprep.subr.bf16.mxu0 0
      %1384 = vmatpush1.bf16.xpose.msra.mxu0 0
      %1385 = vmatprep.subr.bf16.mxu0 0
      %1386 = vmatpush1.bf16.xpose.msra.mxu0 0
      %1387 = vmatprep.subr.bf16.mxu0 0
      %1388 = vmatpush1.bf16.xpose.msra.mxu0 0
      %1389 = vmatprep.subr.bf16.mxu0 0
      %1390 = vmatpush1.bf16.xpose.msra.mxu0 0
      %1391 = vmatprep.subr.bf16.mxu0 0
      %1392 = vmatpush1.bf16.xpose.msra.mxu0 0
      %1393 = vmatprep.subr.bf16.mxu0 0
      %1394 = vmatpush1.bf16.xpose.msra.mxu0 0
      %1395 = vmatprep.subr.bf16.mxu0 0
      %1396 = vmatpush1.bf16.xpose.msra.mxu0 0
      %1397 = vmatprep.mubr.bf16.mxu0 0
      %1398 = vmatmul.mubr.bf16.gmra.mrb[0].mxu0 %v1348
      %v1399 = vpop.f32.mrb[0].mxu0
      %v1400 = vadd.f32 0.0, %v1399
      %v1401 = vpop.f32.mrb[0].mxu0
      %v1402 = vpop.f32.mrb[0].mxu0
      %v1403 = vadd.f32 0.0, %v1402
      %v1404 = vpop.f32.mrb[0].mxu0
      %1405 = vmatprep.mubr.bf16.mxu0 0
      %1406 = vmatmul.mubr.bf16.gmra.mrb[0].mxu0 %v1349
      %v1407 = vpop.f32.mrb[0].mxu0
      %v1408 = vadd.f32 0.0, %v1407
      %v1409 = vpop.f32.mrb[0].mxu0
      %v1410 = vpop.f32.mrb[0].mxu0
      %v1411 = vadd.f32 0.0, %v1410
      %v1412 = vpop.f32.mrb[0].mxu0
      %1413 = vmatprep.mubr.bf16.mxu0 0
      %1414 = vmatmul.mubr.bf16.gmra.mrb[0].mxu0 %v1350
      %v1415 = vpop.f32.mrb[0].mxu0
      %v1416 = vadd.f32 0.0, %v1415
      %v1417 = vpop.f32.mrb[0].mxu0
      %v1418 = vpop.f32.mrb[0].mxu0
      %v1419 = vadd.f32 0.0, %v1418
      %v1420 = vpop.f32.mrb[0].mxu0
      %1421 = vmatprep.mubr.bf16.mxu0 0
      %1422 = vmatmul.mubr.bf16.gmra.mrb[0].mxu0 %v1351
      %v1423 = vpop.f32.mrb[0].mxu0
      %v1424 = vadd.f32 0.0, %v1423
      %v1425 = vpop.f32.mrb[0].mxu0
      %v1426 = vpop.f32.mrb[0].mxu0
      %v1427 = vadd.f32 0.0, %v1426
      %v1428 = vpop.f32.mrb[0].mxu0
      %1429 = vmatprep.mubr.bf16.mxu0 0
      %1430 = vmatmul.mubr.bf16.gmra.mrb[0].mxu0 %v1352
      %v1431 = vpop.f32.mrb[0].mxu0
      %v1432 = vadd.f32 0.0, %v1431
      %v1433 = vpop.f32.mrb[0].mxu0
      %v1434 = vpop.f32.mrb[0].mxu0
      %v1435 = vadd.f32 0.0, %v1434
      %v1436 = vpop.f32.mrb[0].mxu0
      %1437 = vmatprep.mubr.bf16.mxu0 0
      %1438 = vmatmul.mubr.bf16.gmra.mrb[0].mxu0 %v1353
      %v1439 = vpop.f32.mrb[0].mxu0
      %v1440 = vadd.f32 0.0, %v1439
      %v1441 = vpop.f32.mrb[0].mxu0
      %v1442 = vpop.f32.mrb[0].mxu0
      %v1443 = vadd.f32 0.0, %v1442
      %v1444 = vpop.f32.mrb[0].mxu0
      %1445 = vmatprep.mubr.bf16.mxu0 0
      %1446 = vmatmul.mubr.bf16.gmra.mrb[0].mxu0 %v1354
      %v1447 = vpop.f32.mrb[0].mxu0
      %v1448 = vadd.f32 0.0, %v1447
      %v1449 = vpop.f32.mrb[0].mxu0
      %v1450 = vpop.f32.mrb[0].mxu0
      %v1451 = vadd.f32 0.0, %v1450
      %v1452 = vpop.f32.mrb[0].mxu0
      %1453 = vmatprep.mubr.bf16.mxu0 0
      %1454 = vmatmul.mubr.bf16.gmra.mrb[0].mxu0 %v1355
      %v1455 = vpop.f32.mrb[0].mxu0
      %v1456 = vadd.f32 0.0, %v1455
      %v1457 = vpop.f32.mrb[0].mxu0
      %v1458 = vpop.f32.mrb[0].mxu0
      %v1459 = vadd.f32 0.0, %v1458
      %v1460 = vpop.f32.mrb[0].mxu0
      %1461 = vmatprep.mubr.bf16.mxu0 0
      %1462 = vmatmul.mubr.bf16.gmra.mrb[0].mxu0 %v1356
      %v1463 = vpop.f32.mrb[0].mxu0
      %v1464 = vadd.f32 0.0, %v1463
      %v1465 = vpop.f32.mrb[0].mxu0
      %v1466 = vpop.f32.mrb[0].mxu0
      %v1467 = vadd.f32 0.0, %v1466
      %v1468 = vpop.f32.mrb[0].mxu0
      %1469 = vmatprep.mubr.bf16.mxu0 0
      %1470 = vmatmul.mubr.bf16.gmra.mrb[0].mxu0 %v1357
      %v1471 = vpop.f32.mrb[0].mxu0
      %v1472 = vadd.f32 0.0, %v1471
      %v1473 = vpop.f32.mrb[0].mxu0
      %v1474 = vpop.f32.mrb[0].mxu0
      %v1475 = vadd.f32 0.0, %v1474
      %v1476 = vpop.f32.mrb[0].mxu0
      %1477 = vmatprep.mubr.bf16.mxu0 0
      %1478 = vmatmul.mubr.bf16.gmra.mrb[0].mxu0 %v1358
      %v1479 = vpop.f32.mrb[0].mxu0
      %v1480 = vadd.f32 0.0, %v1479
      %v1481 = vpop.f32.mrb[0].mxu0
      %v1482 = vpop.f32.mrb[0].mxu0
      %v1483 = vadd.f32 0.0, %v1482
      %v1484 = vpop.f32.mrb[0].mxu0
      %1485 = vmatprep.mubr.bf16.mxu0 0
      %1486 = vmatmul.mubr.bf16.gmra.mrb[0].mxu0 %v1359
      %v1487 = vpop.f32.mrb[0].mxu0
      %v1488 = vadd.f32 0.0, %v1487
      %v1489 = vpop.f32.mrb[0].mxu0
      %v1490 = vpop.f32.mrb[0].mxu0
      %v1491 = vadd.f32 0.0, %v1490
      %v1492 = vpop.f32.mrb[0].mxu0
      %1493 = vmatprep.mubr.bf16.mxu0 0
      %1494 = vmatmul.mubr.bf16.gmra.mrb[0].mxu0 %v1360
      %v1495 = vpop.f32.mrb[0].mxu0
      %v1496 = vadd.f32 0.0, %v1495
      %v1497 = vpop.f32.mrb[0].mxu0
      %v1498 = vpop.f32.mrb[0].mxu0
      %v1499 = vadd.f32 0.0, %v1498
      %v1500 = vpop.f32.mrb[0].mxu0
      %1501 = vmatprep.mubr.bf16.mxu0 0
      %1502 = vmatmul.mubr.bf16.gmra.mrb[0].mxu0 %v1361
      %v1503 = vpop.f32.mrb[0].mxu0
      %v1504 = vadd.f32 0.0, %v1503
      %v1505 = vpop.f32.mrb[0].mxu0
      %v1506 = vpop.f32.mrb[0].mxu0
      %v1507 = vadd.f32 0.0, %v1506
      %v1508 = vpop.f32.mrb[0].mxu0
      %1509 = vmatprep.mubr.bf16.mxu0 0
      %1510 = vmatmul.mubr.bf16.gmra.mrb[0].mxu0 %v1362
      %v1511 = vpop.f32.mrb[0].mxu0
      %v1512 = vadd.f32 0.0, %v1511
      %v1513 = vpop.f32.mrb[0].mxu0
      %v1514 = vpop.f32.mrb[0].mxu0
      %v1515 = vadd.f32 0.0, %v1514
      %v1516 = vpop.f32.mrb[0].mxu0
      %1517 = vmatprep.mubr.bf16.mxu0 0
      %1518 = vmatmul.mubr.bf16.gmra.mrb[0].mxu0 %v1363
      %v1519 = vpop.f32.mrb[0].mxu0
      %v1520 = vadd.f32 0.0, %v1519
      %v1521 = vpop.f32.mrb[0].mxu0
      %v1522 = vpop.f32.mrb[0].mxu0
      %v1523 = vadd.f32 0.0, %v1522
      %v1524 = vpop.f32.mrb[0].mxu0
      %1525 = vdwg.mxu0
      %v1526 = vmul.f32 %v1400, 0.088388346
      %v1527 = vmul.f32 %v1403, 0.088388346
      %v1528 = vmul.f32 %v1408, 0.088388346
      %v1529 = vmul.f32 %v1411, 0.088388346
      %v1530 = vmul.f32 %v1416, 0.088388346
      %v1531 = vmul.f32 %v1419, 0.088388346
      %v1532 = vmul.f32 %v1424, 0.088388346
      %v1533 = vmul.f32 %v1427, 0.088388346
      %v1534 = vmul.f32 %v1432, 0.088388346
      %v1535 = vmul.f32 %v1435, 0.088388346
      %v1536 = vmul.f32 %v1440, 0.088388346
      %v1537 = vmul.f32 %v1443, 0.088388346
      %v1538 = vmul.f32 %v1448, 0.088388346
      %v1539 = vmul.f32 %v1451, 0.088388346
      %v1540 = vmul.f32 %v1456, 0.088388346
      %v1541 = vmul.f32 %v1459, 0.088388346
      %v1542 = vmul.f32 %v1464, 0.088388346
      %v1543 = vmul.f32 %v1467, 0.088388346
      %v1544 = vmul.f32 %v1472, 0.088388346
      %v1545 = vmul.f32 %v1475, 0.088388346
      %v1546 = vmul.f32 %v1480, 0.088388346
      %v1547 = vmul.f32 %v1483, 0.088388346
      %v1548 = vmul.f32 %v1488, 0.088388346
      %v1549 = vmul.f32 %v1491, 0.088388346
      %v1550 = vmul.f32 %v1496, 0.088388346
      %v1551 = vmul.f32 %v1499, 0.088388346
      %v1552 = vmul.f32 %v1504, 0.088388346
      %v1553 = vmul.f32 %v1507, 0.088388346
      %v1554 = vmul.f32 %v1512, 0.088388346
      %v1555 = vmul.f32 %v1515, 0.088388346
      %v1556 = vmul.f32 %v1520, 0.088388346
      %v1557 = vmul.f32 %v1523, 0.088388346
      %vm1558 = vcmask 31744
      %v1559 = vsel %vm1558, %v1526, -inf
      %1560 = vmax.xlane.f32.xlu0 %v1559
      %v1561 = vpop.xlane.xlu0 %1560
      %v1562 = vsel %vm1558, %v1527, -inf
      %1563 = vmax.xlane.f32.xlu0 %v1562
      %v1564 = vpop.xlane.xlu0 %1563
      %v1565 = vsel %vm1558, %v1528, -inf
      %1566 = vmax.xlane.f32.xlu0 %v1565
      %v1567 = vpop.xlane.xlu0 %1566
      %v1568 = vsel %vm1558, %v1529, -inf
      %1569 = vmax.xlane.f32.xlu0 %v1568
      %v1570 = vpop.xlane.xlu0 %1569
      %v1571 = vsel %vm1558, %v1530, -inf
      %1572 = vmax.xlane.f32.xlu0 %v1571
      %v1573 = vpop.xlane.xlu0 %1572
      %v1574 = vsel %vm1558, %v1531, -inf
      %1575 = vmax.xlane.f32.xlu0 %v1574
      %v1576 = vpop.xlane.xlu0 %1575
      %v1577 = vsel %vm1558, %v1532, -inf
      %1578 = vmax.xlane.f32.xlu0 %v1577
      %v1579 = vpop.xlane.xlu0 %1578
      %v1580 = vsel %vm1558, %v1533, -inf
      %1581 = vmax.xlane.f32.xlu0 %v1580
      %v1582 = vpop.xlane.xlu0 %1581
      %v1583 = vsel %vm1558, %v1534, -inf
      %1584 = vmax.xlane.f32.xlu0 %v1583
      %v1585 = vpop.xlane.xlu0 %1584
      %v1586 = vsel %vm1558, %v1535, -inf
      %1587 = vmax.xlane.f32.xlu0 %v1586
      %v1588 = vpop.xlane.xlu0 %1587
      %v1589 = vsel %vm1558, %v1536, -inf
      %1590 = vmax.xlane.f32.xlu0 %v1589
      %v1591 = vpop.xlane.xlu0 %1590
      %v1592 = vsel %vm1558, %v1537, -inf
      %1593 = vmax.xlane.f32.xlu0 %v1592
      %v1594 = vpop.xlane.xlu0 %1593
      %v1595 = vsel %vm1558, %v1538, -inf
      %1596 = vmax.xlane.f32.xlu0 %v1595
      %v1597 = vpop.xlane.xlu0 %1596
      %v1598 = vsel %vm1558, %v1539, -inf
      %1599 = vmax.xlane.f32.xlu0 %v1598
      %v1600 = vpop.xlane.xlu0 %1599
      %v1601 = vsel %vm1558, %v1540, -inf
      %1602 = vmax.xlane.f32.xlu0 %v1601
      %v1603 = vpop.xlane.xlu0 %1602
      %v1604 = vsel %vm1558, %v1541, -inf
      %1605 = vmax.xlane.f32.xlu0 %v1604
      %v1606 = vpop.xlane.xlu0 %1605
      %v1607 = vsel %vm1558, %v1542, -inf
      %1608 = vmax.xlane.f32.xlu0 %v1607
      %v1609 = vpop.xlane.xlu0 %1608
      %v1610 = vsel %vm1558, %v1543, -inf
      %1611 = vmax.xlane.f32.xlu0 %v1610
      %v1612 = vpop.xlane.xlu0 %1611
      %v1613 = vsel %vm1558, %v1544, -inf
      %1614 = vmax.xlane.f32.xlu0 %v1613
      %v1615 = vpop.xlane.xlu0 %1614
      %v1616 = vsel %vm1558, %v1545, -inf
      %1617 = vmax.xlane.f32.xlu0 %v1616
      %v1618 = vpop.xlane.xlu0 %1617
      %v1619 = vsel %vm1558, %v1546, -inf
      %1620 = vmax.xlane.f32.xlu0 %v1619
      %v1621 = vpop.xlane.xlu0 %1620
      %v1622 = vsel %vm1558, %v1547, -inf
      %1623 = vmax.xlane.f32.xlu0 %v1622
      %v1624 = vpop.xlane.xlu0 %1623
      %v1625 = vsel %vm1558, %v1548, -inf
      %1626 = vmax.xlane.f32.xlu0 %v1625
      %v1627 = vpop.xlane.xlu0 %1626
      %v1628 = vsel %vm1558, %v1549, -inf
      %1629 = vmax.xlane.f32.xlu0 %v1628
      %v1630 = vpop.xlane.xlu0 %1629
      %v1631 = vsel %vm1558, %v1550, -inf
      %1632 = vmax.xlane.f32.xlu0 %v1631
      %v1633 = vpop.xlane.xlu0 %1632
      %v1634 = vsel %vm1558, %v1551, -inf
      %1635 = vmax.xlane.f32.xlu0 %v1634
      %v1636 = vpop.xlane.xlu0 %1635
      %v1637 = vsel %vm1558, %v1552, -inf
      %1638 = vmax.xlane.f32.xlu0 %v1637
      %v1639 = vpop.xlane.xlu0 %1638
      %v1640 = vsel %vm1558, %v1553, -inf
      %1641 = vmax.xlane.f32.xlu0 %v1640
      %v1642 = vpop.xlane.xlu0 %1641
      %v1643 = vsel %vm1558, %v1554, -inf
      %1644 = vmax.xlane.f32.xlu0 %v1643
      %v1645 = vpop.xlane.xlu0 %1644
      %v1646 = vsel %vm1558, %v1555, -inf
      %1647 = vmax.xlane.f32.xlu0 %v1646
      %v1648 = vpop.xlane.xlu0 %1647
      %v1649 = vsel %vm1558, %v1556, -inf
      %1650 = vmax.xlane.f32.xlu0 %v1649
      %v1651 = vpop.xlane.xlu0 %1650
      %v1652 = vsel %vm1558, %v1557, -inf
      %1653 = vmax.xlane.f32.xlu0 %v1652
      %v1654 = vpop.xlane.xlu0 %1653
      %v1655 = vsub.f32 %v1526, %v1561
      %v1656 = vsub.f32 %v1527, %v1564
      %v1657 = vsub.f32 %v1528, %v1567
      %v1658 = vsub.f32 %v1529, %v1570
      %v1659 = vsub.f32 %v1530, %v1573
      %v1660 = vsub.f32 %v1531, %v1576
      %v1661 = vsub.f32 %v1532, %v1579
      %v1662 = vsub.f32 %v1533, %v1582
      %v1663 = vsub.f32 %v1534, %v1585
      %v1664 = vsub.f32 %v1535, %v1588
      %v1665 = vsub.f32 %v1536, %v1591
      %v1666 = vsub.f32 %v1537, %v1594
      %v1667 = vsub.f32 %v1538, %v1597
      %v1668 = vsub.f32 %v1539, %v1600
      %v1669 = vsub.f32 %v1540, %v1603
      %v1670 = vsub.f32 %v1541, %v1606
      %v1671 = vsub.f32 %v1542, %v1609
      %v1672 = vsub.f32 %v1543, %v1612
      %v1673 = vsub.f32 %v1544, %v1615
      %v1674 = vsub.f32 %v1545, %v1618
      %v1675 = vsub.f32 %v1546, %v1621
      %v1676 = vsub.f32 %v1547, %v1624
      %v1677 = vsub.f32 %v1548, %v1627
      %v1678 = vsub.f32 %v1549, %v1630
      %v1679 = vsub.f32 %v1550, %v1633
      %v1680 = vsub.f32 %v1551, %v1636
      %v1681 = vsub.f32 %v1552, %v1639
      %v1682 = vsub.f32 %v1553, %v1642
      %v1683 = vsub.f32 %v1554, %v1645
      %v1684 = vsub.f32 %v1555, %v1648
      %v1685 = vsub.f32 %v1556, %v1651
      %v1686 = vsub.f32 %v1557, %v1654
      %v1687 = vmul.f32 %v1655, 1.442695
      %v1688 = vpow.pop %v1687
      %v1689 = vmul.f32 %v1656, 1.442695
      %v1690 = vpow.pop %v1689
      %v1691 = vmul.f32 %v1657, 1.442695
      %v1692 = vpow.pop %v1691
      %v1693 = vmul.f32 %v1658, 1.442695
      %v1694 = vpow.pop %v1693
      %v1695 = vmul.f32 %v1659, 1.442695
      %v1696 = vpow.pop %v1695
      %v1697 = vmul.f32 %v1660, 1.442695
      %v1698 = vpow.pop %v1697
      %v1699 = vmul.f32 %v1661, 1.442695
      %v1700 = vpow.pop %v1699
      %v1701 = vmul.f32 %v1662, 1.442695
      %v1702 = vpow.pop %v1701
      %v1703 = vmul.f32 %v1663, 1.442695
      %v1704 = vpow.pop %v1703
      %v1705 = vmul.f32 %v1664, 1.442695
      %v1706 = vpow.pop %v1705
      %v1707 = vmul.f32 %v1665, 1.442695
      %v1708 = vpow.pop %v1707
      %v1709 = vmul.f32 %v1666, 1.442695
      %v1710 = vpow.pop %v1709
      %v1711 = vmul.f32 %v1667, 1.442695
      %v1712 = vpow.pop %v1711
      %v1713 = vmul.f32 %v1668, 1.442695
      %v1714 = vpow.pop %v1713
      %v1715 = vmul.f32 %v1669, 1.442695
      %v1716 = vpow.pop %v1715
      %v1717 = vmul.f32 %v1670, 1.442695
      %v1718 = vpow.pop %v1717
      %v1719 = vmul.f32 %v1671, 1.442695
      %v1720 = vpow.pop %v1719
      %v1721 = vmul.f32 %v1672, 1.442695
      %v1722 = vpow.pop %v1721
      %v1723 = vmul.f32 %v1673, 1.442695
      %v1724 = vpow.pop %v1723
      %v1725 = vmul.f32 %v1674, 1.442695
      %v1726 = vpow.pop %v1725
      %v1727 = vmul.f32 %v1675, 1.442695
      %v1728 = vpow.pop %v1727
      %v1729 = vmul.f32 %v1676, 1.442695
      %v1730 = vpow.pop %v1729
      %v1731 = vmul.f32 %v1677, 1.442695
      %v1732 = vpow.pop %v1731
      %v1733 = vmul.f32 %v1678, 1.442695
      %v1734 = vpow.pop %v1733
      %v1735 = vmul.f32 %v1679, 1.442695
      %v1736 = vpow.pop %v1735
      %v1737 = vmul.f32 %v1680, 1.442695
      %v1738 = vpow.pop %v1737
      %v1739 = vmul.f32 %v1681, 1.442695
      %v1740 = vpow.pop %v1739
      %v1741 = vmul.f32 %v1682, 1.442695
      %v1742 = vpow.pop %v1741
      %v1743 = vmul.f32 %v1683, 1.442695
      %v1744 = vpow.pop %v1743
      %v1745 = vmul.f32 %v1684, 1.442695
      %v1746 = vpow.pop %v1745
      %v1747 = vmul.f32 %v1685, 1.442695
      %v1748 = vpow.pop %v1747
      %v1749 = vmul.f32 %v1686, 1.442695
      %v1750 = vpow.pop %v1749
      %v1751 = vsel %vm1558, %v1688, 0.0
      %1752 = vadd.xlane.f32.xlu0 %v1751
      %v1753 = vpop.xlane.xlu0 %1752
      %v1754 = vsel %vm1558, %v1690, 0.0
      %1755 = vadd.xlane.f32.xlu0 %v1754
      %v1756 = vpop.xlane.xlu0 %1755
      %v1757 = vsel %vm1558, %v1692, 0.0
      %1758 = vadd.xlane.f32.xlu0 %v1757
      %v1759 = vpop.xlane.xlu0 %1758
      %v1760 = vsel %vm1558, %v1694, 0.0
      %1761 = vadd.xlane.f32.xlu0 %v1760
      %v1762 = vpop.xlane.xlu0 %1761
      %v1763 = vsel %vm1558, %v1696, 0.0
      %1764 = vadd.xlane.f32.xlu0 %v1763
      %v1765 = vpop.xlane.xlu0 %1764
      %v1766 = vsel %vm1558, %v1698, 0.0
      %1767 = vadd.xlane.f32.xlu0 %v1766
      %v1768 = vpop.xlane.xlu0 %1767
      %v1769 = vsel %vm1558, %v1700, 0.0
      %1770 = vadd.xlane.f32.xlu0 %v1769
      %v1771 = vpop.xlane.xlu0 %1770
      %v1772 = vsel %vm1558, %v1702, 0.0
      %1773 = vadd.xlane.f32.xlu0 %v1772
      %v1774 = vpop.xlane.xlu0 %1773
      %v1775 = vsel %vm1558, %v1704, 0.0
      %1776 = vadd.xlane.f32.xlu0 %v1775
      %v1777 = vpop.xlane.xlu0 %1776
      %v1778 = vsel %vm1558, %v1706, 0.0
      %1779 = vadd.xlane.f32.xlu0 %v1778
      %v1780 = vpop.xlane.xlu0 %1779
      %v1781 = vsel %vm1558, %v1708, 0.0
      %1782 = vadd.xlane.f32.xlu0 %v1781
      %v1783 = vpop.xlane.xlu0 %1782
      %v1784 = vsel %vm1558, %v1710, 0.0
      %1785 = vadd.xlane.f32.xlu0 %v1784
      %v1786 = vpop.xlane.xlu0 %1785
      %v1787 = vsel %vm1558, %v1712, 0.0
      %1788 = vadd.xlane.f32.xlu0 %v1787
      %v1789 = vpop.xlane.xlu0 %1788
      %v1790 = vsel %vm1558, %v1714, 0.0
      %1791 = vadd.xlane.f32.xlu0 %v1790
      %v1792 = vpop.xlane.xlu0 %1791
      %v1793 = vsel %vm1558, %v1716, 0.0
      %1794 = vadd.xlane.f32.xlu0 %v1793
      %v1795 = vpop.xlane.xlu0 %1794
      %v1796 = vsel %vm1558, %v1718, 0.0
      %1797 = vadd.xlane.f32.xlu0 %v1796
      %v1798 = vpop.xlane.xlu0 %1797
      %v1799 = vsel %vm1558, %v1720, 0.0
      %1800 = vadd.xlane.f32.xlu0 %v1799
      %v1801 = vpop.xlane.xlu0 %1800
      %v1802 = vsel %vm1558, %v1722, 0.0
      %1803 = vadd.xlane.f32.xlu0 %v1802
      %v1804 = vpop.xlane.xlu0 %1803
      %v1805 = vsel %vm1558, %v1724, 0.0
      %1806 = vadd.xlane.f32.xlu0 %v1805
      %v1807 = vpop.xlane.xlu0 %1806
      %v1808 = vsel %vm1558, %v1726, 0.0
      %1809 = vadd.xlane.f32.xlu0 %v1808
      %v1810 = vpop.xlane.xlu0 %1809
      %v1811 = vsel %vm1558, %v1728, 0.0
      %1812 = vadd.xlane.f32.xlu0 %v1811
      %v1813 = vpop.xlane.xlu0 %1812
      %v1814 = vsel %vm1558, %v1730, 0.0
      %1815 = vadd.xlane.f32.xlu0 %v1814
      %v1816 = vpop.xlane.xlu0 %1815
      %v1817 = vsel %vm1558, %v1732, 0.0
      %1818 = vadd.xlane.f32.xlu0 %v1817
      %v1819 = vpop.xlane.xlu0 %1818
      %v1820 = vsel %vm1558, %v1734, 0.0
      %1821 = vadd.xlane.f32.xlu0 %v1820
      %v1822 = vpop.xlane.xlu0 %1821
      %v1823 = vsel %vm1558, %v1736, 0.0
      %1824 = vadd.xlane.f32.xlu0 %v1823
      %v1825 = vpop.xlane.xlu0 %1824
      %v1826 = vsel %vm1558, %v1738, 0.0
      %1827 = vadd.xlane.f32.xlu0 %v1826
      %v1828 = vpop.xlane.xlu0 %1827
      %v1829 = vsel %vm1558, %v1740, 0.0
      %1830 = vadd.xlane.f32.xlu0 %v1829
      %v1831 = vpop.xlane.xlu0 %1830
      %v1832 = vsel %vm1558, %v1742, 0.0
      %1833 = vadd.xlane.f32.xlu0 %v1832
      %v1834 = vpop.xlane.xlu0 %1833
      %v1835 = vsel %vm1558, %v1744, 0.0
      %1836 = vadd.xlane.f32.xlu0 %v1835
      %v1837 = vpop.xlane.xlu0 %1836
      %v1838 = vsel %vm1558, %v1746, 0.0
      %1839 = vadd.xlane.f32.xlu0 %v1838
      %v1840 = vpop.xlane.xlu0 %1839
      %v1841 = vsel %vm1558, %v1748, 0.0
      %1842 = vadd.xlane.f32.xlu0 %v1841
      %v1843 = vpop.xlane.xlu0 %1842
      %v1844 = vsel %vm1558, %v1750, 0.0
      %1845 = vadd.xlane.f32.xlu0 %v1844
      %v1846 = vpop.xlane.xlu0 %1845
      %v1847 = vrcp.pop %v1753
      %v1848 = vrcp.pop %v1756
      %v1849 = vrcp.pop %v1759
      %v1850 = vrcp.pop %v1762
      %v1851 = vrcp.pop %v1765
      %v1852 = vrcp.pop %v1768
      %v1853 = vrcp.pop %v1771
      %v1854 = vrcp.pop %v1774
      %v1855 = vrcp.pop %v1777
      %v1856 = vrcp.pop %v1780
      %v1857 = vrcp.pop %v1783
      %v1858 = vrcp.pop %v1786
      %v1859 = vrcp.pop %v1789
      %v1860 = vrcp.pop %v1792
      %v1861 = vrcp.pop %v1795
      %v1862 = vrcp.pop %v1798
      %v1863 = vrcp.pop %v1801
      %v1864 = vrcp.pop %v1804
      %v1865 = vrcp.pop %v1807
      %v1866 = vrcp.pop %v1810
      %v1867 = vrcp.pop %v1813
      %v1868 = vrcp.pop %v1816
      %v1869 = vrcp.pop %v1819
      %v1870 = vrcp.pop %v1822
      %v1871 = vrcp.pop %v1825
      %v1872 = vrcp.pop %v1828
      %v1873 = vrcp.pop %v1831
      %v1874 = vrcp.pop %v1834
      %v1875 = vrcp.pop %v1837
      %v1876 = vrcp.pop %v1840
      %v1877 = vrcp.pop %v1843
      %v1878 = vrcp.pop %v1846
      %v1879 = vmul.f32 %v1688, %v1847
      %v1880 = vmul.f32 %v1690, %v1848
      %v1881 = vmul.f32 %v1692, %v1849
      %v1882 = vmul.f32 %v1694, %v1850
      %v1883 = vmul.f32 %v1696, %v1851
      %v1884 = vmul.f32 %v1698, %v1852
      %v1885 = vmul.f32 %v1700, %v1853
      %v1886 = vmul.f32 %v1702, %v1854
      %v1887 = vmul.f32 %v1704, %v1855
      %v1888 = vmul.f32 %v1706, %v1856
      %v1889 = vmul.f32 %v1708, %v1857
      %v1890 = vmul.f32 %v1710, %v1858
      %v1891 = vmul.f32 %v1712, %v1859
      %v1892 = vmul.f32 %v1714, %v1860
      %v1893 = vmul.f32 %v1716, %v1861
      %v1894 = vmul.f32 %v1718, %v1862
      %v1895 = vmul.f32 %v1720, %v1863
      %v1896 = vmul.f32 %v1722, %v1864
      %v1897 = vmul.f32 %v1724, %v1865
      %v1898 = vmul.f32 %v1726, %v1866
      %v1899 = vmul.f32 %v1728, %v1867
      %v1900 = vmul.f32 %v1730, %v1868
      %v1901 = vmul.f32 %v1732, %v1869
      %v1902 = vmul.f32 %v1734, %v1870
      %v1903 = vmul.f32 %v1736, %v1871
      %v1904 = vmul.f32 %v1738, %v1872
      %v1905 = vmul.f32 %v1740, %v1873
      %v1906 = vmul.f32 %v1742, %v1874
      %v1907 = vmul.f32 %v1744, %v1875
      %v1908 = vmul.f32 %v1746, %v1876
      %v1909 = vmul.f32 %v1748, %v1877
      %v1910 = vmul.f32 %v1750, %v1878
      %v1911 = vpack.c.bf16 %v1880, %v1879
      %v1912 = vpack.c.bf16 %v1882, %v1881
      %v1913 = vpack.c.bf16 %v1884, %v1883
      %v1914 = vpack.c.bf16 %v1886, %v1885
      %v1915 = vpack.c.bf16 %v1888, %v1887
      %v1916 = vpack.c.bf16 %v1890, %v1889
      %v1917 = vpack.c.bf16 %v1892, %v1891
      %v1918 = vpack.c.bf16 %v1894, %v1893
      %v1919 = vpack.c.bf16 %v1896, %v1895
      %v1920 = vpack.c.bf16 %v1898, %v1897
      %v1921 = vpack.c.bf16 %v1900, %v1899
      %v1922 = vpack.c.bf16 %v1902, %v1901
      %v1923 = vpack.c.bf16 %v1904, %v1903
      %v1924 = vpack.c.bf16 %v1906, %v1905
      %v1925 = vpack.c.bf16 %v1908, %v1907
      %v1926 = vpack.c.bf16 %v1910, %v1909
      %v1927 = vld [vmem:[%s530] sm:$0x3]
      %v1929 = vsel %vm1558, %v1911, 0
      %v1932 = vsel %vm1558, %v1912, 0
      %v1935 = vsel %vm1558, %v1913, 0
      %v1938 = vsel %vm1558, %v1914, 0
      %v1941 = vsel %vm1558, %v1915, 0
      %v1944 = vsel %vm1558, %v1916, 0
      %v1947 = vsel %vm1558, %v1917, 0
      %v1950 = vsel %vm1558, %v1918, 0
      %v1953 = vsel %vm1558, %v1919, 0
      %v1956 = vsel %vm1558, %v1920, 0
      %v1959 = vsel %vm1558, %v1921, 0
      %v1962 = vsel %vm1558, %v1922, 0
      %v1965 = vsel %vm1558, %v1923, 0
      %v1968 = vsel %vm1558, %v1924, 0
      %v1971 = vsel %vm1558, %v1925, 0
      %v1974 = vsel %vm1558, %v1926, 0
      %vm1976 = vcmask 1041408
      %v1978 = vsel %vm1976, %v1927, 0
      %1980 = vmatprep.subr.bf16.mxu0 0
      %1981 = vmatpush1.bf16.msra.mxu0 %v1978
      %1982 = vmatprep.subr.bf16.mxu0 0
      %1983 = vmatpush1.bf16.msra.mxu0 0
      %1984 = vmatprep.subr.bf16.mxu0 0
      %1985 = vmatpush1.bf16.msra.mxu0 0
      %1986 = vmatprep.subr.bf16.mxu0 0
      %1987 = vmatpush1.bf16.msra.mxu0 0
      %1988 = vmatprep.subr.bf16.mxu0 0
      %1989 = vmatpush1.bf16.msra.mxu0 0
      %1990 = vmatprep.subr.bf16.mxu0 0
      %1991 = vmatpush1.bf16.msra.mxu0 0
      %1992 = vmatprep.subr.bf16.mxu0 0
      %1993 = vmatpush1.bf16.msra.mxu0 0
      %1994 = vmatprep.subr.bf16.mxu0 0
      %1995 = vmatpush1.bf16.msra.mxu0 0
      %1996 = vmatprep.subr.bf16.mxu0 0
      %1997 = vmatpush1.bf16.msra.mxu0 0
      %1998 = vmatprep.subr.bf16.mxu0 0
      %1999 = vmatpush1.bf16.msra.mxu0 0
      %2000 = vmatprep.subr.bf16.mxu0 0
      %2001 = vmatpush1.bf16.msra.mxu0 0
      %2002 = vmatprep.subr.bf16.mxu0 0
      %2003 = vmatpush1.bf16.msra.mxu0 0
      %2004 = vmatprep.subr.bf16.mxu0 0
      %2005 = vmatpush1.bf16.msra.mxu0 0
      %2006 = vmatprep.subr.bf16.mxu0 0
      %2007 = vmatpush1.bf16.msra.mxu0 0
      %2008 = vmatprep.subr.bf16.mxu0 0
      %2009 = vmatpush1.bf16.msra.mxu0 0
      %2010 = vmatprep.subr.bf16.mxu0 0
      %2011 = vmatpush1.bf16.msra.mxu0 0
      %2012 = vmatprep.mubr.bf16.mxu0 0
      %2013 = vmatmul.mubr.bf16.gmra.mrb[0].mxu0 %v1929
      %v2014 = vpop.f32.mrb[0].mxu0
      %v2015 = vadd.f32 0.0, %v2014
      %v2016 = vpop.f32.mrb[0].mxu0
      %v2017 = vpop.f32.mrb[0].mxu0
      %v2018 = vadd.f32 0.0, %v2017
      %v2019 = vpop.f32.mrb[0].mxu0
      %2020 = vmatprep.mubr.bf16.mxu0 0
      %2021 = vmatmul.mubr.bf16.gmra.mrb[0].mxu0 %v1932
      %v2022 = vpop.f32.mrb[0].mxu0
      %v2023 = vadd.f32 0.0, %v2022
      %v2024 = vpop.f32.mrb[0].mxu0
      %v2025 = vpop.f32.mrb[0].mxu0
      %v2026 = vadd.f32 0.0, %v2025
      %v2027 = vpop.f32.mrb[0].mxu0
      %2028 = vmatprep.mubr.bf16.mxu0 0
      %2029 = vmatmul.mubr.bf16.gmra.mrb[0].mxu0 %v1935
      %v2030 = vpop.f32.mrb[0].mxu0
      %v2031 = vadd.f32 0.0, %v2030
      %v2032 = vpop.f32.mrb[0].mxu0
      %v2033 = vpop.f32.mrb[0].mxu0
      %v2034 = vadd.f32 0.0, %v2033
      %v2035 = vpop.f32.mrb[0].mxu0
      %2036 = vmatprep.mubr.bf16.mxu0 0
      %2037 = vmatmul.mubr.bf16.gmra.mrb[0].mxu0 %v1938
      %v2038 = vpop.f32.mrb[0].mxu0
      %v2039 = vadd.f32 0.0, %v2038
      %v2040 = vpop.f32.mrb[0].mxu0
      %v2041 = vpop.f32.mrb[0].mxu0
      %v2042 = vadd.f32 0.0, %v2041
      %v2043 = vpop.f32.mrb[0].mxu0
      %2044 = vmatprep.mubr.bf16.mxu0 0
      %2045 = vmatmul.mubr.bf16.gmra.mrb[0].mxu0 %v1941
      %v2046 = vpop.f32.mrb[0].mxu0
      %v2047 = vadd.f32 0.0, %v2046
      %v2048 = vpop.f32.mrb[0].mxu0
      %v2049 = vpop.f32.mrb[0].mxu0
      %v2050 = vadd.f32 0.0, %v2049
      %v2051 = vpop.f32.mrb[0].mxu0
      %2052 = vmatprep.mubr.bf16.mxu0 0
      %2053 = vmatmul.mubr.bf16.gmra.mrb[0].mxu0 %v1944
      %v2054 = vpop.f32.mrb[0].mxu0
      %v2055 = vadd.f32 0.0, %v2054
      %v2056 = vpop.f32.mrb[0].mxu0
      %v2057 = vpop.f32.mrb[0].mxu0
      %v2058 = vadd.f32 0.0, %v2057
      %v2059 = vpop.f32.mrb[0].mxu0
      %2060 = vmatprep.mubr.bf16.mxu0 0
      %2061 = vmatmul.mubr.bf16.gmra.mrb[0].mxu0 %v1947
      %v2062 = vpop.f32.mrb[0].mxu0
      %v2063 = vadd.f32 0.0, %v2062
      %v2064 = vpop.f32.mrb[0].mxu0
      %v2065 = vpop.f32.mrb[0].mxu0
      %v2066 = vadd.f32 0.0, %v2065
      %v2067 = vpop.f32.mrb[0].mxu0
      %2068 = vmatprep.mubr.bf16.mxu0 0
      %2069 = vmatmul.mubr.bf16.gmra.mrb[0].mxu0 %v1950
      %v2070 = vpop.f32.mrb[0].mxu0
      %v2071 = vadd.f32 0.0, %v2070
      %v2072 = vpop.f32.mrb[0].mxu0
      %v2073 = vpop.f32.mrb[0].mxu0
      %v2074 = vadd.f32 0.0, %v2073
      %v2075 = vpop.f32.mrb[0].mxu0
      %2076 = vmatprep.mubr.bf16.mxu0 0
      %2077 = vmatmul.mubr.bf16.gmra.mrb[0].mxu0 %v1953
      %v2078 = vpop.f32.mrb[0].mxu0
      %v2079 = vadd.f32 0.0, %v2078
      %v2080 = vpop.f32.mrb[0].mxu0
      %v2081 = vpop.f32.mrb[0].mxu0
      %v2082 = vadd.f32 0.0, %v2081
      %v2083 = vpop.f32.mrb[0].mxu0
      %2084 = vmatprep.mubr.bf16.mxu0 0
      %2085 = vmatmul.mubr.bf16.gmra.mrb[0].mxu0 %v1956
      %v2086 = vpop.f32.mrb[0].mxu0
      %v2087 = vadd.f32 0.0, %v2086
      %v2088 = vpop.f32.mrb[0].mxu0
      %v2089 = vpop.f32.mrb[0].mxu0
      %v2090 = vadd.f32 0.0, %v2089
      %v2091 = vpop.f32.mrb[0].mxu0
      %2092 = vmatprep.mubr.bf16.mxu0 0
      %2093 = vmatmul.mubr.bf16.gmra.mrb[0].mxu0 %v1959
      %v2094 = vpop.f32.mrb[0].mxu0
      %v2095 = vadd.f32 0.0, %v2094
      %v2096 = vpop.f32.mrb[0].mxu0
      %v2097 = vpop.f32.mrb[0].mxu0
      %v2098 = vadd.f32 0.0, %v2097
      %v2099 = vpop.f32.mrb[0].mxu0
      %2100 = vmatprep.mubr.bf16.mxu0 0
      %2101 = vmatmul.mubr.bf16.gmra.mrb[0].mxu0 %v1962
      %v2102 = vpop.f32.mrb[0].mxu0
      %v2103 = vadd.f32 0.0, %v2102
      %v2104 = vpop.f32.mrb[0].mxu0
      %v2105 = vpop.f32.mrb[0].mxu0
      %v2106 = vadd.f32 0.0, %v2105
      %v2107 = vpop.f32.mrb[0].mxu0
      %2108 = vmatprep.mubr.bf16.mxu0 0
      %2109 = vmatmul.mubr.bf16.gmra.mrb[0].mxu0 %v1965
      %v2110 = vpop.f32.mrb[0].mxu0
      %v2111 = vadd.f32 0.0, %v2110
      %v2112 = vpop.f32.mrb[0].mxu0
      %v2113 = vpop.f32.mrb[0].mxu0
      %v2114 = vadd.f32 0.0, %v2113
      %v2115 = vpop.f32.mrb[0].mxu0
      %2116 = vmatprep.mubr.bf16.mxu0 0
      %2117 = vmatmul.mubr.bf16.gmra.mrb[0].mxu0 %v1968
      %v2118 = vpop.f32.mrb[0].mxu0
      %v2119 = vadd.f32 0.0, %v2118
      %v2120 = vpop.f32.mrb[0].mxu0
      %v2121 = vpop.f32.mrb[0].mxu0
      %v2122 = vadd.f32 0.0, %v2121
      %v2123 = vpop.f32.mrb[0].mxu0
      %2124 = vmatprep.mubr.bf16.mxu0 0
      %2125 = vmatmul.mubr.bf16.gmra.mrb[0].mxu0 %v1971
      %v2126 = vpop.f32.mrb[0].mxu0
      %v2127 = vadd.f32 0.0, %v2126
      %v2128 = vpop.f32.mrb[0].mxu0
      %v2129 = vpop.f32.mrb[0].mxu0
      %v2130 = vadd.f32 0.0, %v2129
      %v2131 = vpop.f32.mrb[0].mxu0
      %2132 = vmatprep.mubr.bf16.mxu0 0
      %2133 = vmatmul.mubr.bf16.gmra.mrb[0].mxu0 %v1974
      %v2134 = vpop.f32.mrb[0].mxu0
      %v2135 = vadd.f32 0.0, %v2134
      %v2136 = vpop.f32.mrb[0].mxu0
      %v2137 = vpop.f32.mrb[0].mxu0
      %v2138 = vadd.f32 0.0, %v2137
      %v2139 = vpop.f32.mrb[0].mxu0
      %2140 = vdwg.mxu0
      %v2141 = vpack.c.bf16 %v2018, %v2015
      %v2142 = vpack.c.bf16 %v2026, %v2023
      %v2143 = vpack.c.bf16 %v2034, %v2031
      %v2144 = vpack.c.bf16 %v2042, %v2039
      %v2145 = vpack.c.bf16 %v2050, %v2047
      %v2146 = vpack.c.bf16 %v2058, %v2055
      %v2147 = vpack.c.bf16 %v2066, %v2063
      %v2148 = vpack.c.bf16 %v2074, %v2071
      %v2149 = vpack.c.bf16 %v2082, %v2079
      %v2150 = vpack.c.bf16 %v2090, %v2087
      %v2151 = vpack.c.bf16 %v2098, %v2095
      %v2152 = vpack.c.bf16 %v2106, %v2103
      %v2153 = vpack.c.bf16 %v2114, %v2111
      %v2154 = vpack.c.bf16 %v2122, %v2119
      %v2155 = vpack.c.bf16 %v2130, %v2127
      %v2156 = vpack.c.bf16 %v2138, %v2135
      %v2157 = vld [vmem:[%s7] sm:$0xf]
      %v2158 = vld [vmem:[%s7 + $0x4] sm:$0xf]
      %v2159 = vld [vmem:[%s7 + $0x8] sm:$0xf]
      %v2160 = vld [vmem:[%s7 + $0xc] sm:$0xf]
      %v2161 = vld [vmem:[%s7 + $0x10] sm:$0xf]
      %v2162 = vld [vmem:[%s7 + $0x14] sm:$0xf]
      %v2163 = vld [vmem:[%s7 + $0x18] sm:$0xf]
      %v2164 = vld [vmem:[%s7 + $0x1c] sm:$0xf]
      %v2165 = vld [vmem:[%s7 + $0x20] sm:$0xf]
      %v2166 = vld [vmem:[%s7 + $0x24] sm:$0xf]
      %v2167 = vld [vmem:[%s7 + $0x28] sm:$0xf]
      %v2168 = vld [vmem:[%s7 + $0x2c] sm:$0xf]
      %v2169 = vld [vmem:[%s7 + $0x30] sm:$0xf]
      %v2170 = vld [vmem:[%s7 + $0x34] sm:$0xf]
      %v2171 = vld [vmem:[%s7 + $0x38] sm:$0xf]
      %v2172 = vld [vmem:[%s7 + $0x3c] sm:$0xf]
      %v2189 = vunpack.c.l.b16 %v2157
      %v2190 = vunpack.c.l.b16 %v2158
      %v2191 = vunpack.c.l.b16 %v2159
      %v2192 = vunpack.c.l.b16 %v2160
      %v2193 = vunpack.c.l.b16 %v2161
      %v2194 = vunpack.c.l.b16 %v2162
      %v2195 = vunpack.c.l.b16 %v2163
      %v2196 = vunpack.c.l.b16 %v2164
      %v2197 = vunpack.c.l.b16 %v2165
      %v2198 = vunpack.c.l.b16 %v2166
      %v2199 = vunpack.c.l.b16 %v2167
      %v2200 = vunpack.c.l.b16 %v2168
      %v2201 = vunpack.c.l.b16 %v2169
      %v2202 = vunpack.c.l.b16 %v2170
      %v2203 = vunpack.c.l.b16 %v2171
      %v2204 = vunpack.c.l.b16 %v2172
      %v2205 = vpack.c.b16 %v2190, %v2189
      %v2206 = vpack.c.b16 %v2192, %v2191
      %v2207 = vpack.c.b16 %v2194, %v2193
      %v2208 = vpack.c.b16 %v2196, %v2195
      %v2209 = vpack.c.b16 %v2198, %v2197
      %v2210 = vpack.c.b16 %v2200, %v2199
      %v2211 = vpack.c.b16 %v2202, %v2201
      %v2212 = vpack.c.b16 %v2204, %v2203
      %2221 = vmatprep.subr.bf16.mxu0 0
      %2222 = vmatpush1.bf16.msra.mxu0 %v2205
      %2223 = vmatprep.subr.bf16.mxu0 0
      %2224 = vmatpush1.bf16.msra.mxu0 %v2206
      %2225 = vmatprep.subr.bf16.mxu0 0
      %2226 = vmatpush1.bf16.msra.mxu0 %v2207
      %2227 = vmatprep.subr.bf16.mxu0 0
      %2228 = vmatpush1.bf16.msra.mxu0 %v2208
      %2229 = vmatprep.subr.bf16.mxu0 0
      %2230 = vmatpush1.bf16.msra.mxu0 %v2209
      %2231 = vmatprep.subr.bf16.mxu0 0
      %2232 = vmatpush1.bf16.msra.mxu0 %v2210
      %2233 = vmatprep.subr.bf16.mxu0 0
      %2234 = vmatpush1.bf16.msra.mxu0 %v2211
      %2235 = vmatprep.subr.bf16.mxu0 0
      %2236 = vmatpush1.bf16.msra.mxu0 %v2212
      %2237 = vmatprep.subr.bf16.mxu0 0
      %2238 = vmatpush1.bf16.msra.mxu0 0
      %2239 = vmatprep.subr.bf16.mxu0 0
      %2240 = vmatpush1.bf16.msra.mxu0 0
      %2241 = vmatprep.subr.bf16.mxu0 0
      %2242 = vmatpush1.bf16.msra.mxu0 0
      %2243 = vmatprep.subr.bf16.mxu0 0
      %2244 = vmatpush1.bf16.msra.mxu0 0
      %2245 = vmatprep.subr.bf16.mxu0 0
      %2246 = vmatpush1.bf16.msra.mxu0 0
      %2247 = vmatprep.subr.bf16.mxu0 0
      %2248 = vmatpush1.bf16.msra.mxu0 0
      %2249 = vmatprep.subr.bf16.mxu0 0
      %2250 = vmatpush1.bf16.msra.mxu0 0
      %2251 = vmatprep.subr.bf16.mxu0 0
      %2252 = vmatpush1.bf16.msra.mxu0 0
      %2253 = vmatprep.mubr.bf16.mxu0 0
      %2254 = vmatmul.mubr.bf16.gmra.mrb[0].mxu0 %v2141
      %v2255 = vpop.f32.mrb[0].mxu0
      %v2256 = vadd.f32 0.0, %v2255
      %v2257 = vpop.f32.mrb[0].mxu0
      %v2258 = vpop.f32.mrb[0].mxu0
      %v2259 = vadd.f32 0.0, %v2258
      %v2260 = vpop.f32.mrb[0].mxu0
      %2261 = vmatprep.mubr.bf16.mxu0 0
      %2262 = vmatmul.mubr.bf16.gmra.mrb[0].mxu0 %v2142
      %v2263 = vpop.f32.mrb[0].mxu0
      %v2264 = vadd.f32 0.0, %v2263
      %v2265 = vpop.f32.mrb[0].mxu0
      %v2266 = vpop.f32.mrb[0].mxu0
      %v2267 = vadd.f32 0.0, %v2266
      %v2268 = vpop.f32.mrb[0].mxu0
      %2269 = vmatprep.mubr.bf16.mxu0 0
      %2270 = vmatmul.mubr.bf16.gmra.mrb[0].mxu0 %v2143
      %v2271 = vpop.f32.mrb[0].mxu0
      %v2272 = vadd.f32 0.0, %v2271
      %v2273 = vpop.f32.mrb[0].mxu0
      %v2274 = vpop.f32.mrb[0].mxu0
      %v2275 = vadd.f32 0.0, %v2274
      %v2276 = vpop.f32.mrb[0].mxu0
      %2277 = vmatprep.mubr.bf16.mxu0 0
      %2278 = vmatmul.mubr.bf16.gmra.mrb[0].mxu0 %v2144
      %v2279 = vpop.f32.mrb[0].mxu0
      %v2280 = vadd.f32 0.0, %v2279
      %v2281 = vpop.f32.mrb[0].mxu0
      %v2282 = vpop.f32.mrb[0].mxu0
      %v2283 = vadd.f32 0.0, %v2282
      %v2284 = vpop.f32.mrb[0].mxu0
      %2285 = vmatprep.mubr.bf16.mxu0 0
      %2286 = vmatmul.mubr.bf16.gmra.mrb[0].mxu0 %v2145
      %v2287 = vpop.f32.mrb[0].mxu0
      %v2288 = vadd.f32 0.0, %v2287
      %v2289 = vpop.f32.mrb[0].mxu0
      %v2290 = vpop.f32.mrb[0].mxu0
      %v2291 = vadd.f32 0.0, %v2290
      %v2292 = vpop.f32.mrb[0].mxu0
      %2293 = vmatprep.mubr.bf16.mxu0 0
      %2294 = vmatmul.mubr.bf16.gmra.mrb[0].mxu0 %v2146
      %v2295 = vpop.f32.mrb[0].mxu0
      %v2296 = vadd.f32 0.0, %v2295
      %v2297 = vpop.f32.mrb[0].mxu0
      %v2298 = vpop.f32.mrb[0].mxu0
      %v2299 = vadd.f32 0.0, %v2298
      %v2300 = vpop.f32.mrb[0].mxu0
      %2301 = vmatprep.mubr.bf16.mxu0 0
      %2302 = vmatmul.mubr.bf16.gmra.mrb[0].mxu0 %v2147
      %v2303 = vpop.f32.mrb[0].mxu0
      %v2304 = vadd.f32 0.0, %v2303
      %v2305 = vpop.f32.mrb[0].mxu0
      %v2306 = vpop.f32.mrb[0].mxu0
      %v2307 = vadd.f32 0.0, %v2306
      %v2308 = vpop.f32.mrb[0].mxu0
      %2309 = vmatprep.mubr.bf16.mxu0 0
      %2310 = vmatmul.mubr.bf16.gmra.mrb[0].mxu0 %v2148
      %v2311 = vpop.f32.mrb[0].mxu0
      %v2312 = vadd.f32 0.0, %v2311
      %v2313 = vpop.f32.mrb[0].mxu0
      %v2314 = vpop.f32.mrb[0].mxu0
      %v2315 = vadd.f32 0.0, %v2314
      %v2316 = vpop.f32.mrb[0].mxu0
      %2317 = vmatprep.mubr.bf16.mxu0 0
      %2318 = vmatmul.mubr.bf16.gmra.mrb[0].mxu0 %v2149
      %v2319 = vpop.f32.mrb[0].mxu0
      %v2320 = vadd.f32 0.0, %v2319
      %v2321 = vpop.f32.mrb[0].mxu0
      %v2322 = vpop.f32.mrb[0].mxu0
      %v2323 = vadd.f32 0.0, %v2322
      %v2324 = vpop.f32.mrb[0].mxu0
      %2325 = vmatprep.mubr.bf16.mxu0 0
      %2326 = vmatmul.mubr.bf16.gmra.mrb[0].mxu0 %v2150
      %v2327 = vpop.f32.mrb[0].mxu0
      %v2328 = vadd.f32 0.0, %v2327
      %v2329 = vpop.f32.mrb[0].mxu0
      %v2330 = vpop.f32.mrb[0].mxu0
      %v2331 = vadd.f32 0.0, %v2330
      %v2332 = vpop.f32.mrb[0].mxu0
      %2333 = vmatprep.mubr.bf16.mxu0 0
      %2334 = vmatmul.mubr.bf16.gmra.mrb[0].mxu0 %v2151
      %v2335 = vpop.f32.mrb[0].mxu0
      %v2336 = vadd.f32 0.0, %v2335
      %v2337 = vpop.f32.mrb[0].mxu0
      %v2338 = vpop.f32.mrb[0].mxu0
      %v2339 = vadd.f32 0.0, %v2338
      %v2340 = vpop.f32.mrb[0].mxu0
      %2341 = vmatprep.mubr.bf16.mxu0 0
      %2342 = vmatmul.mubr.bf16.gmra.mrb[0].mxu0 %v2152
      %v2343 = vpop.f32.mrb[0].mxu0
      %v2344 = vadd.f32 0.0, %v2343
      %v2345 = vpop.f32.mrb[0].mxu0
      %v2346 = vpop.f32.mrb[0].mxu0
      %v2347 = vadd.f32 0.0, %v2346
      %v2348 = vpop.f32.mrb[0].mxu0
      %2349 = vmatprep.mubr.bf16.mxu0 0
      %2350 = vmatmul.mubr.bf16.gmra.mrb[0].mxu0 %v2153
      %v2351 = vpop.f32.mrb[0].mxu0
      %v2352 = vadd.f32 0.0, %v2351
      %v2353 = vpop.f32.mrb[0].mxu0
      %v2354 = vpop.f32.mrb[0].mxu0
      %v2355 = vadd.f32 0.0, %v2354
      %v2356 = vpop.f32.mrb[0].mxu0
      %2357 = vmatprep.mubr.bf16.mxu0 0
      %2358 = vmatmul.mubr.bf16.gmra.mrb[0].mxu0 %v2154
      %v2359 = vpop.f32.mrb[0].mxu0
      %v2360 = vadd.f32 0.0, %v2359
      %v2361 = vpop.f32.mrb[0].mxu0
      %v2362 = vpop.f32.mrb[0].mxu0
      %v2363 = vadd.f32 0.0, %v2362
      %v2364 = vpop.f32.mrb[0].mxu0
      %2365 = vmatprep.mubr.bf16.mxu0 0
      %2366 = vmatmul.mubr.bf16.gmra.mrb[0].mxu0 %v2155
      %v2367 = vpop.f32.mrb[0].mxu0
      %v2368 = vadd.f32 0.0, %v2367
      %v2369 = vpop.f32.mrb[0].mxu0
      %v2370 = vpop.f32.mrb[0].mxu0
      %v2371 = vadd.f32 0.0, %v2370
      %v2372 = vpop.f32.mrb[0].mxu0
      %2373 = vmatprep.mubr.bf16.mxu0 0
      %2374 = vmatmul.mubr.bf16.gmra.mrb[0].mxu0 %v2156
      %v2375 = vpop.f32.mrb[0].mxu0
      %v2376 = vadd.f32 0.0, %v2375
      %v2377 = vpop.f32.mrb[0].mxu0
      %v2378 = vpop.f32.mrb[0].mxu0
      %v2379 = vadd.f32 0.0, %v2378
      %v2380 = vpop.f32.mrb[0].mxu0
      %2381 = vdwg.mxu0
      %v2382 = vld [vmem:[%s8] sm:$0x1]
      %v2383 = vlaneseq
      %v2384 = vshrl.u32 %v2383, 7
      %v2385 = vsub.s32 0, %v2384
      %v2386 = vrot.slane %v2382, %v2385
      %v2387 = vmul.f32 %v2256, %v2386
      %v2388 = vmul.f32 %v2259, %v2386
      %v2389 = vmul.f32 %v2264, %v2386
      %v2390 = vmul.f32 %v2267, %v2386
      %v2391 = vmul.f32 %v2272, %v2386
      %v2392 = vmul.f32 %v2275, %v2386
      %v2393 = vmul.f32 %v2280, %v2386
      %v2394 = vmul.f32 %v2283, %v2386
      %v2395 = vmul.f32 %v2288, %v2386
      %v2396 = vmul.f32 %v2291, %v2386
      %v2397 = vmul.f32 %v2296, %v2386
      %v2398 = vmul.f32 %v2299, %v2386
      %v2399 = vmul.f32 %v2304, %v2386
      %v2400 = vmul.f32 %v2307, %v2386
      %v2401 = vmul.f32 %v2312, %v2386
      %v2402 = vmul.f32 %v2315, %v2386
      %v2403 = vmul.f32 %v2320, %v2386
      %v2404 = vmul.f32 %v2323, %v2386
      %v2405 = vmul.f32 %v2328, %v2386
      %v2406 = vmul.f32 %v2331, %v2386
      %v2407 = vmul.f32 %v2336, %v2386
      %v2408 = vmul.f32 %v2339, %v2386
      %v2409 = vmul.f32 %v2344, %v2386
      %v2410 = vmul.f32 %v2347, %v2386
      %v2411 = vmul.f32 %v2352, %v2386
      %v2412 = vmul.f32 %v2355, %v2386
      %v2413 = vmul.f32 %v2360, %v2386
      %v2414 = vmul.f32 %v2363, %v2386
      %v2415 = vmul.f32 %v2368, %v2386
      %v2416 = vmul.f32 %v2371, %v2386
      %v2417 = vmul.f32 %v2376, %v2386
      %v2418 = vmul.f32 %v2379, %v2386
      %v2419 = vld [vmem:[%s8 + $0x1] sm:$0x1]
      %v2420 = vlaneseq
      %v2421 = vshrl.u32 %v2420, 7
      %v2422 = vsub.s32 0, %v2421
      %v2423 = vrot.slane %v2419, %v2422
      %v2424 = vadd.f32 %v2387, %v2423
      %v2425 = vadd.f32 %v2388, %v2423
      %v2426 = vadd.f32 %v2389, %v2423
      %v2427 = vadd.f32 %v2390, %v2423
      %v2428 = vadd.f32 %v2391, %v2423
      %v2429 = vadd.f32 %v2392, %v2423
      %v2430 = vadd.f32 %v2393, %v2423
      %v2431 = vadd.f32 %v2394, %v2423
      %v2432 = vadd.f32 %v2395, %v2423
      %v2433 = vadd.f32 %v2396, %v2423
      %v2434 = vadd.f32 %v2397, %v2423
      %v2435 = vadd.f32 %v2398, %v2423
      %v2436 = vadd.f32 %v2399, %v2423
      %v2437 = vadd.f32 %v2400, %v2423
      %v2438 = vadd.f32 %v2401, %v2423
      %v2439 = vadd.f32 %v2402, %v2423
      %v2440 = vadd.f32 %v2403, %v2423
      %v2441 = vadd.f32 %v2404, %v2423
      %v2442 = vadd.f32 %v2405, %v2423
      %v2443 = vadd.f32 %v2406, %v2423
      %v2444 = vadd.f32 %v2407, %v2423
      %v2445 = vadd.f32 %v2408, %v2423
      %v2446 = vadd.f32 %v2409, %v2423
      %v2447 = vadd.f32 %v2410, %v2423
      %v2448 = vadd.f32 %v2411, %v2423
      %v2449 = vadd.f32 %v2412, %v2423
      %v2450 = vadd.f32 %v2413, %v2423
      %v2451 = vadd.f32 %v2414, %v2423
      %v2452 = vadd.f32 %v2415, %v2423
      %v2453 = vadd.f32 %v2416, %v2423
      %v2454 = vadd.f32 %v2417, %v2423
      %v2455 = vadd.f32 %v2418, %v2423
      %v2456 = vmax.f32 %v2424, 0.0
      %v2457 = vmax.f32 %v2425, 0.0
      %v2458 = vmax.f32 %v2426, 0.0
      %v2459 = vmax.f32 %v2427, 0.0
      %v2460 = vmax.f32 %v2428, 0.0
      %v2461 = vmax.f32 %v2429, 0.0
      %v2462 = vmax.f32 %v2430, 0.0
      %v2463 = vmax.f32 %v2431, 0.0
      %v2464 = vmax.f32 %v2432, 0.0
      %v2465 = vmax.f32 %v2433, 0.0
      %v2466 = vmax.f32 %v2434, 0.0
      %v2467 = vmax.f32 %v2435, 0.0
      %v2468 = vmax.f32 %v2436, 0.0
      %v2469 = vmax.f32 %v2437, 0.0
      %v2470 = vmax.f32 %v2438, 0.0
      %v2471 = vmax.f32 %v2439, 0.0
      %v2472 = vmax.f32 %v2440, 0.0
      %v2473 = vmax.f32 %v2441, 0.0
      %v2474 = vmax.f32 %v2442, 0.0
      %v2475 = vmax.f32 %v2443, 0.0
      %v2476 = vmax.f32 %v2444, 0.0
      %v2477 = vmax.f32 %v2445, 0.0
      %v2478 = vmax.f32 %v2446, 0.0
      %v2479 = vmax.f32 %v2447, 0.0
      %v2480 = vmax.f32 %v2448, 0.0
      %v2481 = vmax.f32 %v2449, 0.0
      %v2482 = vmax.f32 %v2450, 0.0
      %v2483 = vmax.f32 %v2451, 0.0
      %v2484 = vmax.f32 %v2452, 0.0
      %v2485 = vmax.f32 %v2453, 0.0
      %v2486 = vmax.f32 %v2454, 0.0
      %v2487 = vmax.f32 %v2455, 0.0
      %v2488 = vpack.c.bf16 %v2457, %v2456
      %v2489 = vpack.c.bf16 %v2459, %v2458
      %v2490 = vpack.c.bf16 %v2461, %v2460
      %v2491 = vpack.c.bf16 %v2463, %v2462
      %v2492 = vpack.c.bf16 %v2465, %v2464
      %v2493 = vpack.c.bf16 %v2467, %v2466
      %v2494 = vpack.c.bf16 %v2469, %v2468
      %v2495 = vpack.c.bf16 %v2471, %v2470
      %v2496 = vpack.c.bf16 %v2473, %v2472
      %v2497 = vpack.c.bf16 %v2475, %v2474
      %v2498 = vpack.c.bf16 %v2477, %v2476
      %v2499 = vpack.c.bf16 %v2479, %v2478
      %v2500 = vpack.c.bf16 %v2481, %v2480
      %v2501 = vpack.c.bf16 %v2483, %v2482
      %v2502 = vpack.c.bf16 %v2485, %v2484
      %v2503 = vpack.c.bf16 %v2487, %v2486
      %v2504 = vld [vmem:[%s9] sm:$0xf]
      %v2505 = vld [vmem:[%s9 + $0x4] sm:$0xf]
      %v2506 = vld [vmem:[%s9 + $0x8] sm:$0xf]
      %v2507 = vld [vmem:[%s9 + $0xc] sm:$0xf]
      %v2508 = vld [vmem:[%s9 + $0x10] sm:$0xf]
      %v2509 = vld [vmem:[%s9 + $0x14] sm:$0xf]
      %v2510 = vld [vmem:[%s9 + $0x18] sm:$0xf]
      %v2511 = vld [vmem:[%s9 + $0x1c] sm:$0xf]
      %v2512 = vld [vmem:[%s9 + $0x20] sm:$0xf]
      %v2513 = vld [vmem:[%s9 + $0x24] sm:$0xf]
      %v2514 = vld [vmem:[%s9 + $0x28] sm:$0xf]
      %v2515 = vld [vmem:[%s9 + $0x2c] sm:$0xf]
      %v2516 = vld [vmem:[%s9 + $0x30] sm:$0xf]
      %v2517 = vld [vmem:[%s9 + $0x34] sm:$0xf]
      %v2518 = vld [vmem:[%s9 + $0x38] sm:$0xf]
      %v2519 = vld [vmem:[%s9 + $0x3c] sm:$0xf]
      %v2520 = vld [vmem:[%s10] sm:$0xf]
      %v2521 = vld [vmem:[%s10 + $0x4] sm:$0xf]
      %v2522 = vld [vmem:[%s10 + $0x8] sm:$0xf]
      %v2523 = vld [vmem:[%s10 + $0xc] sm:$0xf]
      %v2524 = vld [vmem:[%s10 + $0x10] sm:$0xf]
      %v2525 = vld [vmem:[%s10 + $0x14] sm:$0xf]
      %v2526 = vld [vmem:[%s10 + $0x18] sm:$0xf]
      %v2527 = vld [vmem:[%s10 + $0x1c] sm:$0xf]
      %v2528 = vld [vmem:[%s10 + $0x20] sm:$0xf]
      %v2529 = vld [vmem:[%s10 + $0x24] sm:$0xf]
      %v2530 = vld [vmem:[%s10 + $0x28] sm:$0xf]
      %v2531 = vld [vmem:[%s10 + $0x2c] sm:$0xf]
      %v2532 = vld [vmem:[%s10 + $0x30] sm:$0xf]
      %v2533 = vld [vmem:[%s10 + $0x34] sm:$0xf]
      %v2534 = vld [vmem:[%s10 + $0x38] sm:$0xf]
      %v2535 = vld [vmem:[%s10 + $0x3c] sm:$0xf]
      %v2552 = vunpack.c.l.b16 %v2520
      %v2553 = vunpack.c.l.b16 %v2521
      %v2554 = vunpack.c.l.b16 %v2522
      %v2555 = vunpack.c.l.b16 %v2523
      %v2556 = vunpack.c.l.b16 %v2524
      %v2557 = vunpack.c.l.b16 %v2525
      %v2558 = vunpack.c.l.b16 %v2526
      %v2559 = vunpack.c.l.b16 %v2527
      %v2560 = vunpack.c.l.b16 %v2528
      %v2561 = vunpack.c.l.b16 %v2529
      %v2562 = vunpack.c.l.b16 %v2530
      %v2563 = vunpack.c.l.b16 %v2531
      %v2564 = vunpack.c.l.b16 %v2532
      %v2565 = vunpack.c.l.b16 %v2533
      %v2566 = vunpack.c.l.b16 %v2534
      %v2567 = vunpack.c.l.b16 %v2535
      %v2568 = vpack.c.b16 %v2553, %v2552
      %v2569 = vpack.c.b16 %v2555, %v2554
      %v2570 = vpack.c.b16 %v2557, %v2556
      %v2571 = vpack.c.b16 %v2559, %v2558
      %v2572 = vpack.c.b16 %v2561, %v2560
      %v2573 = vpack.c.b16 %v2563, %v2562
      %v2574 = vpack.c.b16 %v2565, %v2564
      %v2575 = vpack.c.b16 %v2567, %v2566
      %2584 = vmatprep.subr.bf16.mxu0 0
      %2585 = vmatpush1.bf16.msra.mxu0 %v2568
      %2586 = vmatprep.subr.bf16.mxu0 0
      %2587 = vmatpush1.bf16.msra.mxu0 %v2569
      %2588 = vmatprep.subr.bf16.mxu0 0
      %2589 = vmatpush1.bf16.msra.mxu0 %v2570
      %2590 = vmatprep.subr.bf16.mxu0 0
      %2591 = vmatpush1.bf16.msra.mxu0 %v2571
      %2592 = vmatprep.subr.bf16.mxu0 0
      %2593 = vmatpush1.bf16.msra.mxu0 %v2572
      %2594 = vmatprep.subr.bf16.mxu0 0
      %2595 = vmatpush1.bf16.msra.mxu0 %v2573
      %2596 = vmatprep.subr.bf16.mxu0 0
      %2597 = vmatpush1.bf16.msra.mxu0 %v2574
      %2598 = vmatprep.subr.bf16.mxu0 0
      %2599 = vmatpush1.bf16.msra.mxu0 %v2575
      %2600 = vmatprep.subr.bf16.mxu0 0
      %2601 = vmatpush1.bf16.msra.mxu0 0
      %2602 = vmatprep.subr.bf16.mxu0 0
      %2603 = vmatpush1.bf16.msra.mxu0 0
      %2604 = vmatprep.subr.bf16.mxu0 0
      %2605 = vmatpush1.bf16.msra.mxu0 0
      %2606 = vmatprep.subr.bf16.mxu0 0
      %2607 = vmatpush1.bf16.msra.mxu0 0
      %2608 = vmatprep.subr.bf16.mxu0 0
      %2609 = vmatpush1.bf16.msra.mxu0 0
      %2610 = vmatprep.subr.bf16.mxu0 0
      %2611 = vmatpush1.bf16.msra.mxu0 0
      %2612 = vmatprep.subr.bf16.mxu0 0
      %2613 = vmatpush1.bf16.msra.mxu0 0
      %2614 = vmatprep.subr.bf16.mxu0 0
      %2615 = vmatpush1.bf16.msra.mxu0 0
      %2616 = vmatprep.mubr.bf16.mxu0 0
      %2617 = vmatmul.mubr.bf16.gmra.mrb[0].mxu0 %v654
      %v2618 = vpop.f32.mrb[0].mxu0
      %v2619 = vadd.f32 0.0, %v2618
      %v2620 = vpop.f32.mrb[0].mxu0
      %v2621 = vpop.f32.mrb[0].mxu0
      %v2622 = vadd.f32 0.0, %v2621
      %v2623 = vpop.f32.mrb[0].mxu0
      %2624 = vmatprep.mubr.bf16.mxu0 0
      %2625 = vmatmul.mubr.bf16.gmra.mrb[0].mxu0 %v655
      %v2626 = vpop.f32.mrb[0].mxu0
      %v2627 = vadd.f32 0.0, %v2626
      %v2628 = vpop.f32.mrb[0].mxu0
      %v2629 = vpop.f32.mrb[0].mxu0
      %v2630 = vadd.f32 0.0, %v2629
      %v2631 = vpop.f32.mrb[0].mxu0
      %2632 = vmatprep.mubr.bf16.mxu0 0
      %2633 = vmatmul.mubr.bf16.gmra.mrb[0].mxu0 %v656
      %v2634 = vpop.f32.mrb[0].mxu0
      %v2635 = vadd.f32 0.0, %v2634
      %v2636 = vpop.f32.mrb[0].mxu0
      %v2637 = vpop.f32.mrb[0].mxu0
      %v2638 = vadd.f32 0.0, %v2637
      %v2639 = vpop.f32.mrb[0].mxu0
      %2640 = vmatprep.mubr.bf16.mxu0 0
      %2641 = vmatmul.mubr.bf16.gmra.mrb[0].mxu0 %v657
      %v2642 = vpop.f32.mrb[0].mxu0
      %v2643 = vadd.f32 0.0, %v2642
      %v2644 = vpop.f32.mrb[0].mxu0
      %v2645 = vpop.f32.mrb[0].mxu0
      %v2646 = vadd.f32 0.0, %v2645
      %v2647 = vpop.f32.mrb[0].mxu0
      %2648 = vmatprep.mubr.bf16.mxu0 0
      %2649 = vmatmul.mubr.bf16.gmra.mrb[0].mxu0 %v658
      %v2650 = vpop.f32.mrb[0].mxu0
      %v2651 = vadd.f32 0.0, %v2650
      %v2652 = vpop.f32.mrb[0].mxu0
      %v2653 = vpop.f32.mrb[0].mxu0
      %v2654 = vadd.f32 0.0, %v2653
      %v2655 = vpop.f32.mrb[0].mxu0
      %2656 = vmatprep.mubr.bf16.mxu0 0
      %2657 = vmatmul.mubr.bf16.gmra.mrb[0].mxu0 %v659
      %v2658 = vpop.f32.mrb[0].mxu0
      %v2659 = vadd.f32 0.0, %v2658
      %v2660 = vpop.f32.mrb[0].mxu0
      %v2661 = vpop.f32.mrb[0].mxu0
      %v2662 = vadd.f32 0.0, %v2661
      %v2663 = vpop.f32.mrb[0].mxu0
      %2664 = vmatprep.mubr.bf16.mxu0 0
      %2665 = vmatmul.mubr.bf16.gmra.mrb[0].mxu0 %v660
      %v2666 = vpop.f32.mrb[0].mxu0
      %v2667 = vadd.f32 0.0, %v2666
      %v2668 = vpop.f32.mrb[0].mxu0
      %v2669 = vpop.f32.mrb[0].mxu0
      %v2670 = vadd.f32 0.0, %v2669
      %v2671 = vpop.f32.mrb[0].mxu0
      %2672 = vmatprep.mubr.bf16.mxu0 0
      %2673 = vmatmul.mubr.bf16.gmra.mrb[0].mxu0 %v661
      %v2674 = vpop.f32.mrb[0].mxu0
      %v2675 = vadd.f32 0.0, %v2674
      %v2676 = vpop.f32.mrb[0].mxu0
      %v2677 = vpop.f32.mrb[0].mxu0
      %v2678 = vadd.f32 0.0, %v2677
      %v2679 = vpop.f32.mrb[0].mxu0
      %2680 = vmatprep.mubr.bf16.mxu0 0
      %2681 = vmatmul.mubr.bf16.gmra.mrb[0].mxu0 %v662
      %v2682 = vpop.f32.mrb[0].mxu0
      %v2683 = vadd.f32 0.0, %v2682
      %v2684 = vpop.f32.mrb[0].mxu0
      %v2685 = vpop.f32.mrb[0].mxu0
      %v2686 = vadd.f32 0.0, %v2685
      %v2687 = vpop.f32.mrb[0].mxu0
      %2688 = vmatprep.mubr.bf16.mxu0 0
      %2689 = vmatmul.mubr.bf16.gmra.mrb[0].mxu0 %v663
      %v2690 = vpop.f32.mrb[0].mxu0
      %v2691 = vadd.f32 0.0, %v2690
      %v2692 = vpop.f32.mrb[0].mxu0
      %v2693 = vpop.f32.mrb[0].mxu0
      %v2694 = vadd.f32 0.0, %v2693
      %v2695 = vpop.f32.mrb[0].mxu0
      %2696 = vmatprep.mubr.bf16.mxu0 0
      %2697 = vmatmul.mubr.bf16.gmra.mrb[0].mxu0 %v664
      %v2698 = vpop.f32.mrb[0].mxu0
      %v2699 = vadd.f32 0.0, %v2698
      %v2700 = vpop.f32.mrb[0].mxu0
      %v2701 = vpop.f32.mrb[0].mxu0
      %v2702 = vadd.f32 0.0, %v2701
      %v2703 = vpop.f32.mrb[0].mxu0
      %2704 = vmatprep.mubr.bf16.mxu0 0
      %2705 = vmatmul.mubr.bf16.gmra.mrb[0].mxu0 %v665
      %v2706 = vpop.f32.mrb[0].mxu0
      %v2707 = vadd.f32 0.0, %v2706
      %v2708 = vpop.f32.mrb[0].mxu0
      %v2709 = vpop.f32.mrb[0].mxu0
      %v2710 = vadd.f32 0.0, %v2709
      %v2711 = vpop.f32.mrb[0].mxu0
      %2712 = vmatprep.mubr.bf16.mxu0 0
      %2713 = vmatmul.mubr.bf16.gmra.mrb[0].mxu0 %v666
      %v2714 = vpop.f32.mrb[0].mxu0
      %v2715 = vadd.f32 0.0, %v2714
      %v2716 = vpop.f32.mrb[0].mxu0
      %v2717 = vpop.f32.mrb[0].mxu0
      %v2718 = vadd.f32 0.0, %v2717
      %v2719 = vpop.f32.mrb[0].mxu0
      %2720 = vmatprep.mubr.bf16.mxu0 0
      %2721 = vmatmul.mubr.bf16.gmra.mrb[0].mxu0 %v667
      %v2722 = vpop.f32.mrb[0].mxu0
      %v2723 = vadd.f32 0.0, %v2722
      %v2724 = vpop.f32.mrb[0].mxu0
      %v2725 = vpop.f32.mrb[0].mxu0
      %v2726 = vadd.f32 0.0, %v2725
      %v2727 = vpop.f32.mrb[0].mxu0
      %2728 = vmatprep.mubr.bf16.mxu0 0
      %2729 = vmatmul.mubr.bf16.gmra.mrb[0].mxu0 %v668
      %v2730 = vpop.f32.mrb[0].mxu0
      %v2731 = vadd.f32 0.0, %v2730
      %v2732 = vpop.f32.mrb[0].mxu0
      %v2733 = vpop.f32.mrb[0].mxu0
      %v2734 = vadd.f32 0.0, %v2733
      %v2735 = vpop.f32.mrb[0].mxu0
      %2736 = vmatprep.mubr.bf16.mxu0 0
      %2737 = vmatmul.mubr.bf16.gmra.mrb[0].mxu0 %v669
      %v2738 = vpop.f32.mrb[0].mxu0
      %v2739 = vadd.f32 0.0, %v2738
      %v2740 = vpop.f32.mrb[0].mxu0
      %v2741 = vpop.f32.mrb[0].mxu0
      %v2742 = vadd.f32 0.0, %v2741
      %v2743 = vpop.f32.mrb[0].mxu0
      %2744 = vdwg.mxu0
      %v2761 = vunpack.c.l.b16 %v2504
      %v2762 = vunpack.c.l.b16 %v2505
      %v2763 = vunpack.c.l.b16 %v2506
      %v2764 = vunpack.c.l.b16 %v2507
      %v2765 = vunpack.c.l.b16 %v2508
      %v2766 = vunpack.c.l.b16 %v2509
      %v2767 = vunpack.c.l.b16 %v2510
      %v2768 = vunpack.c.l.b16 %v2511
      %v2769 = vunpack.c.l.b16 %v2512
      %v2770 = vunpack.c.l.b16 %v2513
      %v2771 = vunpack.c.l.b16 %v2514
      %v2772 = vunpack.c.l.b16 %v2515
      %v2773 = vunpack.c.l.b16 %v2516
      %v2774 = vunpack.c.l.b16 %v2517
      %v2775 = vunpack.c.l.b16 %v2518
      %v2776 = vunpack.c.l.b16 %v2519
      %v2777 = vpack.c.b16 %v2762, %v2761
      %v2778 = vpack.c.b16 %v2764, %v2763
      %v2779 = vpack.c.b16 %v2766, %v2765
      %v2780 = vpack.c.b16 %v2768, %v2767
      %v2781 = vpack.c.b16 %v2770, %v2769
      %v2782 = vpack.c.b16 %v2772, %v2771
      %v2783 = vpack.c.b16 %v2774, %v2773
      %v2784 = vpack.c.b16 %v2776, %v2775
      %2793 = vmatprep.subr.bf16.mxu0 0
      %2794 = vmatpush1.bf16.msra.mxu0 %v2777
      %2795 = vmatprep.subr.bf16.mxu0 0
      %2796 = vmatpush1.bf16.msra.mxu0 %v2778
      %2797 = vmatprep.subr.bf16.mxu0 0
      %2798 = vmatpush1.bf16.msra.mxu0 %v2779
      %2799 = vmatprep.subr.bf16.mxu0 0
      %2800 = vmatpush1.bf16.msra.mxu0 %v2780
      %2801 = vmatprep.subr.bf16.mxu0 0
      %2802 = vmatpush1.bf16.msra.mxu0 %v2781
      %2803 = vmatprep.subr.bf16.mxu0 0
      %2804 = vmatpush1.bf16.msra.mxu0 %v2782
      %2805 = vmatprep.subr.bf16.mxu0 0
      %2806 = vmatpush1.bf16.msra.mxu0 %v2783
      %2807 = vmatprep.subr.bf16.mxu0 0
      %2808 = vmatpush1.bf16.msra.mxu0 %v2784
      %2809 = vmatprep.subr.bf16.mxu0 0
      %2810 = vmatpush1.bf16.msra.mxu0 0
      %2811 = vmatprep.subr.bf16.mxu0 0
      %2812 = vmatpush1.bf16.msra.mxu0 0
      %2813 = vmatprep.subr.bf16.mxu0 0
      %2814 = vmatpush1.bf16.msra.mxu0 0
      %2815 = vmatprep.subr.bf16.mxu0 0
      %2816 = vmatpush1.bf16.msra.mxu0 0
      %2817 = vmatprep.subr.bf16.mxu0 0
      %2818 = vmatpush1.bf16.msra.mxu0 0
      %2819 = vmatprep.subr.bf16.mxu0 0
      %2820 = vmatpush1.bf16.msra.mxu0 0
      %2821 = vmatprep.subr.bf16.mxu0 0
      %2822 = vmatpush1.bf16.msra.mxu0 0
      %2823 = vmatprep.subr.bf16.mxu0 0
      %2824 = vmatpush1.bf16.msra.mxu0 0
      %2825 = vmatprep.mubr.bf16.mxu0 0
      %2826 = vmatmul.mubr.bf16.gmra.mrb[0].mxu0 %v2488
      %v2827 = vpop.f32.mrb[0].mxu0
      %v2828 = vadd.f32 %v2619, %v2827
      %v2829 = vpop.f32.mrb[0].mxu0
      %v2830 = vpop.f32.mrb[0].mxu0
      %v2831 = vadd.f32 %v2622, %v2830
      %v2832 = vpop.f32.mrb[0].mxu0
      %2833 = vmatprep.mubr.bf16.mxu0 0
      %2834 = vmatmul.mubr.bf16.gmra.mrb[0].mxu0 %v2489
      %v2835 = vpop.f32.mrb[0].mxu0
      %v2836 = vadd.f32 %v2627, %v2835
      %v2837 = vpop.f32.mrb[0].mxu0
      %v2838 = vpop.f32.mrb[0].mxu0
      %v2839 = vadd.f32 %v2630, %v2838
      %v2840 = vpop.f32.mrb[0].mxu0
      %2841 = vmatprep.mubr.bf16.mxu0 0
      %2842 = vmatmul.mubr.bf16.gmra.mrb[0].mxu0 %v2490
      %v2843 = vpop.f32.mrb[0].mxu0
      %v2844 = vadd.f32 %v2635, %v2843
      %v2845 = vpop.f32.mrb[0].mxu0
      %v2846 = vpop.f32.mrb[0].mxu0
      %v2847 = vadd.f32 %v2638, %v2846
      %v2848 = vpop.f32.mrb[0].mxu0
      %2849 = vmatprep.mubr.bf16.mxu0 0
      %2850 = vmatmul.mubr.bf16.gmra.mrb[0].mxu0 %v2491
      %v2851 = vpop.f32.mrb[0].mxu0
      %v2852 = vadd.f32 %v2643, %v2851
      %v2853 = vpop.f32.mrb[0].mxu0
      %v2854 = vpop.f32.mrb[0].mxu0
      %v2855 = vadd.f32 %v2646, %v2854
      %v2856 = vpop.f32.mrb[0].mxu0
      %2857 = vmatprep.mubr.bf16.mxu0 0
      %2858 = vmatmul.mubr.bf16.gmra.mrb[0].mxu0 %v2492
      %v2859 = vpop.f32.mrb[0].mxu0
      %v2860 = vadd.f32 %v2651, %v2859
      %v2861 = vpop.f32.mrb[0].mxu0
      %v2862 = vpop.f32.mrb[0].mxu0
      %v2863 = vadd.f32 %v2654, %v2862
      %v2864 = vpop.f32.mrb[0].mxu0
      %2865 = vmatprep.mubr.bf16.mxu0 0
      %2866 = vmatmul.mubr.bf16.gmra.mrb[0].mxu0 %v2493
      %v2867 = vpop.f32.mrb[0].mxu0
      %v2868 = vadd.f32 %v2659, %v2867
      %v2869 = vpop.f32.mrb[0].mxu0
      %v2870 = vpop.f32.mrb[0].mxu0
      %v2871 = vadd.f32 %v2662, %v2870
      %v2872 = vpop.f32.mrb[0].mxu0
      %2873 = vmatprep.mubr.bf16.mxu0 0
      %2874 = vmatmul.mubr.bf16.gmra.mrb[0].mxu0 %v2494
      %v2875 = vpop.f32.mrb[0].mxu0
      %v2876 = vadd.f32 %v2667, %v2875
      %v2877 = vpop.f32.mrb[0].mxu0
      %v2878 = vpop.f32.mrb[0].mxu0
      %v2879 = vadd.f32 %v2670, %v2878
      %v2880 = vpop.f32.mrb[0].mxu0
      %2881 = vmatprep.mubr.bf16.mxu0 0
      %2882 = vmatmul.mubr.bf16.gmra.mrb[0].mxu0 %v2495
      %v2883 = vpop.f32.mrb[0].mxu0
      %v2884 = vadd.f32 %v2675, %v2883
      %v2885 = vpop.f32.mrb[0].mxu0
      %v2886 = vpop.f32.mrb[0].mxu0
      %v2887 = vadd.f32 %v2678, %v2886
      %v2888 = vpop.f32.mrb[0].mxu0
      %2889 = vmatprep.mubr.bf16.mxu0 0
      %2890 = vmatmul.mubr.bf16.gmra.mrb[0].mxu0 %v2496
      %v2891 = vpop.f32.mrb[0].mxu0
      %v2892 = vadd.f32 %v2683, %v2891
      %v2893 = vpop.f32.mrb[0].mxu0
      %v2894 = vpop.f32.mrb[0].mxu0
      %v2895 = vadd.f32 %v2686, %v2894
      %v2896 = vpop.f32.mrb[0].mxu0
      %2897 = vmatprep.mubr.bf16.mxu0 0
      %2898 = vmatmul.mubr.bf16.gmra.mrb[0].mxu0 %v2497
      %v2899 = vpop.f32.mrb[0].mxu0
      %v2900 = vadd.f32 %v2691, %v2899
      %v2901 = vpop.f32.mrb[0].mxu0
      %v2902 = vpop.f32.mrb[0].mxu0
      %v2903 = vadd.f32 %v2694, %v2902
      %v2904 = vpop.f32.mrb[0].mxu0
      %2905 = vmatprep.mubr.bf16.mxu0 0
      %2906 = vmatmul.mubr.bf16.gmra.mrb[0].mxu0 %v2498
      %v2907 = vpop.f32.mrb[0].mxu0
      %v2908 = vadd.f32 %v2699, %v2907
      %v2909 = vpop.f32.mrb[0].mxu0
      %v2910 = vpop.f32.mrb[0].mxu0
      %v2911 = vadd.f32 %v2702, %v2910
      %v2912 = vpop.f32.mrb[0].mxu0
      %2913 = vmatprep.mubr.bf16.mxu0 0
      %2914 = vmatmul.mubr.bf16.gmra.mrb[0].mxu0 %v2499
      %v2915 = vpop.f32.mrb[0].mxu0
      %v2916 = vadd.f32 %v2707, %v2915
      %v2917 = vpop.f32.mrb[0].mxu0
      %v2918 = vpop.f32.mrb[0].mxu0
      %v2919 = vadd.f32 %v2710, %v2918
      %v2920 = vpop.f32.mrb[0].mxu0
      %2921 = vmatprep.mubr.bf16.mxu0 0
      %2922 = vmatmul.mubr.bf16.gmra.mrb[0].mxu0 %v2500
      %v2923 = vpop.f32.mrb[0].mxu0
      %v2924 = vadd.f32 %v2715, %v2923
      %v2925 = vpop.f32.mrb[0].mxu0
      %v2926 = vpop.f32.mrb[0].mxu0
      %v2927 = vadd.f32 %v2718, %v2926
      %v2928 = vpop.f32.mrb[0].mxu0
      %2929 = vmatprep.mubr.bf16.mxu0 0
      %2930 = vmatmul.mubr.bf16.gmra.mrb[0].mxu0 %v2501
      %v2931 = vpop.f32.mrb[0].mxu0
      %v2932 = vadd.f32 %v2723, %v2931
      %v2933 = vpop.f32.mrb[0].mxu0
      %v2934 = vpop.f32.mrb[0].mxu0
      %v2935 = vadd.f32 %v2726, %v2934
      %v2936 = vpop.f32.mrb[0].mxu0
      %2937 = vmatprep.mubr.bf16.mxu0 0
      %2938 = vmatmul.mubr.bf16.gmra.mrb[0].mxu0 %v2502
      %v2939 = vpop.f32.mrb[0].mxu0
      %v2940 = vadd.f32 %v2731, %v2939
      %v2941 = vpop.f32.mrb[0].mxu0
      %v2942 = vpop.f32.mrb[0].mxu0
      %v2943 = vadd.f32 %v2734, %v2942
      %v2944 = vpop.f32.mrb[0].mxu0
      %2945 = vmatprep.mubr.bf16.mxu0 0
      %2946 = vmatmul.mubr.bf16.gmra.mrb[0].mxu0 %v2503
      %v2947 = vpop.f32.mrb[0].mxu0
      %v2948 = vadd.f32 %v2739, %v2947
      %v2949 = vpop.f32.mrb[0].mxu0
      %v2950 = vpop.f32.mrb[0].mxu0
      %v2951 = vadd.f32 %v2742, %v2950
      %v2952 = vpop.f32.mrb[0].mxu0
      %2953 = vdwg.mxu0
      %v2954 = vld [vmem:[%s11] sm:$0x1]
      %v2955 = vlaneseq
      %v2956 = vshrl.u32 %v2955, 7
      %v2957 = vsub.s32 0, %v2956
      %v2958 = vrot.slane %v2954, %v2957
      %v2959 = vmul.f32 %v2828, %v2958
      %v2960 = vmul.f32 %v2831, %v2958
      %v2961 = vmul.f32 %v2836, %v2958
      %v2962 = vmul.f32 %v2839, %v2958
      %v2963 = vmul.f32 %v2844, %v2958
      %v2964 = vmul.f32 %v2847, %v2958
      %v2965 = vmul.f32 %v2852, %v2958
      %v2966 = vmul.f32 %v2855, %v2958
      %v2967 = vmul.f32 %v2860, %v2958
      %v2968 = vmul.f32 %v2863, %v2958
      %v2969 = vmul.f32 %v2868, %v2958
      %v2970 = vmul.f32 %v2871, %v2958
      %v2971 = vmul.f32 %v2876, %v2958
      %v2972 = vmul.f32 %v2879, %v2958
      %v2973 = vmul.f32 %v2884, %v2958
      %v2974 = vmul.f32 %v2887, %v2958
      %v2975 = vmul.f32 %v2892, %v2958
      %v2976 = vmul.f32 %v2895, %v2958
      %v2977 = vmul.f32 %v2900, %v2958
      %v2978 = vmul.f32 %v2903, %v2958
      %v2979 = vmul.f32 %v2908, %v2958
      %v2980 = vmul.f32 %v2911, %v2958
      %v2981 = vmul.f32 %v2916, %v2958
      %v2982 = vmul.f32 %v2919, %v2958
      %v2983 = vmul.f32 %v2924, %v2958
      %v2984 = vmul.f32 %v2927, %v2958
      %v2985 = vmul.f32 %v2932, %v2958
      %v2986 = vmul.f32 %v2935, %v2958
      %v2987 = vmul.f32 %v2940, %v2958
      %v2988 = vmul.f32 %v2943, %v2958
      %v2989 = vmul.f32 %v2948, %v2958
      %v2990 = vmul.f32 %v2951, %v2958
      %v2991 = vld [vmem:[%s11 + $0x1] sm:$0x1]
      %v2992 = vlaneseq
      %v2993 = vshrl.u32 %v2992, 7
      %v2994 = vsub.s32 0, %v2993
      %v2995 = vrot.slane %v2991, %v2994
      %v2996 = vadd.f32 %v2959, %v2995
      %v2997 = vadd.f32 %v2960, %v2995
      %v2998 = vadd.f32 %v2961, %v2995
      %v2999 = vadd.f32 %v2962, %v2995
      %v3000 = vadd.f32 %v2963, %v2995
      %v3001 = vadd.f32 %v2964, %v2995
      %v3002 = vadd.f32 %v2965, %v2995
      %v3003 = vadd.f32 %v2966, %v2995
      %v3004 = vadd.f32 %v2967, %v2995
      %v3005 = vadd.f32 %v2968, %v2995
      %v3006 = vadd.f32 %v2969, %v2995
      %v3007 = vadd.f32 %v2970, %v2995
      %v3008 = vadd.f32 %v2971, %v2995
      %v3009 = vadd.f32 %v2972, %v2995
      %v3010 = vadd.f32 %v2973, %v2995
      %v3011 = vadd.f32 %v2974, %v2995
      %v3012 = vadd.f32 %v2975, %v2995
      %v3013 = vadd.f32 %v2976, %v2995
      %v3014 = vadd.f32 %v2977, %v2995
      %v3015 = vadd.f32 %v2978, %v2995
      %v3016 = vadd.f32 %v2979, %v2995
      %v3017 = vadd.f32 %v2980, %v2995
      %v3018 = vadd.f32 %v2981, %v2995
      %v3019 = vadd.f32 %v2982, %v2995
      %v3020 = vadd.f32 %v2983, %v2995
      %v3021 = vadd.f32 %v2984, %v2995
      %v3022 = vadd.f32 %v2985, %v2995
      %v3023 = vadd.f32 %v2986, %v2995
      %v3024 = vadd.f32 %v2987, %v2995
      %v3025 = vadd.f32 %v2988, %v2995
      %v3026 = vadd.f32 %v2989, %v2995
      %v3027 = vadd.f32 %v2990, %v2995
      %v3028 = vmax.f32 %v2996, 0.0
      %v3029 = vmax.f32 %v2997, 0.0
      %v3030 = vmax.f32 %v2998, 0.0
      %v3031 = vmax.f32 %v2999, 0.0
      %v3032 = vmax.f32 %v3000, 0.0
      %v3033 = vmax.f32 %v3001, 0.0
      %v3034 = vmax.f32 %v3002, 0.0
      %v3035 = vmax.f32 %v3003, 0.0
      %v3036 = vmax.f32 %v3004, 0.0
      %v3037 = vmax.f32 %v3005, 0.0
      %v3038 = vmax.f32 %v3006, 0.0
      %v3039 = vmax.f32 %v3007, 0.0
      %v3040 = vmax.f32 %v3008, 0.0
      %v3041 = vmax.f32 %v3009, 0.0
      %v3042 = vmax.f32 %v3010, 0.0
      %v3043 = vmax.f32 %v3011, 0.0
      %v3044 = vmax.f32 %v3012, 0.0
      %v3045 = vmax.f32 %v3013, 0.0
      %v3046 = vmax.f32 %v3014, 0.0
      %v3047 = vmax.f32 %v3015, 0.0
      %v3048 = vmax.f32 %v3016, 0.0
      %v3049 = vmax.f32 %v3017, 0.0
      %v3050 = vmax.f32 %v3018, 0.0
      %v3051 = vmax.f32 %v3019, 0.0
      %v3052 = vmax.f32 %v3020, 0.0
      %v3053 = vmax.f32 %v3021, 0.0
      %v3054 = vmax.f32 %v3022, 0.0
      %v3055 = vmax.f32 %v3023, 0.0
      %v3056 = vmax.f32 %v3024, 0.0
      %v3057 = vmax.f32 %v3025, 0.0
      %v3058 = vmax.f32 %v3026, 0.0
      %v3059 = vmax.f32 %v3027, 0.0
      %v3060 = vpack.c.bf16 %v3029, %v3028
      %v3061 = vpack.c.bf16 %v3031, %v3030
      %v3062 = vpack.c.bf16 %v3033, %v3032
      %v3063 = vpack.c.bf16 %v3035, %v3034
      %v3064 = vpack.c.bf16 %v3037, %v3036
      %v3065 = vpack.c.bf16 %v3039, %v3038
      %v3066 = vpack.c.bf16 %v3041, %v3040
      %v3067 = vpack.c.bf16 %v3043, %v3042
      %v3068 = vpack.c.bf16 %v3045, %v3044
      %v3069 = vpack.c.bf16 %v3047, %v3046
      %v3070 = vpack.c.bf16 %v3049, %v3048
      %v3071 = vpack.c.bf16 %v3051, %v3050
      %v3072 = vpack.c.bf16 %v3053, %v3052
      %v3073 = vpack.c.bf16 %v3055, %v3054
      %v3074 = vpack.c.bf16 %v3057, %v3056
      %v3075 = vpack.c.bf16 %v3059, %v3058
      %v3076 = vld [vmem:[%s12] sm:$0xf]
      %v3077 = vld [vmem:[%s12 + $0x4] sm:$0xf]
      %v3078 = vld [vmem:[%s12 + $0x8] sm:$0xf]
      %v3079 = vld [vmem:[%s12 + $0xc] sm:$0xf]
      %v3080 = vld [vmem:[%s12 + $0x10] sm:$0xf]
      %v3081 = vld [vmem:[%s12 + $0x14] sm:$0xf]
      %v3082 = vld [vmem:[%s12 + $0x18] sm:$0xf]
      %v3083 = vld [vmem:[%s12 + $0x1c] sm:$0xf]
      %v3084 = vld [vmem:[%s12 + $0x20] sm:$0xf]
      %v3085 = vld [vmem:[%s12 + $0x24] sm:$0xf]
      %v3086 = vld [vmem:[%s12 + $0x28] sm:$0xf]
      %v3087 = vld [vmem:[%s12 + $0x2c] sm:$0xf]
      %v3088 = vld [vmem:[%s12 + $0x30] sm:$0xf]
      %v3089 = vld [vmem:[%s12 + $0x34] sm:$0xf]
      %v3090 = vld [vmem:[%s12 + $0x38] sm:$0xf]
      %v3091 = vld [vmem:[%s12 + $0x3c] sm:$0xf]
      %v3092 = vld [vmem:[%s13] sm:$0x1]
      %v3094 = vlaneseq
      %v3095 = vshrl.u32 %v3094, 7
      %v3096 = vsub.s32 0, %v3095
      %v3097 = vrot.slane %v3092, %v3096
      %v3115 = vunpack.c.l.b16 %v3076
      %v3116 = vunpack.c.l.b16 %v3077
      %v3117 = vunpack.c.l.b16 %v3078
      %v3118 = vunpack.c.l.b16 %v3079
      %v3119 = vunpack.c.l.b16 %v3080
      %v3120 = vunpack.c.l.b16 %v3081
      %v3121 = vunpack.c.l.b16 %v3082
      %v3122 = vunpack.c.l.b16 %v3083
      %v3123 = vunpack.c.l.b16 %v3084
      %v3124 = vunpack.c.l.b16 %v3085
      %v3125 = vunpack.c.l.b16 %v3086
      %v3126 = vunpack.c.l.b16 %v3087
      %v3127 = vunpack.c.l.b16 %v3088
      %v3128 = vunpack.c.l.b16 %v3089
      %v3129 = vunpack.c.l.b16 %v3090
      %v3130 = vunpack.c.l.b16 %v3091
      %v3131 = vpack.c.b16 %v3116, %v3115
      %v3132 = vpack.c.b16 %v3118, %v3117
      %v3133 = vpack.c.b16 %v3120, %v3119
      %v3134 = vpack.c.b16 %v3122, %v3121
      %v3135 = vpack.c.b16 %v3124, %v3123
      %v3136 = vpack.c.b16 %v3126, %v3125
      %v3137 = vpack.c.b16 %v3128, %v3127
      %v3138 = vpack.c.b16 %v3130, %v3129
      %3147 = vmatprep.subr.bf16.mxu0 0
      %3148 = vmatpush1.bf16.msra.mxu0 %v3131
      %3149 = vmatprep.subr.bf16.mxu0 0
      %3150 = vmatpush1.bf16.msra.mxu0 %v3132
      %3151 = vmatprep.subr.bf16.mxu0 0
      %3152 = vmatpush1.bf16.msra.mxu0 %v3133
      %3153 = vmatprep.subr.bf16.mxu0 0
      %3154 = vmatpush1.bf16.msra.mxu0 %v3134
      %3155 = vmatprep.subr.bf16.mxu0 0
      %3156 = vmatpush1.bf16.msra.mxu0 %v3135
      %3157 = vmatprep.subr.bf16.mxu0 0
      %3158 = vmatpush1.bf16.msra.mxu0 %v3136
      %3159 = vmatprep.subr.bf16.mxu0 0
      %3160 = vmatpush1.bf16.msra.mxu0 %v3137
      %3161 = vmatprep.subr.bf16.mxu0 0
      %3162 = vmatpush1.bf16.msra.mxu0 %v3138
      %3163 = vmatprep.subr.bf16.mxu0 0
      %3164 = vmatpush1.bf16.msra.mxu0 0
      %3165 = vmatprep.subr.bf16.mxu0 0
      %3166 = vmatpush1.bf16.msra.mxu0 0
      %3167 = vmatprep.subr.bf16.mxu0 0
      %3168 = vmatpush1.bf16.msra.mxu0 0
      %3169 = vmatprep.subr.bf16.mxu0 0
      %3170 = vmatpush1.bf16.msra.mxu0 0
      %3171 = vmatprep.subr.bf16.mxu0 0
      %3172 = vmatpush1.bf16.msra.mxu0 0
      %3173 = vmatprep.subr.bf16.mxu0 0
      %3174 = vmatpush1.bf16.msra.mxu0 0
      %3175 = vmatprep.subr.bf16.mxu0 0
      %3176 = vmatpush1.bf16.msra.mxu0 0
      %3177 = vmatprep.subr.bf16.mxu0 0
      %3178 = vmatpush1.bf16.msra.mxu0 0
      %3179 = vmatprep.mubr.bf16.mxu0 0
      %3180 = vmatmul.mubr.bf16.gmra.mrb[0].mxu0 %v3060
      %v3181 = vpop.f32.mrb[0].mxu0
      %v3182 = vadd.f32 %v3097, %v3181
      %v3183 = vpop.f32.mrb[0].mxu0
      %v3184 = vpop.f32.mrb[0].mxu0
      %v3185 = vadd.f32 %v3097, %v3184
      %v3186 = vpop.f32.mrb[0].mxu0
      %3187 = vmatprep.mubr.bf16.mxu0 0
      %3188 = vmatmul.mubr.bf16.gmra.mrb[0].mxu0 %v3061
      %v3189 = vpop.f32.mrb[0].mxu0
      %v3190 = vadd.f32 %v3097, %v3189
      %v3191 = vpop.f32.mrb[0].mxu0
      %v3192 = vpop.f32.mrb[0].mxu0
      %v3193 = vadd.f32 %v3097, %v3192
      %v3194 = vpop.f32.mrb[0].mxu0
      %3195 = vmatprep.mubr.bf16.mxu0 0
      %3196 = vmatmul.mubr.bf16.gmra.mrb[0].mxu0 %v3062
      %v3197 = vpop.f32.mrb[0].mxu0
      %v3198 = vadd.f32 %v3097, %v3197
      %v3199 = vpop.f32.mrb[0].mxu0
      %v3200 = vpop.f32.mrb[0].mxu0
      %v3201 = vadd.f32 %v3097, %v3200
      %v3202 = vpop.f32.mrb[0].mxu0
      %3203 = vmatprep.mubr.bf16.mxu0 0
      %3204 = vmatmul.mubr.bf16.gmra.mrb[0].mxu0 %v3063
      %v3205 = vpop.f32.mrb[0].mxu0
      %v3206 = vadd.f32 %v3097, %v3205
      %v3207 = vpop.f32.mrb[0].mxu0
      %v3208 = vpop.f32.mrb[0].mxu0
      %v3209 = vadd.f32 %v3097, %v3208
      %v3210 = vpop.f32.mrb[0].mxu0
      %3211 = vmatprep.mubr.bf16.mxu0 0
      %3212 = vmatmul.mubr.bf16.gmra.mrb[0].mxu0 %v3064
      %v3213 = vpop.f32.mrb[0].mxu0
      %v3214 = vadd.f32 %v3097, %v3213
      %v3215 = vpop.f32.mrb[0].mxu0
      %v3216 = vpop.f32.mrb[0].mxu0
      %v3217 = vadd.f32 %v3097, %v3216
      %v3218 = vpop.f32.mrb[0].mxu0
      %3219 = vmatprep.mubr.bf16.mxu0 0
      %3220 = vmatmul.mubr.bf16.gmra.mrb[0].mxu0 %v3065
      %v3221 = vpop.f32.mrb[0].mxu0
      %v3222 = vadd.f32 %v3097, %v3221
      %v3223 = vpop.f32.mrb[0].mxu0
      %v3224 = vpop.f32.mrb[0].mxu0
      %v3225 = vadd.f32 %v3097, %v3224
      %v3226 = vpop.f32.mrb[0].mxu0
      %3227 = vmatprep.mubr.bf16.mxu0 0
      %3228 = vmatmul.mubr.bf16.gmra.mrb[0].mxu0 %v3066
      %v3229 = vpop.f32.mrb[0].mxu0
      %v3230 = vadd.f32 %v3097, %v3229
      %v3231 = vpop.f32.mrb[0].mxu0
      %v3232 = vpop.f32.mrb[0].mxu0
      %v3233 = vadd.f32 %v3097, %v3232
      %v3234 = vpop.f32.mrb[0].mxu0
      %3235 = vmatprep.mubr.bf16.mxu0 0
      %3236 = vmatmul.mubr.bf16.gmra.mrb[0].mxu0 %v3067
      %v3237 = vpop.f32.mrb[0].mxu0
      %v3238 = vadd.f32 %v3097, %v3237
      %v3239 = vpop.f32.mrb[0].mxu0
      %v3240 = vpop.f32.mrb[0].mxu0
      %v3241 = vadd.f32 %v3097, %v3240
      %v3242 = vpop.f32.mrb[0].mxu0
      %3243 = vmatprep.mubr.bf16.mxu0 0
      %3244 = vmatmul.mubr.bf16.gmra.mrb[0].mxu0 %v3068
      %v3245 = vpop.f32.mrb[0].mxu0
      %v3246 = vadd.f32 %v3097, %v3245
      %v3247 = vpop.f32.mrb[0].mxu0
      %v3248 = vpop.f32.mrb[0].mxu0
      %v3249 = vadd.f32 %v3097, %v3248
      %v3250 = vpop.f32.mrb[0].mxu0
      %3251 = vmatprep.mubr.bf16.mxu0 0
      %3252 = vmatmul.mubr.bf16.gmra.mrb[0].mxu0 %v3069
      %v3253 = vpop.f32.mrb[0].mxu0
      %v3254 = vadd.f32 %v3097, %v3253
      %v3255 = vpop.f32.mrb[0].mxu0
      %v3256 = vpop.f32.mrb[0].mxu0
      %v3257 = vadd.f32 %v3097, %v3256
      %v3258 = vpop.f32.mrb[0].mxu0
      %3259 = vmatprep.mubr.bf16.mxu0 0
      %3260 = vmatmul.mubr.bf16.gmra.mrb[0].mxu0 %v3070
      %v3261 = vpop.f32.mrb[0].mxu0
      %v3262 = vadd.f32 %v3097, %v3261
      %v3263 = vpop.f32.mrb[0].mxu0
      %v3264 = vpop.f32.mrb[0].mxu0
      %v3265 = vadd.f32 %v3097, %v3264
      %v3266 = vpop.f32.mrb[0].mxu0
      %3267 = vmatprep.mubr.bf16.mxu0 0
      %3268 = vmatmul.mubr.bf16.gmra.mrb[0].mxu0 %v3071
      %v3269 = vpop.f32.mrb[0].mxu0
      %v3270 = vadd.f32 %v3097, %v3269
      %v3271 = vpop.f32.mrb[0].mxu0
      %v3272 = vpop.f32.mrb[0].mxu0
      %v3273 = vadd.f32 %v3097, %v3272
      %v3274 = vpop.f32.mrb[0].mxu0
      %3275 = vmatprep.mubr.bf16.mxu0 0
      %3276 = vmatmul.mubr.bf16.gmra.mrb[0].mxu0 %v3072
      %v3277 = vpop.f32.mrb[0].mxu0
      %v3278 = vadd.f32 %v3097, %v3277
      %v3279 = vpop.f32.mrb[0].mxu0
      %v3280 = vpop.f32.mrb[0].mxu0
      %v3281 = vadd.f32 %v3097, %v3280
      %v3282 = vpop.f32.mrb[0].mxu0
      %3283 = vmatprep.mubr.bf16.mxu0 0
      %3284 = vmatmul.mubr.bf16.gmra.mrb[0].mxu0 %v3073
      %v3285 = vpop.f32.mrb[0].mxu0
      %v3286 = vadd.f32 %v3097, %v3285
      %v3287 = vpop.f32.mrb[0].mxu0
      %v3288 = vpop.f32.mrb[0].mxu0
      %v3289 = vadd.f32 %v3097, %v3288
      %v3290 = vpop.f32.mrb[0].mxu0
      %3291 = vmatprep.mubr.bf16.mxu0 0
      %3292 = vmatmul.mubr.bf16.gmra.mrb[0].mxu0 %v3074
      %v3293 = vpop.f32.mrb[0].mxu0
      %v3294 = vadd.f32 %v3097, %v3293
      %v3295 = vpop.f32.mrb[0].mxu0
      %v3296 = vpop.f32.mrb[0].mxu0
      %v3297 = vadd.f32 %v3097, %v3296
      %v3298 = vpop.f32.mrb[0].mxu0
      %3299 = vmatprep.mubr.bf16.mxu0 0
      %3300 = vmatmul.mubr.bf16.gmra.mrb[0].mxu0 %v3075
      %v3301 = vpop.f32.mrb[0].mxu0
      %v3302 = vadd.f32 %v3097, %v3301
      %v3303 = vpop.f32.mrb[0].mxu0
      %v3304 = vpop.f32.mrb[0].mxu0
      %v3305 = vadd.f32 %v3097, %v3304
      %v3306 = vpop.f32.mrb[0].mxu0
      %3307 = vdwg.mxu0
      %3308 = vst.msk [vmem:[%s539] sm:$0xff] %vm1558, %v3182
      %3309 = vst.msk [vmem:[%s539 + $0x8] sm:$0xff] %vm1558, %v3185
      %3310 = vst.msk [vmem:[%s539 + $0x10] sm:$0xff] %vm1558, %v3190
      %3311 = vst.msk [vmem:[%s539 + $0x18] sm:$0xff] %vm1558, %v3193
      %3312 = vst.msk [vmem:[%s539 + $0x20] sm:$0xff] %vm1558, %v3198
      %3313 = vst.msk [vmem:[%s539 + $0x28] sm:$0xff] %vm1558, %v3201
      %3314 = vst.msk [vmem:[%s539 + $0x30] sm:$0xff] %vm1558, %v3206
      %3315 = vst.msk [vmem:[%s539 + $0x38] sm:$0xff] %vm1558, %v3209
      %3316 = vst.msk [vmem:[%s539 + $0x40] sm:$0xff] %vm1558, %v3214
      %3317 = vst.msk [vmem:[%s539 + $0x48] sm:$0xff] %vm1558, %v3217
      %3318 = vst.msk [vmem:[%s539 + $0x50] sm:$0xff] %vm1558, %v3222
      %3319 = vst.msk [vmem:[%s539 + $0x58] sm:$0xff] %vm1558, %v3225
      %3320 = vst.msk [vmem:[%s539 + $0x60] sm:$0xff] %vm1558, %v3230
      %3321 = vst.msk [vmem:[%s539 + $0x68] sm:$0xff] %vm1558, %v3233
      %3322 = vst.msk [vmem:[%s539 + $0x70] sm:$0xff] %vm1558, %v3238
      %3323 = vst.msk [vmem:[%s539 + $0x78] sm:$0xff] %vm1558, %v3241
      %3324 = vst.msk [vmem:[%s539 + $0x80] sm:$0xff] %vm1558, %v3246
      %3325 = vst.msk [vmem:[%s539 + $0x88] sm:$0xff] %vm1558, %v3249
      %3326 = vst.msk [vmem:[%s539 + $0x90] sm:$0xff] %vm1558, %v3254
      %3327 = vst.msk [vmem:[%s539 + $0x98] sm:$0xff] %vm1558, %v3257
      %3328 = vst.msk [vmem:[%s539 + $0xa0] sm:$0xff] %vm1558, %v3262
      %3329 = vst.msk [vmem:[%s539 + $0xa8] sm:$0xff] %vm1558, %v3265
      %3330 = vst.msk [vmem:[%s539 + $0xb0] sm:$0xff] %vm1558, %v3270
      %3331 = vst.msk [vmem:[%s539 + $0xb8] sm:$0xff] %vm1558, %v3273
      %3332 = vst.msk [vmem:[%s539 + $0xc0] sm:$0xff] %vm1558, %v3278
      %3333 = vst.msk [vmem:[%s539 + $0xc8] sm:$0xff] %vm1558, %v3281
      %3334 = vst.msk [vmem:[%s539 + $0xd0] sm:$0xff] %vm1558, %v3286
      %3335 = vst.msk [vmem:[%s539 + $0xd8] sm:$0xff] %vm1558, %v3289
      %3336 = vst.msk [vmem:[%s539 + $0xe0] sm:$0xff] %vm1558, %v3294
      %3337 = vst.msk [vmem:[%s539 + $0xe8] sm:$0xff] %vm1558, %v3297
      %3338 = vst.msk [vmem:[%s539 + $0xf0] sm:$0xff] %vm1558, %v3302
      %3339 = vst.msk [vmem:[%s539 + $0xf8] sm:$0xff] %vm1558, %v3305
      %s3340 = smul.u32 32, %s30
      %p3341 = scmp.lt.s32.totalorder %s29, 1
      %s3342 = scalar_select %p3341, %s29, 1
      %p3343 = scmp.lt.s32.totalorder %s3340, 31
      %s3344 = scalar_select %p3343, %s3340, 31
      %s3345 = smul.addr %s3342, 32
      %s3346 = sadd.s32 %s3344, %s3345
      %s3347 = smul.addr %s3346, 8
      %s3348 = scalar_lea.vmem %s14, %s3347
      // Predicated region
      $region77: #{ocrnet_forward.3} parent=75 // pred_check
        %p3349 = pneg %p368
      $region78: #{ocrnet_forward.3} parent=75 // pred_check_branch
        %3351 = sbr.rel (%p3349) target = $region80
      $region79: #{ocrnet_forward.3} parent=75 // pred_region
        %s3352 = smul.u32 32, %s30
      $region80: #{ocrnet_forward.3} parent=75 // pred_fallthru
        _
    $region76: #{ocrnet_forward.3} parent=5 // pred_fallthru
      _
    %p3353 = scmp.le.s32.totalorder 2, %s20
    // Predicated region
    $region81: #{ocrnet_forward.3} parent=5 // pred_check
      %p3354 = pneg %p3353
    $region82: #{ocrnet_forward.3} parent=5 // pred_check_branch
      %3356 = sbr.rel (%p3354) target = $region84
    $region83: #{ocrnet_forward.3} parent=5 // pred_region
      %s3357 = ssub.s32 %s20, 2
      // Predicated region
      $region85: #{ocrnet_forward.3} parent=83 // pred_check
        %p3358 = pneg %p374
      $region86: #{ocrnet_forward.3} parent=83 // pred_check_branch
        %3360 = sbr.rel (%p3358) target = $region88
      $region87: #{ocrnet_forward.3} parent=83 // pred_region
        %s3361 = smul.u32 32, %s32
        %p3362 = scmp.lt.s32.totalorder %s31, 1
        %s3363 = scalar_select %p3362, %s31, 1
        %p3364 = scmp.lt.s32.totalorder %s3361, 31
        %s3365 = scalar_select %p3364, %s3361, 31
        %s3366 = smul.addr %s3363, 32
        %s3367 = sadd.s32 %s3365, %s3366
        %s3368 = smul.addr %s3367, 8
        %s3369 = scalar_lea.vmem %s14, %s3368
      $region88: #{ocrnet_forward.3} parent=83 // pred_fallthru
        _
    $region84: #{ocrnet_forward.3} parent=5 // pred_fallthru
      _
  $region6: #{ocrnet_forward.3} parent=0 // loop_footer
    %s24 = sadd.s32 1, %s20
  $region7: #{ocrnet_forward.3} parent=0 // loop_footer_branch
    %19 = sbr.rel target = $region3
  $region8: #{ocrnet_forward.3} parent=0 // loop_exit
    _

// kernel: ocrnet_forward.2
$region0: #{ocrnet_forward.2}
  #allocation0 [shape = 'u32[]', space=smem, size = 0x4, offset = 0x4, fixed_abs, tag = 'smem constant byte address 0x4 - core index']
  #allocation1 [shape = 'u32[144,128]{1,0:T(1,128)}', space=vmem, size = 0x12000, scoped, tag = 'internal scratch']
  %s0 = inlined_call_operand.vmem [shape: f32[2,320,128], index: 0, kind: input, shape index: {}]
  %s1 = inlined_call_operand.vmem [shape: bf16[9,128,128], index: 1, kind: input, shape index: {}]
  %s2 = inlined_call_operand.vmem [shape: f32[1,128], index: 2, kind: input, shape index: {}]
  %s3 = inlined_call_operand.vmem [shape: bf16[128,128], index: 3, kind: input, shape index: {}]
  %s4 = inlined_call_operand.vmem [shape: f32[1,128], index: 4, kind: input, shape index: {}]
  %s5 = inlined_call_operand.vmem [shape: bf16[128,4], index: 5, kind: input, shape index: {}]
  %s6 = inlined_call_operand.vmem [shape: f32[1,4], index: 6, kind: input, shape index: {}]
  %s7 = inlined_call_operand.vmem [shape: bf16[128,128], index: 7, kind: input, shape index: {}]
  %s8 = inlined_call_operand.vmem [shape: f32[2,128], index: 8, kind: input, shape index: {}]
  %s9 = inlined_call_operand.vmem [shape: bf16[128,128], index: 9, kind: input, shape index: {}]
  %s10 = inlined_call_operand.vmem [shape: f32[2,128], index: 10, kind: input, shape index: {}]
  %s11 = inlined_call_operand.vmem [shape: bf16[128,128], index: 11, kind: input, shape index: {}]
  %s12 = inlined_call_operand.vmem [shape: f32[2,128], index: 12, kind: input, shape index: {}]
  %s13 = inlined_call_operand.vmem [shape: f32[2,256,4], index: 13, kind: output, shape index: {0}]
  %s14 = inlined_call_operand.vmem [shape: bf16[2,256,128], index: 14, kind: output, shape index: {1}]
  %s15 = inlined_call_operand.vmem [shape: bf16[2,4,128], index: 15, kind: output, shape index: {2}]
  %s16 = inlined_call_operand.vmem [shape: bf16[2,4,128], index: 16, kind: output, shape index: {3}]
  %17 = xla_tuple %s13, %s14, %s15, %s16
  %s18 = sld [smem:[#allocation0]]
  $region109: #{ocrnet_forward.2} parent=0
    _
  %s20 = ssub.s32 1, %s18
  %s21 = scalar_select 0, %s20, %s18
  loop: start=0, step=1, limit=4
  $region2: #{ocrnet_forward.2} parent=0 // loop_pre_header
    _
  $region3: #{ocrnet_forward.2} parent=0 // loop_header
    %s23 = sphi 0, %s27
    %p24 = scmp.ge.s32.totalorder %s23, 4
    %s33 = sphi 0, %s35
    %s36 = sphi 0, %s33
    %s37 = sphi 0, %s36
    %s53 = sphi 0, %s37
    %s57 = sphi 0, %s57
    %s59 = sphi 0, %s57
    %s60 = sphi 0, %s59
    %s74 = sphi 0, %s60
    %s78 = sphi 0, %s78
    %s80 = sphi 0, %s78
    %s81 = sphi 0, %s80
    %s95 = sphi 0, %s81
    %s99 = sphi 0, %s99
    %s101 = sphi 0, %s99
    %s102 = sphi 0, %s101
    %s116 = sphi 0, %s102
    %s120 = sphi 0, %s120
    %s122 = sphi 0, %s120
    %s123 = sphi 0, %s122
    %s137 = sphi 0, %s123
    %s141 = sphi 0, %s141
    %s143 = sphi 0, %s141
    %s144 = sphi 0, %s143
    %s158 = sphi 0, %s144
    %s162 = sphi 0, %s162
    %s164 = sphi 0, %s162
    %s165 = sphi 0, %s164
    %s179 = sphi 0, %s165
    %s183 = sphi 0, %s183
    %s185 = sphi 0, %s183
    %s186 = sphi 0, %s185
    %s200 = sphi 0, %s186
    %s204 = sphi 0, %s204
    %s206 = sphi 0, %s204
    %s207 = sphi 0, %s206
    %s221 = sphi 0, %s207
    %s225 = sphi 0, %s225
    %s227 = sphi 0, %s225
    %s228 = sphi 0, %s227
    %s242 = sphi 0, %s228
    %s246 = sphi 0, %s246
    %s248 = sphi 0, %s246
    %s249 = sphi 0, %s248
    %s263 = sphi 0, %s249
    %s267 = sphi 0, %s267
    %s269 = sphi 0, %s267
    %s270 = sphi 0, %s269
    %s284 = sphi 0, %s270
    %s288 = sphi 0, %s288
    %s290 = sphi 0, %s288
    %s291 = sphi 0, %s290
    %s305 = sphi 0, %s291
    %s311 = sphi 0, %s313
    %s314 = sphi 0, %s311
    %s315 = sphi 0, %s314
    %s331 = sphi 0, %s315
    %s337 = sphi 0, %s339
    %s340 = sphi 0, %s337
    %s341 = sphi 0, %s340
    %s357 = sphi 0, %s341
    %s363 = sphi 0, %s365
    %s366 = sphi 0, %s363
    %s367 = sphi 0, %s366
    %s383 = sphi 0, %s367
    %s389 = sphi 0, %s391
    %s392 = sphi 0, %s389
    %s393 = sphi 0, %s392
    %s409 = sphi 0, %s393
  $region4: #{ocrnet_forward.2} parent=0 // loop_header_branch
    %26 = sbr.rel (%p24) target = $region8
  $region5: #{ocrnet_forward.2} parent=0 // loop_body
    %s28 = ssub.s32 %s23, 1
    %s29 = ssub.s32 %s23, 2
    %s30 = sadd.s32 %s23, 1
    %s31 = ssub.s32 %s23, %s30
    %p32 = scmp.eq.s32.totalorder %s31, 0
    %s34 = sadd.s32 %s33, 1
    %s35 = scalar_select %p32, %s33, %s34
    %p38 = pneg %p32
    %p39 = scmp.eq.s32.totalorder %s23, 1
    %p40 = por %p38, %p39
    %p41 = scmp.ne.s32.totalorder %s33, %s36
    %p42 = scmp.eq.s32.totalorder %s23, 0
    %p43 = por %p41, %p42
    %p44 = scmp.ne.s32.totalorder %s33, %s36
    %p45 = scmp.eq.s32.totalorder %s28, 1
    %p46 = por %p44, %p45
    %p47 = scmp.ne.s32.totalorder %s36, %s37
    %p48 = scmp.eq.s32.totalorder %s28, 0
    %p49 = por %p47, %p48
    %p50 = scmp.ne.s32.totalorder %s36, %s37
    %p51 = scmp.eq.s32.totalorder %s29, 1
    %p52 = por %p50, %p51
    %p54 = scmp.ne.s32.totalorder %s37, %s53
    %p55 = scmp.eq.s32.totalorder %s29, 0
    %p56 = por %p54, %p55
    %s58 = sadd.s32 %s57, 1
    %p61 = scmp.eq.s32.totalorder %s23, 1
    %p62 = scmp.ne.s32.totalorder %s57, %s59
    %p63 = scmp.eq.s32.totalorder %s23, 0
    %p64 = por %p62, %p63
    %p65 = scmp.ne.s32.totalorder %s57, %s59
    %p66 = scmp.eq.s32.totalorder %s28, 1
    %p67 = por %p65, %p66
    %p68 = scmp.ne.s32.totalorder %s59, %s60
    %p69 = scmp.eq.s32.totalorder %s28, 0
    %p70 = por %p68, %p69
    %p71 = scmp.ne.s32.totalorder %s59, %s60
    %p72 = scmp.eq.s32.totalorder %s29, 1
    %p73 = por %p71, %p72
    %p75 = scmp.ne.s32.totalorder %s60, %s74
    %p76 = scmp.eq.s32.totalorder %s29, 0
    %p77 = por %p75, %p76
    %s79 = sadd.s32 %s78, 1
    %p82 = scmp.eq.s32.totalorder %s23, 1
    %p83 = scmp.ne.s32.totalorder %s78, %s80
    %p84 = scmp.eq.s32.totalorder %s23, 0
    %p85 = por %p83, %p84
    %p86 = scmp.ne.s32.totalorder %s78, %s80
    %p87 = scmp.eq.s32.totalorder %s28, 1
    %p88 = por %p86, %p87
    %p89 = scmp.ne.s32.totalorder %s80, %s81
    %p90 = scmp.eq.s32.totalorder %s28, 0
    %p91 = por %p89, %p90
    %p92 = scmp.ne.s32.totalorder %s80, %s81
    %p93 = scmp.eq.s32.totalorder %s29, 1
    %p94 = por %p92, %p93
    %p96 = scmp.ne.s32.totalorder %s81, %s95
    %p97 = scmp.eq.s32.totalorder %s29, 0
    %p98 = por %p96, %p97
    %s100 = sadd.s32 %s99, 1
    %p103 = scmp.eq.s32.totalorder %s23, 1
    %p104 = scmp.ne.s32.totalorder %s99, %s101
    %p105 = scmp.eq.s32.totalorder %s23, 0
    %p106 = por %p104, %p105
    %p107 = scmp.ne.s32.totalorder %s99, %s101
    %p108 = scmp.eq.s32.totalorder %s28, 1
    %p109 = por %p107, %p108
    %p110 = scmp.ne.s32.totalorder %s101, %s102
    %p111 = scmp.eq.s32.totalorder %s28, 0
    %p112 = por %p110, %p111
    %p113 = scmp.ne.s32.totalorder %s101, %s102
    %p114 = scmp.eq.s32.totalorder %s29, 1
    %p115 = por %p113, %p114
    %p117 = scmp.ne.s32.totalorder %s102, %s116
    %p118 = scmp.eq.s32.totalorder %s29, 0
    %p119 = por %p117, %p118
    %s121 = sadd.s32 %s120, 1
    %p124 = scmp.eq.s32.totalorder %s23, 1
    %p125 = scmp.ne.s32.totalorder %s120, %s122
    %p126 = scmp.eq.s32.totalorder %s23, 0
    %p127 = por %p125, %p126
    %p128 = scmp.ne.s32.totalorder %s120, %s122
    %p129 = scmp.eq.s32.totalorder %s28, 1
    %p130 = por %p128, %p129
    %p131 = scmp.ne.s32.totalorder %s122, %s123
    %p132 = scmp.eq.s32.totalorder %s28, 0
    %p133 = por %p131, %p132
    %p134 = scmp.ne.s32.totalorder %s122, %s123
    %p135 = scmp.eq.s32.totalorder %s29, 1
    %p136 = por %p134, %p135
    %p138 = scmp.ne.s32.totalorder %s123, %s137
    %p139 = scmp.eq.s32.totalorder %s29, 0
    %p140 = por %p138, %p139
    %s142 = sadd.s32 %s141, 1
    %p145 = scmp.eq.s32.totalorder %s23, 1
    %p146 = scmp.ne.s32.totalorder %s141, %s143
    %p147 = scmp.eq.s32.totalorder %s23, 0
    %p148 = por %p146, %p147
    %p149 = scmp.ne.s32.totalorder %s141, %s143
    %p150 = scmp.eq.s32.totalorder %s28, 1
    %p151 = por %p149, %p150
    %p152 = scmp.ne.s32.totalorder %s143, %s144
    %p153 = scmp.eq.s32.totalorder %s28, 0
    %p154 = por %p152, %p153
    %p155 = scmp.ne.s32.totalorder %s143, %s144
    %p156 = scmp.eq.s32.totalorder %s29, 1
    %p157 = por %p155, %p156
    %p159 = scmp.ne.s32.totalorder %s144, %s158
    %p160 = scmp.eq.s32.totalorder %s29, 0
    %p161 = por %p159, %p160
    %s163 = sadd.s32 %s162, 1
    %p166 = scmp.eq.s32.totalorder %s23, 1
    %p167 = scmp.ne.s32.totalorder %s162, %s164
    %p168 = scmp.eq.s32.totalorder %s23, 0
    %p169 = por %p167, %p168
    %p170 = scmp.ne.s32.totalorder %s162, %s164
    %p171 = scmp.eq.s32.totalorder %s28, 1
    %p172 = por %p170, %p171
    %p173 = scmp.ne.s32.totalorder %s164, %s165
    %p174 = scmp.eq.s32.totalorder %s28, 0
    %p175 = por %p173, %p174
    %p176 = scmp.ne.s32.totalorder %s164, %s165
    %p177 = scmp.eq.s32.totalorder %s29, 1
    %p178 = por %p176, %p177
    %p180 = scmp.ne.s32.totalorder %s165, %s179
    %p181 = scmp.eq.s32.totalorder %s29, 0
    %p182 = por %p180, %p181
    %s184 = sadd.s32 %s183, 1
    %p187 = scmp.eq.s32.totalorder %s23, 1
    %p188 = scmp.ne.s32.totalorder %s183, %s185
    %p189 = scmp.eq.s32.totalorder %s23, 0
    %p190 = por %p188, %p189
    %p191 = scmp.ne.s32.totalorder %s183, %s185
    %p192 = scmp.eq.s32.totalorder %s28, 1
    %p193 = por %p191, %p192
    %p194 = scmp.ne.s32.totalorder %s185, %s186
    %p195 = scmp.eq.s32.totalorder %s28, 0
    %p196 = por %p194, %p195
    %p197 = scmp.ne.s32.totalorder %s185, %s186
    %p198 = scmp.eq.s32.totalorder %s29, 1
    %p199 = por %p197, %p198
    %p201 = scmp.ne.s32.totalorder %s186, %s200
    %p202 = scmp.eq.s32.totalorder %s29, 0
    %p203 = por %p201, %p202
    %s205 = sadd.s32 %s204, 1
    %p208 = scmp.eq.s32.totalorder %s23, 1
    %p209 = scmp.ne.s32.totalorder %s204, %s206
    %p210 = scmp.eq.s32.totalorder %s23, 0
    %p211 = por %p209, %p210
    %p212 = scmp.ne.s32.totalorder %s204, %s206
    %p213 = scmp.eq.s32.totalorder %s28, 1
    %p214 = por %p212, %p213
    %p215 = scmp.ne.s32.totalorder %s206, %s207
    %p216 = scmp.eq.s32.totalorder %s28, 0
    %p217 = por %p215, %p216
    %p218 = scmp.ne.s32.totalorder %s206, %s207
    %p219 = scmp.eq.s32.totalorder %s29, 1
    %p220 = por %p218, %p219
    %p222 = scmp.ne.s32.totalorder %s207, %s221
    %p223 = scmp.eq.s32.totalorder %s29, 0
    %p224 = por %p222, %p223
    %s226 = sadd.s32 %s225, 1
    %p229 = scmp.eq.s32.totalorder %s23, 1
    %p230 = scmp.ne.s32.totalorder %s225, %s227
    %p231 = scmp.eq.s32.totalorder %s23, 0
    %p232 = por %p230, %p231
    %p233 = scmp.ne.s32.totalorder %s225, %s227
    %p234 = scmp.eq.s32.totalorder %s28, 1
    %p235 = por %p233, %p234
    %p236 = scmp.ne.s32.totalorder %s227, %s228
    %p237 = scmp.eq.s32.totalorder %s28, 0
    %p238 = por %p236, %p237
    %p239 = scmp.ne.s32.totalorder %s227, %s228
    %p240 = scmp.eq.s32.totalorder %s29, 1
    %p241 = por %p239, %p240
    %p243 = scmp.ne.s32.totalorder %s228, %s242
    %p244 = scmp.eq.s32.totalorder %s29, 0
    %p245 = por %p243, %p244
    %s247 = sadd.s32 %s246, 1
    %p250 = scmp.eq.s32.totalorder %s23, 1
    %p251 = scmp.ne.s32.totalorder %s246, %s248
    %p252 = scmp.eq.s32.totalorder %s23, 0
    %p253 = por %p251, %p252
    %p254 = scmp.ne.s32.totalorder %s246, %s248
    %p255 = scmp.eq.s32.totalorder %s28, 1
    %p256 = por %p254, %p255
    %p257 = scmp.ne.s32.totalorder %s248, %s249
    %p258 = scmp.eq.s32.totalorder %s28, 0
    %p259 = por %p257, %p258
    %p260 = scmp.ne.s32.totalorder %s248, %s249
    %p261 = scmp.eq.s32.totalorder %s29, 1
    %p262 = por %p260, %p261
    %p264 = scmp.ne.s32.totalorder %s249, %s263
    %p265 = scmp.eq.s32.totalorder %s29, 0
    %p266 = por %p264, %p265
    %s268 = sadd.s32 %s267, 1
    %p271 = scmp.eq.s32.totalorder %s23, 1
    %p272 = scmp.ne.s32.totalorder %s267, %s269
    %p273 = scmp.eq.s32.totalorder %s23, 0
    %p274 = por %p272, %p273
    %p275 = scmp.ne.s32.totalorder %s267, %s269
    %p276 = scmp.eq.s32.totalorder %s28, 1
    %p277 = por %p275, %p276
    %p278 = scmp.ne.s32.totalorder %s269, %s270
    %p279 = scmp.eq.s32.totalorder %s28, 0
    %p280 = por %p278, %p279
    %p281 = scmp.ne.s32.totalorder %s269, %s270
    %p282 = scmp.eq.s32.totalorder %s29, 1
    %p283 = por %p281, %p282
    %p285 = scmp.ne.s32.totalorder %s270, %s284
    %p286 = scmp.eq.s32.totalorder %s29, 0
    %p287 = por %p285, %p286
    %s289 = sadd.s32 %s288, 1
    %p292 = scmp.eq.s32.totalorder %s23, 1
    %p293 = scmp.ne.s32.totalorder %s288, %s290
    %p294 = scmp.eq.s32.totalorder %s23, 0
    %p295 = por %p293, %p294
    %p296 = scmp.ne.s32.totalorder %s288, %s290
    %p297 = scmp.eq.s32.totalorder %s28, 1
    %p298 = por %p296, %p297
    %p299 = scmp.ne.s32.totalorder %s290, %s291
    %p300 = scmp.eq.s32.totalorder %s28, 0
    %p301 = por %p299, %p300
    %p302 = scmp.ne.s32.totalorder %s290, %s291
    %p303 = scmp.eq.s32.totalorder %s29, 1
    %p304 = por %p302, %p303
    %p306 = scmp.ne.s32.totalorder %s291, %s305
    %p307 = scmp.eq.s32.totalorder %s29, 0
    %p308 = por %p306, %p307
    %s309 = ssub.s32 %s23, %s30
    %p310 = scmp.eq.s32.totalorder %s309, 0
    %s312 = sadd.s32 %s311, 1
    %s313 = scalar_select %p310, %s311, %s312
    %p316 = pneg %p310
    %p317 = scmp.eq.s32.totalorder %s23, 1
    %p318 = por %p316, %p317
    %p319 = scmp.ne.s32.totalorder %s311, %s314
    %p320 = scmp.eq.s32.totalorder %s23, 0
    %p321 = por %p319, %p320
    %p322 = scmp.ne.s32.totalorder %s311, %s314
    %p323 = scmp.eq.s32.totalorder %s28, 1
    %p324 = por %p322, %p323
    %p325 = scmp.ne.s32.totalorder %s314, %s315
    %p326 = scmp.eq.s32.totalorder %s28, 0
    %p327 = por %p325, %p326
    %p328 = scmp.ne.s32.totalorder %s314, %s315
    %p329 = scmp.eq.s32.totalorder %s29, 1
    %p330 = por %p328, %p329
    %p332 = scmp.ne.s32.totalorder %s315, %s331
    %p333 = scmp.eq.s32.totalorder %s29, 0
    %p334 = por %p332, %p333
    %s335 = ssub.s32 %s23, %s30
    %p336 = scmp.eq.s32.totalorder %s335, 0
    %s338 = sadd.s32 %s337, 1
    %s339 = scalar_select %p336, %s337, %s338
    %p342 = pneg %p336
    %p343 = scmp.eq.s32.totalorder %s23, 1
    %p344 = por %p342, %p343
    %p345 = scmp.ne.s32.totalorder %s337, %s340
    %p346 = scmp.eq.s32.totalorder %s23, 0
    %p347 = por %p345, %p346
    %p348 = scmp.ne.s32.totalorder %s337, %s340
    %p349 = scmp.eq.s32.totalorder %s28, 1
    %p350 = por %p348, %p349
    %p351 = scmp.ne.s32.totalorder %s340, %s341
    %p352 = scmp.eq.s32.totalorder %s28, 0
    %p353 = por %p351, %p352
    %p354 = scmp.ne.s32.totalorder %s340, %s341
    %p355 = scmp.eq.s32.totalorder %s29, 1
    %p356 = por %p354, %p355
    %p358 = scmp.ne.s32.totalorder %s341, %s357
    %p359 = scmp.eq.s32.totalorder %s29, 0
    %p360 = por %p358, %p359
    %s361 = ssub.s32 %s23, %s30
    %p362 = scmp.eq.s32.totalorder %s361, 0
    %s364 = sadd.s32 %s363, 1
    %s365 = scalar_select %p362, %s363, %s364
    %p368 = pneg %p362
    %p369 = scmp.eq.s32.totalorder %s23, 1
    %p370 = por %p368, %p369
    %p371 = scmp.ne.s32.totalorder %s363, %s366
    %p372 = scmp.eq.s32.totalorder %s23, 0
    %p373 = por %p371, %p372
    %p374 = scmp.ne.s32.totalorder %s363, %s366
    %p375 = scmp.eq.s32.totalorder %s28, 1
    %p376 = por %p374, %p375
    %p377 = scmp.ne.s32.totalorder %s366, %s367
    %p378 = scmp.eq.s32.totalorder %s28, 0
    %p379 = por %p377, %p378
    %p380 = scmp.ne.s32.totalorder %s366, %s367
    %p381 = scmp.eq.s32.totalorder %s29, 1
    %p382 = por %p380, %p381
    %p384 = scmp.ne.s32.totalorder %s367, %s383
    %p385 = scmp.eq.s32.totalorder %s29, 0
    %p386 = por %p384, %p385
    %s387 = ssub.s32 %s23, %s30
    %p388 = scmp.eq.s32.totalorder %s387, 0
    %s390 = sadd.s32 %s389, 1
    %s391 = scalar_select %p388, %s389, %s390
    %p394 = pneg %p388
    %p395 = scmp.eq.s32.totalorder %s23, 1
    %p396 = por %p394, %p395
    %p397 = scmp.ne.s32.totalorder %s389, %s392
    %p398 = scmp.eq.s32.totalorder %s23, 0
    %p399 = por %p397, %p398
    %p400 = scmp.ne.s32.totalorder %s389, %s392
    %p401 = scmp.eq.s32.totalorder %s28, 1
    %p402 = por %p400, %p401
    %p403 = scmp.ne.s32.totalorder %s392, %s393
    %p404 = scmp.eq.s32.totalorder %s28, 0
    %p405 = por %p403, %p404
    %p406 = scmp.ne.s32.totalorder %s392, %s393
    %p407 = scmp.eq.s32.totalorder %s29, 1
    %p408 = por %p406, %p407
    %p410 = scmp.ne.s32.totalorder %s393, %s409
    %p411 = scmp.eq.s32.totalorder %s29, 0
    %p412 = por %p410, %p411
    %p413 = scmp.le.s32.totalorder 1, %s23
    %p414 = scmp.lt.s32.totalorder %s23, 3
    %p415 = pnand %p413, %p414
    %p416 = pneg %p415
    // Predicated region
    $region9: #{ocrnet_forward.2} parent=5 // pred_check
      _
    $region10: #{ocrnet_forward.2} parent=5 // pred_check_branch
      %418 = sbr.rel (%p415) target = $region12
    $region11: #{ocrnet_forward.2} parent=5 // pred_region
      %s419 = ssub.s32 %s23, 1
      // Predicated region
      $region13: #{ocrnet_forward.2} parent=11 // pred_check
        %p420 = pneg %p70
      $region14: #{ocrnet_forward.2} parent=11 // pred_check_branch
        %422 = sbr.rel (%p420) target = $region16
      $region15: #{ocrnet_forward.2} parent=11 // pred_region
        _
      $region16: #{ocrnet_forward.2} parent=11 // pred_fallthru
        _
      // Predicated region
      $region17: #{ocrnet_forward.2} parent=11 // pred_check
        %p423 = pneg %p91
      $region18: #{ocrnet_forward.2} parent=11 // pred_check_branch
        %425 = sbr.rel (%p423) target = $region20
      $region19: #{ocrnet_forward.2} parent=11 // pred_region
        _
      $region20: #{ocrnet_forward.2} parent=11 // pred_fallthru
        _
      // Predicated region
      $region21: #{ocrnet_forward.2} parent=11 // pred_check
        %p426 = pneg %p112
      $region22: #{ocrnet_forward.2} parent=11 // pred_check_branch
        %428 = sbr.rel (%p426) target = $region24
      $region23: #{ocrnet_forward.2} parent=11 // pred_region
        _
      $region24: #{ocrnet_forward.2} parent=11 // pred_fallthru
        _
      // Predicated region
      $region25: #{ocrnet_forward.2} parent=11 // pred_check
        %p429 = pneg %p133
      $region26: #{ocrnet_forward.2} parent=11 // pred_check_branch
        %431 = sbr.rel (%p429) target = $region28
      $region27: #{ocrnet_forward.2} parent=11 // pred_region
        _
      $region28: #{ocrnet_forward.2} parent=11 // pred_fallthru
        _
      // Predicated region
      $region29: #{ocrnet_forward.2} parent=11 // pred_check
        %p432 = pneg %p154
      $region30: #{ocrnet_forward.2} parent=11 // pred_check_branch
        %434 = sbr.rel (%p432) target = $region32
      $region31: #{ocrnet_forward.2} parent=11 // pred_region
        _
      $region32: #{ocrnet_forward.2} parent=11 // pred_fallthru
        _
      // Predicated region
      $region33: #{ocrnet_forward.2} parent=11 // pred_check
        %p435 = pneg %p175
      $region34: #{ocrnet_forward.2} parent=11 // pred_check_branch
        %437 = sbr.rel (%p435) target = $region36
      $region35: #{ocrnet_forward.2} parent=11 // pred_region
        _
      $region36: #{ocrnet_forward.2} parent=11 // pred_fallthru
        _
      // Predicated region
      $region37: #{ocrnet_forward.2} parent=11 // pred_check
        %p438 = pneg %p196
      $region38: #{ocrnet_forward.2} parent=11 // pred_check_branch
        %440 = sbr.rel (%p438) target = $region40
      $region39: #{ocrnet_forward.2} parent=11 // pred_region
        _
      $region40: #{ocrnet_forward.2} parent=11 // pred_fallthru
        _
      // Predicated region
      $region41: #{ocrnet_forward.2} parent=11 // pred_check
        %p441 = pneg %p217
      $region42: #{ocrnet_forward.2} parent=11 // pred_check_branch
        %443 = sbr.rel (%p441) target = $region44
      $region43: #{ocrnet_forward.2} parent=11 // pred_region
        _
      $region44: #{ocrnet_forward.2} parent=11 // pred_fallthru
        _
      // Predicated region
      $region45: #{ocrnet_forward.2} parent=11 // pred_check
        %p444 = pneg %p238
      $region46: #{ocrnet_forward.2} parent=11 // pred_check_branch
        %446 = sbr.rel (%p444) target = $region48
      $region47: #{ocrnet_forward.2} parent=11 // pred_region
        _
      $region48: #{ocrnet_forward.2} parent=11 // pred_fallthru
        _
      // Predicated region
      $region49: #{ocrnet_forward.2} parent=11 // pred_check
        %p447 = pneg %p259
      $region50: #{ocrnet_forward.2} parent=11 // pred_check_branch
        %449 = sbr.rel (%p447) target = $region52
      $region51: #{ocrnet_forward.2} parent=11 // pred_region
        _
      $region52: #{ocrnet_forward.2} parent=11 // pred_fallthru
        _
      // Predicated region
      $region53: #{ocrnet_forward.2} parent=11 // pred_check
        %p450 = pneg %p280
      $region54: #{ocrnet_forward.2} parent=11 // pred_check_branch
        %452 = sbr.rel (%p450) target = $region56
      $region55: #{ocrnet_forward.2} parent=11 // pred_region
        _
      $region56: #{ocrnet_forward.2} parent=11 // pred_fallthru
        _
      // Predicated region
      $region57: #{ocrnet_forward.2} parent=11 // pred_check
        %p453 = pneg %p301
      $region58: #{ocrnet_forward.2} parent=11 // pred_check_branch
        %455 = sbr.rel (%p453) target = $region60
      $region59: #{ocrnet_forward.2} parent=11 // pred_region
        _
      $region60: #{ocrnet_forward.2} parent=11 // pred_fallthru
        _
    $region12: #{ocrnet_forward.2} parent=5 // pred_fallthru
      _
    %p456 = scmp.lt.s32.totalorder %s23, 2
    // Predicated region
    $region61: #{ocrnet_forward.2} parent=5 // pred_check
      %p457 = pneg %p456
    $region62: #{ocrnet_forward.2} parent=5 // pred_check_branch
      %459 = sbr.rel (%p457) target = $region64
    $region63: #{ocrnet_forward.2} parent=5 // pred_region
      // Predicated region
      $region65: #{ocrnet_forward.2} parent=63 // pred_check
        %p460 = pneg %p43
      $region66: #{ocrnet_forward.2} parent=63 // pred_check_branch
        %462 = sbr.rel (%p460) target = $region68
      $region67: #{ocrnet_forward.2} parent=63 // pred_region
        %p463 = scmp.lt.s32.totalorder %s23, 1
        %s464 = scalar_select %p463, %s23, 1
        %s465 = smul.addr %s464, 40
        %s466 = smul.addr %s465, 8
        %s467 = scalar_lea.vmem %s0, %s466
      $region68: #{ocrnet_forward.2} parent=63 // pred_fallthru
        _
    $region64: #{ocrnet_forward.2} parent=5 // pred_fallthru
      _
    %p468 = scmp.le.s32.totalorder 1, %s23
    %p469 = scmp.lt.s32.totalorder %s23, 3
    %p470 = pnand %p468, %p469
    %p471 = pneg %p470
    // Predicated region
    $region69: #{ocrnet_forward.2} parent=5 // pred_check
      _
    $region70: #{ocrnet_forward.2} parent=5 // pred_check_branch
      %473 = sbr.rel (%p470) target = $region72
    $region71: #{ocrnet_forward.2} parent=5 // pred_region
      %s474 = ssub.s32 %s23, 1
      %p475 = scmp.lt.s32.totalorder %s28, 1
      %s476 = scalar_select %p475, %s28, 1
      %s477 = smul.addr %s476, 40
      %s478 = smul.addr %s477, 8
      %s479 = scalar_lea.vmem %s0, %s478
      %p480 = pneg %p49
      %p481 = pneg %p46
      %p482 = pneg %p70
      %p483 = pneg %p67
      %p484 = pneg %p91
      %p485 = pneg %p88
      %p486 = pneg %p112
      %p487 = pneg %p109
      %p488 = pneg %p133
      %p489 = pneg %p130
      %p490 = pneg %p154
      %p491 = pneg %p151
      %p492 = pneg %p175
      %p493 = pneg %p172
      %p494 = pneg %p196
      %p495 = pneg %p193
      %p496 = pneg %p217
      %p497 = pneg %p214
      %p498 = pneg %p238
      %p499 = pneg %p235
      %p500 = pneg %p259
      %p501 = pneg %p256
      %p502 = pneg %p280
      %p503 = pneg %p277
      %p504 = pneg %p301
      %p505 = pneg %p298
      %p506 = pneg %p327
      %p507 = pneg %p324
      %p508 = scmp.lt.s32.totalorder %s28, 1
      %s509 = scalar_select %p508, %s28, 1
      %s510 = smul.addr %s509, 32
      %s511 = smul.addr %s510, 8
      %s512 = scalar_lea.vmem %s13, %s511
      %p513 = pneg %p353
      %p514 = pneg %p350
      %p515 = scmp.lt.s32.totalorder %s28, 1
      %s516 = scalar_select %p515, %s28, 1
      %s517 = smul.addr %s516, 32
      %s518 = smul.addr %s517, 4
      %s519 = scalar_lea.vmem %s14, %s518
      %p520 = pneg %p379
      %p521 = pneg %p376
      %p522 = scmp.lt.s32.totalorder %s28, 1
      %s523 = scalar_select %p522, %s28, 1
      %s524 = smul.addr %s523, 2
      %s525 = scalar_lea.vmem %s15, %s524
      %p526 = pneg %p405
      %p527 = pneg %p402
      %p528 = scmp.lt.s32.totalorder %s28, 1
      %s529 = scalar_select %p528, %s28, 1
      %s530 = smul.addr %s529, 2
      %s531 = scalar_lea.vmem %s16, %s530
      %p532 = scmp.lt.s32.totalorder %s28, 1
      %s533 = scalar_select %p532, %s28, 1
      %s534 = smul.addr %s533, 40
      %s535 = smul.addr %s534, 8
      %s536 = scalar_lea.vmem %s0, %s535
      %p537 = scmp.lt.s32.totalorder %s28, 1
      %s538 = scalar_select %p537, %s28, 1
      %s539 = smul.addr %s538, 32
      %s540 = smul.addr %s539, 8
      %s541 = scalar_lea.vmem %s13, %s540
      %p542 = scmp.lt.s32.totalorder %s28, 1
      %s543 = scalar_select %p542, %s28, 1
      %s544 = smul.addr %s543, 32
      %s545 = smul.addr %s544, 4
      %s546 = scalar_lea.vmem %s14, %s545
      %p547 = scmp.lt.s32.totalorder %s28, 1
      %s548 = scalar_select %p547, %s28, 1
      %s549 = smul.addr %s548, 2
      %s550 = scalar_lea.vmem %s15, %s549
      %p551 = scmp.lt.s32.totalorder %s28, 1
      %s552 = scalar_select %p551, %s28, 1
      %s553 = smul.addr %s552, 2
      %s554 = scalar_lea.vmem %s16, %s553
      %v558 = vlaneseq
      %v559 = vshrl.u32 %v558, 7
      %v560 = vadd.s32 %v559, 8
      %v561 = vadd.s32 %v559, 16
      %v562 = vadd.s32 %v559, 24
      %v563 = vadd.s32 %v559, 32
      %v564 = vadd.s32 %v559, 40
      %v565 = vadd.s32 %v559, 48
      %v566 = vadd.s32 %v559, 56
      %v567 = vadd.s32 %v559, 64
      %v568 = vadd.s32 %v559, 72
      %v569 = vadd.s32 %v559, 80
      %v570 = vadd.s32 %v559, 88
      %v571 = vadd.s32 %v559, 96
      %v572 = vadd.s32 %v559, 104
      %v573 = vadd.s32 %v559, 112
      %v574 = vadd.s32 %v559, 120
      %v575 = vadd.s32 %v559, 128
      %v576 = vadd.s32 %v559, 136
      %v577 = vadd.s32 %v559, 144
      %v578 = vadd.s32 %v559, 152
      %v579 = vadd.s32 %v559, 160
      %v580 = vadd.s32 %v559, 168
      %v581 = vadd.s32 %v559, 176
      %v582 = vadd.s32 %v559, 184
      %v583 = vadd.s32 %v559, 192
      %v584 = vadd.s32 %v559, 200
      %v585 = vadd.s32 %v559, 208
      %v586 = vadd.s32 %v559, 216
      %v587 = vadd.s32 %v559, 224
      %v588 = vadd.s32 %v559, 232
      %v589 = vadd.s32 %v559, 240
      %v590 = vadd.s32 %v559, 248
      %vm591 = vcmp.lt.s32.totalorder %v559, 0
      %v592 = vsub.s32 0, %v559
      %v593 = vsel %vm591, %v592, %v559
      %v594 = vshrl.u32 %v593, 4
      %v595 = vand.u32 %v593, 15
      %v596 = vsub.s32 0, %v595
      %v597 = vsel %vm591, %v596, %v595
      %vm598 = vcmp.lt.s32.totalorder %v560, 0
      %v599 = vsub.s32 0, %v560
      %v600 = vsel %vm598, %v599, %v560
      %v601 = vshrl.u32 %v600, 4
      %v602 = vand.u32 %v600, 15
      %v603 = vsub.s32 0, %v602
      %v604 = vsel %vm598, %v603, %v602
      %vm605 = vcmp.lt.s32.totalorder %v561, 0
      %v606 = vsub.s32 0, %v561
      %v607 = vsel %vm605, %v606, %v561
      %v608 = vshrl.u32 %v607, 4
      %v609 = vand.u32 %v607, 15
      %v610 = vsub.s32 0, %v609
      %v611 = vsel %vm605, %v610, %v609
      %vm612 = vcmp.lt.s32.totalorder %v562, 0
      %v613 = vsub.s32 0, %v562
      %v614 = vsel %vm612, %v613, %v562
      %v615 = vshrl.u32 %v614, 4
      %v616 = vand.u32 %v614, 15
      %v617 = vsub.s32 0, %v616
      %v618 = vsel %vm612, %v617, %v616
      %vm619 = vcmp.lt.s32.totalorder %v563, 0
      %v620 = vsub.s32 0, %v563
      %v621 = vsel %vm619, %v620, %v563
      %v622 = vshrl.u32 %v621, 4
      %v623 = vand.u32 %v621, 15
      %v624 = vsub.s32 0, %v623
      %v625 = vsel %vm619, %v624, %v623
      %vm626 = vcmp.lt.s32.totalorder %v564, 0
      %v627 = vsub.s32 0, %v564
      %v628 = vsel %vm626, %v627, %v564
      %v629 = vshrl.u32 %v628, 4
      %v630 = vand.u32 %v628, 15
      %v631 = vsub.s32 0, %v630
      %v632 = vsel %vm626, %v631, %v630
      %vm633 = vcmp.lt.s32.totalorder %v565, 0
      %v634 = vsub.s32 0, %v565
      %v635 = vsel %vm633, %v634, %v565
      %v636 = vshrl.u32 %v635, 4
      %v637 = vand.u32 %v635, 15
      %v638 = vsub.s32 0, %v637
      %v639 = vsel %vm633, %v638, %v637
      %vm640 = vcmp.lt.s32.totalorder %v566, 0
      %v641 = vsub.s32 0, %v566
      %v642 = vsel %vm640, %v641, %v566
      %v643 = vshrl.u32 %v642, 4
      %v644 = vand.u32 %v642, 15
      %v645 = vsub.s32 0, %v644
      %v646 = vsel %vm640, %v645, %v644
      %vm647 = vcmp.lt.s32.totalorder %v567, 0
      %v648 = vsub.s32 0, %v567
      %v649 = vsel %vm647, %v648, %v567
      %v650 = vshrl.u32 %v649, 4
      %v651 = vand.u32 %v649, 15
      %v652 = vsub.s32 0, %v651
      %v653 = vsel %vm647, %v652, %v651
      %vm654 = vcmp.lt.s32.totalorder %v568, 0
      %v655 = vsub.s32 0, %v568
      %v656 = vsel %vm654, %v655, %v568
      %v657 = vshrl.u32 %v656, 4
      %v658 = vand.u32 %v656, 15
      %v659 = vsub.s32 0, %v658
      %v660 = vsel %vm654, %v659, %v658
      %vm661 = vcmp.lt.s32.totalorder %v569, 0
      %v662 = vsub.s32 0, %v569
      %v663 = vsel %vm661, %v662, %v569
      %v664 = vshrl.u32 %v663, 4
      %v665 = vand.u32 %v663, 15
      %v666 = vsub.s32 0, %v665
      %v667 = vsel %vm661, %v666, %v665
      %vm668 = vcmp.lt.s32.totalorder %v570, 0
      %v669 = vsub.s32 0, %v570
      %v670 = vsel %vm668, %v669, %v570
      %v671 = vshrl.u32 %v670, 4
      %v672 = vand.u32 %v670, 15
      %v673 = vsub.s32 0, %v672
      %v674 = vsel %vm668, %v673, %v672
      %vm675 = vcmp.lt.s32.totalorder %v571, 0
      %v676 = vsub.s32 0, %v571
      %v677 = vsel %vm675, %v676, %v571
      %v678 = vshrl.u32 %v677, 4
      %v679 = vand.u32 %v677, 15
      %v680 = vsub.s32 0, %v679
      %v681 = vsel %vm675, %v680, %v679
      %vm682 = vcmp.lt.s32.totalorder %v572, 0
      %v683 = vsub.s32 0, %v572
      %v684 = vsel %vm682, %v683, %v572
      %v685 = vshrl.u32 %v684, 4
      %v686 = vand.u32 %v684, 15
      %v687 = vsub.s32 0, %v686
      %v688 = vsel %vm682, %v687, %v686
      %vm689 = vcmp.lt.s32.totalorder %v573, 0
      %v690 = vsub.s32 0, %v573
      %v691 = vsel %vm689, %v690, %v573
      %v692 = vshrl.u32 %v691, 4
      %v693 = vand.u32 %v691, 15
      %v694 = vsub.s32 0, %v693
      %v695 = vsel %vm689, %v694, %v693
      %vm696 = vcmp.lt.s32.totalorder %v574, 0
      %v697 = vsub.s32 0, %v574
      %v698 = vsel %vm696, %v697, %v574
      %v699 = vshrl.u32 %v698, 4
      %v700 = vand.u32 %v698, 15
      %v701 = vsub.s32 0, %v700
      %v702 = vsel %vm696, %v701, %v700
      %vm703 = vcmp.lt.s32.totalorder %v575, 0
      %v704 = vsub.s32 0, %v575
      %v705 = vsel %vm703, %v704, %v575
      %v706 = vshrl.u32 %v705, 4
      %v707 = vand.u32 %v705, 15
      %v708 = vsub.s32 0, %v707
      %v709 = vsel %vm703, %v708, %v707
      %vm710 = vcmp.lt.s32.totalorder %v576, 0
      %v711 = vsub.s32 0, %v576
      %v712 = vsel %vm710, %v711, %v576
      %v713 = vshrl.u32 %v712, 4
      %v714 = vand.u32 %v712, 15
      %v715 = vsub.s32 0, %v714
      %v716 = vsel %vm710, %v715, %v714
      %vm717 = vcmp.lt.s32.totalorder %v577, 0
      %v718 = vsub.s32 0, %v577
      %v719 = vsel %vm717, %v718, %v577
      %v720 = vshrl.u32 %v719, 4
      %v721 = vand.u32 %v719, 15
      %v722 = vsub.s32 0, %v721
      %v723 = vsel %vm717, %v722, %v721
      %vm724 = vcmp.lt.s32.totalorder %v578, 0
      %v725 = vsub.s32 0, %v578
      %v726 = vsel %vm724, %v725, %v578
      %v727 = vshrl.u32 %v726, 4
      %v728 = vand.u32 %v726, 15
      %v729 = vsub.s32 0, %v728
      %v730 = vsel %vm724, %v729, %v728
      %vm731 = vcmp.lt.s32.totalorder %v579, 0
      %v732 = vsub.s32 0, %v579
      %v733 = vsel %vm731, %v732, %v579
      %v734 = vshrl.u32 %v733, 4
      %v735 = vand.u32 %v733, 15
      %v736 = vsub.s32 0, %v735
      %v737 = vsel %vm731, %v736, %v735
      %vm738 = vcmp.lt.s32.totalorder %v580, 0
      %v739 = vsub.s32 0, %v580
      %v740 = vsel %vm738, %v739, %v580
      %v741 = vshrl.u32 %v740, 4
      %v742 = vand.u32 %v740, 15
      %v743 = vsub.s32 0, %v742
      %v744 = vsel %vm738, %v743, %v742
      %vm745 = vcmp.lt.s32.totalorder %v581, 0
      %v746 = vsub.s32 0, %v581
      %v747 = vsel %vm745, %v746, %v581
      %v748 = vshrl.u32 %v747, 4
      %v749 = vand.u32 %v747, 15
      %v750 = vsub.s32 0, %v749
      %v751 = vsel %vm745, %v750, %v749
      %vm752 = vcmp.lt.s32.totalorder %v582, 0
      %v753 = vsub.s32 0, %v582
      %v754 = vsel %vm752, %v753, %v582
      %v755 = vshrl.u32 %v754, 4
      %v756 = vand.u32 %v754, 15
      %v757 = vsub.s32 0, %v756
      %v758 = vsel %vm752, %v757, %v756
      %vm759 = vcmp.lt.s32.totalorder %v583, 0
      %v760 = vsub.s32 0, %v583
      %v761 = vsel %vm759, %v760, %v583
      %v762 = vshrl.u32 %v761, 4
      %v763 = vand.u32 %v761, 15
      %v764 = vsub.s32 0, %v763
      %v765 = vsel %vm759, %v764, %v763
      %vm766 = vcmp.lt.s32.totalorder %v584, 0
      %v767 = vsub.s32 0, %v584
      %v768 = vsel %vm766, %v767, %v584
      %v769 = vshrl.u32 %v768, 4
      %v770 = vand.u32 %v768, 15
      %v771 = vsub.s32 0, %v770
      %v772 = vsel %vm766, %v771, %v770
      %vm773 = vcmp.lt.s32.totalorder %v585, 0
      %v774 = vsub.s32 0, %v585
      %v775 = vsel %vm773, %v774, %v585
      %v776 = vshrl.u32 %v775, 4
      %v777 = vand.u32 %v775, 15
      %v778 = vsub.s32 0, %v777
      %v779 = vsel %vm773, %v778, %v777
      %vm780 = vcmp.lt.s32.totalorder %v586, 0
      %v781 = vsub.s32 0, %v586
      %v782 = vsel %vm780, %v781, %v586
      %v783 = vshrl.u32 %v782, 4
      %v784 = vand.u32 %v782, 15
      %v785 = vsub.s32 0, %v784
      %v786 = vsel %vm780, %v785, %v784
      %vm787 = vcmp.lt.s32.totalorder %v587, 0
      %v788 = vsub.s32 0, %v587
      %v789 = vsel %vm787, %v788, %v587
      %v790 = vshrl.u32 %v789, 4
      %v791 = vand.u32 %v789, 15
      %v792 = vsub.s32 0, %v791
      %v793 = vsel %vm787, %v792, %v791
      %vm794 = vcmp.lt.s32.totalorder %v588, 0
      %v795 = vsub.s32 0, %v588
      %v796 = vsel %vm794, %v795, %v588
      %v797 = vshrl.u32 %v796, 4
      %v798 = vand.u32 %v796, 15
      %v799 = vsub.s32 0, %v798
      %v800 = vsel %vm794, %v799, %v798
      %vm801 = vcmp.lt.s32.totalorder %v589, 0
      %v802 = vsub.s32 0, %v589
      %v803 = vsel %vm801, %v802, %v589
      %v804 = vshrl.u32 %v803, 4
      %v805 = vand.u32 %v803, 15
      %v806 = vsub.s32 0, %v805
      %v807 = vsel %vm801, %v806, %v805
      %vm808 = vcmp.lt.s32.totalorder %v590, 0
      %v809 = vsub.s32 0, %v590
      %v810 = vsel %vm808, %v809, %v590
      %v811 = vshrl.u32 %v810, 4
      %v812 = vand.u32 %v810, 15
      %v813 = vsub.s32 0, %v812
      %v814 = vsel %vm808, %v813, %v812
      %vm815 = vcmp.ne.s32.totalorder %v597, 0
      %vm816 = vcmp.ne.s32.totalorder %v604, 0
      %vm817 = vcmp.ne.s32.totalorder %v611, 0
      %vm818 = vcmp.ne.s32.totalorder %v618, 0
      %vm819 = vcmp.ne.s32.totalorder %v625, 0
      %vm820 = vcmp.ne.s32.totalorder %v632, 0
      %vm821 = vcmp.ne.s32.totalorder %v639, 0
      %vm822 = vcmp.ne.s32.totalorder %v646, 0
      %vm823 = vcmp.ne.s32.totalorder %v653, 0
      %vm824 = vcmp.ne.s32.totalorder %v660, 0
      %vm825 = vcmp.ne.s32.totalorder %v667, 0
      %vm826 = vcmp.ne.s32.totalorder %v674, 0
      %vm827 = vcmp.ne.s32.totalorder %v681, 0
      %vm828 = vcmp.ne.s32.totalorder %v688, 0
      %vm829 = vcmp.ne.s32.totalorder %v695, 0
      %vm830 = vcmp.ne.s32.totalorder %v702, 0
      %vm831 = vcmp.ne.s32.totalorder %v709, 0
      %vm832 = vcmp.ne.s32.totalorder %v716, 0
      %vm833 = vcmp.ne.s32.totalorder %v723, 0
      %vm834 = vcmp.ne.s32.totalorder %v730, 0
      %vm835 = vcmp.ne.s32.totalorder %v737, 0
      %vm836 = vcmp.ne.s32.totalorder %v744, 0
      %vm837 = vcmp.ne.s32.totalorder %v751, 0
      %vm838 = vcmp.ne.s32.totalorder %v758, 0
      %vm839 = vcmp.ne.s32.totalorder %v765, 0
      %vm840 = vcmp.ne.s32.totalorder %v772, 0
      %vm841 = vcmp.ne.s32.totalorder %v779, 0
      %vm842 = vcmp.ne.s32.totalorder %v786, 0
      %vm843 = vcmp.ne.s32.totalorder %v793, 0
      %vm844 = vcmp.ne.s32.totalorder %v800, 0
      %vm845 = vcmp.ne.s32.totalorder %v807, 0
      %vm846 = vcmp.ne.s32.totalorder %v814, 0
      %vm847 = vcmp.lt.s32.totalorder %v597, 0
      %vm848 = vcmp.lt.s32.totalorder %v604, 0
      %vm849 = vcmp.lt.s32.totalorder %v611, 0
      %vm850 = vcmp.lt.s32.totalorder %v618, 0
      %vm851 = vcmp.lt.s32.totalorder %v625, 0
      %vm852 = vcmp.lt.s32.totalorder %v632, 0
      %vm853 = vcmp.lt.s32.totalorder %v639, 0
      %vm854 = vcmp.lt.s32.totalorder %v646, 0
      %vm855 = vcmp.lt.s32.totalorder %v653, 0
      %vm856 = vcmp.lt.s32.totalorder %v660, 0
      %vm857 = vcmp.lt.s32.totalorder %v667, 0
      %vm858 = vcmp.lt.s32.totalorder %v674, 0
      %vm859 = vcmp.lt.s32.totalorder %v681, 0
      %vm860 = vcmp.lt.s32.totalorder %v688, 0
      %vm861 = vcmp.lt.s32.totalorder %v695, 0
      %vm862 = vcmp.lt.s32.totalorder %v702, 0
      %vm863 = vcmp.lt.s32.totalorder %v709, 0
      %vm864 = vcmp.lt.s32.totalorder %v716, 0
      %vm865 = vcmp.lt.s32.totalorder %v723, 0
      %vm866 = vcmp.lt.s32.totalorder %v730, 0
      %vm867 = vcmp.lt.s32.totalorder %v737, 0
      %vm868 = vcmp.lt.s32.totalorder %v744, 0
      %vm869 = vcmp.lt.s32.totalorder %v751, 0
      %vm870 = vcmp.lt.s32.totalorder %v758, 0
      %vm871 = vcmp.lt.s32.totalorder %v765, 0
      %vm872 = vcmp.lt.s32.totalorder %v772, 0
      %vm873 = vcmp.lt.s32.totalorder %v779, 0
      %vm874 = vcmp.lt.s32.totalorder %v786, 0
      %vm875 = vcmp.lt.s32.totalorder %v793, 0
      %vm876 = vcmp.lt.s32.totalorder %v800, 0
      %vm877 = vcmp.lt.s32.totalorder %v807, 0
      %vm878 = vcmp.lt.s32.totalorder %v814, 0
      %vm879 = vmand %vm847, %vm815
      %vm880 = vmand %vm848, %vm816
      %vm881 = vmand %vm849, %vm817
      %vm882 = vmand %vm850, %vm818
      %vm883 = vmand %vm851, %vm819
      %vm884 = vmand %vm852, %vm820
      %vm885 = vmand %vm853, %vm821
      %vm886 = vmand %vm854, %vm822
      %vm887 = vmand %vm855, %vm823
      %vm888 = vmand %vm856, %vm824
      %vm889 = vmand %vm857, %vm825
      %vm890 = vmand %vm858, %vm826
      %vm891 = vmand %vm859, %vm827
      %vm892 = vmand %vm860, %vm828
      %vm893 = vmand %vm861, %vm829
      %vm894 = vmand %vm862, %vm830
      %vm895 = vmand %vm863, %vm831
      %vm896 = vmand %vm864, %vm832
      %vm897 = vmand %vm865, %vm833
      %vm898 = vmand %vm866, %vm834
      %vm899 = vmand %vm867, %vm835
      %vm900 = vmand %vm868, %vm836
      %vm901 = vmand %vm869, %vm837
      %vm902 = vmand %vm870, %vm838
      %vm903 = vmand %vm871, %vm839
      %vm904 = vmand %vm872, %vm840
      %vm905 = vmand %vm873, %vm841
      %vm906 = vmand %vm874, %vm842
      %vm907 = vmand %vm875, %vm843
      %vm908 = vmand %vm876, %vm844
      %vm909 = vmand %vm877, %vm845
      %vm910 = vmand %vm878, %vm846
      %v911 = vadd.s32 %v597, 16
      %v912 = vadd.s32 %v604, 16
      %v913 = vadd.s32 %v611, 16
      %v914 = vadd.s32 %v618, 16
      %v915 = vadd.s32 %v625, 16
      %v916 = vadd.s32 %v632, 16
      %v917 = vadd.s32 %v639, 16
      %v918 = vadd.s32 %v646, 16
      %v919 = vadd.s32 %v653, 16
      %v920 = vadd.s32 %v660, 16
      %v921 = vadd.s32 %v667, 16
      %v922 = vadd.s32 %v674, 16
      %v923 = vadd.s32 %v681, 16
      %v924 = vadd.s32 %v688, 16
      %v925 = vadd.s32 %v695, 16
      %v926 = vadd.s32 %v702, 16
      %v927 = vadd.s32 %v709, 16
      %v928 = vadd.s32 %v716, 16
      %v929 = vadd.s32 %v723, 16
      %v930 = vadd.s32 %v730, 16
      %v931 = vadd.s32 %v737, 16
      %v932 = vadd.s32 %v744, 16
      %v933 = vadd.s32 %v751, 16
      %v934 = vadd.s32 %v758, 16
      %v935 = vadd.s32 %v765, 16
      %v936 = vadd.s32 %v772, 16
      %v937 = vadd.s32 %v779, 16
      %v938 = vadd.s32 %v786, 16
      %v939 = vadd.s32 %v793, 16
      %v940 = vadd.s32 %v800, 16
      %v941 = vadd.s32 %v807, 16
      %v942 = vadd.s32 %v814, 16
      %v943 = vsel %vm879, %v911, %v597
      %v944 = vsel %vm880, %v912, %v604
      %v945 = vsel %vm881, %v913, %v611
      %v946 = vsel %vm882, %v914, %v618
      %v947 = vsel %vm883, %v915, %v625
      %v948 = vsel %vm884, %v916, %v632
      %v949 = vsel %vm885, %v917, %v639
      %v950 = vsel %vm886, %v918, %v646
      %v951 = vsel %vm887, %v919, %v653
      %v952 = vsel %vm888, %v920, %v660
      %v953 = vsel %vm889, %v921, %v667
      %v954 = vsel %vm890, %v922, %v674
      %v955 = vsel %vm891, %v923, %v681
      %v956 = vsel %vm892, %v924, %v688
      %v957 = vsel %vm893, %v925, %v695
      %v958 = vsel %vm894, %v926, %v702
      %v959 = vsel %vm895, %v927, %v709
      %v960 = vsel %vm896, %v928, %v716
      %v961 = vsel %vm897, %v929, %v723
      %v962 = vsel %vm898, %v930, %v730
      %v963 = vsel %vm899, %v931, %v737
      %v964 = vsel %vm900, %v932, %v744
      %v965 = vsel %vm901, %v933, %v751
      %v966 = vsel %vm902, %v934, %v758
      %v967 = vsel %vm903, %v935, %v765
      %v968 = vsel %vm904, %v936, %v772
      %v969 = vsel %vm905, %v937, %v779
      %v970 = vsel %vm906, %v938, %v786
      %v971 = vsel %vm907, %v939, %v793
      %v972 = vsel %vm908, %v940, %v800
      %v973 = vsel %vm909, %v941, %v807
      %v974 = vsel %vm910, %v942, %v814
      %v975 = vld [vmem:[%s536 + $0xf] sm:$0xff]
      %v976 = vld [vmem:[%s536 + $0x17] sm:$0xff]
      %v977 = vld [vmem:[%s536 + $0x1f] sm:$0xff]
      %v978 = vld [vmem:[%s536 + $0x27] sm:$0xff]
      %v979 = vld [vmem:[%s536 + $0x2f] sm:$0xff]
      %v980 = vld [vmem:[%s536 + $0x37] sm:$0xff]
      %v981 = vld [vmem:[%s536 + $0x3f] sm:$0xff]
      %v982 = vld [vmem:[%s536 + $0x47] sm:$0xff]
      %v983 = vld [vmem:[%s536 + $0x4f] sm:$0xff]
      %v984 = vld [vmem:[%s536 + $0x57] sm:$0xff]
      %v985 = vld [vmem:[%s536 + $0x5f] sm:$0xff]
      %v986 = vld [vmem:[%s536 + $0x67] sm:$0xff]
      %v987 = vld [vmem:[%s536 + $0x6f] sm:$0xff]
      %v988 = vld [vmem:[%s536 + $0x77] sm:$0xff]
      %v989 = vld [vmem:[%s536 + $0x7f] sm:$0xff]
      %v990 = vld [vmem:[%s536 + $0x87] sm:$0xff]
      %v991 = vld [vmem:[%s536 + $0x8f] sm:$0xff]
      %v992 = vld [vmem:[%s536 + $0x97] sm:$0xff]
      %v993 = vld [vmem:[%s536 + $0x9f] sm:$0xff]
      %v994 = vld [vmem:[%s536 + $0xa7] sm:$0xff]
      %v995 = vld [vmem:[%s536 + $0xaf] sm:$0xff]
      %v996 = vld [vmem:[%s536 + $0xb7] sm:$0xff]
      %v997 = vld [vmem:[%s536 + $0xbf] sm:$0xff]
      %v998 = vld [vmem:[%s536 + $0xc7] sm:$0xff]
      %v999 = vld [vmem:[%s536 + $0xcf] sm:$0xff]
      %v1000 = vld [vmem:[%s536 + $0xd7] sm:$0xff]
      %v1001 = vld [vmem:[%s536 + $0xdf] sm:$0xff]
      %v1002 = vld [vmem:[%s536 + $0xe7] sm:$0xff]
      %v1003 = vld [vmem:[%s536 + $0xef] sm:$0xff]
      %v1004 = vld [vmem:[%s536 + $0xf7] sm:$0xff]
      %v1005 = vld [vmem:[%s536 + $0xff] sm:$0xff]
      %v1006 = vld [vmem:[%s536 + $0x107] sm:$0xff]
      %v1007 = vpack.c.bf16 %v976, %v975
      %v1008 = vpack.c.bf16 %v978, %v977
      %v1009 = vpack.c.bf16 %v980, %v979
      %v1010 = vpack.c.bf16 %v982, %v981
      %v1011 = vpack.c.bf16 %v984, %v983
      %v1012 = vpack.c.bf16 %v986, %v985
      %v1013 = vpack.c.bf16 %v988, %v987
      %v1014 = vpack.c.bf16 %v990, %v989
      %v1015 = vpack.c.bf16 %v992, %v991
      %v1016 = vpack.c.bf16 %v994, %v993
      %v1017 = vpack.c.bf16 %v996, %v995
      %v1018 = vpack.c.bf16 %v998, %v997
      %v1019 = vpack.c.bf16 %v1000, %v999
      %v1020 = vpack.c.bf16 %v1002, %v1001
      %v1021 = vpack.c.bf16 %v1004, %v1003
      %v1022 = vpack.c.bf16 %v1006, %v1005
      %vm1023 = vcmp.ge.s32.totalorder %v943, 1
      %vm1024 = vcmp.ge.s32.totalorder %v944, 1
      %vm1025 = vcmp.ge.s32.totalorder %v945, 1
      %vm1026 = vcmp.ge.s32.totalorder %v946, 1
      %vm1027 = vcmp.ge.s32.totalorder %v947, 1
      %vm1028 = vcmp.ge.s32.totalorder %v948, 1
      %vm1029 = vcmp.ge.s32.totalorder %v949, 1
      %vm1030 = vcmp.ge.s32.totalorder %v950, 1
      %vm1031 = vcmp.ge.s32.totalorder %v951, 1
      %vm1032 = vcmp.ge.s32.totalorder %v952, 1
      %vm1033 = vcmp.ge.s32.totalorder %v953, 1
      %vm1034 = vcmp.ge.s32.totalorder %v954, 1
      %vm1035 = vcmp.ge.s32.totalorder %v955, 1
      %vm1036 = vcmp.ge.s32.totalorder %v956, 1
      %vm1037 = vcmp.ge.s32.totalorder %v957, 1
      %vm1038 = vcmp.ge.s32.totalorder %v958, 1
      %vm1039 = vcmp.ge.s32.totalorder %v959, 1
      %vm1040 = vcmp.ge.s32.totalorder %v960, 1
      %vm1041 = vcmp.ge.s32.totalorder %v961, 1
      %vm1042 = vcmp.ge.s32.totalorder %v962, 1
      %vm1043 = vcmp.ge.s32.totalorder %v963, 1
      %vm1044 = vcmp.ge.s32.totalorder %v964, 1
      %vm1045 = vcmp.ge.s32.totalorder %v965, 1
      %vm1046 = vcmp.ge.s32.totalorder %v966, 1
      %vm1047 = vcmp.ge.s32.totalorder %v967, 1
      %vm1048 = vcmp.ge.s32.totalorder %v968, 1
      %vm1049 = vcmp.ge.s32.totalorder %v969, 1
      %vm1050 = vcmp.ge.s32.totalorder %v970, 1
      %vm1051 = vcmp.ge.s32.totalorder %v971, 1
      %vm1052 = vcmp.ge.s32.totalorder %v972, 1
      %vm1053 = vcmp.ge.s32.totalorder %v973, 1
      %vm1054 = vcmp.ge.s32.totalorder %v974, 1
      %v1055 = vsel %vm1023, 1, 0
      %v1056 = vsel %vm1024, 1, 0
      %v1057 = vsel %vm1025, 1, 0
      %v1058 = vsel %vm1026, 1, 0
      %v1059 = vsel %vm1027, 1, 0
      %v1060 = vsel %vm1028, 1, 0
      %v1061 = vsel %vm1029, 1, 0
      %v1062 = vsel %vm1030, 1, 0
      %v1063 = vsel %vm1031, 1, 0
      %v1064 = vsel %vm1032, 1, 0
      %v1065 = vsel %vm1033, 1, 0
      %v1066 = vsel %vm1034, 1, 0
      %v1067 = vsel %vm1035, 1, 0
      %v1068 = vsel %vm1036, 1, 0
      %v1069 = vsel %vm1037, 1, 0
      %v1070 = vsel %vm1038, 1, 0
      %v1071 = vsel %vm1039, 1, 0
      %v1072 = vsel %vm1040, 1, 0
      %v1073 = vsel %vm1041, 1, 0
      %v1074 = vsel %vm1042, 1, 0
      %v1075 = vsel %vm1043, 1, 0
      %v1076 = vsel %vm1044, 1, 0
      %v1077 = vsel %vm1045, 1, 0
      %v1078 = vsel %vm1046, 1, 0
      %v1079 = vsel %vm1047, 1, 0
      %v1080 = vsel %vm1048, 1, 0
      %v1081 = vsel %vm1049, 1, 0
      %v1082 = vsel %vm1050, 1, 0
      %v1083 = vsel %vm1051, 1, 0
      %v1084 = vsel %vm1052, 1, 0
      %v1085 = vsel %vm1053, 1, 0
      %v1086 = vsel %vm1054, 1, 0
      %vm1087 = vcmp.eq.s32.totalorder %v1055, 1
      %vm1088 = vcmp.eq.s32.totalorder %v1056, 1
      %vm1089 = vcmp.eq.s32.totalorder %v1057, 1
      %vm1090 = vcmp.eq.s32.totalorder %v1058, 1
      %vm1091 = vcmp.eq.s32.totalorder %v1059, 1
      %vm1092 = vcmp.eq.s32.totalorder %v1060, 1
      %vm1093 = vcmp.eq.s32.totalorder %v1061, 1
      %vm1094 = vcmp.eq.s32.totalorder %v1062, 1
      %vm1095 = vcmp.eq.s32.totalorder %v1063, 1
      %vm1096 = vcmp.eq.s32.totalorder %v1064, 1
      %vm1097 = vcmp.eq.s32.totalorder %v1065, 1
      %vm1098 = vcmp.eq.s32.totalorder %v1066, 1
      %vm1099 = vcmp.eq.s32.totalorder %v1067, 1
      %vm1100 = vcmp.eq.s32.totalorder %v1068, 1
      %vm1101 = vcmp.eq.s32.totalorder %v1069, 1
      %vm1102 = vcmp.eq.s32.totalorder %v1070, 1
      %vm1103 = vcmp.eq.s32.totalorder %v1071, 1
      %vm1104 = vcmp.eq.s32.totalorder %v1072, 1
      %vm1105 = vcmp.eq.s32.totalorder %v1073, 1
      %vm1106 = vcmp.eq.s32.totalorder %v1074, 1
      %vm1107 = vcmp.eq.s32.totalorder %v1075, 1
      %vm1108 = vcmp.eq.s32.totalorder %v1076, 1
      %vm1109 = vcmp.eq.s32.totalorder %v1077, 1
      %vm1110 = vcmp.eq.s32.totalorder %v1078, 1
      %vm1111 = vcmp.eq.s32.totalorder %v1079, 1
      %vm1112 = vcmp.eq.s32.totalorder %v1080, 1
      %vm1113 = vcmp.eq.s32.totalorder %v1081, 1
      %vm1114 = vcmp.eq.s32.totalorder %v1082, 1
      %vm1115 = vcmp.eq.s32.totalorder %v1083, 1
      %vm1116 = vcmp.eq.s32.totalorder %v1084, 1
      %vm1117 = vcmp.eq.s32.totalorder %v1085, 1
      %vm1118 = vcmp.eq.s32.totalorder %v1086, 1
      %vm1119 = vmpackc.low %vm1087, %vm1087
      %vm1120 = vmpackc.low %vm1088, %vm1088
      %vm1121 = vmpackc.low %vm1089, %vm1089
      %vm1122 = vmpackc.low %vm1090, %vm1090
      %vm1123 = vmpackc.low %vm1091, %vm1091
      %vm1124 = vmpackc.low %vm1092, %vm1092
      %vm1125 = vmpackc.low %vm1093, %vm1093
      %vm1126 = vmpackc.low %vm1094, %vm1094
      %vm1127 = vmpackc.low %vm1095, %vm1095
      %vm1128 = vmpackc.low %vm1096, %vm1096
      %vm1129 = vmpackc.low %vm1097, %vm1097
      %vm1130 = vmpackc.low %vm1098, %vm1098
      %vm1131 = vmpackc.low %vm1099, %vm1099
      %vm1132 = vmpackc.low %vm1100, %vm1100
      %vm1133 = vmpackc.low %vm1101, %vm1101
      %vm1134 = vmpackc.low %vm1102, %vm1102
      %vm1135 = vmpackc.low %vm1103, %vm1103
      %vm1136 = vmpackc.low %vm1104, %vm1104
      %vm1137 = vmpackc.low %vm1105, %vm1105
      %vm1138 = vmpackc.low %vm1106, %vm1106
      %vm1139 = vmpackc.low %vm1107, %vm1107
      %vm1140 = vmpackc.low %vm1108, %vm1108
      %vm1141 = vmpackc.low %vm1109, %vm1109
      %vm1142 = vmpackc.low %vm1110, %vm1110
      %vm1143 = vmpackc.low %vm1111, %vm1111
      %vm1144 = vmpackc.low %vm1112, %vm1112
      %vm1145 = vmpackc.low %vm1113, %vm1113
      %vm1146 = vmpackc.low %vm1114, %vm1114
      %vm1147 = vmpackc.low %vm1115, %vm1115
      %vm1148 = vmpackc.low %vm1116, %vm1116
      %vm1149 = vmpackc.low %vm1117, %vm1117
      %vm1150 = vmpackc.low %vm1118, %vm1118
      %v1151 = vsel %vm1119, 65537, 0
      %v1152 = vsel %vm1120, 65537, 0
      %v1153 = vsel %vm1121, 65537, 0
      %v1154 = vsel %vm1122, 65537, 0
      %v1155 = vsel %vm1123, 65537, 0
      %v1156 = vsel %vm1124, 65537, 0
      %v1157 = vsel %vm1125, 65537, 0
      %v1158 = vsel %vm1126, 65537, 0
      %v1159 = vsel %vm1127, 65537, 0
      %v1160 = vsel %vm1128, 65537, 0
      %v1161 = vsel %vm1129, 65537, 0
      %v1162 = vsel %vm1130, 65537, 0
      %v1163 = vsel %vm1131, 65537, 0
      %v1164 = vsel %vm1132, 65537, 0
      %v1165 = vsel %vm1133, 65537, 0
      %v1166 = vsel %vm1134, 65537, 0
      %v1167 = vsel %vm1135, 65537, 0
      %v1168 = vsel %vm1136, 65537, 0
      %v1169 = vsel %vm1137, 65537, 0
      %v1170 = vsel %vm1138, 65537, 0
      %v1171 = vsel %vm1139, 65537, 0
      %v1172 = vsel %vm1140, 65537, 0
      %v1173 = vsel %vm1141, 65537, 0
      %v1174 = vsel %vm1142, 65537, 0
      %v1175 = vsel %vm1143, 65537, 0
      %v1176 = vsel %vm1144, 65537, 0
      %v1177 = vsel %vm1145, 65537, 0
      %v1178 = vsel %vm1146, 65537, 0
      %v1179 = vsel %vm1147, 65537, 0
      %v1180 = vsel %vm1148, 65537, 0
      %v1181 = vsel %vm1149, 65537, 0
      %v1182 = vsel %vm1150, 65537, 0
      %v1183 = vunpack.c.l.b16 %v1151
      %v1184 = vunpack.c.l.b16 %v1152
      %v1185 = vunpack.c.l.b16 %v1153
      %v1186 = vunpack.c.l.b16 %v1154
      %v1187 = vunpack.c.l.b16 %v1155
      %v1188 = vunpack.c.l.b16 %v1156
      %v1189 = vunpack.c.l.b16 %v1157
      %v1190 = vunpack.c.l.b16 %v1158
      %v1191 = vunpack.c.l.b16 %v1159
      %v1192 = vunpack.c.l.b16 %v1160
      %v1193 = vunpack.c.l.b16 %v1161
      %v1194 = vunpack.c.l.b16 %v1162
      %v1195 = vunpack.c.l.b16 %v1163
      %v1196 = vunpack.c.l.b16 %v1164
      %v1197 = vunpack.c.l.b16 %v1165
      %v1198 = vunpack.c.l.b16 %v1166
      %v1199 = vunpack.c.l.b16 %v1167
      %v1200 = vunpack.c.l.b16 %v1168
      %v1201 = vunpack.c.l.b16 %v1169
      %v1202 = vunpack.c.l.b16 %v1170
      %v1203 = vunpack.c.l.b16 %v1171
      %v1204 = vunpack.c.l.b16 %v1172
      %v1205 = vunpack.c.l.b16 %v1173
      %v1206 = vunpack.c.l.b16 %v1174
      %v1207 = vunpack.c.l.b16 %v1175
      %v1208 = vunpack.c.l.b16 %v1176
      %v1209 = vunpack.c.l.b16 %v1177
      %v1210 = vunpack.c.l.b16 %v1178
      %v1211 = vunpack.c.l.b16 %v1179
      %v1212 = vunpack.c.l.b16 %v1180
      %v1213 = vunpack.c.l.b16 %v1181
      %v1214 = vunpack.c.l.b16 %v1182
      %v1215 = vpack.c.b16 %v1184, %v1183
      %v1216 = vpack.c.b16 %v1186, %v1185
      %v1217 = vpack.c.b16 %v1188, %v1187
      %v1218 = vpack.c.b16 %v1190, %v1189
      %v1219 = vpack.c.b16 %v1192, %v1191
      %v1220 = vpack.c.b16 %v1194, %v1193
      %v1221 = vpack.c.b16 %v1196, %v1195
      %v1222 = vpack.c.b16 %v1198, %v1197
      %v1223 = vpack.c.b16 %v1200, %v1199
      %v1224 = vpack.c.b16 %v1202, %v1201
      %v1225 = vpack.c.b16 %v1204, %v1203
      %v1226 = vpack.c.b16 %v1206, %v1205
      %v1227 = vpack.c.b16 %v1208, %v1207
      %v1228 = vpack.c.b16 %v1210, %v1209
      %v1229 = vpack.c.b16 %v1212, %v1211
      %v1230 = vpack.c.b16 %v1214, %v1213
      %vm1231 = vcmp.ne.s16.totalorder %v1215, 0
      %vm1232 = vcmp.ne.s16.totalorder %v1216, 0
      %vm1233 = vcmp.ne.s16.totalorder %v1217, 0
      %vm1234 = vcmp.ne.s16.totalorder %v1218, 0
      %vm1235 = vcmp.ne.s16.totalorder %v1219, 0
      %vm1236 = vcmp.ne.s16.totalorder %v1220, 0
      %vm1237 = vcmp.ne.s16.totalorder %v1221, 0
      %vm1238 = vcmp.ne.s16.totalorder %v1222, 0
      %vm1239 = vcmp.ne.s16.totalorder %v1223, 0
      %vm1240 = vcmp.ne.s16.totalorder %v1224, 0
      %vm1241 = vcmp.ne.s16.totalorder %v1225, 0
      %vm1242 = vcmp.ne.s16.totalorder %v1226, 0
      %vm1243 = vcmp.ne.s16.totalorder %v1227, 0
      %vm1244 = vcmp.ne.s16.totalorder %v1228, 0
      %vm1245 = vcmp.ne.s16.totalorder %v1229, 0
      %vm1246 = vcmp.ne.s16.totalorder %v1230, 0
      %v1247 = vsel %vm1231, %v1007, 0
      %v1248 = vsel %vm1232, %v1008, 0
      %v1249 = vsel %vm1233, %v1009, 0
      %v1250 = vsel %vm1234, %v1010, 0
      %v1251 = vsel %vm1235, %v1011, 0
      %v1252 = vsel %vm1236, %v1012, 0
      %v1253 = vsel %vm1237, %v1013, 0
      %v1254 = vsel %vm1238, %v1014, 0
      %v1255 = vsel %vm1239, %v1015, 0
      %v1256 = vsel %vm1240, %v1016, 0
      %v1257 = vsel %vm1241, %v1017, 0
      %v1258 = vsel %vm1242, %v1018, 0
      %v1259 = vsel %vm1243, %v1019, 0
      %v1260 = vsel %vm1244, %v1020, 0
      %v1261 = vsel %vm1245, %v1021, 0
      %v1262 = vsel %vm1246, %v1022, 0
      %v1263 = vld [vmem:[%s1] sm:$0xf]
      %v1264 = vld [vmem:[%s1 + $0x4] sm:$0xf]
      %v1265 = vld [vmem:[%s1 + $0x8] sm:$0xf]
      %v1266 = vld [vmem:[%s1 + $0xc] sm:$0xf]
      %v1267 = vld [vmem:[%s1 + $0x10] sm:$0xf]
      %v1268 = vld [vmem:[%s1 + $0x14] sm:$0xf]
      %v1269 = vld [vmem:[%s1 + $0x18] sm:$0xf]
      %v1270 = vld [vmem:[%s1 + $0x1c] sm:$0xf]
      %v1271 = vld [vmem:[%s1 + $0x20] sm:$0xf]
      %v1272 = vld [vmem:[%s1 + $0x24] sm:$0xf]
      %v1273 = vld [vmem:[%s1 + $0x28] sm:$0xf]
      %v1274 = vld [vmem:[%s1 + $0x2c] sm:$0xf]
      %v1275 = vld [vmem:[%s1 + $0x30] sm:$0xf]
      %v1276 = vld [vmem:[%s1 + $0x34] sm:$0xf]
      %v1277 = vld [vmem:[%s1 + $0x38] sm:$0xf]
      %v1278 = vld [vmem:[%s1 + $0x3c] sm:$0xf]
      %v1279 = vld [vmem:[%s536 + $0x10] sm:$0xff]
      %v1280 = vld [vmem:[%s536 + $0x18] sm:$0xff]
      %v1281 = vld [vmem:[%s536 + $0x20] sm:$0xff]
      %v1282 = vld [vmem:[%s536 + $0x28] sm:$0xff]
      %v1283 = vld [vmem:[%s536 + $0x30] sm:$0xff]
      %v1284 = vld [vmem:[%s536 + $0x38] sm:$0xff]
      %v1285 = vld [vmem:[%s536 + $0x40] sm:$0xff]
      %v1286 = vld [vmem:[%s536 + $0x48] sm:$0xff]
      %v1287 = vld [vmem:[%s536 + $0x50] sm:$0xff]
      %v1288 = vld [vmem:[%s536 + $0x58] sm:$0xff]
      %v1289 = vld [vmem:[%s536 + $0x60] sm:$0xff]
      %v1290 = vld [vmem:[%s536 + $0x68] sm:$0xff]
      %v1291 = vld [vmem:[%s536 + $0x70] sm:$0xff]
      %v1292 = vld [vmem:[%s536 + $0x78] sm:$0xff]
      %v1293 = vld [vmem:[%s536 + $0x80] sm:$0xff]
      %v1294 = vld [vmem:[%s536 + $0x88] sm:$0xff]
      %v1295 = vld [vmem:[%s536 + $0x90] sm:$0xff]
      %v1296 = vld [vmem:[%s536 + $0x98] sm:$0xff]
      %v1297 = vld [vmem:[%s536 + $0xa0] sm:$0xff]
      %v1298 = vld [vmem:[%s536 + $0xa8] sm:$0xff]
      %v1299 = vld [vmem:[%s536 + $0xb0] sm:$0xff]
      %v1300 = vld [vmem:[%s536 + $0xb8] sm:$0xff]
      %v1301 = vld [vmem:[%s536 + $0xc0] sm:$0xff]
      %v1302 = vld [vmem:[%s536 + $0xc8] sm:$0xff]
      %v1303 = vld [vmem:[%s536 + $0xd0] sm:$0xff]
      %v1304 = vld [vmem:[%s536 + $0xd8] sm:$0xff]
      %v1305 = vld [vmem:[%s536 + $0xe0] sm:$0xff]
      %v1306 = vld [vmem:[%s536 + $0xe8] sm:$0xff]
      %v1307 = vld [vmem:[%s536 + $0xf0] sm:$0xff]
      %v1308 = vld [vmem:[%s536 + $0xf8] sm:$0xff]
      %v1309 = vld [vmem:[%s536 + $0x100] sm:$0xff]
      %v1310 = vld [vmem:[%s536 + $0x108] sm:$0xff]
      %v1311 = vpack.c.bf16 %v1280, %v1279
      %v1312 = vpack.c.bf16 %v1282, %v1281
      %v1313 = vpack.c.bf16 %v1284, %v1283
      %v1314 = vpack.c.bf16 %v1286, %v1285
      %v1315 = vpack.c.bf16 %v1288, %v1287
      %v1316 = vpack.c.bf16 %v1290, %v1289
      %v1317 = vpack.c.bf16 %v1292, %v1291
      %v1318 = vpack.c.bf16 %v1294, %v1293
      %v1319 = vpack.c.bf16 %v1296, %v1295
      %v1320 = vpack.c.bf16 %v1298, %v1297
      %v1321 = vpack.c.bf16 %v1300, %v1299
      %v1322 = vpack.c.bf16 %v1302, %v1301
      %v1323 = vpack.c.bf16 %v1304, %v1303
      %v1324 = vpack.c.bf16 %v1306, %v1305
      %v1325 = vpack.c.bf16 %v1308, %v1307
      %v1326 = vpack.c.bf16 %v1310, %v1309
      %s1327 = scalar_lea.vmem %s1, 64
      %v1328 = vld [vmem:[%s1327] sm:$0xf]
      %v1329 = vld [vmem:[%s1327 + $0x4] sm:$0xf]
      %v1330 = vld [vmem:[%s1327 + $0x8] sm:$0xf]
      %v1331 = vld [vmem:[%s1327 + $0xc] sm:$0xf]
      %v1332 = vld [vmem:[%s1327 + $0x10] sm:$0xf]
      %v1333 = vld [vmem:[%s1327 + $0x14] sm:$0xf]
      %v1334 = vld [vmem:[%s1327 + $0x18] sm:$0xf]
      %v1335 = vld [vmem:[%s1327 + $0x1c] sm:$0xf]
      %v1336 = vld [vmem:[%s1327 + $0x20] sm:$0xf]
      %v1337 = vld [vmem:[%s1327 + $0x24] sm:$0xf]
      %v1338 = vld [vmem:[%s1327 + $0x28] sm:$0xf]
      %v1339 = vld [vmem:[%s1327 + $0x2c] sm:$0xf]
      %v1340 = vld [vmem:[%s1327 + $0x30] sm:$0xf]
      %v1341 = vld [vmem:[%s1327 + $0x34] sm:$0xf]
      %v1342 = vld [vmem:[%s1327 + $0x38] sm:$0xf]
      %v1343 = vld [vmem:[%s1327 + $0x3c] sm:$0xf]
      %v1360 = vunpack.c.l.b16 %v1328
      %v1361 = vunpack.c.l.b16 %v1329
      %v1362 = vunpack.c.l.b16 %v1330
      %v1363 = vunpack.c.l.b16 %v1331
      %v1364 = vunpack.c.l.b16 %v1332
      %v1365 = vunpack.c.l.b16 %v1333
      %v1366 = vunpack.c.l.b16 %v1334
      %v1367 = vunpack.c.l.b16 %v1335
      %v1368 = vunpack.c.l.b16 %v1336
      %v1369 = vunpack.c.l.b16 %v1337
      %v1370 = vunpack.c.l.b16 %v1338
      %v1371 = vunpack.c.l.b16 %v1339
      %v1372 = vunpack.c.l.b16 %v1340
      %v1373 = vunpack.c.l.b16 %v1341
      %v1374 = vunpack.c.l.b16 %v1342
      %v1375 = vunpack.c.l.b16 %v1343
      %v1376 = vpack.c.b16 %v1361, %v1360
      %v1377 = vpack.c.b16 %v1363, %v1362
      %v1378 = vpack.c.b16 %v1365, %v1364
      %v1379 = vpack.c.b16 %v1367, %v1366
      %v1380 = vpack.c.b16 %v1369, %v1368
      %v1381 = vpack.c.b16 %v1371, %v1370
      %v1382 = vpack.c.b16 %v1373, %v1372
      %v1383 = vpack.c.b16 %v1375, %v1374
      %1392 = vmatprep.subr.bf16.mxu0 0
      %1393 = vmatpush1.bf16.msra.mxu0 %v1376
      %1394 = vmatprep.subr.bf16.mxu0 0
      %1395 = vmatpush1.bf16.msra.mxu0 %v1377
      %1396 = vmatprep.subr.bf16.mxu0 0
      %1397 = vmatpush1.bf16.msra.mxu0 %v1378
      %1398 = vmatprep.subr.bf16.mxu0 0
      %1399 = vmatpush1.bf16.msra.mxu0 %v1379
      %1400 = vmatprep.subr.bf16.mxu0 0
      %1401 = vmatpush1.bf16.msra.mxu0 %v1380
      %1402 = vmatprep.subr.bf16.mxu0 0
      %1403 = vmatpush1.bf16.msra.mxu0 %v1381
      %1404 = vmatprep.subr.bf16.mxu0 0
      %1405 = vmatpush1.bf16.msra.mxu0 %v1382
      %1406 = vmatprep.subr.bf16.mxu0 0
      %1407 = vmatpush1.bf16.msra.mxu0 %v1383
      %1408 = vmatprep.subr.bf16.mxu0 0
      %1409 = vmatpush1.bf16.msra.mxu0 0
      %1410 = vmatprep.subr.bf16.mxu0 0
      %1411 = vmatpush1.bf16.msra.mxu0 0
      %1412 = vmatprep.subr.bf16.mxu0 0
      %1413 = vmatpush1.bf16.msra.mxu0 0
      %1414 = vmatprep.subr.bf16.mxu0 0
      %1415 = vmatpush1.bf16.msra.mxu0 0
      %1416 = vmatprep.subr.bf16.mxu0 0
      %1417 = vmatpush1.bf16.msra.mxu0 0
      %1418 = vmatprep.subr.bf16.mxu0 0
      %1419 = vmatpush1.bf16.msra.mxu0 0
      %1420 = vmatprep.subr.bf16.mxu0 0
      %1421 = vmatpush1.bf16.msra.mxu0 0
      %1422 = vmatprep.subr.bf16.mxu0 0
      %1423 = vmatpush1.bf16.msra.mxu0 0
      %1424 = vmatprep.mubr.bf16.mxu0 0
      %1425 = vmatmul.mubr.bf16.gmra.mrb[0].mxu0 %v1311
      %v1426 = vpop.f32.mrb[0].mxu0
      %v1427 = vadd.f32 0.0, %v1426
      %v1428 = vpop.f32.mrb[0].mxu0
      %v1429 = vpop.f32.mrb[0].mxu0
      %v1430 = vadd.f32 0.0, %v1429
      %v1431 = vpop.f32.mrb[0].mxu0
      %1432 = vmatprep.mubr.bf16.mxu0 0
      %1433 = vmatmul.mubr.bf16.gmra.mrb[0].mxu0 %v1312
      %v1434 = vpop.f32.mrb[0].mxu0
      %v1435 = vadd.f32 0.0, %v1434
      %v1436 = vpop.f32.mrb[0].mxu0
      %v1437 = vpop.f32.mrb[0].mxu0
      %v1438 = vadd.f32 0.0, %v1437
      %v1439 = vpop.f32.mrb[0].mxu0
      %1440 = vmatprep.mubr.bf16.mxu0 0
      %1441 = vmatmul.mubr.bf16.gmra.mrb[0].mxu0 %v1313
      %v1442 = vpop.f32.mrb[0].mxu0
      %v1443 = vadd.f32 0.0, %v1442
      %v1444 = vpop.f32.mrb[0].mxu0
      %v1445 = vpop.f32.mrb[0].mxu0
      %v1446 = vadd.f32 0.0, %v1445
      %v1447 = vpop.f32.mrb[0].mxu0
      %1448 = vmatprep.mubr.bf16.mxu0 0
      %1449 = vmatmul.mubr.bf16.gmra.mrb[0].mxu0 %v1314
      %v1450 = vpop.f32.mrb[0].mxu0
      %v1451 = vadd.f32 0.0, %v1450
      %v1452 = vpop.f32.mrb[0].mxu0
      %v1453 = vpop.f32.mrb[0].mxu0
      %v1454 = vadd.f32 0.0, %v1453
      %v1455 = vpop.f32.mrb[0].mxu0
      %1456 = vmatprep.mubr.bf16.mxu0 0
      %1457 = vmatmul.mubr.bf16.gmra.mrb[0].mxu0 %v1315
      %v1458 = vpop.f32.mrb[0].mxu0
      %v1459 = vadd.f32 0.0, %v1458
      %v1460 = vpop.f32.mrb[0].mxu0
      %v1461 = vpop.f32.mrb[0].mxu0
      %v1462 = vadd.f32 0.0, %v1461
      %v1463 = vpop.f32.mrb[0].mxu0
      %1464 = vmatprep.mubr.bf16.mxu0 0
      %1465 = vmatmul.mubr.bf16.gmra.mrb[0].mxu0 %v1316
      %v1466 = vpop.f32.mrb[0].mxu0
      %v1467 = vadd.f32 0.0, %v1466
      %v1468 = vpop.f32.mrb[0].mxu0
      %v1469 = vpop.f32.mrb[0].mxu0
      %v1470 = vadd.f32 0.0, %v1469
      %v1471 = vpop.f32.mrb[0].mxu0
      %1472 = vmatprep.mubr.bf16.mxu0 0
      %1473 = vmatmul.mubr.bf16.gmra.mrb[0].mxu0 %v1317
      %v1474 = vpop.f32.mrb[0].mxu0
      %v1475 = vadd.f32 0.0, %v1474
      %v1476 = vpop.f32.mrb[0].mxu0
      %v1477 = vpop.f32.mrb[0].mxu0
      %v1478 = vadd.f32 0.0, %v1477
      %v1479 = vpop.f32.mrb[0].mxu0
      %1480 = vmatprep.mubr.bf16.mxu0 0
      %1481 = vmatmul.mubr.bf16.gmra.mrb[0].mxu0 %v1318
      %v1482 = vpop.f32.mrb[0].mxu0
      %v1483 = vadd.f32 0.0, %v1482
      %v1484 = vpop.f32.mrb[0].mxu0
      %v1485 = vpop.f32.mrb[0].mxu0
      %v1486 = vadd.f32 0.0, %v1485
      %v1487 = vpop.f32.mrb[0].mxu0
      %1488 = vmatprep.mubr.bf16.mxu0 0
      %1489 = vmatmul.mubr.bf16.gmra.mrb[0].mxu0 %v1319
      %v1490 = vpop.f32.mrb[0].mxu0
      %v1491 = vadd.f32 0.0, %v1490
      %v1492 = vpop.f32.mrb[0].mxu0
      %v1493 = vpop.f32.mrb[0].mxu0
      %v1494 = vadd.f32 0.0, %v1493
      %v1495 = vpop.f32.mrb[0].mxu0
      %1496 = vmatprep.mubr.bf16.mxu0 0
      %1497 = vmatmul.mubr.bf16.gmra.mrb[0].mxu0 %v1320
      %v1498 = vpop.f32.mrb[0].mxu0
      %v1499 = vadd.f32 0.0, %v1498
      %v1500 = vpop.f32.mrb[0].mxu0
      %v1501 = vpop.f32.mrb[0].mxu0
      %v1502 = vadd.f32 0.0, %v1501
      %v1503 = vpop.f32.mrb[0].mxu0
      %1504 = vmatprep.mubr.bf16.mxu0 0
      %1505 = vmatmul.mubr.bf16.gmra.mrb[0].mxu0 %v1321
      %v1506 = vpop.f32.mrb[0].mxu0
      %v1507 = vadd.f32 0.0, %v1506
      %v1508 = vpop.f32.mrb[0].mxu0
      %v1509 = vpop.f32.mrb[0].mxu0
      %v1510 = vadd.f32 0.0, %v1509
      %v1511 = vpop.f32.mrb[0].mxu0
      %1512 = vmatprep.mubr.bf16.mxu0 0
      %1513 = vmatmul.mubr.bf16.gmra.mrb[0].mxu0 %v1322
      %v1514 = vpop.f32.mrb[0].mxu0
      %v1515 = vadd.f32 0.0, %v1514
      %v1516 = vpop.f32.mrb[0].mxu0
      %v1517 = vpop.f32.mrb[0].mxu0
      %v1518 = vadd.f32 0.0, %v1517
      %v1519 = vpop.f32.mrb[0].mxu0
      %1520 = vmatprep.mubr.bf16.mxu0 0
      %1521 = vmatmul.mubr.bf16.gmra.mrb[0].mxu0 %v1323
      %v1522 = vpop.f32.mrb[0].mxu0
      %v1523 = vadd.f32 0.0, %v1522
      %v1524 = vpop.f32.mrb[0].mxu0
      %v1525 = vpop.f32.mrb[0].mxu0
      %v1526 = vadd.f32 0.0, %v1525
      %v1527 = vpop.f32.mrb[0].mxu0
      %1528 = vmatprep.mubr.bf16.mxu0 0
      %1529 = vmatmul.mubr.bf16.gmra.mrb[0].mxu0 %v1324
      %v1530 = vpop.f32.mrb[0].mxu0
      %v1531 = vadd.f32 0.0, %v1530
      %v1532 = vpop.f32.mrb[0].mxu0
      %v1533 = vpop.f32.mrb[0].mxu0
      %v1534 = vadd.f32 0.0, %v1533
      %v1535 = vpop.f32.mrb[0].mxu0
      %1536 = vmatprep.mubr.bf16.mxu0 0
      %1537 = vmatmul.mubr.bf16.gmra.mrb[0].mxu0 %v1325
      %v1538 = vpop.f32.mrb[0].mxu0
      %v1539 = vadd.f32 0.0, %v1538
      %v1540 = vpop.f32.mrb[0].mxu0
      %v1541 = vpop.f32.mrb[0].mxu0
      %v1542 = vadd.f32 0.0, %v1541
      %v1543 = vpop.f32.mrb[0].mxu0
      %1544 = vmatprep.mubr.bf16.mxu0 0
      %1545 = vmatmul.mubr.bf16.gmra.mrb[0].mxu0 %v1326
      %v1546 = vpop.f32.mrb[0].mxu0
      %v1547 = vadd.f32 0.0, %v1546
      %v1548 = vpop.f32.mrb[0].mxu0
      %v1549 = vpop.f32.mrb[0].mxu0
      %v1550 = vadd.f32 0.0, %v1549
      %v1551 = vpop.f32.mrb[0].mxu0
      %1552 = vdwg.mxu0
      %v1569 = vunpack.c.l.b16 %v1263
      %v1570 = vunpack.c.l.b16 %v1264
      %v1571 = vunpack.c.l.b16 %v1265
      %v1572 = vunpack.c.l.b16 %v1266
      %v1573 = vunpack.c.l.b16 %v1267
      %v1574 = vunpack.c.l.b16 %v1268
      %v1575 = vunpack.c.l.b16 %v1269
      %v1576 = vunpack.c.l.b16 %v1270
      %v1577 = vunpack.c.l.b16 %v1271
      %v1578 = vunpack.c.l.b16 %v1272
      %v1579 = vunpack.c.l.b16 %v1273
      %v1580 = vunpack.c.l.b16 %v1274
      %v1581 = vunpack.c.l.b16 %v1275
      %v1582 = vunpack.c.l.b16 %v1276
      %v1583 = vunpack.c.l.b16 %v1277
      %v1584 = vunpack.c.l.b16 %v1278
      %v1585 = vpack.c.b16 %v1570, %v1569
      %v1586 = vpack.c.b16 %v1572, %v1571
      %v1587 = vpack.c.b16 %v1574, %v1573
      %v1588 = vpack.c.b16 %v1576, %v1575
      %v1589 = vpack.c.b16 %v1578, %v1577
      %v1590 = vpack.c.b16 %v1580, %v1579
      %v1591 = vpack.c.b16 %v1582, %v1581
      %v1592 = vpack.c.b16 %v1584, %v1583
      %1601 = vmatprep.subr.bf16.mxu0 0
      %1602 = vmatpush1.bf16.msra.mxu0 %v1585
      %1603 = vmatprep.subr.bf16.mxu0 0
      %1604 = vmatpush1.bf16.msra.mxu0 %v1586
      %1605 = vmatprep.subr.bf16.mxu0 0
      %1606 = vmatpush1.bf16.msra.mxu0 %v1587
      %1607 = vmatprep.subr.bf16.mxu0 0
      %1608 = vmatpush1.bf16.msra.mxu0 %v1588
      %1609 = vmatprep.subr.bf16.mxu0 0
      %1610 = vmatpush1.bf16.msra.mxu0 %v1589
      %1611 = vmatprep.subr.bf16.mxu0 0
      %1612 = vmatpush1.bf16.msra.mxu0 %v1590
      %1613 = vmatprep.subr.bf16.mxu0 0
      %1614 = vmatpush1.bf16.msra.mxu0 %v1591
      %1615 = vmatprep.subr.bf16.mxu0 0
      %1616 = vmatpush1.bf16.msra.mxu0 %v1592
      %1617 = vmatprep.subr.bf16.mxu0 0
      %1618 = vmatpush1.bf16.msra.mxu0 0
      %1619 = vmatprep.subr.bf16.mxu0 0
      %1620 = vmatpush1.bf16.msra.mxu0 0
      %1621 = vmatprep.subr.bf16.mxu0 0
      %1622 = vmatpush1.bf16.msra.mxu0 0
      %1623 = vmatprep.subr.bf16.mxu0 0
      %1624 = vmatpush1.bf16.msra.mxu0 0
      %1625 = vmatprep.subr.bf16.mxu0 0
      %1626 = vmatpush1.bf16.msra.mxu0 0
      %1627 = vmatprep.subr.bf16.mxu0 0
      %1628 = vmatpush1.bf16.msra.mxu0 0
      %1629 = vmatprep.subr.bf16.mxu0 0
      %1630 = vmatpush1.bf16.msra.mxu0 0
      %1631 = vmatprep.subr.bf16.mxu0 0
      %1632 = vmatpush1.bf16.msra.mxu0 0
      %1633 = vmatprep.mubr.bf16.mxu0 0
      %1634 = vmatmul.mubr.bf16.gmra.mrb[0].mxu0 %v1247
      %v1635 = vpop.f32.mrb[0].mxu0
      %v1636 = vadd.f32 %v1427, %v1635
      %v1637 = vpop.f32.mrb[0].mxu0
      %v1638 = vpop.f32.mrb[0].mxu0
      %v1639 = vadd.f32 %v1430, %v1638
      %v1640 = vpop.f32.mrb[0].mxu0
      %1641 = vmatprep.mubr.bf16.mxu0 0
      %1642 = vmatmul.mubr.bf16.gmra.mrb[0].mxu0 %v1248
      %v1643 = vpop.f32.mrb[0].mxu0
      %v1644 = vadd.f32 %v1435, %v1643
      %v1645 = vpop.f32.mrb[0].mxu0
      %v1646 = vpop.f32.mrb[0].mxu0
      %v1647 = vadd.f32 %v1438, %v1646
      %v1648 = vpop.f32.mrb[0].mxu0
      %1649 = vmatprep.mubr.bf16.mxu0 0
      %1650 = vmatmul.mubr.bf16.gmra.mrb[0].mxu0 %v1249
      %v1651 = vpop.f32.mrb[0].mxu0
      %v1652 = vadd.f32 %v1443, %v1651
      %v1653 = vpop.f32.mrb[0].mxu0
      %v1654 = vpop.f32.mrb[0].mxu0
      %v1655 = vadd.f32 %v1446, %v1654
      %v1656 = vpop.f32.mrb[0].mxu0
      %1657 = vmatprep.mubr.bf16.mxu0 0
      %1658 = vmatmul.mubr.bf16.gmra.mrb[0].mxu0 %v1250
      %v1659 = vpop.f32.mrb[0].mxu0
      %v1660 = vadd.f32 %v1451, %v1659
      %v1661 = vpop.f32.mrb[0].mxu0
      %v1662 = vpop.f32.mrb[0].mxu0
      %v1663 = vadd.f32 %v1454, %v1662
      %v1664 = vpop.f32.mrb[0].mxu0
      %1665 = vmatprep.mubr.bf16.mxu0 0
      %1666 = vmatmul.mubr.bf16.gmra.mrb[0].mxu0 %v1251
      %v1667 = vpop.f32.mrb[0].mxu0
      %v1668 = vadd.f32 %v1459, %v1667
      %v1669 = vpop.f32.mrb[0].mxu0
      %v1670 = vpop.f32.mrb[0].mxu0
      %v1671 = vadd.f32 %v1462, %v1670
      %v1672 = vpop.f32.mrb[0].mxu0
      %1673 = vmatprep.mubr.bf16.mxu0 0
      %1674 = vmatmul.mubr.bf16.gmra.mrb[0].mxu0 %v1252
      %v1675 = vpop.f32.mrb[0].mxu0
      %v1676 = vadd.f32 %v1467, %v1675
      %v1677 = vpop.f32.mrb[0].mxu0
      %v1678 = vpop.f32.mrb[0].mxu0
      %v1679 = vadd.f32 %v1470, %v1678
      %v1680 = vpop.f32.mrb[0].mxu0
      %1681 = vmatprep.mubr.bf16.mxu0 0
      %1682 = vmatmul.mubr.bf16.gmra.mrb[0].mxu0 %v1253
      %v1683 = vpop.f32.mrb[0].mxu0
      %v1684 = vadd.f32 %v1475, %v1683
      %v1685 = vpop.f32.mrb[0].mxu0
      %v1686 = vpop.f32.mrb[0].mxu0
      %v1687 = vadd.f32 %v1478, %v1686
      %v1688 = vpop.f32.mrb[0].mxu0
      %1689 = vmatprep.mubr.bf16.mxu0 0
      %1690 = vmatmul.mubr.bf16.gmra.mrb[0].mxu0 %v1254
      %v1691 = vpop.f32.mrb[0].mxu0
      %v1692 = vadd.f32 %v1483, %v1691
      %v1693 = vpop.f32.mrb[0].mxu0
      %v1694 = vpop.f32.mrb[0].mxu0
      %v1695 = vadd.f32 %v1486, %v1694
      %v1696 = vpop.f32.mrb[0].mxu0
      %1697 = vmatprep.mubr.bf16.mxu0 0
      %1698 = vmatmul.mubr.bf16.gmra.mrb[0].mxu0 %v1255
      %v1699 = vpop.f32.mrb[0].mxu0
      %v1700 = vadd.f32 %v1491, %v1699
      %v1701 = vpop.f32.mrb[0].mxu0
      %v1702 = vpop.f32.mrb[0].mxu0
      %v1703 = vadd.f32 %v1494, %v1702
      %v1704 = vpop.f32.mrb[0].mxu0
      %1705 = vmatprep.mubr.bf16.mxu0 0
      %1706 = vmatmul.mubr.bf16.gmra.mrb[0].mxu0 %v1256
      %v1707 = vpop.f32.mrb[0].mxu0
      %v1708 = vadd.f32 %v1499, %v1707
      %v1709 = vpop.f32.mrb[0].mxu0
      %v1710 = vpop.f32.mrb[0].mxu0
      %v1711 = vadd.f32 %v1502, %v1710
      %v1712 = vpop.f32.mrb[0].mxu0
      %1713 = vmatprep.mubr.bf16.mxu0 0
      %1714 = vmatmul.mubr.bf16.gmra.mrb[0].mxu0 %v1257
      %v1715 = vpop.f32.mrb[0].mxu0
      %v1716 = vadd.f32 %v1507, %v1715
      %v1717 = vpop.f32.mrb[0].mxu0
      %v1718 = vpop.f32.mrb[0].mxu0
      %v1719 = vadd.f32 %v1510, %v1718
      %v1720 = vpop.f32.mrb[0].mxu0
      %1721 = vmatprep.mubr.bf16.mxu0 0
      %1722 = vmatmul.mubr.bf16.gmra.mrb[0].mxu0 %v1258
      %v1723 = vpop.f32.mrb[0].mxu0
      %v1724 = vadd.f32 %v1515, %v1723
      %v1725 = vpop.f32.mrb[0].mxu0
      %v1726 = vpop.f32.mrb[0].mxu0
      %v1727 = vadd.f32 %v1518, %v1726
      %v1728 = vpop.f32.mrb[0].mxu0
      %1729 = vmatprep.mubr.bf16.mxu0 0
      %1730 = vmatmul.mubr.bf16.gmra.mrb[0].mxu0 %v1259
      %v1731 = vpop.f32.mrb[0].mxu0
      %v1732 = vadd.f32 %v1523, %v1731
      %v1733 = vpop.f32.mrb[0].mxu0
      %v1734 = vpop.f32.mrb[0].mxu0
      %v1735 = vadd.f32 %v1526, %v1734
      %v1736 = vpop.f32.mrb[0].mxu0
      %1737 = vmatprep.mubr.bf16.mxu0 0
      %1738 = vmatmul.mubr.bf16.gmra.mrb[0].mxu0 %v1260
      %v1739 = vpop.f32.mrb[0].mxu0
      %v1740 = vadd.f32 %v1531, %v1739
      %v1741 = vpop.f32.mrb[0].mxu0
      %v1742 = vpop.f32.mrb[0].mxu0
      %v1743 = vadd.f32 %v1534, %v1742
      %v1744 = vpop.f32.mrb[0].mxu0
      %1745 = vmatprep.mubr.bf16.mxu0 0
      %1746 = vmatmul.mubr.bf16.gmra.mrb[0].mxu0 %v1261
      %v1747 = vpop.f32.mrb[0].mxu0
      %v1748 = vadd.f32 %v1539, %v1747
      %v1749 = vpop.f32.mrb[0].mxu0
      %v1750 = vpop.f32.mrb[0].mxu0
      %v1751 = vadd.f32 %v1542, %v1750
      %v1752 = vpop.f32.mrb[0].mxu0
      %1753 = vmatprep.mubr.bf16.mxu0 0
      %1754 = vmatmul.mubr.bf16.gmra.mrb[0].mxu0 %v1262
      %v1755 = vpop.f32.mrb[0].mxu0
      %v1756 = vadd.f32 %v1547, %v1755
      %v1757 = vpop.f32.mrb[0].mxu0
      %v1758 = vpop.f32.mrb[0].mxu0
      %v1759 = vadd.f32 %v1550, %v1758
      %v1760 = vpop.f32.mrb[0].mxu0
      %1761 = vdwg.mxu0
      %v1762 = vld [vmem:[%s536 + $0x11] sm:$0xff]
      %v1763 = vld [vmem:[%s536 + $0x19] sm:$0xff]
      %v1764 = vld [vmem:[%s536 + $0x21] sm:$0xff]
      %v1765 = vld [vmem:[%s536 + $0x29] sm:$0xff]
      %v1766 = vld [vmem:[%s536 + $0x31] sm:$0xff]
      %v1767 = vld [vmem:[%s536 + $0x39] sm:$0xff]
      %v1768 = vld [vmem:[%s536 + $0x41] sm:$0xff]
      %v1769 = vld [vmem:[%s536 + $0x49] sm:$0xff]
      %v1770 = vld [vmem:[%s536 + $0x51] sm:$0xff]
      %v1771 = vld [vmem:[%s536 + $0x59] sm:$0xff]
      %v1772 = vld [vmem:[%s536 + $0x61] sm:$0xff]
      %v1773 = vld [vmem:[%s536 + $0x69] sm:$0xff]
      %v1774 = vld [vmem:[%s536 + $0x71] sm:$0xff]
      %v1775 = vld [vmem:[%s536 + $0x79] sm:$0xff]
      %v1776 = vld [vmem:[%s536 + $0x81] sm:$0xff]
      %v1777 = vld [vmem:[%s536 + $0x89] sm:$0xff]
      %v1778 = vld [vmem:[%s536 + $0x91] sm:$0xff]
      %v1779 = vld [vmem:[%s536 + $0x99] sm:$0xff]
      %v1780 = vld [vmem:[%s536 + $0xa1] sm:$0xff]
      %v1781 = vld [vmem:[%s536 + $0xa9] sm:$0xff]
      %v1782 = vld [vmem:[%s536 + $0xb1] sm:$0xff]
      %v1783 = vld [vmem:[%s536 + $0xb9] sm:$0xff]
      %v1784 = vld [vmem:[%s536 + $0xc1] sm:$0xff]
      %v1785 = vld [vmem:[%s536 + $0xc9] sm:$0xff]
      %v1786 = vld [vmem:[%s536 + $0xd1] sm:$0xff]
      %v1787 = vld [vmem:[%s536 + $0xd9] sm:$0xff]
      %v1788 = vld [vmem:[%s536 + $0xe1] sm:$0xff]
      %v1789 = vld [vmem:[%s536 + $0xe9] sm:$0xff]
      %v1790 = vld [vmem:[%s536 + $0xf1] sm:$0xff]
      %v1791 = vld [vmem:[%s536 + $0xf9] sm:$0xff]
      %v1792 = vld [vmem:[%s536 + $0x101] sm:$0xff]
      %v1793 = vld [vmem:[%s536 + $0x109] sm:$0xff]
      %v1794 = vpack.c.bf16 %v1763, %v1762
      %v1795 = vpack.c.bf16 %v1765, %v1764
      %v1796 = vpack.c.bf16 %v1767, %v1766
      %v1797 = vpack.c.bf16 %v1769, %v1768
      %v1798 = vpack.c.bf16 %v1771, %v1770
      %v1799 = vpack.c.bf16 %v1773, %v1772
      %v1800 = vpack.c.bf16 %v1775, %v1774
      %v1801 = vpack.c.bf16 %v1777, %v1776
      %v1802 = vpack.c.bf16 %v1779, %v1778
      %v1803 = vpack.c.bf16 %v1781, %v1780
      %v1804 = vpack.c.bf16 %v1783, %v1782
      %v1805 = vpack.c.bf16 %v1785, %v1784
      %v1806 = vpack.c.bf16 %v1787, %v1786
      %v1807 = vpack.c.bf16 %v1789, %v1788
      %v1808 = vpack.c.bf16 %v1791, %v1790
      %v1809 = vpack.c.bf16 %v1793, %v1792
      %vm1810 = vcmp.le.s32.totalorder %v943, 14
      %vm1811 = vcmp.le.s32.totalorder %v944, 14
      %vm1812 = vcmp.le.s32.totalorder %v945, 14
      %vm1813 = vcmp.le.s32.totalorder %v946, 14
      %vm1814 = vcmp.le.s32.totalorder %v947, 14
      %vm1815 = vcmp.le.s32.totalorder %v948, 14
      %vm1816 = vcmp.le.s32.totalorder %v949, 14
      %vm1817 = vcmp.le.s32.totalorder %v950, 14
      %vm1818 = vcmp.le.s32.totalorder %v951, 14
      %vm1819 = vcmp.le.s32.totalorder %v952, 14
      %vm1820 = vcmp.le.s32.totalorder %v953, 14
      %vm1821 = vcmp.le.s32.totalorder %v954, 14
      %vm1822 = vcmp.le.s32.totalorder %v955, 14
      %vm1823 = vcmp.le.s32.totalorder %v956, 14
      %vm1824 = vcmp.le.s32.totalorder %v957, 14
      %vm1825 = vcmp.le.s32.totalorder %v958, 14
      %vm1826 = vcmp.le.s32.totalorder %v959, 14
      %vm1827 = vcmp.le.s32.totalorder %v960, 14
      %vm1828 = vcmp.le.s32.totalorder %v961, 14
      %vm1829 = vcmp.le.s32.totalorder %v962, 14
      %vm1830 = vcmp.le.s32.totalorder %v963, 14
      %vm1831 = vcmp.le.s32.totalorder %v964, 14
      %vm1832 = vcmp.le.s32.totalorder %v965, 14
      %vm1833 = vcmp.le.s32.totalorder %v966, 14
      %vm1834 = vcmp.le.s32.totalorder %v967, 14
      %vm1835 = vcmp.le.s32.totalorder %v968, 14
      %vm1836 = vcmp.le.s32.totalorder %v969, 14
      %vm1837 = vcmp.le.s32.totalorder %v970, 14
      %vm1838 = vcmp.le.s32.totalorder %v971, 14
      %vm1839 = vcmp.le.s32.totalorder %v972, 14
      %vm1840 = vcmp.le.s32.totalorder %v973, 14
      %vm1841 = vcmp.le.s32.totalorder %v974, 14
      %v1842 = vsel %vm1810, 1, 0
      %v1843 = vsel %vm1811, 1, 0
      %v1844 = vsel %vm1812, 1, 0
      %v1845 = vsel %vm1813, 1, 0
      %v1846 = vsel %vm1814, 1, 0
      %v1847 = vsel %vm1815, 1, 0
      %v1848 = vsel %vm1816, 1, 0
      %v1849 = vsel %vm1817, 1, 0
      %v1850 = vsel %vm1818, 1, 0
      %v1851 = vsel %vm1819, 1, 0
      %v1852 = vsel %vm1820, 1, 0
      %v1853 = vsel %vm1821, 1, 0
      %v1854 = vsel %vm1822, 1, 0
      %v1855 = vsel %vm1823, 1, 0
      %v1856 = vsel %vm1824, 1, 0
      %v1857 = vsel %vm1825, 1, 0
      %v1858 = vsel %vm1826, 1, 0
      %v1859 = vsel %vm1827, 1, 0
      %v1860 = vsel %vm1828, 1, 0
      %v1861 = vsel %vm1829, 1, 0
      %v1862 = vsel %vm1830, 1, 0
      %v1863 = vsel %vm1831, 1, 0
      %v1864 = vsel %vm1832, 1, 0
      %v1865 = vsel %vm1833, 1, 0
      %v1866 = vsel %vm1834, 1, 0
      %v1867 = vsel %vm1835, 1, 0
      %v1868 = vsel %vm1836, 1, 0
      %v1869 = vsel %vm1837, 1, 0
      %v1870 = vsel %vm1838, 1, 0
      %v1871 = vsel %vm1839, 1, 0
      %v1872 = vsel %vm1840, 1, 0
      %v1873 = vsel %vm1841, 1, 0
      %vm1874 = vcmp.eq.s32.totalorder %v1842, 1
      %vm1875 = vcmp.eq.s32.totalorder %v1843, 1
      %vm1876 = vcmp.eq.s32.totalorder %v1844, 1
      %vm1877 = vcmp.eq.s32.totalorder %v1845, 1
      %vm1878 = vcmp.eq.s32.totalorder %v1846, 1
      %vm1879 = vcmp.eq.s32.totalorder %v1847, 1
      %vm1880 = vcmp.eq.s32.totalorder %v1848, 1
      %vm1881 = vcmp.eq.s32.totalorder %v1849, 1
      %vm1882 = vcmp.eq.s32.totalorder %v1850, 1
      %vm1883 = vcmp.eq.s32.totalorder %v1851, 1
      %vm1884 = vcmp.eq.s32.totalorder %v1852, 1
      %vm1885 = vcmp.eq.s32.totalorder %v1853, 1
      %vm1886 = vcmp.eq.s32.totalorder %v1854, 1
      %vm1887 = vcmp.eq.s32.totalorder %v1855, 1
      %vm1888 = vcmp.eq.s32.totalorder %v1856, 1
      %vm1889 = vcmp.eq.s32.totalorder %v1857, 1
      %vm1890 = vcmp.eq.s32.totalorder %v1858, 1
      %vm1891 = vcmp.eq.s32.totalorder %v1859, 1
      %vm1892 = vcmp.eq.s32.totalorder %v1860, 1
      %vm1893 = vcmp.eq.s32.totalorder %v1861, 1
      %vm1894 = vcmp.eq.s32.totalorder %v1862, 1
      %vm1895 = vcmp.eq.s32.totalorder %v1863, 1
      %vm1896 = vcmp.eq.s32.totalorder %v1864, 1
      %vm1897 = vcmp.eq.s32.totalorder %v1865, 1
      %vm1898 = vcmp.eq.s32.totalorder %v1866, 1
      %vm1899 = vcmp.eq.s32.totalorder %v1867, 1
      %vm1900 = vcmp.eq.s32.totalorder %v1868, 1
      %vm1901 = vcmp.eq.s32.totalorder %v1869, 1
      %vm1902 = vcmp.eq.s32.totalorder %v1870, 1
      %vm1903 = vcmp.eq.s32.totalorder %v1871, 1
      %vm1904 = vcmp.eq.s32.totalorder %v1872, 1
      %vm1905 = vcmp.eq.s32.totalorder %v1873, 1
      %vm1906 = vmpackc.low %vm1874, %vm1874
      %vm1907 = vmpackc.low %vm1875, %vm1875
      %vm1908 = vmpackc.low %vm1876, %vm1876
      %vm1909 = vmpackc.low %vm1877, %vm1877
      %vm1910 = vmpackc.low %vm1878, %vm1878
      %vm1911 = vmpackc.low %vm1879, %vm1879
      %vm1912 = vmpackc.low %vm1880, %vm1880
      %vm1913 = vmpackc.low %vm1881, %vm1881
      %vm1914 = vmpackc.low %vm1882, %vm1882
      %vm1915 = vmpackc.low %vm1883, %vm1883
      %vm1916 = vmpackc.low %vm1884, %vm1884
      %vm1917 = vmpackc.low %vm1885, %vm1885
      %vm1918 = vmpackc.low %vm1886, %vm1886
      %vm1919 = vmpackc.low %vm1887, %vm1887
      %vm1920 = vmpackc.low %vm1888, %vm1888
      %vm1921 = vmpackc.low %vm1889, %vm1889
      %vm1922 = vmpackc.low %vm1890, %vm1890
      %vm1923 = vmpackc.low %vm1891, %vm1891
      %vm1924 = vmpackc.low %vm1892, %vm1892
      %vm1925 = vmpackc.low %vm1893, %vm1893
      %vm1926 = vmpackc.low %vm1894, %vm1894
      %vm1927 = vmpackc.low %vm1895, %vm1895
      %vm1928 = vmpackc.low %vm1896, %vm1896
      %vm1929 = vmpackc.low %vm1897, %vm1897
      %vm1930 = vmpackc.low %vm1898, %vm1898
      %vm1931 = vmpackc.low %vm1899, %vm1899
      %vm1932 = vmpackc.low %vm1900, %vm1900
      %vm1933 = vmpackc.low %vm1901, %vm1901
      %vm1934 = vmpackc.low %vm1902, %vm1902
      %vm1935 = vmpackc.low %vm1903, %vm1903
      %vm1936 = vmpackc.low %vm1904, %vm1904
      %vm1937 = vmpackc.low %vm1905, %vm1905
      %v1938 = vsel %vm1906, 65537, 0
      %v1939 = vsel %vm1907, 65537, 0
      %v1940 = vsel %vm1908, 65537, 0
      %v1941 = vsel %vm1909, 65537, 0
      %v1942 = vsel %vm1910, 65537, 0
      %v1943 = vsel %vm1911, 65537, 0
      %v1944 = vsel %vm1912, 65537, 0
      %v1945 = vsel %vm1913, 65537, 0
      %v1946 = vsel %vm1914, 65537, 0
      %v1947 = vsel %vm1915, 65537, 0
      %v1948 = vsel %vm1916, 65537, 0
      %v1949 = vsel %vm1917, 65537, 0
      %v1950 = vsel %vm1918, 65537, 0
      %v1951 = vsel %vm1919, 65537, 0
      %v1952 = vsel %vm1920, 65537, 0
      %v1953 = vsel %vm1921, 65537, 0
      %v1954 = vsel %vm1922, 65537, 0
      %v1955 = vsel %vm1923, 65537, 0
      %v1956 = vsel %vm1924, 65537, 0
      %v1957 = vsel %vm1925, 65537, 0
      %v1958 = vsel %vm1926, 65537, 0
      %v1959 = vsel %vm1927, 65537, 0
      %v1960 = vsel %vm1928, 65537, 0
      %v1961 = vsel %vm1929, 65537, 0
      %v1962 = vsel %vm1930, 65537, 0
      %v1963 = vsel %vm1931, 65537, 0
      %v1964 = vsel %vm1932, 65537, 0
      %v1965 = vsel %vm1933, 65537, 0
      %v1966 = vsel %vm1934, 65537, 0
      %v1967 = vsel %vm1935, 65537, 0
      %v1968 = vsel %vm1936, 65537, 0
      %v1969 = vsel %vm1937, 65537, 0
      %v1970 = vunpack.c.l.b16 %v1938
      %v1971 = vunpack.c.l.b16 %v1939
      %v1972 = vunpack.c.l.b16 %v1940
      %v1973 = vunpack.c.l.b16 %v1941
      %v1974 = vunpack.c.l.b16 %v1942
      %v1975 = vunpack.c.l.b16 %v1943
      %v1976 = vunpack.c.l.b16 %v1944
      %v1977 = vunpack.c.l.b16 %v1945
      %v1978 = vunpack.c.l.b16 %v1946
      %v1979 = vunpack.c.l.b16 %v1947
      %v1980 = vunpack.c.l.b16 %v1948
      %v1981 = vunpack.c.l.b16 %v1949
      %v1982 = vunpack.c.l.b16 %v1950
      %v1983 = vunpack.c.l.b16 %v1951
      %v1984 = vunpack.c.l.b16 %v1952
      %v1985 = vunpack.c.l.b16 %v1953
      %v1986 = vunpack.c.l.b16 %v1954
      %v1987 = vunpack.c.l.b16 %v1955
      %v1988 = vunpack.c.l.b16 %v1956
      %v1989 = vunpack.c.l.b16 %v1957
      %v1990 = vunpack.c.l.b16 %v1958
      %v1991 = vunpack.c.l.b16 %v1959
      %v1992 = vunpack.c.l.b16 %v1960
      %v1993 = vunpack.c.l.b16 %v1961
      %v1994 = vunpack.c.l.b16 %v1962
      %v1995 = vunpack.c.l.b16 %v1963
      %v1996 = vunpack.c.l.b16 %v1964
      %v1997 = vunpack.c.l.b16 %v1965
      %v1998 = vunpack.c.l.b16 %v1966
      %v1999 = vunpack.c.l.b16 %v1967
      %v2000 = vunpack.c.l.b16 %v1968
      %v2001 = vunpack.c.l.b16 %v1969
      %v2002 = vpack.c.b16 %v1971, %v1970
      %v2003 = vpack.c.b16 %v1973, %v1972
      %v2004 = vpack.c.b16 %v1975, %v1974
      %v2005 = vpack.c.b16 %v1977, %v1976
      %v2006 = vpack.c.b16 %v1979, %v1978
      %v2007 = vpack.c.b16 %v1981, %v1980
      %v2008 = vpack.c.b16 %v1983, %v1982
      %v2009 = vpack.c.b16 %v1985, %v1984
      %v2010 = vpack.c.b16 %v1987, %v1986
      %v2011 = vpack.c.b16 %v1989, %v1988
      %v2012 = vpack.c.b16 %v1991, %v1990
      %v2013 = vpack.c.b16 %v1993, %v1992
      %v2014 = vpack.c.b16 %v1995, %v1994
      %v2015 = vpack.c.b16 %v1997, %v1996
      %v2016 = vpack.c.b16 %v1999, %v1998
      %v2017 = vpack.c.b16 %v2001, %v2000
      %vm2018 = vcmp.ne.s16.totalorder %v2002, 0
      %vm2019 = vcmp.ne.s16.totalorder %v2003, 0
      %vm2020 = vcmp.ne.s16.totalorder %v2004, 0
      %vm2021 = vcmp.ne.s16.totalorder %v2005, 0
      %vm2022 = vcmp.ne.s16.totalorder %v2006, 0
      %vm2023 = vcmp.ne.s16.totalorder %v2007, 0
      %vm2024 = vcmp.ne.s16.totalorder %v2008, 0
      %vm2025 = vcmp.ne.s16.totalorder %v2009, 0
      %vm2026 = vcmp.ne.s16.totalorder %v2010, 0
      %vm2027 = vcmp.ne.s16.totalorder %v2011, 0
      %vm2028 = vcmp.ne.s16.totalorder %v2012, 0
      %vm2029 = vcmp.ne.s16.totalorder %v2013, 0
      %vm2030 = vcmp.ne.s16.totalorder %v2014, 0
      %vm2031 = vcmp.ne.s16.totalorder %v2015, 0
      %vm2032 = vcmp.ne.s16.totalorder %v2016, 0
      %vm2033 = vcmp.ne.s16.totalorder %v2017, 0
      %v2034 = vsel %vm2018, %v1794, 0
      %v2035 = vsel %vm2019, %v1795, 0
      %v2036 = vsel %vm2020, %v1796, 0
      %v2037 = vsel %vm2021, %v1797, 0
      %v2038 = vsel %vm2022, %v1798, 0
      %v2039 = vsel %vm2023, %v1799, 0
      %v2040 = vsel %vm2024, %v1800, 0
      %v2041 = vsel %vm2025, %v1801, 0
      %v2042 = vsel %vm2026, %v1802, 0
      %v2043 = vsel %vm2027, %v1803, 0
      %v2044 = vsel %vm2028, %v1804, 0
      %v2045 = vsel %vm2029, %v1805, 0
      %v2046 = vsel %vm2030, %v1806, 0
      %v2047 = vsel %vm2031, %v1807, 0
      %v2048 = vsel %vm2032, %v1808, 0
      %v2049 = vsel %vm2033, %v1809, 0
      %s2050 = scalar_lea.vmem %s1, 128
      %v2051 = vld [vmem:[%s2050] sm:$0xf]
      %v2052 = vld [vmem:[%s2050 + $0x4] sm:$0xf]
      %v2053 = vld [vmem:[%s2050 + $0x8] sm:$0xf]
      %v2054 = vld [vmem:[%s2050 + $0xc] sm:$0xf]
      %v2055 = vld [vmem:[%s2050 + $0x10] sm:$0xf]
      %v2056 = vld [vmem:[%s2050 + $0x14] sm:$0xf]
      %v2057 = vld [vmem:[%s2050 + $0x18] sm:$0xf]
      %v2058 = vld [vmem:[%s2050 + $0x1c] sm:$0xf]
      %v2059 = vld [vmem:[%s2050 + $0x20] sm:$0xf]
      %v2060 = vld [vmem:[%s2050 + $0x24] sm:$0xf]
      %v2061 = vld [vmem:[%s2050 + $0x28] sm:$0xf]
      %v2062 = vld [vmem:[%s2050 + $0x2c] sm:$0xf]
      %v2063 = vld [vmem:[%s2050 + $0x30] sm:$0xf]
      %v2064 = vld [vmem:[%s2050 + $0x34] sm:$0xf]
      %v2065 = vld [vmem:[%s2050 + $0x38] sm:$0xf]
      %v2066 = vld [vmem:[%s2050 + $0x3c] sm:$0xf]
      %v2083 = vunpack.c.l.b16 %v2051
      %v2084 = vunpack.c.l.b16 %v2052
      %v2085 = vunpack.c.l.b16 %v2053
      %v2086 = vunpack.c.l.b16 %v2054
      %v2087 = vunpack.c.l.b16 %v2055
      %v2088 = vunpack.c.l.b16 %v2056
      %v2089 = vunpack.c.l.b16 %v2057
      %v2090 = vunpack.c.l.b16 %v2058
      %v2091 = vunpack.c.l.b16 %v2059
      %v2092 = vunpack.c.l.b16 %v2060
      %v2093 = vunpack.c.l.b16 %v2061
      %v2094 = vunpack.c.l.b16 %v2062
      %v2095 = vunpack.c.l.b16 %v2063
      %v2096 = vunpack.c.l.b16 %v2064
      %v2097 = vunpack.c.l.b16 %v2065
      %v2098 = vunpack.c.l.b16 %v2066
      %v2099 = vpack.c.b16 %v2084, %v2083
      %v2100 = vpack.c.b16 %v2086, %v2085
      %v2101 = vpack.c.b16 %v2088, %v2087
      %v2102 = vpack.c.b16 %v2090, %v2089
      %v2103 = vpack.c.b16 %v2092, %v2091
      %v2104 = vpack.c.b16 %v2094, %v2093
      %v2105 = vpack.c.b16 %v2096, %v2095
      %v2106 = vpack.c.b16 %v2098, %v2097
      %2115 = vmatprep.subr.bf16.mxu0 0
      %2116 = vmatpush1.bf16.msra.mxu0 %v2099
      %2117 = vmatprep.subr.bf16.mxu0 0
      %2118 = vmatpush1.bf16.msra.mxu0 %v2100
      %2119 = vmatprep.subr.bf16.mxu0 0
      %2120 = vmatpush1.bf16.msra.mxu0 %v2101
      %2121 = vmatprep.subr.bf16.mxu0 0
      %2122 = vmatpush1.bf16.msra.mxu0 %v2102
      %2123 = vmatprep.subr.bf16.mxu0 0
      %2124 = vmatpush1.bf16.msra.mxu0 %v2103
      %2125 = vmatprep.subr.bf16.mxu0 0
      %2126 = vmatpush1.bf16.msra.mxu0 %v2104
      %2127 = vmatprep.subr.bf16.mxu0 0
      %2128 = vmatpush1.bf16.msra.mxu0 %v2105
      %2129 = vmatprep.subr.bf16.mxu0 0
      %2130 = vmatpush1.bf16.msra.mxu0 %v2106
      %2131 = vmatprep.subr.bf16.mxu0 0
      %2132 = vmatpush1.bf16.msra.mxu0 0
      %2133 = vmatprep.subr.bf16.mxu0 0
      %2134 = vmatpush1.bf16.msra.mxu0 0
      %2135 = vmatprep.subr.bf16.mxu0 0
      %2136 = vmatpush1.bf16.msra.mxu0 0
      %2137 = vmatprep.subr.bf16.mxu0 0
      %2138 = vmatpush1.bf16.msra.mxu0 0
      %2139 = vmatprep.subr.bf16.mxu0 0
      %2140 = vmatpush1.bf16.msra.mxu0 0
      %2141 = vmatprep.subr.bf16.mxu0 0
      %2142 = vmatpush1.bf16.msra.mxu0 0
      %2143 = vmatprep.subr.bf16.mxu0 0
      %2144 = vmatpush1.bf16.msra.mxu0 0
      %2145 = vmatprep.subr.bf16.mxu0 0
      %2146 = vmatpush1.bf16.msra.mxu0 0
      %2147 = vmatprep.mubr.bf16.mxu0 0
      %2148 = vmatmul.mubr.bf16.gmra.mrb[0].mxu0 %v2034
      %v2149 = vpop.f32.mrb[0].mxu0
      %v2150 = vadd.f32 0.0, %v2149
      %v2151 = vpop.f32.mrb[0].mxu0
      %v2152 = vpop.f32.mrb[0].mxu0
      %v2153 = vadd.f32 0.0, %v2152
      %v2154 = vpop.f32.mrb[0].mxu0
      %2155 = vmatprep.mubr.bf16.mxu0 0
      %2156 = vmatmul.mubr.bf16.gmra.mrb[0].mxu0 %v2035
      %v2157 = vpop.f32.mrb[0].mxu0
      %v2158 = vadd.f32 0.0, %v2157
      %v2159 = vpop.f32.mrb[0].mxu0
      %v2160 = vpop.f32.mrb[0].mxu0
      %v2161 = vadd.f32 0.0, %v2160
      %v2162 = vpop.f32.mrb[0].mxu0
      %2163 = vmatprep.mubr.bf16.mxu0 0
      %2164 = vmatmul.mubr.bf16.gmra.mrb[0].mxu0 %v2036
      %v2165 = vpop.f32.mrb[0].mxu0
      %v2166 = vadd.f32 0.0, %v2165
      %v2167 = vpop.f32.mrb[0].mxu0
      %v2168 = vpop.f32.mrb[0].mxu0
      %v2169 = vadd.f32 0.0, %v2168
      %v2170 = vpop.f32.mrb[0].mxu0
      %2171 = vmatprep.mubr.bf16.mxu0 0
      %2172 = vmatmul.mubr.bf16.gmra.mrb[0].mxu0 %v2037
      %v2173 = vpop.f32.mrb[0].mxu0
      %v2174 = vadd.f32 0.0, %v2173
      %v2175 = vpop.f32.mrb[0].mxu0
      %v2176 = vpop.f32.mrb[0].mxu0
      %v2177 = vadd.f32 0.0, %v2176
      %v2178 = vpop.f32.mrb[0].mxu0
      %2179 = vmatprep.mubr.bf16.mxu0 0
      %2180 = vmatmul.mubr.bf16.gmra.mrb[0].mxu0 %v2038
      %v2181 = vpop.f32.mrb[0].mxu0
      %v2182 = vadd.f32 0.0, %v2181
      %v2183 = vpop.f32.mrb[0].mxu0
      %v2184 = vpop.f32.mrb[0].mxu0
      %v2185 = vadd.f32 0.0, %v2184
      %v2186 = vpop.f32.mrb[0].mxu0
      %2187 = vmatprep.mubr.bf16.mxu0 0
      %2188 = vmatmul.mubr.bf16.gmra.mrb[0].mxu0 %v2039
      %v2189 = vpop.f32.mrb[0].mxu0
      %v2190 = vadd.f32 0.0, %v2189
      %v2191 = vpop.f32.mrb[0].mxu0
      %v2192 = vpop.f32.mrb[0].mxu0
      %v2193 = vadd.f32 0.0, %v2192
      %v2194 = vpop.f32.mrb[0].mxu0
      %2195 = vmatprep.mubr.bf16.mxu0 0
      %2196 = vmatmul.mubr.bf16.gmra.mrb[0].mxu0 %v2040
      %v2197 = vpop.f32.mrb[0].mxu0
      %v2198 = vadd.f32 0.0, %v2197
      %v2199 = vpop.f32.mrb[0].mxu0
      %v2200 = vpop.f32.mrb[0].mxu0
      %v2201 = vadd.f32 0.0, %v2200
      %v2202 = vpop.f32.mrb[0].mxu0
      %2203 = vmatprep.mubr.bf16.mxu0 0
      %2204 = vmatmul.mubr.bf16.gmra.mrb[0].mxu0 %v2041
      %v2205 = vpop.f32.mrb[0].mxu0
      %v2206 = vadd.f32 0.0, %v2205
      %v2207 = vpop.f32.mrb[0].mxu0
      %v2208 = vpop.f32.mrb[0].mxu0
      %v2209 = vadd.f32 0.0, %v2208
      %v2210 = vpop.f32.mrb[0].mxu0
      %2211 = vmatprep.mubr.bf16.mxu0 0
      %2212 = vmatmul.mubr.bf16.gmra.mrb[0].mxu0 %v2042
      %v2213 = vpop.f32.mrb[0].mxu0
      %v2214 = vadd.f32 0.0, %v2213
      %v2215 = vpop.f32.mrb[0].mxu0
      %v2216 = vpop.f32.mrb[0].mxu0
      %v2217 = vadd.f32 0.0, %v2216
      %v2218 = vpop.f32.mrb[0].mxu0
      %2219 = vmatprep.mubr.bf16.mxu0 0
      %2220 = vmatmul.mubr.bf16.gmra.mrb[0].mxu0 %v2043
      %v2221 = vpop.f32.mrb[0].mxu0
      %v2222 = vadd.f32 0.0, %v2221
      %v2223 = vpop.f32.mrb[0].mxu0
      %v2224 = vpop.f32.mrb[0].mxu0
      %v2225 = vadd.f32 0.0, %v2224
      %v2226 = vpop.f32.mrb[0].mxu0
      %2227 = vmatprep.mubr.bf16.mxu0 0
      %2228 = vmatmul.mubr.bf16.gmra.mrb[0].mxu0 %v2044
      %v2229 = vpop.f32.mrb[0].mxu0
      %v2230 = vadd.f32 0.0, %v2229
      %v2231 = vpop.f32.mrb[0].mxu0
      %v2232 = vpop.f32.mrb[0].mxu0
      %v2233 = vadd.f32 0.0, %v2232
      %v2234 = vpop.f32.mrb[0].mxu0
      %2235 = vmatprep.mubr.bf16.mxu0 0
      %2236 = vmatmul.mubr.bf16.gmra.mrb[0].mxu0 %v2045
      %v2237 = vpop.f32.mrb[0].mxu0
      %v2238 = vadd.f32 0.0, %v2237
      %v2239 = vpop.f32.mrb[0].mxu0
      %v2240 = vpop.f32.mrb[0].mxu0
      %v2241 = vadd.f32 0.0, %v2240
      %v2242 = vpop.f32.mrb[0].mxu0
      %2243 = vmatprep.mubr.bf16.mxu0 0
      %2244 = vmatmul.mubr.bf16.gmra.mrb[0].mxu0 %v2046
      %v2245 = vpop.f32.mrb[0].mxu0
      %v2246 = vadd.f32 0.0, %v2245
      %v2247 = vpop.f32.mrb[0].mxu0
      %v2248 = vpop.f32.mrb[0].mxu0
      %v2249 = vadd.f32 0.0, %v2248
      %v2250 = vpop.f32.mrb[0].mxu0
      %2251 = vmatprep.mubr.bf16.mxu0 0
      %2252 = vmatmul.mubr.bf16.gmra.mrb[0].mxu0 %v2047
      %v2253 = vpop.f32.mrb[0].mxu0
      %v2254 = vadd.f32 0.0, %v2253
      %v2255 = vpop.f32.mrb[0].mxu0
      %v2256 = vpop.f32.mrb[0].mxu0
      %v2257 = vadd.f32 0.0, %v2256
      %v2258 = vpop.f32.mrb[0].mxu0
      %2259 = vmatprep.mubr.bf16.mxu0 0
      %2260 = vmatmul.mubr.bf16.gmra.mrb[0].mxu0 %v2048
      %v2261 = vpop.f32.mrb[0].mxu0
      %v2262 = vadd.f32 0.0, %v2261
      %v2263 = vpop.f32.mrb[0].mxu0
      %v2264 = vpop.f32.mrb[0].mxu0
      %v2265 = vadd.f32 0.0, %v2264
      %v2266 = vpop.f32.mrb[0].mxu0
      %2267 = vmatprep.mubr.bf16.mxu0 0
      %2268 = vmatmul.mubr.bf16.gmra.mrb[0].mxu0 %v2049
      %v2269 = vpop.f32.mrb[0].mxu0
      %v2270 = vadd.f32 0.0, %v2269
      %v2271 = vpop.f32.mrb[0].mxu0
      %v2272 = vpop.f32.mrb[0].mxu0
      %v2273 = vadd.f32 0.0, %v2272
      %v2274 = vpop.f32.mrb[0].mxu0
      %2275 = vdwg.mxu0
      %v2276 = vadd.f32 %v1636, %v2150
      %v2277 = vadd.f32 %v1639, %v2153
      %v2278 = vadd.f32 %v1644, %v2158
      %v2279 = vadd.f32 %v1647, %v2161
      %v2280 = vadd.f32 %v1652, %v2166
      %v2281 = vadd.f32 %v1655, %v2169
      %v2282 = vadd.f32 %v1660, %v2174
      %v2283 = vadd.f32 %v1663, %v2177
      %v2284 = vadd.f32 %v1668, %v2182
      %v2285 = vadd.f32 %v1671, %v2185
      %v2286 = vadd.f32 %v1676, %v2190
      %v2287 = vadd.f32 %v1679, %v2193
      %v2288 = vadd.f32 %v1684, %v2198
      %v2289 = vadd.f32 %v1687, %v2201
      %v2290 = vadd.f32 %v1692, %v2206
      %v2291 = vadd.f32 %v1695, %v2209
      %v2292 = vadd.f32 %v1700, %v2214
      %v2293 = vadd.f32 %v1703, %v2217
      %v2294 = vadd.f32 %v1708, %v2222
      %v2295 = vadd.f32 %v1711, %v2225
      %v2296 = vadd.f32 %v1716, %v2230
      %v2297 = vadd.f32 %v1719, %v2233
      %v2298 = vadd.f32 %v1724, %v2238
      %v2299 = vadd.f32 %v1727, %v2241
      %v2300 = vadd.f32 %v1732, %v2246
      %v2301 = vadd.f32 %v1735, %v2249
      %v2302 = vadd.f32 %v1740, %v2254
      %v2303 = vadd.f32 %v1743, %v2257
      %v2304 = vadd.f32 %v1748, %v2262
      %v2305 = vadd.f32 %v1751, %v2265
      %v2306 = vadd.f32 %v1756, %v2270
      %v2307 = vadd.f32 %v1759, %v2273
      %v2308 = vld [vmem:[%s536 + $0x1f] sm:$0xff]
      %v2309 = vld [vmem:[%s536 + $0x27] sm:$0xff]
      %v2310 = vld [vmem:[%s536 + $0x2f] sm:$0xff]
      %v2311 = vld [vmem:[%s536 + $0x37] sm:$0xff]
      %v2312 = vld [vmem:[%s536 + $0x3f] sm:$0xff]
      %v2313 = vld [vmem:[%s536 + $0x47] sm:$0xff]
      %v2314 = vld [vmem:[%s536 + $0x4f] sm:$0xff]
      %v2315 = vld [vmem:[%s536 + $0x57] sm:$0xff]
      %v2316 = vld [vmem:[%s536 + $0x5f] sm:$0xff]
      %v2317 = vld [vmem:[%s536 + $0x67] sm:$0xff]
      %v2318 = vld [vmem:[%s536 + $0x6f] sm:$0xff]
      %v2319 = vld [vmem:[%s536 + $0x77] sm:$0xff]
      %v2320 = vld [vmem:[%s536 + $0x7f] sm:$0xff]
      %v2321 = vld [vmem:[%s536 + $0x87] sm:$0xff]
      %v2322 = vld [vmem:[%s536 + $0x8f] sm:$0xff]
      %v2323 = vld [vmem:[%s536 + $0x97] sm:$0xff]
      %v2324 = vld [vmem:[%s536 + $0x9f] sm:$0xff]
      %v2325 = vld [vmem:[%s536 + $0xa7] sm:$0xff]
      %v2326 = vld [vmem:[%s536 + $0xaf] sm:$0xff]
      %v2327 = vld [vmem:[%s536 + $0xb7] sm:$0xff]
      %v2328 = vld [vmem:[%s536 + $0xbf] sm:$0xff]
      %v2329 = vld [vmem:[%s536 + $0xc7] sm:$0xff]
      %v2330 = vld [vmem:[%s536 + $0xcf] sm:$0xff]
      %v2331 = vld [vmem:[%s536 + $0xd7] sm:$0xff]
      %v2332 = vld [vmem:[%s536 + $0xdf] sm:$0xff]
      %v2333 = vld [vmem:[%s536 + $0xe7] sm:$0xff]
      %v2334 = vld [vmem:[%s536 + $0xef] sm:$0xff]
      %v2335 = vld [vmem:[%s536 + $0xf7] sm:$0xff]
      %v2336 = vld [vmem:[%s536 + $0xff] sm:$0xff]
      %v2337 = vld [vmem:[%s536 + $0x107] sm:$0xff]
      %v2338 = vld [vmem:[%s536 + $0x10f] sm:$0xff]
      %v2339 = vld [vmem:[%s536 + $0x117] sm:$0xff]
      %v2340 = vpack.c.bf16 %v2309, %v2308
      %v2341 = vpack.c.bf16 %v2311, %v2310
      %v2342 = vpack.c.bf16 %v2313, %v2312
      %v2343 = vpack.c.bf16 %v2315, %v2314
      %v2344 = vpack.c.bf16 %v2317, %v2316
      %v2345 = vpack.c.bf16 %v2319, %v2318
      %v2346 = vpack.c.bf16 %v2321, %v2320
      %v2347 = vpack.c.bf16 %v2323, %v2322
      %v2348 = vpack.c.bf16 %v2325, %v2324
      %v2349 = vpack.c.bf16 %v2327, %v2326
      %v2350 = vpack.c.bf16 %v2329, %v2328
      %v2351 = vpack.c.bf16 %v2331, %v2330
      %v2352 = vpack.c.bf16 %v2333, %v2332
      %v2353 = vpack.c.bf16 %v2335, %v2334
      %v2354 = vpack.c.bf16 %v2337, %v2336
      %v2355 = vpack.c.bf16 %v2339, %v2338
      %v2356 = vsel %vm1231, %v2340, 0
      %v2357 = vsel %vm1232, %v2341, 0
      %v2358 = vsel %vm1233, %v2342, 0
      %v2359 = vsel %vm1234, %v2343, 0
      %v2360 = vsel %vm1235, %v2344, 0
      %v2361 = vsel %vm1236, %v2345, 0
      %v2362 = vsel %vm1237, %v2346, 0
      %v2363 = vsel %vm1238, %v2347, 0
      %v2364 = vsel %vm1239, %v2348, 0
      %v2365 = vsel %vm1240, %v2349, 0
      %v2366 = vsel %vm1241, %v2350, 0
      %v2367 = vsel %vm1242, %v2351, 0
      %v2368 = vsel %vm1243, %v2352, 0
      %v2369 = vsel %vm1244, %v2353, 0
      %v2370 = vsel %vm1245, %v2354, 0
      %v2371 = vsel %vm1246, %v2355, 0
      %s2372 = scalar_lea.vmem %s1, 192
      %v2373 = vld [vmem:[%s2372] sm:$0xf]
      %v2374 = vld [vmem:[%s2372 + $0x4] sm:$0xf]
      %v2375 = vld [vmem:[%s2372 + $0x8] sm:$0xf]
      %v2376 = vld [vmem:[%s2372 + $0xc] sm:$0xf]
      %v2377 = vld [vmem:[%s2372 + $0x10] sm:$0xf]
      %v2378 = vld [vmem:[%s2372 + $0x14] sm:$0xf]
      %v2379 = vld [vmem:[%s2372 + $0x18] sm:$0xf]
      %v2380 = vld [vmem:[%s2372 + $0x1c] sm:$0xf]
      %v2381 = vld [vmem:[%s2372 + $0x20] sm:$0xf]
      %v2382 = vld [vmem:[%s2372 + $0x24] sm:$0xf]
      %v2383 = vld [vmem:[%s2372 + $0x28] sm:$0xf]
      %v2384 = vld [vmem:[%s2372 + $0x2c] sm:$0xf]
      %v2385 = vld [vmem:[%s2372 + $0x30] sm:$0xf]
      %v2386 = vld [vmem:[%s2372 + $0x34] sm:$0xf]
      %v2387 = vld [vmem:[%s2372 + $0x38] sm:$0xf]
      %v2388 = vld [vmem:[%s2372 + $0x3c] sm:$0xf]
      %v2405 = vunpack.c.l.b16 %v2373
      %v2406 = vunpack.c.l.b16 %v2374
      %v2407 = vunpack.c.l.b16 %v2375
      %v2408 = vunpack.c.l.b16 %v2376
      %v2409 = vunpack.c.l.b16 %v2377
      %v2410 = vunpack.c.l.b16 %v2378
      %v2411 = vunpack.c.l.b16 %v2379
      %v2412 = vunpack.c.l.b16 %v2380
      %v2413 = vunpack.c.l.b16 %v2381
      %v2414 = vunpack.c.l.b16 %v2382
      %v2415 = vunpack.c.l.b16 %v2383
      %v2416 = vunpack.c.l.b16 %v2384
      %v2417 = vunpack.c.l.b16 %v2385
      %v2418 = vunpack.c.l.b16 %v2386
      %v2419 = vunpack.c.l.b16 %v2387
      %v2420 = vunpack.c.l.b16 %v2388
      %v2421 = vpack.c.b16 %v2406, %v2405
      %v2422 = vpack.c.b16 %v2408, %v2407
      %v2423 = vpack.c.b16 %v2410, %v2409
      %v2424 = vpack.c.b16 %v2412, %v2411
      %v2425 = vpack.c.b16 %v2414, %v2413
      %v2426 = vpack.c.b16 %v2416, %v2415
      %v2427 = vpack.c.b16 %v2418, %v2417
      %v2428 = vpack.c.b16 %v2420, %v2419
      %2437 = vmatprep.subr.bf16.mxu0 0
      %2438 = vmatpush1.bf16.msra.mxu0 %v2421
      %2439 = vmatprep.subr.bf16.mxu0 0
      %2440 = vmatpush1.bf16.msra.mxu0 %v2422
      %2441 = vmatprep.subr.bf16.mxu0 0
      %2442 = vmatpush1.bf16.msra.mxu0 %v2423
      %2443 = vmatprep.subr.bf16.mxu0 0
      %2444 = vmatpush1.bf16.msra.mxu0 %v2424
      %2445 = vmatprep.subr.bf16.mxu0 0
      %2446 = vmatpush1.bf16.msra.mxu0 %v2425
      %2447 = vmatprep.subr.bf16.mxu0 0
      %2448 = vmatpush1.bf16.msra.mxu0 %v2426
      %2449 = vmatprep.subr.bf16.mxu0 0
      %2450 = vmatpush1.bf16.msra.mxu0 %v2427
      %2451 = vmatprep.subr.bf16.mxu0 0
      %2452 = vmatpush1.bf16.msra.mxu0 %v2428
      %2453 = vmatprep.subr.bf16.mxu0 0
      %2454 = vmatpush1.bf16.msra.mxu0 0
      %2455 = vmatprep.subr.bf16.mxu0 0
      %2456 = vmatpush1.bf16.msra.mxu0 0
      %2457 = vmatprep.subr.bf16.mxu0 0
      %2458 = vmatpush1.bf16.msra.mxu0 0
      %2459 = vmatprep.subr.bf16.mxu0 0
      %2460 = vmatpush1.bf16.msra.mxu0 0
      %2461 = vmatprep.subr.bf16.mxu0 0
      %2462 = vmatpush1.bf16.msra.mxu0 0
      %2463 = vmatprep.subr.bf16.mxu0 0
      %2464 = vmatpush1.bf16.msra.mxu0 0
      %2465 = vmatprep.subr.bf16.mxu0 0
      %2466 = vmatpush1.bf16.msra.mxu0 0
      %2467 = vmatprep.subr.bf16.mxu0 0
      %2468 = vmatpush1.bf16.msra.mxu0 0
      %2469 = vmatprep.mubr.bf16.mxu0 0
      %2470 = vmatmul.mubr.bf16.gmra.mrb[0].mxu0 %v2356
      %v2471 = vpop.f32.mrb[0].mxu0
      %v2472 = vadd.f32 0.0, %v2471
      %v2473 = vpop.f32.mrb[0].mxu0
      %v2474 = vpop.f32.mrb[0].mxu0
      %v2475 = vadd.f32 0.0, %v2474
      %v2476 = vpop.f32.mrb[0].mxu0
      %2477 = vmatprep.mubr.bf16.mxu0 0
      %2478 = vmatmul.mubr.bf16.gmra.mrb[0].mxu0 %v2357
      %v2479 = vpop.f32.mrb[0].mxu0
      %v2480 = vadd.f32 0.0, %v2479
      %v2481 = vpop.f32.mrb[0].mxu0
      %v2482 = vpop.f32.mrb[0].mxu0
      %v2483 = vadd.f32 0.0, %v2482
      %v2484 = vpop.f32.mrb[0].mxu0
      %2485 = vmatprep.mubr.bf16.mxu0 0
      %2486 = vmatmul.mubr.bf16.gmra.mrb[0].mxu0 %v2358
      %v2487 = vpop.f32.mrb[0].mxu0
      %v2488 = vadd.f32 0.0, %v2487
      %v2489 = vpop.f32.mrb[0].mxu0
      %v2490 = vpop.f32.mrb[0].mxu0
      %v2491 = vadd.f32 0.0, %v2490
      %v2492 = vpop.f32.mrb[0].mxu0
      %2493 = vmatprep.mubr.bf16.mxu0 0
      %2494 = vmatmul.mubr.bf16.gmra.mrb[0].mxu0 %v2359
      %v2495 = vpop.f32.mrb[0].mxu0
      %v2496 = vadd.f32 0.0, %v2495
      %v2497 = vpop.f32.mrb[0].mxu0
      %v2498 = vpop.f32.mrb[0].mxu0
      %v2499 = vadd.f32 0.0, %v2498
      %v2500 = vpop.f32.mrb[0].mxu0
      %2501 = vmatprep.mubr.bf16.mxu0 0
      %2502 = vmatmul.mubr.bf16.gmra.mrb[0].mxu0 %v2360
      %v2503 = vpop.f32.mrb[0].mxu0
      %v2504 = vadd.f32 0.0, %v2503
      %v2505 = vpop.f32.mrb[0].mxu0
      %v2506 = vpop.f32.mrb[0].mxu0
      %v2507 = vadd.f32 0.0, %v2506
      %v2508 = vpop.f32.mrb[0].mxu0
      %2509 = vmatprep.mubr.bf16.mxu0 0
      %2510 = vmatmul.mubr.bf16.gmra.mrb[0].mxu0 %v2361
      %v2511 = vpop.f32.mrb[0].mxu0
      %v2512 = vadd.f32 0.0, %v2511
      %v2513 = vpop.f32.mrb[0].mxu0
      %v2514 = vpop.f32.mrb[0].mxu0
      %v2515 = vadd.f32 0.0, %v2514
      %v2516 = vpop.f32.mrb[0].mxu0
      %2517 = vmatprep.mubr.bf16.mxu0 0
      %2518 = vmatmul.mubr.bf16.gmra.mrb[0].mxu0 %v2362
      %v2519 = vpop.f32.mrb[0].mxu0
      %v2520 = vadd.f32 0.0, %v2519
      %v2521 = vpop.f32.mrb[0].mxu0
      %v2522 = vpop.f32.mrb[0].mxu0
      %v2523 = vadd.f32 0.0, %v2522
      %v2524 = vpop.f32.mrb[0].mxu0
      %2525 = vmatprep.mubr.bf16.mxu0 0
      %2526 = vmatmul.mubr.bf16.gmra.mrb[0].mxu0 %v2363
      %v2527 = vpop.f32.mrb[0].mxu0
      %v2528 = vadd.f32 0.0, %v2527
      %v2529 = vpop.f32.mrb[0].mxu0
      %v2530 = vpop.f32.mrb[0].mxu0
      %v2531 = vadd.f32 0.0, %v2530
      %v2532 = vpop.f32.mrb[0].mxu0
      %2533 = vmatprep.mubr.bf16.mxu0 0
      %2534 = vmatmul.mubr.bf16.gmra.mrb[0].mxu0 %v2364
      %v2535 = vpop.f32.mrb[0].mxu0
      %v2536 = vadd.f32 0.0, %v2535
      %v2537 = vpop.f32.mrb[0].mxu0
      %v2538 = vpop.f32.mrb[0].mxu0
      %v2539 = vadd.f32 0.0, %v2538
      %v2540 = vpop.f32.mrb[0].mxu0
      %2541 = vmatprep.mubr.bf16.mxu0 0
      %2542 = vmatmul.mubr.bf16.gmra.mrb[0].mxu0 %v2365
      %v2543 = vpop.f32.mrb[0].mxu0
      %v2544 = vadd.f32 0.0, %v2543
      %v2545 = vpop.f32.mrb[0].mxu0
      %v2546 = vpop.f32.mrb[0].mxu0
      %v2547 = vadd.f32 0.0, %v2546
      %v2548 = vpop.f32.mrb[0].mxu0
      %2549 = vmatprep.mubr.bf16.mxu0 0
      %2550 = vmatmul.mubr.bf16.gmra.mrb[0].mxu0 %v2366
      %v2551 = vpop.f32.mrb[0].mxu0
      %v2552 = vadd.f32 0.0, %v2551
      %v2553 = vpop.f32.mrb[0].mxu0
      %v2554 = vpop.f32.mrb[0].mxu0
      %v2555 = vadd.f32 0.0, %v2554
      %v2556 = vpop.f32.mrb[0].mxu0
      %2557 = vmatprep.mubr.bf16.mxu0 0
      %2558 = vmatmul.mubr.bf16.gmra.mrb[0].mxu0 %v2367
      %v2559 = vpop.f32.mrb[0].mxu0
      %v2560 = vadd.f32 0.0, %v2559
      %v2561 = vpop.f32.mrb[0].mxu0
      %v2562 = vpop.f32.mrb[0].mxu0
      %v2563 = vadd.f32 0.0, %v2562
      %v2564 = vpop.f32.mrb[0].mxu0
      %2565 = vmatprep.mubr.bf16.mxu0 0
      %2566 = vmatmul.mubr.bf16.gmra.mrb[0].mxu0 %v2368
      %v2567 = vpop.f32.mrb[0].mxu0
      %v2568 = vadd.f32 0.0, %v2567
      %v2569 = vpop.f32.mrb[0].mxu0
      %v2570 = vpop.f32.mrb[0].mxu0
      %v2571 = vadd.f32 0.0, %v2570
      %v2572 = vpop.f32.mrb[0].mxu0
      %2573 = vmatprep.mubr.bf16.mxu0 0
      %2574 = vmatmul.mubr.bf16.gmra.mrb[0].mxu0 %v2369
      %v2575 = vpop.f32.mrb[0].mxu0
      %v2576 = vadd.f32 0.0, %v2575
      %v2577 = vpop.f32.mrb[0].mxu0
      %v2578 = vpop.f32.mrb[0].mxu0
      %v2579 = vadd.f32 0.0, %v2578
      %v2580 = vpop.f32.mrb[0].mxu0
      %2581 = vmatprep.mubr.bf16.mxu0 0
      %2582 = vmatmul.mubr.bf16.gmra.mrb[0].mxu0 %v2370
      %v2583 = vpop.f32.mrb[0].mxu0
      %v2584 = vadd.f32 0.0, %v2583
      %v2585 = vpop.f32.mrb[0].mxu0
      %v2586 = vpop.f32.mrb[0].mxu0
      %v2587 = vadd.f32 0.0, %v2586
      %v2588 = vpop.f32.mrb[0].mxu0
      %2589 = vmatprep.mubr.bf16.mxu0 0
      %2590 = vmatmul.mubr.bf16.gmra.mrb[0].mxu0 %v2371
      %v2591 = vpop.f32.mrb[0].mxu0
      %v2592 = vadd.f32 0.0, %v2591
      %v2593 = vpop.f32.mrb[0].mxu0
      %v2594 = vpop.f32.mrb[0].mxu0
      %v2595 = vadd.f32 0.0, %v2594
      %v2596 = vpop.f32.mrb[0].mxu0
      %2597 = vdwg.mxu0
      %v2598 = vadd.f32 %v2276, %v2472
      %v2599 = vadd.f32 %v2277, %v2475
      %v2600 = vadd.f32 %v2278, %v2480
      %v2601 = vadd.f32 %v2279, %v2483
      %v2602 = vadd.f32 %v2280, %v2488
      %v2603 = vadd.f32 %v2281, %v2491
      %v2604 = vadd.f32 %v2282, %v2496
      %v2605 = vadd.f32 %v2283, %v2499
      %v2606 = vadd.f32 %v2284, %v2504
      %v2607 = vadd.f32 %v2285, %v2507
      %v2608 = vadd.f32 %v2286, %v2512
      %v2609 = vadd.f32 %v2287, %v2515
      %v2610 = vadd.f32 %v2288, %v2520
      %v2611 = vadd.f32 %v2289, %v2523
      %v2612 = vadd.f32 %v2290, %v2528
      %v2613 = vadd.f32 %v2291, %v2531
      %v2614 = vadd.f32 %v2292, %v2536
      %v2615 = vadd.f32 %v2293, %v2539
      %v2616 = vadd.f32 %v2294, %v2544
      %v2617 = vadd.f32 %v2295, %v2547
      %v2618 = vadd.f32 %v2296, %v2552
      %v2619 = vadd.f32 %v2297, %v2555
      %v2620 = vadd.f32 %v2298, %v2560
      %v2621 = vadd.f32 %v2299, %v2563
      %v2622 = vadd.f32 %v2300, %v2568
      %v2623 = vadd.f32 %v2301, %v2571
      %v2624 = vadd.f32 %v2302, %v2576
      %v2625 = vadd.f32 %v2303, %v2579
      %v2626 = vadd.f32 %v2304, %v2584
      %v2627 = vadd.f32 %v2305, %v2587
      %v2628 = vadd.f32 %v2306, %v2592
      %v2629 = vadd.f32 %v2307, %v2595
      %v2630 = vld [vmem:[%s536 + $0x20] sm:$0xff]
      %v2631 = vld [vmem:[%s536 + $0x28] sm:$0xff]
      %v2632 = vld [vmem:[%s536 + $0x30] sm:$0xff]
      %v2633 = vld [vmem:[%s536 + $0x38] sm:$0xff]
      %v2634 = vld [vmem:[%s536 + $0x40] sm:$0xff]
      %v2635 = vld [vmem:[%s536 + $0x48] sm:$0xff]
      %v2636 = vld [vmem:[%s536 + $0x50] sm:$0xff]
      %v2637 = vld [vmem:[%s536 + $0x58] sm:$0xff]
      %v2638 = vld [vmem:[%s536 + $0x60] sm:$0xff]
      %v2639 = vld [vmem:[%s536 + $0x68] sm:$0xff]
      %v2640 = vld [vmem:[%s536 + $0x70] sm:$0xff]
      %v2641 = vld [vmem:[%s536 + $0x78] sm:$0xff]
      %v2642 = vld [vmem:[%s536 + $0x80] sm:$0xff]
      %v2643 = vld [vmem:[%s536 + $0x88] sm:$0xff]
      %v2644 = vld [vmem:[%s536 + $0x90] sm:$0xff]
      %v2645 = vld [vmem:[%s536 + $0x98] sm:$0xff]
      %v2646 = vld [vmem:[%s536 + $0xa0] sm:$0xff]
      %v2647 = vld [vmem:[%s536 + $0xa8] sm:$0xff]
      %v2648 = vld [vmem:[%s536 + $0xb0] sm:$0xff]
      %v2649 = vld [vmem:[%s536 + $0xb8] sm:$0xff]
      %v2650 = vld [vmem:[%s536 + $0xc0] sm:$0xff]
      %v2651 = vld [vmem:[%s536 + $0xc8] sm:$0xff]
      %v2652 = vld [vmem:[%s536 + $0xd0] sm:$0xff]
      %v2653 = vld [vmem:[%s536 + $0xd8] sm:$0xff]
      %v2654 = vld [vmem:[%s536 + $0xe0] sm:$0xff]
      %v2655 = vld [vmem:[%s536 + $0xe8] sm:$0xff]
      %v2656 = vld [vmem:[%s536 + $0xf0] sm:$0xff]
      %v2657 = vld [vmem:[%s536 + $0xf8] sm:$0xff]
      %v2658 = vld [vmem:[%s536 + $0x100] sm:$0xff]
      %v2659 = vld [vmem:[%s536 + $0x108] sm:$0xff]
      %v2660 = vld [vmem:[%s536 + $0x110] sm:$0xff]
      %v2661 = vld [vmem:[%s536 + $0x118] sm:$0xff]
      %v2662 = vpack.c.bf16 %v2631, %v2630
      %v2663 = vpack.c.bf16 %v2633, %v2632
      %v2664 = vpack.c.bf16 %v2635, %v2634
      %v2665 = vpack.c.bf16 %v2637, %v2636
      %v2666 = vpack.c.bf16 %v2639, %v2638
      %v2667 = vpack.c.bf16 %v2641, %v2640
      %v2668 = vpack.c.bf16 %v2643, %v2642
      %v2669 = vpack.c.bf16 %v2645, %v2644
      %v2670 = vpack.c.bf16 %v2647, %v2646
      %v2671 = vpack.c.bf16 %v2649, %v2648
      %v2672 = vpack.c.bf16 %v2651, %v2650
      %v2673 = vpack.c.bf16 %v2653, %v2652
      %v2674 = vpack.c.bf16 %v2655, %v2654
      %v2675 = vpack.c.bf16 %v2657, %v2656
      %v2676 = vpack.c.bf16 %v2659, %v2658
      %v2677 = vpack.c.bf16 %v2661, %v2660
      %s2678 = scalar_lea.vmem %s1, 256
      %v2679 = vld [vmem:[%s2678] sm:$0xf]
      %v2680 = vld [vmem:[%s2678 + $0x4] sm:$0xf]
      %v2681 = vld [vmem:[%s2678 + $0x8] sm:$0xf]
      %v2682 = vld [vmem:[%s2678 + $0xc] sm:$0xf]
      %v2683 = vld [vmem:[%s2678 + $0x10] sm:$0xf]
      %v2684 = vld [vmem:[%s2678 + $0x14] sm:$0xf]
      %v2685 = vld [vmem:[%s2678 + $0x18] sm:$0xf]
      %v2686 = vld [vmem:[%s2678 + $0x1c] sm:$0xf]
      %v2687 = vld [vmem:[%s2678 + $0x20] sm:$0xf]
      %v2688 = vld [vmem:[%s2678 + $0x24] sm:$0xf]
      %v2689 = vld [vmem:[%s2678 + $0x28] sm:$0xf]
      %v2690 = vld [vmem:[%s2678 + $0x2c] sm:$0xf]
      %v2691 = vld [vmem:[%s2678 + $0x30] sm:$0xf]
      %v2692 = vld [vmem:[%s2678 + $0x34] sm:$0xf]
      %v2693 = vld [vmem:[%s2678 + $0x38] sm:$0xf]
      %v2694 = vld [vmem:[%s2678 + $0x3c] sm:$0xf]
      %v2711 = vunpack.c.l.b16 %v2679
      %v2712 = vunpack.c.l.b16 %v2680
      %v2713 = vunpack.c.l.b16 %v2681
      %v2714 = vunpack.c.l.b16 %v2682
      %v2715 = vunpack.c.l.b16 %v2683
      %v2716 = vunpack.c.l.b16 %v2684
      %v2717 = vunpack.c.l.b16 %v2685
      %v2718 = vunpack.c.l.b16 %v2686
      %v2719 = vunpack.c.l.b16 %v2687
      %v2720 = vunpack.c.l.b16 %v2688
      %v2721 = vunpack.c.l.b16 %v2689
      %v2722 = vunpack.c.l.b16 %v2690
      %v2723 = vunpack.c.l.b16 %v2691
      %v2724 = vunpack.c.l.b16 %v2692
      %v2725 = vunpack.c.l.b16 %v2693
      %v2726 = vunpack.c.l.b16 %v2694
      %v2727 = vpack.c.b16 %v2712, %v2711
      %v2728 = vpack.c.b16 %v2714, %v2713
      %v2729 = vpack.c.b16 %v2716, %v2715
      %v2730 = vpack.c.b16 %v2718, %v2717
      %v2731 = vpack.c.b16 %v2720, %v2719
      %v2732 = vpack.c.b16 %v2722, %v2721
      %v2733 = vpack.c.b16 %v2724, %v2723
      %v2734 = vpack.c.b16 %v2726, %v2725
      %2743 = vmatprep.subr.bf16.mxu0 0
      %2744 = vmatpush1.bf16.msra.mxu0 %v2727
      %2745 = vmatprep.subr.bf16.mxu0 0
      %2746 = vmatpush1.bf16.msra.mxu0 %v2728
      %2747 = vmatprep.subr.bf16.mxu0 0
      %2748 = vmatpush1.bf16.msra.mxu0 %v2729
      %2749 = vmatprep.subr.bf16.mxu0 0
      %2750 = vmatpush1.bf16.msra.mxu0 %v2730
      %2751 = vmatprep.subr.bf16.mxu0 0
      %2752 = vmatpush1.bf16.msra.mxu0 %v2731
      %2753 = vmatprep.subr.bf16.mxu0 0
      %2754 = vmatpush1.bf16.msra.mxu0 %v2732
      %2755 = vmatprep.subr.bf16.mxu0 0
      %2756 = vmatpush1.bf16.msra.mxu0 %v2733
      %2757 = vmatprep.subr.bf16.mxu0 0
      %2758 = vmatpush1.bf16.msra.mxu0 %v2734
      %2759 = vmatprep.subr.bf16.mxu0 0
      %2760 = vmatpush1.bf16.msra.mxu0 0
      %2761 = vmatprep.subr.bf16.mxu0 0
      %2762 = vmatpush1.bf16.msra.mxu0 0
      %2763 = vmatprep.subr.bf16.mxu0 0
      %2764 = vmatpush1.bf16.msra.mxu0 0
      %2765 = vmatprep.subr.bf16.mxu0 0
      %2766 = vmatpush1.bf16.msra.mxu0 0
      %2767 = vmatprep.subr.bf16.mxu0 0
      %2768 = vmatpush1.bf16.msra.mxu0 0
      %2769 = vmatprep.subr.bf16.mxu0 0
      %2770 = vmatpush1.bf16.msra.mxu0 0
      %2771 = vmatprep.subr.bf16.mxu0 0
      %2772 = vmatpush1.bf16.msra.mxu0 0
      %2773 = vmatprep.subr.bf16.mxu0 0
      %2774 = vmatpush1.bf16.msra.mxu0 0
      %2775 = vmatprep.mubr.bf16.mxu0 0
      %2776 = vmatmul.mubr.bf16.gmra.mrb[0].mxu0 %v2662
      %v2777 = vpop.f32.mrb[0].mxu0
      %v2778 = vadd.f32 0.0, %v2777
      %v2779 = vpop.f32.mrb[0].mxu0
      %v2780 = vpop.f32.mrb[0].mxu0
      %v2781 = vadd.f32 0.0, %v2780
      %v2782 = vpop.f32.mrb[0].mxu0
      %2783 = vmatprep.mubr.bf16.mxu0 0
      %2784 = vmatmul.mubr.bf16.gmra.mrb[0].mxu0 %v2663
      %v2785 = vpop.f32.mrb[0].mxu0
      %v2786 = vadd.f32 0.0, %v2785
      %v2787 = vpop.f32.mrb[0].mxu0
      %v2788 = vpop.f32.mrb[0].mxu0
      %v2789 = vadd.f32 0.0, %v2788
      %v2790 = vpop.f32.mrb[0].mxu0
      %2791 = vmatprep.mubr.bf16.mxu0 0
      %2792 = vmatmul.mubr.bf16.gmra.mrb[0].mxu0 %v2664
      %v2793 = vpop.f32.mrb[0].mxu0
      %v2794 = vadd.f32 0.0, %v2793
      %v2795 = vpop.f32.mrb[0].mxu0
      %v2796 = vpop.f32.mrb[0].mxu0
      %v2797 = vadd.f32 0.0, %v2796
      %v2798 = vpop.f32.mrb[0].mxu0
      %2799 = vmatprep.mubr.bf16.mxu0 0
      %2800 = vmatmul.mubr.bf16.gmra.mrb[0].mxu0 %v2665
      %v2801 = vpop.f32.mrb[0].mxu0
      %v2802 = vadd.f32 0.0, %v2801
      %v2803 = vpop.f32.mrb[0].mxu0
      %v2804 = vpop.f32.mrb[0].mxu0
      %v2805 = vadd.f32 0.0, %v2804
      %v2806 = vpop.f32.mrb[0].mxu0
      %2807 = vmatprep.mubr.bf16.mxu0 0
      %2808 = vmatmul.mubr.bf16.gmra.mrb[0].mxu0 %v2666
      %v2809 = vpop.f32.mrb[0].mxu0
      %v2810 = vadd.f32 0.0, %v2809
      %v2811 = vpop.f32.mrb[0].mxu0
      %v2812 = vpop.f32.mrb[0].mxu0
      %v2813 = vadd.f32 0.0, %v2812
      %v2814 = vpop.f32.mrb[0].mxu0
      %2815 = vmatprep.mubr.bf16.mxu0 0
      %2816 = vmatmul.mubr.bf16.gmra.mrb[0].mxu0 %v2667
      %v2817 = vpop.f32.mrb[0].mxu0
      %v2818 = vadd.f32 0.0, %v2817
      %v2819 = vpop.f32.mrb[0].mxu0
      %v2820 = vpop.f32.mrb[0].mxu0
      %v2821 = vadd.f32 0.0, %v2820
      %v2822 = vpop.f32.mrb[0].mxu0
      %2823 = vmatprep.mubr.bf16.mxu0 0
      %2824 = vmatmul.mubr.bf16.gmra.mrb[0].mxu0 %v2668
      %v2825 = vpop.f32.mrb[0].mxu0
      %v2826 = vadd.f32 0.0, %v2825
      %v2827 = vpop.f32.mrb[0].mxu0
      %v2828 = vpop.f32.mrb[0].mxu0
      %v2829 = vadd.f32 0.0, %v2828
      %v2830 = vpop.f32.mrb[0].mxu0
      %2831 = vmatprep.mubr.bf16.mxu0 0
      %2832 = vmatmul.mubr.bf16.gmra.mrb[0].mxu0 %v2669
      %v2833 = vpop.f32.mrb[0].mxu0
      %v2834 = vadd.f32 0.0, %v2833
      %v2835 = vpop.f32.mrb[0].mxu0
      %v2836 = vpop.f32.mrb[0].mxu0
      %v2837 = vadd.f32 0.0, %v2836
      %v2838 = vpop.f32.mrb[0].mxu0
      %2839 = vmatprep.mubr.bf16.mxu0 0
      %2840 = vmatmul.mubr.bf16.gmra.mrb[0].mxu0 %v2670
      %v2841 = vpop.f32.mrb[0].mxu0
      %v2842 = vadd.f32 0.0, %v2841
      %v2843 = vpop.f32.mrb[0].mxu0
      %v2844 = vpop.f32.mrb[0].mxu0
      %v2845 = vadd.f32 0.0, %v2844
      %v2846 = vpop.f32.mrb[0].mxu0
      %2847 = vmatprep.mubr.bf16.mxu0 0
      %2848 = vmatmul.mubr.bf16.gmra.mrb[0].mxu0 %v2671
      %v2849 = vpop.f32.mrb[0].mxu0
      %v2850 = vadd.f32 0.0, %v2849
      %v2851 = vpop.f32.mrb[0].mxu0
      %v2852 = vpop.f32.mrb[0].mxu0
      %v2853 = vadd.f32 0.0, %v2852
      %v2854 = vpop.f32.mrb[0].mxu0
      %2855 = vmatprep.mubr.bf16.mxu0 0
      %2856 = vmatmul.mubr.bf16.gmra.mrb[0].mxu0 %v2672
      %v2857 = vpop.f32.mrb[0].mxu0
      %v2858 = vadd.f32 0.0, %v2857
      %v2859 = vpop.f32.mrb[0].mxu0
      %v2860 = vpop.f32.mrb[0].mxu0
      %v2861 = vadd.f32 0.0, %v2860
      %v2862 = vpop.f32.mrb[0].mxu0
      %2863 = vmatprep.mubr.bf16.mxu0 0
      %2864 = vmatmul.mubr.bf16.gmra.mrb[0].mxu0 %v2673
      %v2865 = vpop.f32.mrb[0].mxu0
      %v2866 = vadd.f32 0.0, %v2865
      %v2867 = vpop.f32.mrb[0].mxu0
      %v2868 = vpop.f32.mrb[0].mxu0
      %v2869 = vadd.f32 0.0, %v2868
      %v2870 = vpop.f32.mrb[0].mxu0
      %2871 = vmatprep.mubr.bf16.mxu0 0
      %2872 = vmatmul.mubr.bf16.gmra.mrb[0].mxu0 %v2674
      %v2873 = vpop.f32.mrb[0].mxu0
      %v2874 = vadd.f32 0.0, %v2873
      %v2875 = vpop.f32.mrb[0].mxu0
      %v2876 = vpop.f32.mrb[0].mxu0
      %v2877 = vadd.f32 0.0, %v2876
      %v2878 = vpop.f32.mrb[0].mxu0
      %2879 = vmatprep.mubr.bf16.mxu0 0
      %2880 = vmatmul.mubr.bf16.gmra.mrb[0].mxu0 %v2675
      %v2881 = vpop.f32.mrb[0].mxu0
      %v2882 = vadd.f32 0.0, %v2881
      %v2883 = vpop.f32.mrb[0].mxu0
      %v2884 = vpop.f32.mrb[0].mxu0
      %v2885 = vadd.f32 0.0, %v2884
      %v2886 = vpop.f32.mrb[0].mxu0
      %2887 = vmatprep.mubr.bf16.mxu0 0
      %2888 = vmatmul.mubr.bf16.gmra.mrb[0].mxu0 %v2676
      %v2889 = vpop.f32.mrb[0].mxu0
      %v2890 = vadd.f32 0.0, %v2889
      %v2891 = vpop.f32.mrb[0].mxu0
      %v2892 = vpop.f32.mrb[0].mxu0
      %v2893 = vadd.f32 0.0, %v2892
      %v2894 = vpop.f32.mrb[0].mxu0
      %2895 = vmatprep.mubr.bf16.mxu0 0
      %2896 = vmatmul.mubr.bf16.gmra.mrb[0].mxu0 %v2677
      %v2897 = vpop.f32.mrb[0].mxu0
      %v2898 = vadd.f32 0.0, %v2897
      %v2899 = vpop.f32.mrb[0].mxu0
      %v2900 = vpop.f32.mrb[0].mxu0
      %v2901 = vadd.f32 0.0, %v2900
      %v2902 = vpop.f32.mrb[0].mxu0
      %2903 = vdwg.mxu0
      %v2904 = vadd.f32 %v2598, %v2778
      %v2905 = vadd.f32 %v2599, %v2781
      %v2906 = vadd.f32 %v2600, %v2786
      %v2907 = vadd.f32 %v2601, %v2789
      %v2908 = vadd.f32 %v2602, %v2794
      %v2909 = vadd.f32 %v2603, %v2797
      %v2910 = vadd.f32 %v2604, %v2802
      %v2911 = vadd.f32 %v2605, %v2805
      %v2912 = vadd.f32 %v2606, %v2810
      %v2913 = vadd.f32 %v2607, %v2813
      %v2914 = vadd.f32 %v2608, %v2818
      %v2915 = vadd.f32 %v2609, %v2821
      %v2916 = vadd.f32 %v2610, %v2826
      %v2917 = vadd.f32 %v2611, %v2829
      %v2918 = vadd.f32 %v2612, %v2834
      %v2919 = vadd.f32 %v2613, %v2837
      %v2920 = vadd.f32 %v2614, %v2842
      %v2921 = vadd.f32 %v2615, %v2845
      %v2922 = vadd.f32 %v2616, %v2850
      %v2923 = vadd.f32 %v2617, %v2853
      %v2924 = vadd.f32 %v2618, %v2858
      %v2925 = vadd.f32 %v2619, %v2861
      %v2926 = vadd.f32 %v2620, %v2866
      %v2927 = vadd.f32 %v2621, %v2869
      %v2928 = vadd.f32 %v2622, %v2874
      %v2929 = vadd.f32 %v2623, %v2877
      %v2930 = vadd.f32 %v2624, %v2882
      %v2931 = vadd.f32 %v2625, %v2885
      %v2932 = vadd.f32 %v2626, %v2890
      %v2933 = vadd.f32 %v2627, %v2893
      %v2934 = vadd.f32 %v2628, %v2898
      %v2935 = vadd.f32 %v2629, %v2901
      %v2936 = vld [vmem:[%s536 + $0x21] sm:$0xff]
      %v2937 = vld [vmem:[%s536 + $0x29] sm:$0xff]
      %v2938 = vld [vmem:[%s536 + $0x31] sm:$0xff]
      %v2939 = vld [vmem:[%s536 + $0x39] sm:$0xff]
      %v2940 = vld [vmem:[%s536 + $0x41] sm:$0xff]
      %v2941 = vld [vmem:[%s536 + $0x49] sm:$0xff]
      %v2942 = vld [vmem:[%s536 + $0x51] sm:$0xff]
      %v2943 = vld [vmem:[%s536 + $0x59] sm:$0xff]
      %v2944 = vld [vmem:[%s536 + $0x61] sm:$0xff]
      %v2945 = vld [vmem:[%s536 + $0x69] sm:$0xff]
      %v2946 = vld [vmem:[%s536 + $0x71] sm:$0xff]
      %v2947 = vld [vmem:[%s536 + $0x79] sm:$0xff]
      %v2948 = vld [vmem:[%s536 + $0x81] sm:$0xff]
      %v2949 = vld [vmem:[%s536 + $0x89] sm:$0xff]
      %v2950 = vld [vmem:[%s536 + $0x91] sm:$0xff]
      %v2951 = vld [vmem:[%s536 + $0x99] sm:$0xff]
      %v2952 = vld [vmem:[%s536 + $0xa1] sm:$0xff]
      %v2953 = vld [vmem:[%s536 + $0xa9] sm:$0xff]
      %v2954 = vld [vmem:[%s536 + $0xb1] sm:$0xff]
      %v2955 = vld [vmem:[%s536 + $0xb9] sm:$0xff]
      %v2956 = vld [vmem:[%s536 + $0xc1] sm:$0xff]
      %v2957 = vld [vmem:[%s536 + $0xc9] sm:$0xff]
      %v2958 = vld [vmem:[%s536 + $0xd1] sm:$0xff]
      %v2959 = vld [vmem:[%s536 + $0xd9] sm:$0xff]
      %v2960 = vld [vmem:[%s536 + $0xe1] sm:$0xff]
      %v2961 = vld [vmem:[%s536 + $0xe9] sm:$0xff]
      %v2962 = vld [vmem:[%s536 + $0xf1] sm:$0xff]
      %v2963 = vld [vmem:[%s536 + $0xf9] sm:$0xff]
      %v2964 = vld [vmem:[%s536 + $0x101] sm:$0xff]
      %v2965 = vld [vmem:[%s536 + $0x109] sm:$0xff]
      %v2966 = vld [vmem:[%s536 + $0x111] sm:$0xff]
      %v2967 = vld [vmem:[%s536 + $0x119] sm:$0xff]
      %v2968 = vpack.c.bf16 %v2937, %v2936
      %v2969 = vpack.c.bf16 %v2939, %v2938
      %v2970 = vpack.c.bf16 %v2941, %v2940
      %v2971 = vpack.c.bf16 %v2943, %v2942
      %v2972 = vpack.c.bf16 %v2945, %v2944
      %v2973 = vpack.c.bf16 %v2947, %v2946
      %v2974 = vpack.c.bf16 %v2949, %v2948
      %v2975 = vpack.c.bf16 %v2951, %v2950
      %v2976 = vpack.c.bf16 %v2953, %v2952
      %v2977 = vpack.c.bf16 %v2955, %v2954
      %v2978 = vpack.c.bf16 %v2957, %v2956
      %v2979 = vpack.c.bf16 %v2959, %v2958
      %v2980 = vpack.c.bf16 %v2961, %v2960
      %v2981 = vpack.c.bf16 %v2963, %v2962
      %v2982 = vpack.c.bf16 %v2965, %v2964
      %v2983 = vpack.c.bf16 %v2967, %v2966
      %v2984 = vsel %vm2018, %v2968, 0
      %v2985 = vsel %vm2019, %v2969, 0
      %v2986 = vsel %vm2020, %v2970, 0
      %v2987 = vsel %vm2021, %v2971, 0
      %v2988 = vsel %vm2022, %v2972, 0
      %v2989 = vsel %vm2023, %v2973, 0
      %v2990 = vsel %vm2024, %v2974, 0
      %v2991 = vsel %vm2025, %v2975, 0
      %v2992 = vsel %vm2026, %v2976, 0
      %v2993 = vsel %vm2027, %v2977, 0
      %v2994 = vsel %vm2028, %v2978, 0
      %v2995 = vsel %vm2029, %v2979, 0
      %v2996 = vsel %vm2030, %v2980, 0
      %v2997 = vsel %vm2031, %v2981, 0
      %v2998 = vsel %vm2032, %v2982, 0
      %v2999 = vsel %vm2033, %v2983, 0
      %s3000 = scalar_lea.vmem %s1, 320
      %v3001 = vld [vmem:[%s3000] sm:$0xf]
      %v3002 = vld [vmem:[%s3000 + $0x4] sm:$0xf]
      %v3003 = vld [vmem:[%s3000 + $0x8] sm:$0xf]
      %v3004 = vld [vmem:[%s3000 + $0xc] sm:$0xf]
      %v3005 = vld [vmem:[%s3000 + $0x10] sm:$0xf]
      %v3006 = vld [vmem:[%s3000 + $0x14] sm:$0xf]
      %v3007 = vld [vmem:[%s3000 + $0x18] sm:$0xf]
      %v3008 = vld [vmem:[%s3000 + $0x1c] sm:$0xf]
      %v3009 = vld [vmem:[%s3000 + $0x20] sm:$0xf]
      %v3010 = vld [vmem:[%s3000 + $0x24] sm:$0xf]
      %v3011 = vld [vmem:[%s3000 + $0x28] sm:$0xf]
      %v3012 = vld [vmem:[%s3000 + $0x2c] sm:$0xf]
      %v3013 = vld [vmem:[%s3000 + $0x30] sm:$0xf]
      %v3014 = vld [vmem:[%s3000 + $0x34] sm:$0xf]
      %v3015 = vld [vmem:[%s3000 + $0x38] sm:$0xf]
      %v3016 = vld [vmem:[%s3000 + $0x3c] sm:$0xf]
      %v3033 = vunpack.c.l.b16 %v3001
      %v3034 = vunpack.c.l.b16 %v3002
      %v3035 = vunpack.c.l.b16 %v3003
      %v3036 = vunpack.c.l.b16 %v3004
      %v3037 = vunpack.c.l.b16 %v3005
      %v3038 = vunpack.c.l.b16 %v3006
      %v3039 = vunpack.c.l.b16 %v3007
      %v3040 = vunpack.c.l.b16 %v3008
      %v3041 = vunpack.c.l.b16 %v3009
      %v3042 = vunpack.c.l.b16 %v3010
      %v3043 = vunpack.c.l.b16 %v3011
      %v3044 = vunpack.c.l.b16 %v3012
      %v3045 = vunpack.c.l.b16 %v3013
      %v3046 = vunpack.c.l.b16 %v3014
      %v3047 = vunpack.c.l.b16 %v3015
      %v3048 = vunpack.c.l.b16 %v3016
      %v3049 = vpack.c.b16 %v3034, %v3033
      %v3050 = vpack.c.b16 %v3036, %v3035
      %v3051 = vpack.c.b16 %v3038, %v3037
      %v3052 = vpack.c.b16 %v3040, %v3039
      %v3053 = vpack.c.b16 %v3042, %v3041
      %v3054 = vpack.c.b16 %v3044, %v3043
      %v3055 = vpack.c.b16 %v3046, %v3045
      %v3056 = vpack.c.b16 %v3048, %v3047
      %3065 = vmatprep.subr.bf16.mxu0 0
      %3066 = vmatpush1.bf16.msra.mxu0 %v3049
      %3067 = vmatprep.subr.bf16.mxu0 0
      %3068 = vmatpush1.bf16.msra.mxu0 %v3050
      %3069 = vmatprep.subr.bf16.mxu0 0
      %3070 = vmatpush1.bf16.msra.mxu0 %v3051
      %3071 = vmatprep.subr.bf16.mxu0 0
      %3072 = vmatpush1.bf16.msra.mxu0 %v3052
      %3073 = vmatprep.subr.bf16.mxu0 0
      %3074 = vmatpush1.bf16.msra.mxu0 %v3053
      %3075 = vmatprep.subr.bf16.mxu0 0
      %3076 = vmatpush1.bf16.msra.mxu0 %v3054
      %3077 = vmatprep.subr.bf16.mxu0 0
      %3078 = vmatpush1.bf16.msra.mxu0 %v3055
      %3079 = vmatprep.subr.bf16.mxu0 0
      %3080 = vmatpush1.bf16.msra.mxu0 %v3056
      %3081 = vmatprep.subr.bf16.mxu0 0
      %3082 = vmatpush1.bf16.msra.mxu0 0
      %3083 = vmatprep.subr.bf16.mxu0 0
      %3084 = vmatpush1.bf16.msra.mxu0 0
      %3085 = vmatprep.subr.bf16.mxu0 0
      %3086 = vmatpush1.bf16.msra.mxu0 0
      %3087 = vmatprep.subr.bf16.mxu0 0
      %3088 = vmatpush1.bf16.msra.mxu0 0
      %3089 = vmatprep.subr.bf16.mxu0 0
      %3090 = vmatpush1.bf16.msra.mxu0 0
      %3091 = vmatprep.subr.bf16.mxu0 0
      %3092 = vmatpush1.bf16.msra.mxu0 0
      %3093 = vmatprep.subr.bf16.mxu0 0
      %3094 = vmatpush1.bf16.msra.mxu0 0
      %3095 = vmatprep.subr.bf16.mxu0 0
      %3096 = vmatpush1.bf16.msra.mxu0 0
      %3097 = vmatprep.mubr.bf16.mxu0 0
      %3098 = vmatmul.mubr.bf16.gmra.mrb[0].mxu0 %v2984
      %v3099 = vpop.f32.mrb[0].mxu0
      %v3100 = vadd.f32 0.0, %v3099
      %v3101 = vpop.f32.mrb[0].mxu0
      %v3102 = vpop.f32.mrb[0].mxu0
      %v3103 = vadd.f32 0.0, %v3102
      %v3104 = vpop.f32.mrb[0].mxu0
      %3105 = vmatprep.mubr.bf16.mxu0 0
      %3106 = vmatmul.mubr.bf16.gmra.mrb[0].mxu0 %v2985
      %v3107 = vpop.f32.mrb[0].mxu0
      %v3108 = vadd.f32 0.0, %v3107
      %v3109 = vpop.f32.mrb[0].mxu0
      %v3110 = vpop.f32.mrb[0].mxu0
      %v3111 = vadd.f32 0.0, %v3110
      %v3112 = vpop.f32.mrb[0].mxu0
      %3113 = vmatprep.mubr.bf16.mxu0 0
      %3114 = vmatmul.mubr.bf16.gmra.mrb[0].mxu0 %v2986
      %v3115 = vpop.f32.mrb[0].mxu0
      %v3116 = vadd.f32 0.0, %v3115
      %v3117 = vpop.f32.mrb[0].mxu0
      %v3118 = vpop.f32.mrb[0].mxu0
      %v3119 = vadd.f32 0.0, %v3118
      %v3120 = vpop.f32.mrb[0].mxu0
      %3121 = vmatprep.mubr.bf16.mxu0 0
      %3122 = vmatmul.mubr.bf16.gmra.mrb[0].mxu0 %v2987
      %v3123 = vpop.f32.mrb[0].mxu0
      %v3124 = vadd.f32 0.0, %v3123
      %v3125 = vpop.f32.mrb[0].mxu0
      %v3126 = vpop.f32.mrb[0].mxu0
      %v3127 = vadd.f32 0.0, %v3126
      %v3128 = vpop.f32.mrb[0].mxu0
      %3129 = vmatprep.mubr.bf16.mxu0 0
      %3130 = vmatmul.mubr.bf16.gmra.mrb[0].mxu0 %v2988
      %v3131 = vpop.f32.mrb[0].mxu0
      %v3132 = vadd.f32 0.0, %v3131
      %v3133 = vpop.f32.mrb[0].mxu0
      %v3134 = vpop.f32.mrb[0].mxu0
      %v3135 = vadd.f32 0.0, %v3134
      %v3136 = vpop.f32.mrb[0].mxu0
      %3137 = vmatprep.mubr.bf16.mxu0 0
      %3138 = vmatmul.mubr.bf16.gmra.mrb[0].mxu0 %v2989
      %v3139 = vpop.f32.mrb[0].mxu0
      %v3140 = vadd.f32 0.0, %v3139
      %v3141 = vpop.f32.mrb[0].mxu0
      %v3142 = vpop.f32.mrb[0].mxu0
      %v3143 = vadd.f32 0.0, %v3142
      %v3144 = vpop.f32.mrb[0].mxu0
      %3145 = vmatprep.mubr.bf16.mxu0 0
      %3146 = vmatmul.mubr.bf16.gmra.mrb[0].mxu0 %v2990
      %v3147 = vpop.f32.mrb[0].mxu0
      %v3148 = vadd.f32 0.0, %v3147
      %v3149 = vpop.f32.mrb[0].mxu0
      %v3150 = vpop.f32.mrb[0].mxu0
      %v3151 = vadd.f32 0.0, %v3150
      %v3152 = vpop.f32.mrb[0].mxu0
      %3153 = vmatprep.mubr.bf16.mxu0 0
      %3154 = vmatmul.mubr.bf16.gmra.mrb[0].mxu0 %v2991
      %v3155 = vpop.f32.mrb[0].mxu0
      %v3156 = vadd.f32 0.0, %v3155
      %v3157 = vpop.f32.mrb[0].mxu0
      %v3158 = vpop.f32.mrb[0].mxu0
      %v3159 = vadd.f32 0.0, %v3158
      %v3160 = vpop.f32.mrb[0].mxu0
      %3161 = vmatprep.mubr.bf16.mxu0 0
      %3162 = vmatmul.mubr.bf16.gmra.mrb[0].mxu0 %v2992
      %v3163 = vpop.f32.mrb[0].mxu0
      %v3164 = vadd.f32 0.0, %v3163
      %v3165 = vpop.f32.mrb[0].mxu0
      %v3166 = vpop.f32.mrb[0].mxu0
      %v3167 = vadd.f32 0.0, %v3166
      %v3168 = vpop.f32.mrb[0].mxu0
      %3169 = vmatprep.mubr.bf16.mxu0 0
      %3170 = vmatmul.mubr.bf16.gmra.mrb[0].mxu0 %v2993
      %v3171 = vpop.f32.mrb[0].mxu0
      %v3172 = vadd.f32 0.0, %v3171
      %v3173 = vpop.f32.mrb[0].mxu0
      %v3174 = vpop.f32.mrb[0].mxu0
      %v3175 = vadd.f32 0.0, %v3174
      %v3176 = vpop.f32.mrb[0].mxu0
      %3177 = vmatprep.mubr.bf16.mxu0 0
      %3178 = vmatmul.mubr.bf16.gmra.mrb[0].mxu0 %v2994
      %v3179 = vpop.f32.mrb[0].mxu0
      %v3180 = vadd.f32 0.0, %v3179
      %v3181 = vpop.f32.mrb[0].mxu0
      %v3182 = vpop.f32.mrb[0].mxu0
      %v3183 = vadd.f32 0.0, %v3182
      %v3184 = vpop.f32.mrb[0].mxu0
      %3185 = vmatprep.mubr.bf16.mxu0 0
      %3186 = vmatmul.mubr.bf16.gmra.mrb[0].mxu0 %v2995
      %v3187 = vpop.f32.mrb[0].mxu0
      %v3188 = vadd.f32 0.0, %v3187
      %v3189 = vpop.f32.mrb[0].mxu0
      %v3190 = vpop.f32.mrb[0].mxu0
      %v3191 = vadd.f32 0.0, %v3190
      %v3192 = vpop.f32.mrb[0].mxu0
      %3193 = vmatprep.mubr.bf16.mxu0 0
      %3194 = vmatmul.mubr.bf16.gmra.mrb[0].mxu0 %v2996
      %v3195 = vpop.f32.mrb[0].mxu0
      %v3196 = vadd.f32 0.0, %v3195
      %v3197 = vpop.f32.mrb[0].mxu0
      %v3198 = vpop.f32.mrb[0].mxu0
      %v3199 = vadd.f32 0.0, %v3198
      %v3200 = vpop.f32.mrb[0].mxu0
      %3201 = vmatprep.mubr.bf16.mxu0 0
      %3202 = vmatmul.mubr.bf16.gmra.mrb[0].mxu0 %v2997
      %v3203 = vpop.f32.mrb[0].mxu0
      %v3204 = vadd.f32 0.0, %v3203
      %v3205 = vpop.f32.mrb[0].mxu0
      %v3206 = vpop.f32.mrb[0].mxu0
      %v3207 = vadd.f32 0.0, %v3206
      %v3208 = vpop.f32.mrb[0].mxu0
      %3209 = vmatprep.mubr.bf16.mxu0 0
      %3210 = vmatmul.mubr.bf16.gmra.mrb[0].mxu0 %v2998
      %v3211 = vpop.f32.mrb[0].mxu0
      %v3212 = vadd.f32 0.0, %v3211
      %v3213 = vpop.f32.mrb[0].mxu0
      %v3214 = vpop.f32.mrb[0].mxu0
      %v3215 = vadd.f32 0.0, %v3214
      %v3216 = vpop.f32.mrb[0].mxu0
      %3217 = vmatprep.mubr.bf16.mxu0 0
      %3218 = vmatmul.mubr.bf16.gmra.mrb[0].mxu0 %v2999
      %v3219 = vpop.f32.mrb[0].mxu0
      %v3220 = vadd.f32 0.0, %v3219
      %v3221 = vpop.f32.mrb[0].mxu0
      %v3222 = vpop.f32.mrb[0].mxu0
      %v3223 = vadd.f32 0.0, %v3222
      %v3224 = vpop.f32.mrb[0].mxu0
      %3225 = vdwg.mxu0
      %v3226 = vadd.f32 %v2904, %v3100
      %v3227 = vadd.f32 %v2905, %v3103
      %v3228 = vadd.f32 %v2906, %v3108
      %v3229 = vadd.f32 %v2907, %v3111
      %v3230 = vadd.f32 %v2908, %v3116
      %v3231 = vadd.f32 %v2909, %v3119
      %v3232 = vadd.f32 %v2910, %v3124
      %v3233 = vadd.f32 %v2911, %v3127
      %v3234 = vadd.f32 %v2912, %v3132
      %v3235 = vadd.f32 %v2913, %v3135
      %v3236 = vadd.f32 %v2914, %v3140
      %v3237 = vadd.f32 %v2915, %v3143
      %v3238 = vadd.f32 %v2916, %v3148
      %v3239 = vadd.f32 %v2917, %v3151
      %v3240 = vadd.f32 %v2918, %v3156
      %v3241 = vadd.f32 %v2919, %v3159
      %v3242 = vadd.f32 %v2920, %v3164
      %v3243 = vadd.f32 %v2921, %v3167
      %v3244 = vadd.f32 %v2922, %v3172
      %v3245 = vadd.f32 %v2923, %v3175
      %v3246 = vadd.f32 %v2924, %v3180
      %v3247 = vadd.f32 %v2925, %v3183
      %v3248 = vadd.f32 %v2926, %v3188
      %v3249 = vadd.f32 %v2927, %v3191
      %v3250 = vadd.f32 %v2928, %v3196
      %v3251 = vadd.f32 %v2929, %v3199
      %v3252 = vadd.f32 %v2930, %v3204
      %v3253 = vadd.f32 %v2931, %v3207
      %v3254 = vadd.f32 %v2932, %v3212
      %v3255 = vadd.f32 %v2933, %v3215
      %v3256 = vadd.f32 %v2934, %v3220
      %v3257 = vadd.f32 %v2935, %v3223
      %v3258 = vld [vmem:[%s536 + $0x2f] sm:$0xff]
      %v3259 = vld [vmem:[%s536 + $0x37] sm:$0xff]
      %v3260 = vld [vmem:[%s536 + $0x3f] sm:$0xff]
      %v3261 = vld [vmem:[%s536 + $0x47] sm:$0xff]
      %v3262 = vld [vmem:[%s536 + $0x4f] sm:$0xff]
      %v3263 = vld [vmem:[%s536 + $0x57] sm:$0xff]
      %v3264 = vld [vmem:[%s536 + $0x5f] sm:$0xff]
      %v3265 = vld [vmem:[%s536 + $0x67] sm:$0xff]
      %v3266 = vld [vmem:[%s536 + $0x6f] sm:$0xff]
      %v3267 = vld [vmem:[%s536 + $0x77] sm:$0xff]
      %v3268 = vld [vmem:[%s536 + $0x7f] sm:$0xff]
      %v3269 = vld [vmem:[%s536 + $0x87] sm:$0xff]
      %v3270 = vld [vmem:[%s536 + $0x8f] sm:$0xff]
      %v3271 = vld [vmem:[%s536 + $0x97] sm:$0xff]
      %v3272 = vld [vmem:[%s536 + $0x9f] sm:$0xff]
      %v3273 = vld [vmem:[%s536 + $0xa7] sm:$0xff]
      %v3274 = vld [vmem:[%s536 + $0xaf] sm:$0xff]
      %v3275 = vld [vmem:[%s536 + $0xb7] sm:$0xff]
      %v3276 = vld [vmem:[%s536 + $0xbf] sm:$0xff]
      %v3277 = vld [vmem:[%s536 + $0xc7] sm:$0xff]
      %v3278 = vld [vmem:[%s536 + $0xcf] sm:$0xff]
      %v3279 = vld [vmem:[%s536 + $0xd7] sm:$0xff]
      %v3280 = vld [vmem:[%s536 + $0xdf] sm:$0xff]
      %v3281 = vld [vmem:[%s536 + $0xe7] sm:$0xff]
      %v3282 = vld [vmem:[%s536 + $0xef] sm:$0xff]
      %v3283 = vld [vmem:[%s536 + $0xf7] sm:$0xff]
      %v3284 = vld [vmem:[%s536 + $0xff] sm:$0xff]
      %v3285 = vld [vmem:[%s536 + $0x107] sm:$0xff]
      %v3286 = vld [vmem:[%s536 + $0x10f] sm:$0xff]
      %v3287 = vld [vmem:[%s536 + $0x117] sm:$0xff]
      %v3288 = vld [vmem:[%s536 + $0x11f] sm:$0xff]
      %v3289 = vld [vmem:[%s536 + $0x127] sm:$0xff]
      %v3290 = vpack.c.bf16 %v3259, %v3258
      %v3291 = vpack.c.bf16 %v3261, %v3260
      %v3292 = vpack.c.bf16 %v3263, %v3262
      %v3293 = vpack.c.bf16 %v3265, %v3264
      %v3294 = vpack.c.bf16 %v3267, %v3266
      %v3295 = vpack.c.bf16 %v3269, %v3268
      %v3296 = vpack.c.bf16 %v3271, %v3270
      %v3297 = vpack.c.bf16 %v3273, %v3272
      %v3298 = vpack.c.bf16 %v3275, %v3274
      %v3299 = vpack.c.bf16 %v3277, %v3276
      %v3300 = vpack.c.bf16 %v3279, %v3278
      %v3301 = vpack.c.bf16 %v3281, %v3280
      %v3302 = vpack.c.bf16 %v3283, %v3282
      %v3303 = vpack.c.bf16 %v3285, %v3284
      %v3304 = vpack.c.bf16 %v3287, %v3286
      %v3305 = vpack.c.bf16 %v3289, %v3288
      %v3306 = vsel %vm1231, %v3290, 0
      %v3307 = vsel %vm1232, %v3291, 0
      %v3308 = vsel %vm1233, %v3292, 0
      %v3309 = vsel %vm1234, %v3293, 0
      %v3310 = vsel %vm1235, %v3294, 0
      %v3311 = vsel %vm1236, %v3295, 0
      %v3312 = vsel %vm1237, %v3296, 0
      %v3313 = vsel %vm1238, %v3297, 0
      %v3314 = vsel %vm1239, %v3298, 0
      %v3315 = vsel %vm1240, %v3299, 0
      %v3316 = vsel %vm1241, %v3300, 0
      %v3317 = vsel %vm1242, %v3301, 0
      %v3318 = vsel %vm1243, %v3302, 0
      %v3319 = vsel %vm1244, %v3303, 0
      %v3320 = vsel %vm1245, %v3304, 0
      %v3321 = vsel %vm1246, %v3305, 0
      %s3322 = scalar_lea.vmem %s1, 384
      %v3323 = vld [vmem:[%s3322] sm:$0xf]
      %v3324 = vld [vmem:[%s3322 + $0x4] sm:$0xf]
      %v3325 = vld [vmem:[%s3322 + $0x8] sm:$0xf]
      %v3326 = vld [vmem:[%s3322 + $0xc] sm:$0xf]
      %v3327 = vld [vmem:[%s3322 + $0x10] sm:$0xf]
      %v3328 = vld [vmem:[%s3322 + $0x14] sm:$0xf]
      %v3329 = vld [vmem:[%s3322 + $0x18] sm:$0xf]
      %v3330 = vld [vmem:[%s3322 + $0x1c] sm:$0xf]
      %v3331 = vld [vmem:[%s3322 + $0x20] sm:$0xf]
      %v3332 = vld [vmem:[%s3322 + $0x24] sm:$0xf]
      %v3333 = vld [vmem:[%s3322 + $0x28] sm:$0xf]
      %v3334 = vld [vmem:[%s3322 + $0x2c] sm:$0xf]
      %v3335 = vld [vmem:[%s3322 + $0x30] sm:$0xf]
      %v3336 = vld [vmem:[%s3322 + $0x34] sm:$0xf]
      %v3337 = vld [vmem:[%s3322 + $0x38] sm:$0xf]
      %v3338 = vld [vmem:[%s3322 + $0x3c] sm:$0xf]
      %v3355 = vunpack.c.l.b16 %v3323
      %v3356 = vunpack.c.l.b16 %v3324
      %v3357 = vunpack.c.l.b16 %v3325
      %v3358 = vunpack.c.l.b16 %v3326
      %v3359 = vunpack.c.l.b16 %v3327
      %v3360 = vunpack.c.l.b16 %v3328
      %v3361 = vunpack.c.l.b16 %v3329
      %v3362 = vunpack.c.l.b16 %v3330
      %v3363 = vunpack.c.l.b16 %v3331
      %v3364 = vunpack.c.l.b16 %v3332
      %v3365 = vunpack.c.l.b16 %v3333
      %v3366 = vunpack.c.l.b16 %v3334
      %v3367 = vunpack.c.l.b16 %v3335
      %v3368 = vunpack.c.l.b16 %v3336
      %v3369 = vunpack.c.l.b16 %v3337
      %v3370 = vunpack.c.l.b16 %v3338
      %v3371 = vpack.c.b16 %v3356, %v3355
      %v3372 = vpack.c.b16 %v3358, %v3357
      %v3373 = vpack.c.b16 %v3360, %v3359
      %v3374 = vpack.c.b16 %v3362, %v3361
      %v3375 = vpack.c.b16 %v3364, %v3363
      %v3376 = vpack.c.b16 %v3366, %v3365
      %v3377 = vpack.c.b16 %v3368, %v3367
      %v3378 = vpack.c.b16 %v3370, %v3369
      %3387 = vmatprep.subr.bf16.mxu0 0
      %3388 = vmatpush1.bf16.msra.mxu0 %v3371
      %3389 = vmatprep.subr.bf16.mxu0 0
      %3390 = vmatpush1.bf16.msra.mxu0 %v3372
      %3391 = vmatprep.subr.bf16.mxu0 0
      %3392 = vmatpush1.bf16.msra.mxu0 %v3373
      %3393 = vmatprep.subr.bf16.mxu0 0
      %3394 = vmatpush1.bf16.msra.mxu0 %v3374
      %3395 = vmatprep.subr.bf16.mxu0 0
      %3396 = vmatpush1.bf16.msra.mxu0 %v3375
      %3397 = vmatprep.subr.bf16.mxu0 0
      %3398 = vmatpush1.bf16.msra.mxu0 %v3376
      %3399 = vmatprep.subr.bf16.mxu0 0
      %3400 = vmatpush1.bf16.msra.mxu0 %v3377
      %3401 = vmatprep.subr.bf16.mxu0 0
      %3402 = vmatpush1.bf16.msra.mxu0 %v3378
      %3403 = vmatprep.subr.bf16.mxu0 0
      %3404 = vmatpush1.bf16.msra.mxu0 0
      %3405 = vmatprep.subr.bf16.mxu0 0
      %3406 = vmatpush1.bf16.msra.mxu0 0
      %3407 = vmatprep.subr.bf16.mxu0 0
      %3408 = vmatpush1.bf16.msra.mxu0 0
      %3409 = vmatprep.subr.bf16.mxu0 0
      %3410 = vmatpush1.bf16.msra.mxu0 0
      %3411 = vmatprep.subr.bf16.mxu0 0
      %3412 = vmatpush1.bf16.msra.mxu0 0
      %3413 = vmatprep.subr.bf16.mxu0 0
      %3414 = vmatpush1.bf16.msra.mxu0 0
      %3415 = vmatprep.subr.bf16.mxu0 0
      %3416 = vmatpush1.bf16.msra.mxu0 0
      %3417 = vmatprep.subr.bf16.mxu0 0
      %3418 = vmatpush1.bf16.msra.mxu0 0
      %3419 = vmatprep.mubr.bf16.mxu0 0
      %3420 = vmatmul.mubr.bf16.gmra.mrb[0].mxu0 %v3306
      %v3421 = vpop.f32.mrb[0].mxu0
      %v3422 = vadd.f32 0.0, %v3421
      %v3423 = vpop.f32.mrb[0].mxu0
      %v3424 = vpop.f32.mrb[0].mxu0
      %v3425 = vadd.f32 0.0, %v3424
      %v3426 = vpop.f32.mrb[0].mxu0
      %3427 = vmatprep.mubr.bf16.mxu0 0
      %3428 = vmatmul.mubr.bf16.gmra.mrb[0].mxu0 %v3307
      %v3429 = vpop.f32.mrb[0].mxu0
      %v3430 = vadd.f32 0.0, %v3429
      %v3431 = vpop.f32.mrb[0].mxu0
      %v3432 = vpop.f32.mrb[0].mxu0
      %v3433 = vadd.f32 0.0, %v3432
      %v3434 = vpop.f32.mrb[0].mxu0
      %3435 = vmatprep.mubr.bf16.mxu0 0
      %3436 = vmatmul.mubr.bf16.gmra.mrb[0].mxu0 %v3308
      %v3437 = vpop.f32.mrb[0].mxu0
      %v3438 = vadd.f32 0.0, %v3437
      %v3439 = vpop.f32.mrb[0].mxu0
      %v3440 = vpop.f32.mrb[0].mxu0
      %v3441 = vadd.f32 0.0, %v3440
      %v3442 = vpop.f32.mrb[0].mxu0
      %3443 = vmatprep.mubr.bf16.mxu0 0
      %3444 = vmatmul.mubr.bf16.gmra.mrb[0].mxu0 %v3309
      %v3445 = vpop.f32.mrb[0].mxu0
      %v3446 = vadd.f32 0.0, %v3445
      %v3447 = vpop.f32.mrb[0].mxu0
      %v3448 = vpop.f32.mrb[0].mxu0
      %v3449 = vadd.f32 0.0, %v3448
      %v3450 = vpop.f32.mrb[0].mxu0
      %3451 = vmatprep.mubr.bf16.mxu0 0
      %3452 = vmatmul.mubr.bf16.gmra.mrb[0].mxu0 %v3310
      %v3453 = vpop.f32.mrb[0].mxu0
      %v3454 = vadd.f32 0.0, %v3453
      %v3455 = vpop.f32.mrb[0].mxu0
      %v3456 = vpop.f32.mrb[0].mxu0
      %v3457 = vadd.f32 0.0, %v3456
      %v3458 = vpop.f32.mrb[0].mxu0
      %3459 = vmatprep.mubr.bf16.mxu0 0
      %3460 = vmatmul.mubr.bf16.gmra.mrb[0].mxu0 %v3311
      %v3461 = vpop.f32.mrb[0].mxu0
      %v3462 = vadd.f32 0.0, %v3461
      %v3463 = vpop.f32.mrb[0].mxu0
      %v3464 = vpop.f32.mrb[0].mxu0
      %v3465 = vadd.f32 0.0, %v3464
      %v3466 = vpop.f32.mrb[0].mxu0
      %3467 = vmatprep.mubr.bf16.mxu0 0
      %3468 = vmatmul.mubr.bf16.gmra.mrb[0].mxu0 %v3312
      %v3469 = vpop.f32.mrb[0].mxu0
      %v3470 = vadd.f32 0.0, %v3469
      %v3471 = vpop.f32.mrb[0].mxu0
      %v3472 = vpop.f32.mrb[0].mxu0
      %v3473 = vadd.f32 0.0, %v3472
      %v3474 = vpop.f32.mrb[0].mxu0
      %3475 = vmatprep.mubr.bf16.mxu0 0
      %3476 = vmatmul.mubr.bf16.gmra.mrb[0].mxu0 %v3313
      %v3477 = vpop.f32.mrb[0].mxu0
      %v3478 = vadd.f32 0.0, %v3477
      %v3479 = vpop.f32.mrb[0].mxu0
      %v3480 = vpop.f32.mrb[0].mxu0
      %v3481 = vadd.f32 0.0, %v3480
      %v3482 = vpop.f32.mrb[0].mxu0
      %3483 = vmatprep.mubr.bf16.mxu0 0
      %3484 = vmatmul.mubr.bf16.gmra.mrb[0].mxu0 %v3314
      %v3485 = vpop.f32.mrb[0].mxu0
      %v3486 = vadd.f32 0.0, %v3485
      %v3487 = vpop.f32.mrb[0].mxu0
      %v3488 = vpop.f32.mrb[0].mxu0
      %v3489 = vadd.f32 0.0, %v3488
      %v3490 = vpop.f32.mrb[0].mxu0
      %3491 = vmatprep.mubr.bf16.mxu0 0
      %3492 = vmatmul.mubr.bf16.gmra.mrb[0].mxu0 %v3315
      %v3493 = vpop.f32.mrb[0].mxu0
      %v3494 = vadd.f32 0.0, %v3493
      %v3495 = vpop.f32.mrb[0].mxu0
      %v3496 = vpop.f32.mrb[0].mxu0
      %v3497 = vadd.f32 0.0, %v3496
      %v3498 = vpop.f32.mrb[0].mxu0
      %3499 = vmatprep.mubr.bf16.mxu0 0
      %3500 = vmatmul.mubr.bf16.gmra.mrb[0].mxu0 %v3316
      %v3501 = vpop.f32.mrb[0].mxu0
      %v3502 = vadd.f32 0.0, %v3501
      %v3503 = vpop.f32.mrb[0].mxu0
      %v3504 = vpop.f32.mrb[0].mxu0
      %v3505 = vadd.f32 0.0, %v3504
      %v3506 = vpop.f32.mrb[0].mxu0
      %3507 = vmatprep.mubr.bf16.mxu0 0
      %3508 = vmatmul.mubr.bf16.gmra.mrb[0].mxu0 %v3317
      %v3509 = vpop.f32.mrb[0].mxu0
      %v3510 = vadd.f32 0.0, %v3509
      %v3511 = vpop.f32.mrb[0].mxu0
      %v3512 = vpop.f32.mrb[0].mxu0
      %v3513 = vadd.f32 0.0, %v3512
      %v3514 = vpop.f32.mrb[0].mxu0
      %3515 = vmatprep.mubr.bf16.mxu0 0
      %3516 = vmatmul.mubr.bf16.gmra.mrb[0].mxu0 %v3318
      %v3517 = vpop.f32.mrb[0].mxu0
      %v3518 = vadd.f32 0.0, %v3517
      %v3519 = vpop.f32.mrb[0].mxu0
      %v3520 = vpop.f32.mrb[0].mxu0
      %v3521 = vadd.f32 0.0, %v3520
      %v3522 = vpop.f32.mrb[0].mxu0
      %3523 = vmatprep.mubr.bf16.mxu0 0
      %3524 = vmatmul.mubr.bf16.gmra.mrb[0].mxu0 %v3319
      %v3525 = vpop.f32.mrb[0].mxu0
      %v3526 = vadd.f32 0.0, %v3525
      %v3527 = vpop.f32.mrb[0].mxu0
      %v3528 = vpop.f32.mrb[0].mxu0
      %v3529 = vadd.f32 0.0, %v3528
      %v3530 = vpop.f32.mrb[0].mxu0
      %3531 = vmatprep.mubr.bf16.mxu0 0
      %3532 = vmatmul.mubr.bf16.gmra.mrb[0].mxu0 %v3320
      %v3533 = vpop.f32.mrb[0].mxu0
      %v3534 = vadd.f32 0.0, %v3533
      %v3535 = vpop.f32.mrb[0].mxu0
      %v3536 = vpop.f32.mrb[0].mxu0
      %v3537 = vadd.f32 0.0, %v3536
      %v3538 = vpop.f32.mrb[0].mxu0
      %3539 = vmatprep.mubr.bf16.mxu0 0
      %3540 = vmatmul.mubr.bf16.gmra.mrb[0].mxu0 %v3321
      %v3541 = vpop.f32.mrb[0].mxu0
      %v3542 = vadd.f32 0.0, %v3541
      %v3543 = vpop.f32.mrb[0].mxu0
      %v3544 = vpop.f32.mrb[0].mxu0
      %v3545 = vadd.f32 0.0, %v3544
      %v3546 = vpop.f32.mrb[0].mxu0
      %3547 = vdwg.mxu0
      %v3548 = vadd.f32 %v3226, %v3422
      %v3549 = vadd.f32 %v3227, %v3425
      %v3550 = vadd.f32 %v3228, %v3430
      %v3551 = vadd.f32 %v3229, %v3433
      %v3552 = vadd.f32 %v3230, %v3438
      %v3553 = vadd.f32 %v3231, %v3441
      %v3554 = vadd.f32 %v3232, %v3446
      %v3555 = vadd.f32 %v3233, %v3449
      %v3556 = vadd.f32 %v3234, %v3454
      %v3557 = vadd.f32 %v3235, %v3457
      %v3558 = vadd.f32 %v3236, %v3462
      %v3559 = vadd.f32 %v3237, %v3465
      %v3560 = vadd.f32 %v3238, %v3470
      %v3561 = vadd.f32 %v3239, %v3473
      %v3562 = vadd.f32 %v3240, %v3478
      %v3563 = vadd.f32 %v3241, %v3481
      %v3564 = vadd.f32 %v3242, %v3486
      %v3565 = vadd.f32 %v3243, %v3489
      %v3566 = vadd.f32 %v3244, %v3494
      %v3567 = vadd.f32 %v3245, %v3497
      %v3568 = vadd.f32 %v3246, %v3502
      %v3569 = vadd.f32 %v3247, %v3505
      %v3570 = vadd.f32 %v3248, %v3510
      %v3571 = vadd.f32 %v3249, %v3513
      %v3572 = vadd.f32 %v3250, %v3518
      %v3573 = vadd.f32 %v3251, %v3521
      %v3574 = vadd.f32 %v3252, %v3526
      %v3575 = vadd.f32 %v3253, %v3529
      %v3576 = vadd.f32 %v3254, %v3534
      %v3577 = vadd.f32 %v3255, %v3537
      %v3578 = vadd.f32 %v3256, %v3542
      %v3579 = vadd.f32 %v3257, %v3545
      %v3580 = vld [vmem:[%s536 + $0x30] sm:$0xff]
      %v3581 = vld [vmem:[%s536 + $0x38] sm:$0xff]
      %v3582 = vld [vmem:[%s536 + $0x40] sm:$0xff]
      %v3583 = vld [vmem:[%s536 + $0x48] sm:$0xff]
      %v3584 = vld [vmem:[%s536 + $0x50] sm:$0xff]
      %v3585 = vld [vmem:[%s536 + $0x58] sm:$0xff]
      %v3586 = vld [vmem:[%s536 + $0x60] sm:$0xff]
      %v3587 = vld [vmem:[%s536 + $0x68] sm:$0xff]
      %v3588 = vld [vmem:[%s536 + $0x70] sm:$0xff]
      %v3589 = vld [vmem:[%s536 + $0x78] sm:$0xff]
      %v3590 = vld [vmem:[%s536 + $0x80] sm:$0xff]
      %v3591 = vld [vmem:[%s536 + $0x88] sm:$0xff]
      %v3592 = vld [vmem:[%s536 + $0x90] sm:$0xff]
      %v3593 = vld [vmem:[%s536 + $0x98] sm:$0xff]
      %v3594 = vld [vmem:[%s536 + $0xa0] sm:$0xff]
      %v3595 = vld [vmem:[%s536 + $0xa8] sm:$0xff]
      %v3596 = vld [vmem:[%s536 + $0xb0] sm:$0xff]
      %v3597 = vld [vmem:[%s536 + $0xb8] sm:$0xff]
      %v3598 = vld [vmem:[%s536 + $0xc0] sm:$0xff]
      %v3599 = vld [vmem:[%s536 + $0xc8] sm:$0xff]
      %v3600 = vld [vmem:[%s536 + $0xd0] sm:$0xff]
      %v3601 = vld [vmem:[%s536 + $0xd8] sm:$0xff]
      %v3602 = vld [vmem:[%s536 + $0xe0] sm:$0xff]
      %v3603 = vld [vmem:[%s536 + $0xe8] sm:$0xff]
      %v3604 = vld [vmem:[%s536 + $0xf0] sm:$0xff]
      %v3605 = vld [vmem:[%s536 + $0xf8] sm:$0xff]
      %v3606 = vld [vmem:[%s536 + $0x100] sm:$0xff]
      %v3607 = vld [vmem:[%s536 + $0x108] sm:$0xff]
      %v3608 = vld [vmem:[%s536 + $0x110] sm:$0xff]
      %v3609 = vld [vmem:[%s536 + $0x118] sm:$0xff]
      %v3610 = vld [vmem:[%s536 + $0x120] sm:$0xff]
      %v3611 = vld [vmem:[%s536 + $0x128] sm:$0xff]
      %v3612 = vpack.c.bf16 %v3581, %v3580
      %v3613 = vpack.c.bf16 %v3583, %v3582
      %v3614 = vpack.c.bf16 %v3585, %v3584
      %v3615 = vpack.c.bf16 %v3587, %v3586
      %v3616 = vpack.c.bf16 %v3589, %v3588
      %v3617 = vpack.c.bf16 %v3591, %v3590
      %v3618 = vpack.c.bf16 %v3593, %v3592
      %v3619 = vpack.c.bf16 %v3595, %v3594
      %v3620 = vpack.c.bf16 %v3597, %v3596
      %v3621 = vpack.c.bf16 %v3599, %v3598
      %v3622 = vpack.c.bf16 %v3601, %v3600
      %v3623 = vpack.c.bf16 %v3603, %v3602
      %v3624 = vpack.c.bf16 %v3605, %v3604
      %v3625 = vpack.c.bf16 %v3607, %v3606
      %v3626 = vpack.c.bf16 %v3609, %v3608
      %v3627 = vpack.c.bf16 %v3611, %v3610
      %s3628 = scalar_lea.vmem %s1, 448
      %v3629 = vld [vmem:[%s3628] sm:$0xf]
      %v3630 = vld [vmem:[%s3628 + $0x4] sm:$0xf]
      %v3631 = vld [vmem:[%s3628 + $0x8] sm:$0xf]
      %v3632 = vld [vmem:[%s3628 + $0xc] sm:$0xf]
      %v3633 = vld [vmem:[%s3628 + $0x10] sm:$0xf]
      %v3634 = vld [vmem:[%s3628 + $0x14] sm:$0xf]
      %v3635 = vld [vmem:[%s3628 + $0x18] sm:$0xf]
      %v3636 = vld [vmem:[%s3628 + $0x1c] sm:$0xf]
      %v3637 = vld [vmem:[%s3628 + $0x20] sm:$0xf]
      %v3638 = vld [vmem:[%s3628 + $0x24] sm:$0xf]
      %v3639 = vld [vmem:[%s3628 + $0x28] sm:$0xf]
      %v3640 = vld [vmem:[%s3628 + $0x2c] sm:$0xf]
      %v3641 = vld [vmem:[%s3628 + $0x30] sm:$0xf]
      %v3642 = vld [vmem:[%s3628 + $0x34] sm:$0xf]
      %v3643 = vld [vmem:[%s3628 + $0x38] sm:$0xf]
      %v3644 = vld [vmem:[%s3628 + $0x3c] sm:$0xf]
      %v3661 = vunpack.c.l.b16 %v3629
      %v3662 = vunpack.c.l.b16 %v3630
      %v3663 = vunpack.c.l.b16 %v3631
      %v3664 = vunpack.c.l.b16 %v3632
      %v3665 = vunpack.c.l.b16 %v3633
      %v3666 = vunpack.c.l.b16 %v3634
      %v3667 = vunpack.c.l.b16 %v3635
      %v3668 = vunpack.c.l.b16 %v3636
      %v3669 = vunpack.c.l.b16 %v3637
      %v3670 = vunpack.c.l.b16 %v3638
      %v3671 = vunpack.c.l.b16 %v3639
      %v3672 = vunpack.c.l.b16 %v3640
      %v3673 = vunpack.c.l.b16 %v3641
      %v3674 = vunpack.c.l.b16 %v3642
      %v3675 = vunpack.c.l.b16 %v3643
      %v3676 = vunpack.c.l.b16 %v3644
      %v3677 = vpack.c.b16 %v3662, %v3661
      %v3678 = vpack.c.b16 %v3664, %v3663
      %v3679 = vpack.c.b16 %v3666, %v3665
      %v3680 = vpack.c.b16 %v3668, %v3667
      %v3681 = vpack.c.b16 %v3670, %v3669
      %v3682 = vpack.c.b16 %v3672, %v3671
      %v3683 = vpack.c.b16 %v3674, %v3673
      %v3684 = vpack.c.b16 %v3676, %v3675
      %3693 = vmatprep.subr.bf16.mxu0 0
      %3694 = vmatpush1.bf16.msra.mxu0 %v3677
      %3695 = vmatprep.subr.bf16.mxu0 0
      %3696 = vmatpush1.bf16.msra.mxu0 %v3678
      %3697 = vmatprep.subr.bf16.mxu0 0
      %3698 = vmatpush1.bf16.msra.mxu0 %v3679
      %3699 = vmatprep.subr.bf16.mxu0 0
      %3700 = vmatpush1.bf16.msra.mxu0 %v3680
      %3701 = vmatprep.subr.bf16.mxu0 0
      %3702 = vmatpush1.bf16.msra.mxu0 %v3681
      %3703 = vmatprep.subr.bf16.mxu0 0
      %3704 = vmatpush1.bf16.msra.mxu0 %v3682
      %3705 = vmatprep.subr.bf16.mxu0 0
      %3706 = vmatpush1.bf16.msra.mxu0 %v3683
      %3707 = vmatprep.subr.bf16.mxu0 0
      %3708 = vmatpush1.bf16.msra.mxu0 %v3684
      %3709 = vmatprep.subr.bf16.mxu0 0
      %3710 = vmatpush1.bf16.msra.mxu0 0
      %3711 = vmatprep.subr.bf16.mxu0 0
      %3712 = vmatpush1.bf16.msra.mxu0 0
      %3713 = vmatprep.subr.bf16.mxu0 0
      %3714 = vmatpush1.bf16.msra.mxu0 0
      %3715 = vmatprep.subr.bf16.mxu0 0
      %3716 = vmatpush1.bf16.msra.mxu0 0
      %3717 = vmatprep.subr.bf16.mxu0 0
      %3718 = vmatpush1.bf16.msra.mxu0 0
      %3719 = vmatprep.subr.bf16.mxu0 0
      %3720 = vmatpush1.bf16.msra.mxu0 0
      %3721 = vmatprep.subr.bf16.mxu0 0
      %3722 = vmatpush1.bf16.msra.mxu0 0
      %3723 = vmatprep.subr.bf16.mxu0 0
      %3724 = vmatpush1.bf16.msra.mxu0 0
      %3725 = vmatprep.mubr.bf16.mxu0 0
      %3726 = vmatmul.mubr.bf16.gmra.mrb[0].mxu0 %v3612
      %v3727 = vpop.f32.mrb[0].mxu0
      %v3728 = vadd.f32 0.0, %v3727
      %v3729 = vpop.f32.mrb[0].mxu0
      %v3730 = vpop.f32.mrb[0].mxu0
      %v3731 = vadd.f32 0.0, %v3730
      %v3732 = vpop.f32.mrb[0].mxu0
      %3733 = vmatprep.mubr.bf16.mxu0 0
      %3734 = vmatmul.mubr.bf16.gmra.mrb[0].mxu0 %v3613
      %v3735 = vpop.f32.mrb[0].mxu0
      %v3736 = vadd.f32 0.0, %v3735
      %v3737 = vpop.f32.mrb[0].mxu0
      %v3738 = vpop.f32.mrb[0].mxu0
      %v3739 = vadd.f32 0.0, %v3738
      %v3740 = vpop.f32.mrb[0].mxu0
      %3741 = vmatprep.mubr.bf16.mxu0 0
      %3742 = vmatmul.mubr.bf16.gmra.mrb[0].mxu0 %v3614
      %v3743 = vpop.f32.mrb[0].mxu0
      %v3744 = vadd.f32 0.0, %v3743
      %v3745 = vpop.f32.mrb[0].mxu0
      %v3746 = vpop.f32.mrb[0].mxu0
      %v3747 = vadd.f32 0.0, %v3746
      %v3748 = vpop.f32.mrb[0].mxu0
      %3749 = vmatprep.mubr.bf16.mxu0 0
      %3750 = vmatmul.mubr.bf16.gmra.mrb[0].mxu0 %v3615
      %v3751 = vpop.f32.mrb[0].mxu0
      %v3752 = vadd.f32 0.0, %v3751
      %v3753 = vpop.f32.mrb[0].mxu0
      %v3754 = vpop.f32.mrb[0].mxu0
      %v3755 = vadd.f32 0.0, %v3754
      %v3756 = vpop.f32.mrb[0].mxu0
      %3757 = vmatprep.mubr.bf16.mxu0 0
      %3758 = vmatmul.mubr.bf16.gmra.mrb[0].mxu0 %v3616
      %v3759 = vpop.f32.mrb[0].mxu0
      %v3760 = vadd.f32 0.0, %v3759
      %v3761 = vpop.f32.mrb[0].mxu0
      %v3762 = vpop.f32.mrb[0].mxu0
      %v3763 = vadd.f32 0.0, %v3762
      %v3764 = vpop.f32.mrb[0].mxu0
      %3765 = vmatprep.mubr.bf16.mxu0 0
      %3766 = vmatmul.mubr.bf16.gmra.mrb[0].mxu0 %v3617
      %v3767 = vpop.f32.mrb[0].mxu0
      %v3768 = vadd.f32 0.0, %v3767
      %v3769 = vpop.f32.mrb[0].mxu0
      %v3770 = vpop.f32.mrb[0].mxu0
      %v3771 = vadd.f32 0.0, %v3770
      %v3772 = vpop.f32.mrb[0].mxu0
      %3773 = vmatprep.mubr.bf16.mxu0 0
      %3774 = vmatmul.mubr.bf16.gmra.mrb[0].mxu0 %v3618
      %v3775 = vpop.f32.mrb[0].mxu0
      %v3776 = vadd.f32 0.0, %v3775
      %v3777 = vpop.f32.mrb[0].mxu0
      %v3778 = vpop.f32.mrb[0].mxu0
      %v3779 = vadd.f32 0.0, %v3778
      %v3780 = vpop.f32.mrb[0].mxu0
      %3781 = vmatprep.mubr.bf16.mxu0 0
      %3782 = vmatmul.mubr.bf16.gmra.mrb[0].mxu0 %v3619
      %v3783 = vpop.f32.mrb[0].mxu0
      %v3784 = vadd.f32 0.0, %v3783
      %v3785 = vpop.f32.mrb[0].mxu0
      %v3786 = vpop.f32.mrb[0].mxu0
      %v3787 = vadd.f32 0.0, %v3786
      %v3788 = vpop.f32.mrb[0].mxu0
      %3789 = vmatprep.mubr.bf16.mxu0 0
      %3790 = vmatmul.mubr.bf16.gmra.mrb[0].mxu0 %v3620
      %v3791 = vpop.f32.mrb[0].mxu0
      %v3792 = vadd.f32 0.0, %v3791
      %v3793 = vpop.f32.mrb[0].mxu0
      %v3794 = vpop.f32.mrb[0].mxu0
      %v3795 = vadd.f32 0.0, %v3794
      %v3796 = vpop.f32.mrb[0].mxu0
      %3797 = vmatprep.mubr.bf16.mxu0 0
      %3798 = vmatmul.mubr.bf16.gmra.mrb[0].mxu0 %v3621
      %v3799 = vpop.f32.mrb[0].mxu0
      %v3800 = vadd.f32 0.0, %v3799
      %v3801 = vpop.f32.mrb[0].mxu0
      %v3802 = vpop.f32.mrb[0].mxu0
      %v3803 = vadd.f32 0.0, %v3802
      %v3804 = vpop.f32.mrb[0].mxu0
      %3805 = vmatprep.mubr.bf16.mxu0 0
      %3806 = vmatmul.mubr.bf16.gmra.mrb[0].mxu0 %v3622
      %v3807 = vpop.f32.mrb[0].mxu0
      %v3808 = vadd.f32 0.0, %v3807
      %v3809 = vpop.f32.mrb[0].mxu0
      %v3810 = vpop.f32.mrb[0].mxu0
      %v3811 = vadd.f32 0.0, %v3810
      %v3812 = vpop.f32.mrb[0].mxu0
      %3813 = vmatprep.mubr.bf16.mxu0 0
      %3814 = vmatmul.mubr.bf16.gmra.mrb[0].mxu0 %v3623
      %v3815 = vpop.f32.mrb[0].mxu0
      %v3816 = vadd.f32 0.0, %v3815
      %v3817 = vpop.f32.mrb[0].mxu0
      %v3818 = vpop.f32.mrb[0].mxu0
      %v3819 = vadd.f32 0.0, %v3818
      %v3820 = vpop.f32.mrb[0].mxu0
      %3821 = vmatprep.mubr.bf16.mxu0 0
      %3822 = vmatmul.mubr.bf16.gmra.mrb[0].mxu0 %v3624
      %v3823 = vpop.f32.mrb[0].mxu0
      %v3824 = vadd.f32 0.0, %v3823
      %v3825 = vpop.f32.mrb[0].mxu0
      %v3826 = vpop.f32.mrb[0].mxu0
      %v3827 = vadd.f32 0.0, %v3826
      %v3828 = vpop.f32.mrb[0].mxu0
      %3829 = vmatprep.mubr.bf16.mxu0 0
      %3830 = vmatmul.mubr.bf16.gmra.mrb[0].mxu0 %v3625
      %v3831 = vpop.f32.mrb[0].mxu0
      %v3832 = vadd.f32 0.0, %v3831
      %v3833 = vpop.f32.mrb[0].mxu0
      %v3834 = vpop.f32.mrb[0].mxu0
      %v3835 = vadd.f32 0.0, %v3834
      %v3836 = vpop.f32.mrb[0].mxu0
      %3837 = vmatprep.mubr.bf16.mxu0 0
      %3838 = vmatmul.mubr.bf16.gmra.mrb[0].mxu0 %v3626
      %v3839 = vpop.f32.mrb[0].mxu0
      %v3840 = vadd.f32 0.0, %v3839
      %v3841 = vpop.f32.mrb[0].mxu0
      %v3842 = vpop.f32.mrb[0].mxu0
      %v3843 = vadd.f32 0.0, %v3842
      %v3844 = vpop.f32.mrb[0].mxu0
      %3845 = vmatprep.mubr.bf16.mxu0 0
      %3846 = vmatmul.mubr.bf16.gmra.mrb[0].mxu0 %v3627
      %v3847 = vpop.f32.mrb[0].mxu0
      %v3848 = vadd.f32 0.0, %v3847
      %v3849 = vpop.f32.mrb[0].mxu0
      %v3850 = vpop.f32.mrb[0].mxu0
      %v3851 = vadd.f32 0.0, %v3850
      %v3852 = vpop.f32.mrb[0].mxu0
      %3853 = vdwg.mxu0
      %v3854 = vadd.f32 %v3548, %v3728
      %v3855 = vadd.f32 %v3549, %v3731
      %v3856 = vadd.f32 %v3550, %v3736
      %v3857 = vadd.f32 %v3551, %v3739
      %v3858 = vadd.f32 %v3552, %v3744
      %v3859 = vadd.f32 %v3553, %v3747
      %v3860 = vadd.f32 %v3554, %v3752
      %v3861 = vadd.f32 %v3555, %v3755
      %v3862 = vadd.f32 %v3556, %v3760
      %v3863 = vadd.f32 %v3557, %v3763
      %v3864 = vadd.f32 %v3558, %v3768
      %v3865 = vadd.f32 %v3559, %v3771
      %v3866 = vadd.f32 %v3560, %v3776
      %v3867 = vadd.f32 %v3561, %v3779
      %v3868 = vadd.f32 %v3562, %v3784
      %v3869 = vadd.f32 %v3563, %v3787
      %v3870 = vadd.f32 %v3564, %v3792
      %v3871 = vadd.f32 %v3565, %v3795
      %v3872 = vadd.f32 %v3566, %v3800
      %v3873 = vadd.f32 %v3567, %v3803
      %v3874 = vadd.f32 %v3568, %v3808
      %v3875 = vadd.f32 %v3569, %v3811
      %v3876 = vadd.f32 %v3570, %v3816
      %v3877 = vadd.f32 %v3571, %v3819
      %v3878 = vadd.f32 %v3572, %v3824
      %v3879 = vadd.f32 %v3573, %v3827
      %v3880 = vadd.f32 %v3574, %v3832
      %v3881 = vadd.f32 %v3575, %v3835
      %v3882 = vadd.f32 %v3576, %v3840
      %v3883 = vadd.f32 %v3577, %v3843
      %v3884 = vadd.f32 %v3578, %v3848
      %v3885 = vadd.f32 %v3579, %v3851
      %v3886 = vld [vmem:[%s536 + $0x31] sm:$0xff]
      %v3887 = vld [vmem:[%s536 + $0x39] sm:$0xff]
      %v3888 = vld [vmem:[%s536 + $0x41] sm:$0xff]
      %v3889 = vld [vmem:[%s536 + $0x49] sm:$0xff]
      %v3890 = vld [vmem:[%s536 + $0x51] sm:$0xff]
      %v3891 = vld [vmem:[%s536 + $0x59] sm:$0xff]
      %v3892 = vld [vmem:[%s536 + $0x61] sm:$0xff]
      %v3893 = vld [vmem:[%s536 + $0x69] sm:$0xff]
      %v3894 = vld [vmem:[%s536 + $0x71] sm:$0xff]
      %v3895 = vld [vmem:[%s536 + $0x79] sm:$0xff]
      %v3896 = vld [vmem:[%s536 + $0x81] sm:$0xff]
      %v3897 = vld [vmem:[%s536 + $0x89] sm:$0xff]
      %v3898 = vld [vmem:[%s536 + $0x91] sm:$0xff]
      %v3899 = vld [vmem:[%s536 + $0x99] sm:$0xff]
      %v3900 = vld [vmem:[%s536 + $0xa1] sm:$0xff]
      %v3901 = vld [vmem:[%s536 + $0xa9] sm:$0xff]
      %v3902 = vld [vmem:[%s536 + $0xb1] sm:$0xff]
      %v3903 = vld [vmem:[%s536 + $0xb9] sm:$0xff]
      %v3904 = vld [vmem:[%s536 + $0xc1] sm:$0xff]
      %v3905 = vld [vmem:[%s536 + $0xc9] sm:$0xff]
      %v3906 = vld [vmem:[%s536 + $0xd1] sm:$0xff]
      %v3907 = vld [vmem:[%s536 + $0xd9] sm:$0xff]
      %v3908 = vld [vmem:[%s536 + $0xe1] sm:$0xff]
      %v3909 = vld [vmem:[%s536 + $0xe9] sm:$0xff]
      %v3910 = vld [vmem:[%s536 + $0xf1] sm:$0xff]
      %v3911 = vld [vmem:[%s536 + $0xf9] sm:$0xff]
      %v3912 = vld [vmem:[%s536 + $0x101] sm:$0xff]
      %v3913 = vld [vmem:[%s536 + $0x109] sm:$0xff]
      %v3914 = vld [vmem:[%s536 + $0x111] sm:$0xff]
      %v3915 = vld [vmem:[%s536 + $0x119] sm:$0xff]
      %v3916 = vld [vmem:[%s536 + $0x121] sm:$0xff]
      %v3917 = vld [vmem:[%s536 + $0x129] sm:$0xff]
      %v3918 = vpack.c.bf16 %v3887, %v3886
      %v3919 = vpack.c.bf16 %v3889, %v3888
      %v3920 = vpack.c.bf16 %v3891, %v3890
      %v3921 = vpack.c.bf16 %v3893, %v3892
      %v3922 = vpack.c.bf16 %v3895, %v3894
      %v3923 = vpack.c.bf16 %v3897, %v3896
      %v3924 = vpack.c.bf16 %v3899, %v3898
      %v3925 = vpack.c.bf16 %v3901, %v3900
      %v3926 = vpack.c.bf16 %v3903, %v3902
      %v3927 = vpack.c.bf16 %v3905, %v3904
      %v3928 = vpack.c.bf16 %v3907, %v3906
      %v3929 = vpack.c.bf16 %v3909, %v3908
      %v3930 = vpack.c.bf16 %v3911, %v3910
      %v3931 = vpack.c.bf16 %v3913, %v3912
      %v3932 = vpack.c.bf16 %v3915, %v3914
      %v3933 = vpack.c.bf16 %v3917, %v3916
      %v3934 = vsel %vm2018, %v3918, 0
      %v3935 = vsel %vm2019, %v3919, 0
      %v3936 = vsel %vm2020, %v3920, 0
      %v3937 = vsel %vm2021, %v3921, 0
      %v3938 = vsel %vm2022, %v3922, 0
      %v3939 = vsel %vm2023, %v3923, 0
      %v3940 = vsel %vm2024, %v3924, 0
      %v3941 = vsel %vm2025, %v3925, 0
      %v3942 = vsel %vm2026, %v3926, 0
      %v3943 = vsel %vm2027, %v3927, 0
      %v3944 = vsel %vm2028, %v3928, 0
      %v3945 = vsel %vm2029, %v3929, 0
      %v3946 = vsel %vm2030, %v3930, 0
      %v3947 = vsel %vm2031, %v3931, 0
      %v3948 = vsel %vm2032, %v3932, 0
      %v3949 = vsel %vm2033, %v3933, 0
      %s3950 = scalar_lea.vmem %s1, 512
      %v3951 = vld [vmem:[%s3950] sm:$0xf]
      %v3952 = vld [vmem:[%s3950 + $0x4] sm:$0xf]
      %v3953 = vld [vmem:[%s3950 + $0x8] sm:$0xf]
      %v3954 = vld [vmem:[%s3950 + $0xc] sm:$0xf]
      %v3955 = vld [vmem:[%s3950 + $0x10] sm:$0xf]
      %v3956 = vld [vmem:[%s3950 + $0x14] sm:$0xf]
      %v3957 = vld [vmem:[%s3950 + $0x18] sm:$0xf]
      %v3958 = vld [vmem:[%s3950 + $0x1c] sm:$0xf]
      %v3959 = vld [vmem:[%s3950 + $0x20] sm:$0xf]
      %v3960 = vld [vmem:[%s3950 + $0x24] sm:$0xf]
      %v3961 = vld [vmem:[%s3950 + $0x28] sm:$0xf]
      %v3962 = vld [vmem:[%s3950 + $0x2c] sm:$0xf]
      %v3963 = vld [vmem:[%s3950 + $0x30] sm:$0xf]
      %v3964 = vld [vmem:[%s3950 + $0x34] sm:$0xf]
      %v3965 = vld [vmem:[%s3950 + $0x38] sm:$0xf]
      %v3966 = vld [vmem:[%s3950 + $0x3c] sm:$0xf]
      %v3983 = vunpack.c.l.b16 %v3951
      %v3984 = vunpack.c.l.b16 %v3952
      %v3985 = vunpack.c.l.b16 %v3953
      %v3986 = vunpack.c.l.b16 %v3954
      %v3987 = vunpack.c.l.b16 %v3955
      %v3988 = vunpack.c.l.b16 %v3956
      %v3989 = vunpack.c.l.b16 %v3957
      %v3990 = vunpack.c.l.b16 %v3958
      %v3991 = vunpack.c.l.b16 %v3959
      %v3992 = vunpack.c.l.b16 %v3960
      %v3993 = vunpack.c.l.b16 %v3961
      %v3994 = vunpack.c.l.b16 %v3962
      %v3995 = vunpack.c.l.b16 %v3963
      %v3996 = vunpack.c.l.b16 %v3964
      %v3997 = vunpack.c.l.b16 %v3965
      %v3998 = vunpack.c.l.b16 %v3966
      %v3999 = vpack.c.b16 %v3984, %v3983
      %v4000 = vpack.c.b16 %v3986, %v3985
      %v4001 = vpack.c.b16 %v3988, %v3987
      %v4002 = vpack.c.b16 %v3990, %v3989
      %v4003 = vpack.c.b16 %v3992, %v3991
      %v4004 = vpack.c.b16 %v3994, %v3993
      %v4005 = vpack.c.b16 %v3996, %v3995
      %v4006 = vpack.c.b16 %v3998, %v3997
      %4015 = vmatprep.subr.bf16.mxu0 0
      %4016 = vmatpush1.bf16.msra.mxu0 %v3999
      %4017 = vmatprep.subr.bf16.mxu0 0
      %4018 = vmatpush1.bf16.msra.mxu0 %v4000
      %4019 = vmatprep.subr.bf16.mxu0 0
      %4020 = vmatpush1.bf16.msra.mxu0 %v4001
      %4021 = vmatprep.subr.bf16.mxu0 0
      %4022 = vmatpush1.bf16.msra.mxu0 %v4002
      %4023 = vmatprep.subr.bf16.mxu0 0
      %4024 = vmatpush1.bf16.msra.mxu0 %v4003
      %4025 = vmatprep.subr.bf16.mxu0 0
      %4026 = vmatpush1.bf16.msra.mxu0 %v4004
      %4027 = vmatprep.subr.bf16.mxu0 0
      %4028 = vmatpush1.bf16.msra.mxu0 %v4005
      %4029 = vmatprep.subr.bf16.mxu0 0
      %4030 = vmatpush1.bf16.msra.mxu0 %v4006
      %4031 = vmatprep.subr.bf16.mxu0 0
      %4032 = vmatpush1.bf16.msra.mxu0 0
      %4033 = vmatprep.subr.bf16.mxu0 0
      %4034 = vmatpush1.bf16.msra.mxu0 0
      %4035 = vmatprep.subr.bf16.mxu0 0
      %4036 = vmatpush1.bf16.msra.mxu0 0
      %4037 = vmatprep.subr.bf16.mxu0 0
      %4038 = vmatpush1.bf16.msra.mxu0 0
      %4039 = vmatprep.subr.bf16.mxu0 0
      %4040 = vmatpush1.bf16.msra.mxu0 0
      %4041 = vmatprep.subr.bf16.mxu0 0
      %4042 = vmatpush1.bf16.msra.mxu0 0
      %4043 = vmatprep.subr.bf16.mxu0 0
      %4044 = vmatpush1.bf16.msra.mxu0 0
      %4045 = vmatprep.subr.bf16.mxu0 0
      %4046 = vmatpush1.bf16.msra.mxu0 0
      %4047 = vmatprep.mubr.bf16.mxu0 0
      %4048 = vmatmul.mubr.bf16.gmra.mrb[0].mxu0 %v3934
      %v4049 = vpop.f32.mrb[0].mxu0
      %v4050 = vadd.f32 0.0, %v4049
      %v4051 = vpop.f32.mrb[0].mxu0
      %v4052 = vpop.f32.mrb[0].mxu0
      %v4053 = vadd.f32 0.0, %v4052
      %v4054 = vpop.f32.mrb[0].mxu0
      %4055 = vmatprep.mubr.bf16.mxu0 0
      %4056 = vmatmul.mubr.bf16.gmra.mrb[0].mxu0 %v3935
      %v4057 = vpop.f32.mrb[0].mxu0
      %v4058 = vadd.f32 0.0, %v4057
      %v4059 = vpop.f32.mrb[0].mxu0
      %v4060 = vpop.f32.mrb[0].mxu0
      %v4061 = vadd.f32 0.0, %v4060
      %v4062 = vpop.f32.mrb[0].mxu0
      %4063 = vmatprep.mubr.bf16.mxu0 0
      %4064 = vmatmul.mubr.bf16.gmra.mrb[0].mxu0 %v3936
      %v4065 = vpop.f32.mrb[0].mxu0
      %v4066 = vadd.f32 0.0, %v4065
      %v4067 = vpop.f32.mrb[0].mxu0
      %v4068 = vpop.f32.mrb[0].mxu0
      %v4069 = vadd.f32 0.0, %v4068
      %v4070 = vpop.f32.mrb[0].mxu0
      %4071 = vmatprep.mubr.bf16.mxu0 0
      %4072 = vmatmul.mubr.bf16.gmra.mrb[0].mxu0 %v3937
      %v4073 = vpop.f32.mrb[0].mxu0
      %v4074 = vadd.f32 0.0, %v4073
      %v4075 = vpop.f32.mrb[0].mxu0
      %v4076 = vpop.f32.mrb[0].mxu0
      %v4077 = vadd.f32 0.0, %v4076
      %v4078 = vpop.f32.mrb[0].mxu0
      %4079 = vmatprep.mubr.bf16.mxu0 0
      %4080 = vmatmul.mubr.bf16.gmra.mrb[0].mxu0 %v3938
      %v4081 = vpop.f32.mrb[0].mxu0
      %v4082 = vadd.f32 0.0, %v4081
      %v4083 = vpop.f32.mrb[0].mxu0
      %v4084 = vpop.f32.mrb[0].mxu0
      %v4085 = vadd.f32 0.0, %v4084
      %v4086 = vpop.f32.mrb[0].mxu0
      %4087 = vmatprep.mubr.bf16.mxu0 0
      %4088 = vmatmul.mubr.bf16.gmra.mrb[0].mxu0 %v3939
      %v4089 = vpop.f32.mrb[0].mxu0
      %v4090 = vadd.f32 0.0, %v4089
      %v4091 = vpop.f32.mrb[0].mxu0
      %v4092 = vpop.f32.mrb[0].mxu0
      %v4093 = vadd.f32 0.0, %v4092
      %v4094 = vpop.f32.mrb[0].mxu0
      %4095 = vmatprep.mubr.bf16.mxu0 0
      %4096 = vmatmul.mubr.bf16.gmra.mrb[0].mxu0 %v3940
      %v4097 = vpop.f32.mrb[0].mxu0
      %v4098 = vadd.f32 0.0, %v4097
      %v4099 = vpop.f32.mrb[0].mxu0
      %v4100 = vpop.f32.mrb[0].mxu0
      %v4101 = vadd.f32 0.0, %v4100
      %v4102 = vpop.f32.mrb[0].mxu0
      %4103 = vmatprep.mubr.bf16.mxu0 0
      %4104 = vmatmul.mubr.bf16.gmra.mrb[0].mxu0 %v3941
      %v4105 = vpop.f32.mrb[0].mxu0
      %v4106 = vadd.f32 0.0, %v4105
      %v4107 = vpop.f32.mrb[0].mxu0
      %v4108 = vpop.f32.mrb[0].mxu0
      %v4109 = vadd.f32 0.0, %v4108
      %v4110 = vpop.f32.mrb[0].mxu0
      %4111 = vmatprep.mubr.bf16.mxu0 0
      %4112 = vmatmul.mubr.bf16.gmra.mrb[0].mxu0 %v3942
      %v4113 = vpop.f32.mrb[0].mxu0
      %v4114 = vadd.f32 0.0, %v4113
      %v4115 = vpop.f32.mrb[0].mxu0
      %v4116 = vpop.f32.mrb[0].mxu0
      %v4117 = vadd.f32 0.0, %v4116
      %v4118 = vpop.f32.mrb[0].mxu0
      %4119 = vmatprep.mubr.bf16.mxu0 0
      %4120 = vmatmul.mubr.bf16.gmra.mrb[0].mxu0 %v3943
      %v4121 = vpop.f32.mrb[0].mxu0
      %v4122 = vadd.f32 0.0, %v4121
      %v4123 = vpop.f32.mrb[0].mxu0
      %v4124 = vpop.f32.mrb[0].mxu0
      %v4125 = vadd.f32 0.0, %v4124
      %v4126 = vpop.f32.mrb[0].mxu0
      %4127 = vmatprep.mubr.bf16.mxu0 0
      %4128 = vmatmul.mubr.bf16.gmra.mrb[0].mxu0 %v3944
      %v4129 = vpop.f32.mrb[0].mxu0
      %v4130 = vadd.f32 0.0, %v4129
      %v4131 = vpop.f32.mrb[0].mxu0
      %v4132 = vpop.f32.mrb[0].mxu0
      %v4133 = vadd.f32 0.0, %v4132
      %v4134 = vpop.f32.mrb[0].mxu0
      %4135 = vmatprep.mubr.bf16.mxu0 0
      %4136 = vmatmul.mubr.bf16.gmra.mrb[0].mxu0 %v3945
      %v4137 = vpop.f32.mrb[0].mxu0
      %v4138 = vadd.f32 0.0, %v4137
      %v4139 = vpop.f32.mrb[0].mxu0
      %v4140 = vpop.f32.mrb[0].mxu0
      %v4141 = vadd.f32 0.0, %v4140
      %v4142 = vpop.f32.mrb[0].mxu0
      %4143 = vmatprep.mubr.bf16.mxu0 0
      %4144 = vmatmul.mubr.bf16.gmra.mrb[0].mxu0 %v3946
      %v4145 = vpop.f32.mrb[0].mxu0
      %v4146 = vadd.f32 0.0, %v4145
      %v4147 = vpop.f32.mrb[0].mxu0
      %v4148 = vpop.f32.mrb[0].mxu0
      %v4149 = vadd.f32 0.0, %v4148
      %v4150 = vpop.f32.mrb[0].mxu0
      %4151 = vmatprep.mubr.bf16.mxu0 0
      %4152 = vmatmul.mubr.bf16.gmra.mrb[0].mxu0 %v3947
      %v4153 = vpop.f32.mrb[0].mxu0
      %v4154 = vadd.f32 0.0, %v4153
      %v4155 = vpop.f32.mrb[0].mxu0
      %v4156 = vpop.f32.mrb[0].mxu0
      %v4157 = vadd.f32 0.0, %v4156
      %v4158 = vpop.f32.mrb[0].mxu0
      %4159 = vmatprep.mubr.bf16.mxu0 0
      %4160 = vmatmul.mubr.bf16.gmra.mrb[0].mxu0 %v3948
      %v4161 = vpop.f32.mrb[0].mxu0
      %v4162 = vadd.f32 0.0, %v4161
      %v4163 = vpop.f32.mrb[0].mxu0
      %v4164 = vpop.f32.mrb[0].mxu0
      %v4165 = vadd.f32 0.0, %v4164
      %v4166 = vpop.f32.mrb[0].mxu0
      %4167 = vmatprep.mubr.bf16.mxu0 0
      %4168 = vmatmul.mubr.bf16.gmra.mrb[0].mxu0 %v3949
      %v4169 = vpop.f32.mrb[0].mxu0
      %v4170 = vadd.f32 0.0, %v4169
      %v4171 = vpop.f32.mrb[0].mxu0
      %v4172 = vpop.f32.mrb[0].mxu0
      %v4173 = vadd.f32 0.0, %v4172
      %v4174 = vpop.f32.mrb[0].mxu0
      %4175 = vdwg.mxu0
      %v4176 = vadd.f32 %v3854, %v4050
      %v4177 = vadd.f32 %v3855, %v4053
      %v4178 = vadd.f32 %v3856, %v4058
      %v4179 = vadd.f32 %v3857, %v4061
      %v4180 = vadd.f32 %v3858, %v4066
      %v4181 = vadd.f32 %v3859, %v4069
      %v4182 = vadd.f32 %v3860, %v4074
      %v4183 = vadd.f32 %v3861, %v4077
      %v4184 = vadd.f32 %v3862, %v4082
      %v4185 = vadd.f32 %v3863, %v4085
      %v4186 = vadd.f32 %v3864, %v4090
      %v4187 = vadd.f32 %v3865, %v4093
      %v4188 = vadd.f32 %v3866, %v4098
      %v4189 = vadd.f32 %v3867, %v4101
      %v4190 = vadd.f32 %v3868, %v4106
      %v4191 = vadd.f32 %v3869, %v4109
      %v4192 = vadd.f32 %v3870, %v4114
      %v4193 = vadd.f32 %v3871, %v4117
      %v4194 = vadd.f32 %v3872, %v4122
      %v4195 = vadd.f32 %v3873, %v4125
      %v4196 = vadd.f32 %v3874, %v4130
      %v4197 = vadd.f32 %v3875, %v4133
      %v4198 = vadd.f32 %v3876, %v4138
      %v4199 = vadd.f32 %v3877, %v4141
      %v4200 = vadd.f32 %v3878, %v4146
      %v4201 = vadd.f32 %v3879, %v4149
      %v4202 = vadd.f32 %v3880, %v4154
      %v4203 = vadd.f32 %v3881, %v4157
      %v4204 = vadd.f32 %v3882, %v4162
      %v4205 = vadd.f32 %v3883, %v4165
      %v4206 = vadd.f32 %v3884, %v4170
      %v4207 = vadd.f32 %v3885, %v4173
      %v4208 = vld [vmem:[%s2] sm:$0x1]
      %v4210 = vlaneseq
      %v4211 = vshrl.u32 %v4210, 7
      %v4212 = vsub.s32 0, %v4211
      %v4213 = vrot.slane %v4208, %v4212
      %v4215 = vadd.f32 %v4176, %v4213
      %v4216 = vadd.f32 %v4177, %v4213
      %v4217 = vadd.f32 %v4178, %v4213
      %v4218 = vadd.f32 %v4179, %v4213
      %v4219 = vadd.f32 %v4180, %v4213
      %v4220 = vadd.f32 %v4181, %v4213
      %v4221 = vadd.f32 %v4182, %v4213
      %v4222 = vadd.f32 %v4183, %v4213
      %v4223 = vadd.f32 %v4184, %v4213
      %v4224 = vadd.f32 %v4185, %v4213
      %v4225 = vadd.f32 %v4186, %v4213
      %v4226 = vadd.f32 %v4187, %v4213
      %v4227 = vadd.f32 %v4188, %v4213
      %v4228 = vadd.f32 %v4189, %v4213
      %v4229 = vadd.f32 %v4190, %v4213
      %v4230 = vadd.f32 %v4191, %v4213
      %v4231 = vadd.f32 %v4192, %v4213
      %v4232 = vadd.f32 %v4193, %v4213
      %v4233 = vadd.f32 %v4194, %v4213
      %v4234 = vadd.f32 %v4195, %v4213
      %v4235 = vadd.f32 %v4196, %v4213
      %v4236 = vadd.f32 %v4197, %v4213
      %v4237 = vadd.f32 %v4198, %v4213
      %v4238 = vadd.f32 %v4199, %v4213
      %v4239 = vadd.f32 %v4200, %v4213
      %v4240 = vadd.f32 %v4201, %v4213
      %v4241 = vadd.f32 %v4202, %v4213
      %v4242 = vadd.f32 %v4203, %v4213
      %v4243 = vadd.f32 %v4204, %v4213
      %v4244 = vadd.f32 %v4205, %v4213
      %v4245 = vadd.f32 %v4206, %v4213
      %v4246 = vadd.f32 %v4207, %v4213
      %v4247 = vmax.f32 %v4215, 0.0
      %v4248 = vmax.f32 %v4216, 0.0
      %v4249 = vmax.f32 %v4217, 0.0
      %v4250 = vmax.f32 %v4218, 0.0
      %v4251 = vmax.f32 %v4219, 0.0
      %v4252 = vmax.f32 %v4220, 0.0
      %v4253 = vmax.f32 %v4221, 0.0
      %v4254 = vmax.f32 %v4222, 0.0
      %v4255 = vmax.f32 %v4223, 0.0
      %v4256 = vmax.f32 %v4224, 0.0
      %v4257 = vmax.f32 %v4225, 0.0
      %v4258 = vmax.f32 %v4226, 0.0
      %v4259 = vmax.f32 %v4227, 0.0
      %v4260 = vmax.f32 %v4228, 0.0
      %v4261 = vmax.f32 %v4229, 0.0
      %v4262 = vmax.f32 %v4230, 0.0
      %v4263 = vmax.f32 %v4231, 0.0
      %v4264 = vmax.f32 %v4232, 0.0
      %v4265 = vmax.f32 %v4233, 0.0
      %v4266 = vmax.f32 %v4234, 0.0
      %v4267 = vmax.f32 %v4235, 0.0
      %v4268 = vmax.f32 %v4236, 0.0
      %v4269 = vmax.f32 %v4237, 0.0
      %v4270 = vmax.f32 %v4238, 0.0
      %v4271 = vmax.f32 %v4239, 0.0
      %v4272 = vmax.f32 %v4240, 0.0
      %v4273 = vmax.f32 %v4241, 0.0
      %v4274 = vmax.f32 %v4242, 0.0
      %v4275 = vmax.f32 %v4243, 0.0
      %v4276 = vmax.f32 %v4244, 0.0
      %v4277 = vmax.f32 %v4245, 0.0
      %v4278 = vmax.f32 %v4246, 0.0
      %v4279 = vpack.c.bf16 %v4248, %v4247
      %v4280 = vpack.c.bf16 %v4250, %v4249
      %v4281 = vpack.c.bf16 %v4252, %v4251
      %v4282 = vpack.c.bf16 %v4254, %v4253
      %v4283 = vpack.c.bf16 %v4256, %v4255
      %v4284 = vpack.c.bf16 %v4258, %v4257
      %v4285 = vpack.c.bf16 %v4260, %v4259
      %v4286 = vpack.c.bf16 %v4262, %v4261
      %v4287 = vpack.c.bf16 %v4264, %v4263
      %v4288 = vpack.c.bf16 %v4266, %v4265
      %v4289 = vpack.c.bf16 %v4268, %v4267
      %v4290 = vpack.c.bf16 %v4270, %v4269
      %v4291 = vpack.c.bf16 %v4272, %v4271
      %v4292 = vpack.c.bf16 %v4274, %v4273
      %v4293 = vpack.c.bf16 %v4276, %v4275
      %v4294 = vpack.c.bf16 %v4278, %v4277
      %v4311 = vunpack.c.l.b16 %v4279
      %v4312 = vunpack.c.h.b16 %v4279
      %v4313 = vunpack.c.l.b16 %v4280
      %v4314 = vunpack.c.h.b16 %v4280
      %v4315 = vunpack.c.l.b16 %v4281
      %v4316 = vunpack.c.h.b16 %v4281
      %v4317 = vunpack.c.l.b16 %v4282
      %v4318 = vunpack.c.h.b16 %v4282
      %v4319 = vunpack.c.l.b16 %v4283
      %v4320 = vunpack.c.h.b16 %v4283
      %v4321 = vunpack.c.l.b16 %v4284
      %v4322 = vunpack.c.h.b16 %v4284
      %v4323 = vunpack.c.l.b16 %v4285
      %v4324 = vunpack.c.h.b16 %v4285
      %v4325 = vunpack.c.l.b16 %v4286
      %v4326 = vunpack.c.h.b16 %v4286
      %v4327 = vunpack.c.l.b16 %v4287
      %v4328 = vunpack.c.h.b16 %v4287
      %v4329 = vunpack.c.l.b16 %v4288
      %v4330 = vunpack.c.h.b16 %v4288
      %v4331 = vunpack.c.l.b16 %v4289
      %v4332 = vunpack.c.h.b16 %v4289
      %v4333 = vunpack.c.l.b16 %v4290
      %v4334 = vunpack.c.h.b16 %v4290
      %v4335 = vunpack.c.l.b16 %v4291
      %v4336 = vunpack.c.h.b16 %v4291
      %v4337 = vunpack.c.l.b16 %v4292
      %v4338 = vunpack.c.h.b16 %v4292
      %v4339 = vunpack.c.l.b16 %v4293
      %v4340 = vunpack.c.h.b16 %v4293
      %v4341 = vunpack.c.l.b16 %v4294
      %v4342 = vunpack.c.h.b16 %v4294
      %v4343 = vpack.c.b16 %v4311, %v4311
      %v4344 = vpack.c.b16 %v4312, %v4312
      %v4345 = vpack.c.b16 %v4313, %v4313
      %v4346 = vpack.c.b16 %v4314, %v4314
      %v4347 = vpack.c.b16 %v4315, %v4315
      %v4348 = vpack.c.b16 %v4316, %v4316
      %v4349 = vpack.c.b16 %v4317, %v4317
      %v4350 = vpack.c.b16 %v4318, %v4318
      %v4351 = vpack.c.b16 %v4319, %v4319
      %v4352 = vpack.c.b16 %v4320, %v4320
      %v4353 = vpack.c.b16 %v4321, %v4321
      %v4354 = vpack.c.b16 %v4322, %v4322
      %v4355 = vpack.c.b16 %v4323, %v4323
      %v4356 = vpack.c.b16 %v4324, %v4324
      %v4357 = vpack.c.b16 %v4325, %v4325
      %v4358 = vpack.c.b16 %v4326, %v4326
      %v4359 = vpack.c.b16 %v4327, %v4327
      %v4360 = vpack.c.b16 %v4328, %v4328
      %v4361 = vpack.c.b16 %v4329, %v4329
      %v4362 = vpack.c.b16 %v4330, %v4330
      %v4363 = vpack.c.b16 %v4331, %v4331
      %v4364 = vpack.c.b16 %v4332, %v4332
      %v4365 = vpack.c.b16 %v4333, %v4333
      %v4366 = vpack.c.b16 %v4334, %v4334
      %v4367 = vpack.c.b16 %v4335, %v4335
      %v4368 = vpack.c.b16 %v4336, %v4336
      %v4369 = vpack.c.b16 %v4337, %v4337
      %v4370 = vpack.c.b16 %v4338, %v4338
      %v4371 = vpack.c.b16 %v4339, %v4339
      %v4372 = vpack.c.b16 %v4340, %v4340
      %v4373 = vpack.c.b16 %v4341, %v4341
      %v4374 = vpack.c.b16 %v4342, %v4342
      %4407 = vst [vmem:[%s546] sm:$0xf] %v4343
      %4408 = vst [vmem:[%s546 + $0x4] sm:$0xf] %v4344
      %4409 = vst [vmem:[%s546 + $0x8] sm:$0xf] %v4345
      %4410 = vst [vmem:[%s546 + $0xc] sm:$0xf] %v4346
      %4411 = vst [vmem:[%s546 + $0x10] sm:$0xf] %v4347
      %4412 = vst [vmem:[%s546 + $0x14] sm:$0xf] %v4348
      %4413 = vst [vmem:[%s546 + $0x18] sm:$0xf] %v4349
      %4414 = vst [vmem:[%s546 + $0x1c] sm:$0xf] %v4350
      %4415 = vst [vmem:[%s546 + $0x20] sm:$0xf] %v4351
      %4416 = vst [vmem:[%s546 + $0x24] sm:$0xf] %v4352
      %4417 = vst [vmem:[%s546 + $0x28] sm:$0xf] %v4353
      %4418 = vst [vmem:[%s546 + $0x2c] sm:$0xf] %v4354
      %4419 = vst [vmem:[%s546 + $0x30] sm:$0xf] %v4355
      %4420 = vst [vmem:[%s546 + $0x34] sm:$0xf] %v4356
      %4421 = vst [vmem:[%s546 + $0x38] sm:$0xf] %v4357
      %4422 = vst [vmem:[%s546 + $0x3c] sm:$0xf] %v4358
      %4423 = vst [vmem:[%s546 + $0x40] sm:$0xf] %v4359
      %4424 = vst [vmem:[%s546 + $0x44] sm:$0xf] %v4360
      %4425 = vst [vmem:[%s546 + $0x48] sm:$0xf] %v4361
      %4426 = vst [vmem:[%s546 + $0x4c] sm:$0xf] %v4362
      %4427 = vst [vmem:[%s546 + $0x50] sm:$0xf] %v4363
      %4428 = vst [vmem:[%s546 + $0x54] sm:$0xf] %v4364
      %4429 = vst [vmem:[%s546 + $0x58] sm:$0xf] %v4365
      %4430 = vst [vmem:[%s546 + $0x5c] sm:$0xf] %v4366
      %4431 = vst [vmem:[%s546 + $0x60] sm:$0xf] %v4367
      %4432 = vst [vmem:[%s546 + $0x64] sm:$0xf] %v4368
      %4433 = vst [vmem:[%s546 + $0x68] sm:$0xf] %v4369
      %4434 = vst [vmem:[%s546 + $0x6c] sm:$0xf] %v4370
      %4435 = vst [vmem:[%s546 + $0x70] sm:$0xf] %v4371
      %4436 = vst [vmem:[%s546 + $0x74] sm:$0xf] %v4372
      %4437 = vst [vmem:[%s546 + $0x78] sm:$0xf] %v4373
      %4438 = vst [vmem:[%s546 + $0x7c] sm:$0xf] %v4374
      %v4439 = vld [vmem:[%s536 + $0x20] sm:$0xff]
      %v4440 = vld [vmem:[%s536 + $0x28] sm:$0xff]
      %v4441 = vld [vmem:[%s536 + $0x30] sm:$0xff]
      %v4442 = vld [vmem:[%s536 + $0x38] sm:$0xff]
      %v4443 = vld [vmem:[%s536 + $0x40] sm:$0xff]
      %v4444 = vld [vmem:[%s536 + $0x48] sm:$0xff]
      %v4445 = vld [vmem:[%s536 + $0x50] sm:$0xff]
      %v4446 = vld [vmem:[%s536 + $0x58] sm:$0xff]
      %v4447 = vld [vmem:[%s536 + $0x60] sm:$0xff]
      %v4448 = vld [vmem:[%s536 + $0x68] sm:$0xff]
      %v4449 = vld [vmem:[%s536 + $0x70] sm:$0xff]
      %v4450 = vld [vmem:[%s536 + $0x78] sm:$0xff]
      %v4451 = vld [vmem:[%s536 + $0x80] sm:$0xff]
      %v4452 = vld [vmem:[%s536 + $0x88] sm:$0xff]
      %v4453 = vld [vmem:[%s536 + $0x90] sm:$0xff]
      %v4454 = vld [vmem:[%s536 + $0x98] sm:$0xff]
      %v4455 = vld [vmem:[%s536 + $0xa0] sm:$0xff]
      %v4456 = vld [vmem:[%s536 + $0xa8] sm:$0xff]
      %v4457 = vld [vmem:[%s536 + $0xb0] sm:$0xff]
      %v4458 = vld [vmem:[%s536 + $0xb8] sm:$0xff]
      %v4459 = vld [vmem:[%s536 + $0xc0] sm:$0xff]
      %v4460 = vld [vmem:[%s536 + $0xc8] sm:$0xff]
      %v4461 = vld [vmem:[%s536 + $0xd0] sm:$0xff]
      %v4462 = vld [vmem:[%s536 + $0xd8] sm:$0xff]
      %v4463 = vld [vmem:[%s536 + $0xe0] sm:$0xff]
      %v4464 = vld [vmem:[%s536 + $0xe8] sm:$0xff]
      %v4465 = vld [vmem:[%s536 + $0xf0] sm:$0xff]
      %v4466 = vld [vmem:[%s536 + $0xf8] sm:$0xff]
      %v4467 = vld [vmem:[%s536 + $0x100] sm:$0xff]
      %v4468 = vld [vmem:[%s536 + $0x108] sm:$0xff]
      %v4469 = vld [vmem:[%s536 + $0x110] sm:$0xff]
      %v4470 = vld [vmem:[%s536 + $0x118] sm:$0xff]
      %v4471 = vpack.c.bf16 %v4440, %v4439
      %v4472 = vpack.c.bf16 %v4442, %v4441
      %v4473 = vpack.c.bf16 %v4444, %v4443
      %v4474 = vpack.c.bf16 %v4446, %v4445
      %v4475 = vpack.c.bf16 %v4448, %v4447
      %v4476 = vpack.c.bf16 %v4450, %v4449
      %v4477 = vpack.c.bf16 %v4452, %v4451
      %v4478 = vpack.c.bf16 %v4454, %v4453
      %v4479 = vpack.c.bf16 %v4456, %v4455
      %v4480 = vpack.c.bf16 %v4458, %v4457
      %v4481 = vpack.c.bf16 %v4460, %v4459
      %v4482 = vpack.c.bf16 %v4462, %v4461
      %v4483 = vpack.c.bf16 %v4464, %v4463
      %v4484 = vpack.c.bf16 %v4466, %v4465
      %v4485 = vpack.c.bf16 %v4468, %v4467
      %v4486 = vpack.c.bf16 %v4470, %v4469
      %v4487 = vld [vmem:[%s3] sm:$0xf]
      %v4488 = vld [vmem:[%s3 + $0x4] sm:$0xf]
      %v4489 = vld [vmem:[%s3 + $0x8] sm:$0xf]
      %v4490 = vld [vmem:[%s3 + $0xc] sm:$0xf]
      %v4491 = vld [vmem:[%s3 + $0x10] sm:$0xf]
      %v4492 = vld [vmem:[%s3 + $0x14] sm:$0xf]
      %v4493 = vld [vmem:[%s3 + $0x18] sm:$0xf]
      %v4494 = vld [vmem:[%s3 + $0x1c] sm:$0xf]
      %v4495 = vld [vmem:[%s3 + $0x20] sm:$0xf]
      %v4496 = vld [vmem:[%s3 + $0x24] sm:$0xf]
      %v4497 = vld [vmem:[%s3 + $0x28] sm:$0xf]
      %v4498 = vld [vmem:[%s3 + $0x2c] sm:$0xf]
      %v4499 = vld [vmem:[%s3 + $0x30] sm:$0xf]
      %v4500 = vld [vmem:[%s3 + $0x34] sm:$0xf]
      %v4501 = vld [vmem:[%s3 + $0x38] sm:$0xf]
      %v4502 = vld [vmem:[%s3 + $0x3c] sm:$0xf]
      %v4503 = vld [vmem:[%s4] sm:$0x1]
      %v4505 = vlaneseq
      %v4506 = vshrl.u32 %v4505, 7
      %v4507 = vsub.s32 0, %v4506
      %v4508 = vrot.slane %v4503, %v4507
      %v4526 = vunpack.c.l.b16 %v4487
      %v4527 = vunpack.c.l.b16 %v4488
      %v4528 = vunpack.c.l.b16 %v4489
      %v4529 = vunpack.c.l.b16 %v4490
      %v4530 = vunpack.c.l.b16 %v4491
      %v4531 = vunpack.c.l.b16 %v4492
      %v4532 = vunpack.c.l.b16 %v4493
      %v4533 = vunpack.c.l.b16 %v4494
      %v4534 = vunpack.c.l.b16 %v4495
      %v4535 = vunpack.c.l.b16 %v4496
      %v4536 = vunpack.c.l.b16 %v4497
      %v4537 = vunpack.c.l.b16 %v4498
      %v4538 = vunpack.c.l.b16 %v4499
      %v4539 = vunpack.c.l.b16 %v4500
      %v4540 = vunpack.c.l.b16 %v4501
      %v4541 = vunpack.c.l.b16 %v4502
      %v4542 = vpack.c.b16 %v4527, %v4526
      %v4543 = vpack.c.b16 %v4529, %v4528
      %v4544 = vpack.c.b16 %v4531, %v4530
      %v4545 = vpack.c.b16 %v4533, %v4532
      %v4546 = vpack.c.b16 %v4535, %v4534
      %v4547 = vpack.c.b16 %v4537, %v4536
      %v4548 = vpack.c.b16 %v4539, %v4538
      %v4549 = vpack.c.b16 %v4541, %v4540
      %4558 = vmatprep.subr.bf16.mxu0 0
      %4559 = vmatpush1.bf16.msra.mxu0 %v4542
      %4560 = vmatprep.subr.bf16.mxu0 0
      %4561 = vmatpush1.bf16.msra.mxu0 %v4543
      %4562 = vmatprep.subr.bf16.mxu0 0
      %4563 = vmatpush1.bf16.msra.mxu0 %v4544
      %4564 = vmatprep.subr.bf16.mxu0 0
      %4565 = vmatpush1.bf16.msra.mxu0 %v4545
      %4566 = vmatprep.subr.bf16.mxu0 0
      %4567 = vmatpush1.bf16.msra.mxu0 %v4546
      %4568 = vmatprep.subr.bf16.mxu0 0
      %4569 = vmatpush1.bf16.msra.mxu0 %v4547
      %4570 = vmatprep.subr.bf16.mxu0 0
      %4571 = vmatpush1.bf16.msra.mxu0 %v4548
      %4572 = vmatprep.subr.bf16.mxu0 0
      %4573 = vmatpush1.bf16.msra.mxu0 %v4549
      %4574 = vmatprep.subr.bf16.mxu0 0
      %4575 = vmatpush1.bf16.msra.mxu0 0
      %4576 = vmatprep.subr.bf16.mxu0 0
      %4577 = vmatpush1.bf16.msra.mxu0 0
      %4578 = vmatprep.subr.bf16.mxu0 0
      %4579 = vmatpush1.bf16.msra.mxu0 0
      %4580 = vmatprep.subr.bf16.mxu0 0
      %4581 = vmatpush1.bf16.msra.mxu0 0
      %4582 = vmatprep.subr.bf16.mxu0 0
      %4583 = vmatpush1.bf16.msra.mxu0 0
      %4584 = vmatprep.subr.bf16.mxu0 0
      %4585 = vmatpush1.bf16.msra.mxu0 0
      %4586 = vmatprep.subr.bf16.mxu0 0
      %4587 = vmatpush1.bf16.msra.mxu0 0
      %4588 = vmatprep.subr.bf16.mxu0 0
      %4589 = vmatpush1.bf16.msra.mxu0 0
      %4590 = vmatprep.mubr.bf16.mxu0 0
      %4591 = vmatmul.mubr.bf16.gmra.mrb[0].mxu0 %v4471
      %v4592 = vpop.f32.mrb[0].mxu0
      %v4593 = vadd.f32 %v4508, %v4592
      %v4594 = vpop.f32.mrb[0].mxu0
      %v4595 = vpop.f32.mrb[0].mxu0
      %v4596 = vadd.f32 %v4508, %v4595
      %v4597 = vpop.f32.mrb[0].mxu0
      %4598 = vmatprep.mubr.bf16.mxu0 0
      %4599 = vmatmul.mubr.bf16.gmra.mrb[0].mxu0 %v4472
      %v4600 = vpop.f32.mrb[0].mxu0
      %v4601 = vadd.f32 %v4508, %v4600
      %v4602 = vpop.f32.mrb[0].mxu0
      %v4603 = vpop.f32.mrb[0].mxu0
      %v4604 = vadd.f32 %v4508, %v4603
      %v4605 = vpop.f32.mrb[0].mxu0
      %4606 = vmatprep.mubr.bf16.mxu0 0
      %4607 = vmatmul.mubr.bf16.gmra.mrb[0].mxu0 %v4473
      %v4608 = vpop.f32.mrb[0].mxu0
      %v4609 = vadd.f32 %v4508, %v4608
      %v4610 = vpop.f32.mrb[0].mxu0
      %v4611 = vpop.f32.mrb[0].mxu0
      %v4612 = vadd.f32 %v4508, %v4611
      %v4613 = vpop.f32.mrb[0].mxu0
      %4614 = vmatprep.mubr.bf16.mxu0 0
      %4615 = vmatmul.mubr.bf16.gmra.mrb[0].mxu0 %v4474
      %v4616 = vpop.f32.mrb[0].mxu0
      %v4617 = vadd.f32 %v4508, %v4616
      %v4618 = vpop.f32.mrb[0].mxu0
      %v4619 = vpop.f32.mrb[0].mxu0
      %v4620 = vadd.f32 %v4508, %v4619
      %v4621 = vpop.f32.mrb[0].mxu0
      %4622 = vmatprep.mubr.bf16.mxu0 0
      %4623 = vmatmul.mubr.bf16.gmra.mrb[0].mxu0 %v4475
      %v4624 = vpop.f32.mrb[0].mxu0
      %v4625 = vadd.f32 %v4508, %v4624
      %v4626 = vpop.f32.mrb[0].mxu0
      %v4627 = vpop.f32.mrb[0].mxu0
      %v4628 = vadd.f32 %v4508, %v4627
      %v4629 = vpop.f32.mrb[0].mxu0
      %4630 = vmatprep.mubr.bf16.mxu0 0
      %4631 = vmatmul.mubr.bf16.gmra.mrb[0].mxu0 %v4476
      %v4632 = vpop.f32.mrb[0].mxu0
      %v4633 = vadd.f32 %v4508, %v4632
      %v4634 = vpop.f32.mrb[0].mxu0
      %v4635 = vpop.f32.mrb[0].mxu0
      %v4636 = vadd.f32 %v4508, %v4635
      %v4637 = vpop.f32.mrb[0].mxu0
      %4638 = vmatprep.mubr.bf16.mxu0 0
      %4639 = vmatmul.mubr.bf16.gmra.mrb[0].mxu0 %v4477
      %v4640 = vpop.f32.mrb[0].mxu0
      %v4641 = vadd.f32 %v4508, %v4640
      %v4642 = vpop.f32.mrb[0].mxu0
      %v4643 = vpop.f32.mrb[0].mxu0
      %v4644 = vadd.f32 %v4508, %v4643
      %v4645 = vpop.f32.mrb[0].mxu0
      %4646 = vmatprep.mubr.bf16.mxu0 0
      %4647 = vmatmul.mubr.bf16.gmra.mrb[0].mxu0 %v4478
      %v4648 = vpop.f32.mrb[0].mxu0
      %v4649 = vadd.f32 %v4508, %v4648
      %v4650 = vpop.f32.mrb[0].mxu0
      %v4651 = vpop.f32.mrb[0].mxu0
      %v4652 = vadd.f32 %v4508, %v4651
      %v4653 = vpop.f32.mrb[0].mxu0
      %4654 = vmatprep.mubr.bf16.mxu0 0
      %4655 = vmatmul.mubr.bf16.gmra.mrb[0].mxu0 %v4479
      %v4656 = vpop.f32.mrb[0].mxu0
      %v4657 = vadd.f32 %v4508, %v4656
      %v4658 = vpop.f32.mrb[0].mxu0
      %v4659 = vpop.f32.mrb[0].mxu0
      %v4660 = vadd.f32 %v4508, %v4659
      %v4661 = vpop.f32.mrb[0].mxu0
      %4662 = vmatprep.mubr.bf16.mxu0 0
      %4663 = vmatmul.mubr.bf16.gmra.mrb[0].mxu0 %v4480
      %v4664 = vpop.f32.mrb[0].mxu0
      %v4665 = vadd.f32 %v4508, %v4664
      %v4666 = vpop.f32.mrb[0].mxu0
      %v4667 = vpop.f32.mrb[0].mxu0
      %v4668 = vadd.f32 %v4508, %v4667
      %v4669 = vpop.f32.mrb[0].mxu0
      %4670 = vmatprep.mubr.bf16.mxu0 0
      %4671 = vmatmul.mubr.bf16.gmra.mrb[0].mxu0 %v4481
      %v4672 = vpop.f32.mrb[0].mxu0
      %v4673 = vadd.f32 %v4508, %v4672
      %v4674 = vpop.f32.mrb[0].mxu0
      %v4675 = vpop.f32.mrb[0].mxu0
      %v4676 = vadd.f32 %v4508, %v4675
      %v4677 = vpop.f32.mrb[0].mxu0
      %4678 = vmatprep.mubr.bf16.mxu0 0
      %4679 = vmatmul.mubr.bf16.gmra.mrb[0].mxu0 %v4482
      %v4680 = vpop.f32.mrb[0].mxu0
      %v4681 = vadd.f32 %v4508, %v4680
      %v4682 = vpop.f32.mrb[0].mxu0
      %v4683 = vpop.f32.mrb[0].mxu0
      %v4684 = vadd.f32 %v4508, %v4683
      %v4685 = vpop.f32.mrb[0].mxu0
      %4686 = vmatprep.mubr.bf16.mxu0 0
      %4687 = vmatmul.mubr.bf16.gmra.mrb[0].mxu0 %v4483
      %v4688 = vpop.f32.mrb[0].mxu0
      %v4689 = vadd.f32 %v4508, %v4688
      %v4690 = vpop.f32.mrb[0].mxu0
      %v4691 = vpop.f32.mrb[0].mxu0
      %v4692 = vadd.f32 %v4508, %v4691
      %v4693 = vpop.f32.mrb[0].mxu0
      %4694 = vmatprep.mubr.bf16.mxu0 0
      %4695 = vmatmul.mubr.bf16.gmra.mrb[0].mxu0 %v4484
      %v4696 = vpop.f32.mrb[0].mxu0
      %v4697 = vadd.f32 %v4508, %v4696
      %v4698 = vpop.f32.mrb[0].mxu0
      %v4699 = vpop.f32.mrb[0].mxu0
      %v4700 = vadd.f32 %v4508, %v4699
      %v4701 = vpop.f32.mrb[0].mxu0
      %4702 = vmatprep.mubr.bf16.mxu0 0
      %4703 = vmatmul.mubr.bf16.gmra.mrb[0].mxu0 %v4485
      %v4704 = vpop.f32.mrb[0].mxu0
      %v4705 = vadd.f32 %v4508, %v4704
      %v4706 = vpop.f32.mrb[0].mxu0
      %v4707 = vpop.f32.mrb[0].mxu0
      %v4708 = vadd.f32 %v4508, %v4707
      %v4709 = vpop.f32.mrb[0].mxu0
      %4710 = vmatprep.mubr.bf16.mxu0 0
      %4711 = vmatmul.mubr.bf16.gmra.mrb[0].mxu0 %v4486
      %v4712 = vpop.f32.mrb[0].mxu0
      %v4713 = vadd.f32 %v4508, %v4712
      %v4714 = vpop.f32.mrb[0].mxu0
      %v4715 = vpop.f32.mrb[0].mxu0
      %v4716 = vadd.f32 %v4508, %v4715
      %v4717 = vpop.f32.mrb[0].mxu0
      %4718 = vdwg.mxu0
      %v4719 = vmax.f32 %v4593, 0.0
      %v4720 = vmax.f32 %v4596, 0.0
      %v4721 = vmax.f32 %v4601, 0.0
      %v4722 = vmax.f32 %v4604, 0.0
      %v4723 = vmax.f32 %v4609, 0.0
      %v4724 = vmax.f32 %v4612, 0.0
      %v4725 = vmax.f32 %v4617, 0.0
      %v4726 = vmax.f32 %v4620, 0.0
      %v4727 = vmax.f32 %v4625, 0.0
      %v4728 = vmax.f32 %v4628, 0.0
      %v4729 = vmax.f32 %v4633, 0.0
      %v4730 = vmax.f32 %v4636, 0.0
      %v4731 = vmax.f32 %v4641, 0.0
      %v4732 = vmax.f32 %v4644, 0.0
      %v4733 = vmax.f32 %v4649, 0.0
      %v4734 = vmax.f32 %v4652, 0.0
      %v4735 = vmax.f32 %v4657, 0.0
      %v4736 = vmax.f32 %v4660, 0.0
      %v4737 = vmax.f32 %v4665, 0.0
      %v4738 = vmax.f32 %v4668, 0.0
      %v4739 = vmax.f32 %v4673, 0.0
      %v4740 = vmax.f32 %v4676, 0.0
      %v4741 = vmax.f32 %v4681, 0.0
      %v4742 = vmax.f32 %v4684, 0.0
      %v4743 = vmax.f32 %v4689, 0.0
      %v4744 = vmax.f32 %v4692, 0.0
      %v4745 = vmax.f32 %v4697, 0.0
      %v4746 = vmax.f32 %v4700, 0.0
      %v4747 = vmax.f32 %v4705, 0.0
      %v4748 = vmax.f32 %v4708, 0.0
      %v4749 = vmax.f32 %v4713, 0.0
      %v4750 = vmax.f32 %v4716, 0.0
      %v4751 = vpack.c.bf16 %v4720, %v4719
      %v4752 = vpack.c.bf16 %v4722, %v4721
      %v4753 = vpack.c.bf16 %v4724, %v4723
      %v4754 = vpack.c.bf16 %v4726, %v4725
      %v4755 = vpack.c.bf16 %v4728, %v4727
      %v4756 = vpack.c.bf16 %v4730, %v4729
      %v4757 = vpack.c.bf16 %v4732, %v4731
      %v4758 = vpack.c.bf16 %v4734, %v4733
      %v4759 = vpack.c.bf16 %v4736, %v4735
      %v4760 = vpack.c.bf16 %v4738, %v4737
      %v4761 = vpack.c.bf16 %v4740, %v4739
      %v4762 = vpack.c.bf16 %v4742, %v4741
      %v4763 = vpack.c.bf16 %v4744, %v4743
      %v4764 = vpack.c.bf16 %v4746, %v4745
      %v4765 = vpack.c.bf16 %v4748, %v4747
      %v4766 = vpack.c.bf16 %v4750, %v4749
      %v4767 = vld [vmem:[%s5] sm:$0xf]
      %v4768 = vld [vmem:[%s5 + $0x4] sm:$0xf]
      %v4769 = vld [vmem:[%s5 + $0x8] sm:$0xf]
      %v4770 = vld [vmem:[%s5 + $0xc] sm:$0xf]
      %v4771 = vld [vmem:[%s5 + $0x10] sm:$0xf]
      %v4772 = vld [vmem:[%s5 + $0x14] sm:$0xf]
      %v4773 = vld [vmem:[%s5 + $0x18] sm:$0xf]
      %v4774 = vld [vmem:[%s5 + $0x1c] sm:$0xf]
      %v4775 = vld [vmem:[%s5 + $0x20] sm:$0xf]
      %v4776 = vld [vmem:[%s5 + $0x24] sm:$0xf]
      %v4777 = vld [vmem:[%s5 + $0x28] sm:$0xf]
      %v4778 = vld [vmem:[%s5 + $0x2c] sm:$0xf]
      %v4779 = vld [vmem:[%s5 + $0x30] sm:$0xf]
      %v4780 = vld [vmem:[%s5 + $0x34] sm:$0xf]
      %v4781 = vld [vmem:[%s5 + $0x38] sm:$0xf]
      %v4782 = vld [vmem:[%s5 + $0x3c] sm:$0xf]
      %v4783 = vld [vmem:[%s6] sm:$0x1]
      %v4785 = vlaneseq
      %v4786 = vshrl.u32 %v4785, 7
      %v4787 = vsub.s32 0, %v4786
      %v4788 = vrot.slane %v4783, %v4787
      %v4806 = vunpack.c.l.b16 %v4767
      %v4807 = vunpack.c.l.b16 %v4768
      %v4808 = vunpack.c.l.b16 %v4769
      %v4809 = vunpack.c.l.b16 %v4770
      %v4810 = vunpack.c.l.b16 %v4771
      %v4811 = vunpack.c.l.b16 %v4772
      %v4812 = vunpack.c.l.b16 %v4773
      %v4813 = vunpack.c.l.b16 %v4774
      %v4814 = vunpack.c.l.b16 %v4775
      %v4815 = vunpack.c.l.b16 %v4776
      %v4816 = vunpack.c.l.b16 %v4777
      %v4817 = vunpack.c.l.b16 %v4778
      %v4818 = vunpack.c.l.b16 %v4779
      %v4819 = vunpack.c.l.b16 %v4780
      %v4820 = vunpack.c.l.b16 %v4781
      %v4821 = vunpack.c.l.b16 %v4782
      %v4822 = vpack.c.b16 %v4807, %v4806
      %v4823 = vpack.c.b16 %v4809, %v4808
      %v4824 = vpack.c.b16 %v4811, %v4810
      %v4825 = vpack.c.b16 %v4813, %v4812
      %v4826 = vpack.c.b16 %v4815, %v4814
      %v4827 = vpack.c.b16 %v4817, %v4816
      %v4828 = vpack.c.b16 %v4819, %v4818
      %v4829 = vpack.c.b16 %v4821, %v4820
      %4838 = vmatprep.subr.bf16.mxu0 0
      %4839 = vmatpush1.bf16.msra.mxu0 %v4822
      %4840 = vmatprep.subr.bf16.mxu0 0
      %4841 = vmatpush1.bf16.msra.mxu0 %v4823
      %4842 = vmatprep.subr.bf16.mxu0 0
      %4843 = vmatpush1.bf16.msra.mxu0 %v4824
      %4844 = vmatprep.subr.bf16.mxu0 0
      %4845 = vmatpush1.bf16.msra.mxu0 %v4825
      %4846 = vmatprep.subr.bf16.mxu0 0
      %4847 = vmatpush1.bf16.msra.mxu0 %v4826
      %4848 = vmatprep.subr.bf16.mxu0 0
      %4849 = vmatpush1.bf16.msra.mxu0 %v4827
      %4850 = vmatprep.subr.bf16.mxu0 0
      %4851 = vmatpush1.bf16.msra.mxu0 %v4828
      %4852 = vmatprep.subr.bf16.mxu0 0
      %4853 = vmatpush1.bf16.msra.mxu0 %v4829
      %4854 = vmatprep.subr.bf16.mxu0 0
      %4855 = vmatpush1.bf16.msra.mxu0 0
      %4856 = vmatprep.subr.bf16.mxu0 0
      %4857 = vmatpush1.bf16.msra.mxu0 0
      %4858 = vmatprep.subr.bf16.mxu0 0
      %4859 = vmatpush1.bf16.msra.mxu0 0
      %4860 = vmatprep.subr.bf16.mxu0 0
      %4861 = vmatpush1.bf16.msra.mxu0 0
      %4862 = vmatprep.subr.bf16.mxu0 0
      %4863 = vmatpush1.bf16.msra.mxu0 0
      %4864 = vmatprep.subr.bf16.mxu0 0
      %4865 = vmatpush1.bf16.msra.mxu0 0
      %4866 = vmatprep.subr.bf16.mxu0 0
      %4867 = vmatpush1.bf16.msra.mxu0 0
      %4868 = vmatprep.subr.bf16.mxu0 0
      %4869 = vmatpush1.bf16.msra.mxu0 0
      %4870 = vmatprep.mubr.bf16.mxu0 0
      %4871 = vmatmul.mubr.bf16.gmra.mrb[0].mxu0 %v4751
      %v4872 = vpop.f32.mrb[0].mxu0
      %v4873 = vadd.f32 %v4788, %v4872
      %v4874 = vpop.f32.mrb[0].mxu0
      %v4875 = vpop.f32.mrb[0].mxu0
      %v4876 = vadd.f32 %v4788, %v4875
      %v4877 = vpop.f32.mrb[0].mxu0
      %4878 = vmatprep.mubr.bf16.mxu0 0
      %4879 = vmatmul.mubr.bf16.gmra.mrb[0].mxu0 %v4752
      %v4880 = vpop.f32.mrb[0].mxu0
      %v4881 = vadd.f32 %v4788, %v4880
      %v4882 = vpop.f32.mrb[0].mxu0
      %v4883 = vpop.f32.mrb[0].mxu0
      %v4884 = vadd.f32 %v4788, %v4883
      %v4885 = vpop.f32.mrb[0].mxu0
      %4886 = vmatprep.mubr.bf16.mxu0 0
      %4887 = vmatmul.mubr.bf16.gmra.mrb[0].mxu0 %v4753
      %v4888 = vpop.f32.mrb[0].mxu0
      %v4889 = vadd.f32 %v4788, %v4888
      %v4890 = vpop.f32.mrb[0].mxu0
      %v4891 = vpop.f32.mrb[0].mxu0
      %v4892 = vadd.f32 %v4788, %v4891
      %v4893 = vpop.f32.mrb[0].mxu0
      %4894 = vmatprep.mubr.bf16.mxu0 0
      %4895 = vmatmul.mubr.bf16.gmra.mrb[0].mxu0 %v4754
      %v4896 = vpop.f32.mrb[0].mxu0
      %v4897 = vadd.f32 %v4788, %v4896
      %v4898 = vpop.f32.mrb[0].mxu0
      %v4899 = vpop.f32.mrb[0].mxu0
      %v4900 = vadd.f32 %v4788, %v4899
      %v4901 = vpop.f32.mrb[0].mxu0
      %4902 = vmatprep.mubr.bf16.mxu0 0
      %4903 = vmatmul.mubr.bf16.gmra.mrb[0].mxu0 %v4755
      %v4904 = vpop.f32.mrb[0].mxu0
      %v4905 = vadd.f32 %v4788, %v4904
      %v4906 = vpop.f32.mrb[0].mxu0
      %v4907 = vpop.f32.mrb[0].mxu0
      %v4908 = vadd.f32 %v4788, %v4907
      %v4909 = vpop.f32.mrb[0].mxu0
      %4910 = vmatprep.mubr.bf16.mxu0 0
      %4911 = vmatmul.mubr.bf16.gmra.mrb[0].mxu0 %v4756
      %v4912 = vpop.f32.mrb[0].mxu0
      %v4913 = vadd.f32 %v4788, %v4912
      %v4914 = vpop.f32.mrb[0].mxu0
      %v4915 = vpop.f32.mrb[0].mxu0
      %v4916 = vadd.f32 %v4788, %v4915
      %v4917 = vpop.f32.mrb[0].mxu0
      %4918 = vmatprep.mubr.bf16.mxu0 0
      %4919 = vmatmul.mubr.bf16.gmra.mrb[0].mxu0 %v4757
      %v4920 = vpop.f32.mrb[0].mxu0
      %v4921 = vadd.f32 %v4788, %v4920
      %v4922 = vpop.f32.mrb[0].mxu0
      %v4923 = vpop.f32.mrb[0].mxu0
      %v4924 = vadd.f32 %v4788, %v4923
      %v4925 = vpop.f32.mrb[0].mxu0
      %4926 = vmatprep.mubr.bf16.mxu0 0
      %4927 = vmatmul.mubr.bf16.gmra.mrb[0].mxu0 %v4758
      %v4928 = vpop.f32.mrb[0].mxu0
      %v4929 = vadd.f32 %v4788, %v4928
      %v4930 = vpop.f32.mrb[0].mxu0
      %v4931 = vpop.f32.mrb[0].mxu0
      %v4932 = vadd.f32 %v4788, %v4931
      %v4933 = vpop.f32.mrb[0].mxu0
      %4934 = vmatprep.mubr.bf16.mxu0 0
      %4935 = vmatmul.mubr.bf16.gmra.mrb[0].mxu0 %v4759
      %v4936 = vpop.f32.mrb[0].mxu0
      %v4937 = vadd.f32 %v4788, %v4936
      %v4938 = vpop.f32.mrb[0].mxu0
      %v4939 = vpop.f32.mrb[0].mxu0
      %v4940 = vadd.f32 %v4788, %v4939
      %v4941 = vpop.f32.mrb[0].mxu0
      %4942 = vmatprep.mubr.bf16.mxu0 0
      %4943 = vmatmul.mubr.bf16.gmra.mrb[0].mxu0 %v4760
      %v4944 = vpop.f32.mrb[0].mxu0
      %v4945 = vadd.f32 %v4788, %v4944
      %v4946 = vpop.f32.mrb[0].mxu0
      %v4947 = vpop.f32.mrb[0].mxu0
      %v4948 = vadd.f32 %v4788, %v4947
      %v4949 = vpop.f32.mrb[0].mxu0
      %4950 = vmatprep.mubr.bf16.mxu0 0
      %4951 = vmatmul.mubr.bf16.gmra.mrb[0].mxu0 %v4761
      %v4952 = vpop.f32.mrb[0].mxu0
      %v4953 = vadd.f32 %v4788, %v4952
      %v4954 = vpop.f32.mrb[0].mxu0
      %v4955 = vpop.f32.mrb[0].mxu0
      %v4956 = vadd.f32 %v4788, %v4955
      %v4957 = vpop.f32.mrb[0].mxu0
      %4958 = vmatprep.mubr.bf16.mxu0 0
      %4959 = vmatmul.mubr.bf16.gmra.mrb[0].mxu0 %v4762
      %v4960 = vpop.f32.mrb[0].mxu0
      %v4961 = vadd.f32 %v4788, %v4960
      %v4962 = vpop.f32.mrb[0].mxu0
      %v4963 = vpop.f32.mrb[0].mxu0
      %v4964 = vadd.f32 %v4788, %v4963
      %v4965 = vpop.f32.mrb[0].mxu0
      %4966 = vmatprep.mubr.bf16.mxu0 0
      %4967 = vmatmul.mubr.bf16.gmra.mrb[0].mxu0 %v4763
      %v4968 = vpop.f32.mrb[0].mxu0
      %v4969 = vadd.f32 %v4788, %v4968
      %v4970 = vpop.f32.mrb[0].mxu0
      %v4971 = vpop.f32.mrb[0].mxu0
      %v4972 = vadd.f32 %v4788, %v4971
      %v4973 = vpop.f32.mrb[0].mxu0
      %4974 = vmatprep.mubr.bf16.mxu0 0
      %4975 = vmatmul.mubr.bf16.gmra.mrb[0].mxu0 %v4764
      %v4976 = vpop.f32.mrb[0].mxu0
      %v4977 = vadd.f32 %v4788, %v4976
      %v4978 = vpop.f32.mrb[0].mxu0
      %v4979 = vpop.f32.mrb[0].mxu0
      %v4980 = vadd.f32 %v4788, %v4979
      %v4981 = vpop.f32.mrb[0].mxu0
      %4982 = vmatprep.mubr.bf16.mxu0 0
      %4983 = vmatmul.mubr.bf16.gmra.mrb[0].mxu0 %v4765
      %v4984 = vpop.f32.mrb[0].mxu0
      %v4985 = vadd.f32 %v4788, %v4984
      %v4986 = vpop.f32.mrb[0].mxu0
      %v4987 = vpop.f32.mrb[0].mxu0
      %v4988 = vadd.f32 %v4788, %v4987
      %v4989 = vpop.f32.mrb[0].mxu0
      %4990 = vmatprep.mubr.bf16.mxu0 0
      %4991 = vmatmul.mubr.bf16.gmra.mrb[0].mxu0 %v4766
      %v4992 = vpop.f32.mrb[0].mxu0
      %v4993 = vadd.f32 %v4788, %v4992
      %v4994 = vpop.f32.mrb[0].mxu0
      %v4995 = vpop.f32.mrb[0].mxu0
      %v4996 = vadd.f32 %v4788, %v4995
      %v4997 = vpop.f32.mrb[0].mxu0
      %4998 = vdwg.mxu0
      %vm4999 = vcmask 31744
      %5000 = vst.msk [vmem:[%s541] sm:$0xff] %vm4999, %v4873
      %5001 = vst.msk [vmem:[%s541 + $0x8] sm:$0xff] %vm4999, %v4876
      %5002 = vst.msk [vmem:[%s541 + $0x10] sm:$0xff] %vm4999, %v4881
      %5003 = vst.msk [vmem:[%s541 + $0x18] sm:$0xff] %vm4999, %v4884
      %5004 = vst.msk [vmem:[%s541 + $0x20] sm:$0xff] %vm4999, %v4889
      %5005 = vst.msk [vmem:[%s541 + $0x28] sm:$0xff] %vm4999, %v4892
      %5006 = vst.msk [vmem:[%s541 + $0x30] sm:$0xff] %vm4999, %v4897
      %5007 = vst.msk [vmem:[%s541 + $0x38] sm:$0xff] %vm4999, %v4900
      %5008 = vst.msk [vmem:[%s541 + $0x40] sm:$0xff] %vm4999, %v4905
      %5009 = vst.msk [vmem:[%s541 + $0x48] sm:$0xff] %vm4999, %v4908
      %5010 = vst.msk [vmem:[%s541 + $0x50] sm:$0xff] %vm4999, %v4913
      %5011 = vst.msk [vmem:[%s541 + $0x58] sm:$0xff] %vm4999, %v4916
      %5012 = vst.msk [vmem:[%s541 + $0x60] sm:$0xff] %vm4999, %v4921
      %5013 = vst.msk [vmem:[%s541 + $0x68] sm:$0xff] %vm4999, %v4924
      %5014 = vst.msk [vmem:[%s541 + $0x70] sm:$0xff] %vm4999, %v4929
      %5015 = vst.msk [vmem:[%s541 + $0x78] sm:$0xff] %vm4999, %v4932
      %5016 = vst.msk [vmem:[%s541 + $0x80] sm:$0xff] %vm4999, %v4937
      %5017 = vst.msk [vmem:[%s541 + $0x88] sm:$0xff] %vm4999, %v4940
      %5018 = vst.msk [vmem:[%s541 + $0x90] sm:$0xff] %vm4999, %v4945
      %5019 = vst.msk [vmem:[%s541 + $0x98] sm:$0xff] %vm4999, %v4948
      %5020 = vst.msk [vmem:[%s541 + $0xa0] sm:$0xff] %vm4999, %v4953
      %5021 = vst.msk [vmem:[%s541 + $0xa8] sm:$0xff] %vm4999, %v4956
      %5022 = vst.msk [vmem:[%s541 + $0xb0] sm:$0xff] %vm4999, %v4961
      %5023 = vst.msk [vmem:[%s541 + $0xb8] sm:$0xff] %vm4999, %v4964
      %5024 = vst.msk [vmem:[%s541 + $0xc0] sm:$0xff] %vm4999, %v4969
      %5025 = vst.msk [vmem:[%s541 + $0xc8] sm:$0xff] %vm4999, %v4972
      %5026 = vst.msk [vmem:[%s541 + $0xd0] sm:$0xff] %vm4999, %v4977
      %5027 = vst.msk [vmem:[%s541 + $0xd8] sm:$0xff] %vm4999, %v4980
      %5028 = vst.msk [vmem:[%s541 + $0xe0] sm:$0xff] %vm4999, %v4985
      %5029 = vst.msk [vmem:[%s541 + $0xe8] sm:$0xff] %vm4999, %v4988
      %5030 = vst.msk [vmem:[%s541 + $0xf0] sm:$0xff] %vm4999, %v4993
      %5031 = vst.msk [vmem:[%s541 + $0xf8] sm:$0xff] %vm4999, %v4996
      %v5032 = vsel %vm4999, %v4873, -inf
      %v5033 = vsel %vm4999, %v4876, -inf
      %v5034 = vsel %vm4999, %v4881, -inf
      %v5035 = vsel %vm4999, %v4884, -inf
      %v5036 = vsel %vm4999, %v4889, -inf
      %v5037 = vmax.f32 %v5032, %v5036
      %v5038 = vsel %vm4999, %v4892, -inf
      %v5039 = vmax.f32 %v5033, %v5038
      %v5040 = vsel %vm4999, %v4897, -inf
      %v5041 = vmax.f32 %v5034, %v5040
      %v5042 = vsel %vm4999, %v4900, -inf
      %v5043 = vmax.f32 %v5035, %v5042
      %v5044 = vsel %vm4999, %v4905, -inf
      %v5045 = vmax.f32 %v5037, %v5044
      %v5046 = vsel %vm4999, %v4908, -inf
      %v5047 = vmax.f32 %v5039, %v5046
      %v5048 = vsel %vm4999, %v4913, -inf
      %v5049 = vmax.f32 %v5041, %v5048
      %v5050 = vsel %vm4999, %v4916, -inf
      %v5051 = vmax.f32 %v5043, %v5050
      %v5052 = vsel %vm4999, %v4921, -inf
      %v5053 = vmax.f32 %v5045, %v5052
      %v5054 = vsel %vm4999, %v4924, -inf
      %v5055 = vmax.f32 %v5047, %v5054
      %v5056 = vsel %vm4999, %v4929, -inf
      %v5057 = vmax.f32 %v5049, %v5056
      %v5058 = vsel %vm4999, %v4932, -inf
      %v5059 = vmax.f32 %v5051, %v5058
      %v5060 = vsel %vm4999, %v4937, -inf
      %v5061 = vmax.f32 %v5053, %v5060
      %v5062 = vsel %vm4999, %v4940, -inf
      %v5063 = vmax.f32 %v5055, %v5062
      %v5064 = vsel %vm4999, %v4945, -inf
      %v5065 = vmax.f32 %v5057, %v5064
      %v5066 = vsel %vm4999, %v4948, -inf
      %v5067 = vmax.f32 %v5059, %v5066
      %v5068 = vsel %vm4999, %v4953, -inf
      %v5069 = vmax.f32 %v5061, %v5068
      %v5070 = vsel %vm4999, %v4956, -inf
      %v5071 = vmax.f32 %v5063, %v5070
      %v5072 = vsel %vm4999, %v4961, -inf
      %v5073 = vmax.f32 %v5065, %v5072
      %v5074 = vsel %vm4999, %v4964, -inf
      %v5075 = vmax.f32 %v5067, %v5074
      %v5076 = vsel %vm4999, %v4969, -inf
      %v5077 = vmax.f32 %v5069, %v5076
      %v5078 = vsel %vm4999, %v4972, -inf
      %v5079 = vmax.f32 %v5071, %v5078
      %v5080 = vsel %vm4999, %v4977, -inf
      %v5081 = vmax.f32 %v5073, %v5080
      %v5082 = vsel %vm4999, %v4980, -inf
      %v5083 = vmax.f32 %v5075, %v5082
      %v5084 = vsel %vm4999, %v4985, -inf
      %v5085 = vmax.f32 %v5077, %v5084
      %v5086 = vsel %vm4999, %v4988, -inf
      %v5087 = vmax.f32 %v5079, %v5086
      %v5088 = vsel %vm4999, %v4993, -inf
      %v5089 = vmax.f32 %v5081, %v5088
      %v5090 = vsel %vm4999, %v4996, -inf
      %v5091 = vmax.f32 %v5083, %v5090
      %v5092 = vmax.f32 %v5085, %v5087
      %v5093 = vmax.f32 %v5089, %v5091
      %v5094 = vmax.f32 %v5092, %v5093
      %v5095 = vrot.slane %v5094, 4
      %v5096 = vmax.f32 %v5094, %v5095
      %v5097 = vrot.slane %v5096, 2
      %v5098 = vmax.f32 %v5096, %v5097
      %v5099 = vrot.slane %v5098, 1
      %v5100 = vmax.f32 %v5098, %v5099
      %v5101 = vsub.f32 %v4873, %v5100
      %v5102 = vsub.f32 %v4876, %v5100
      %v5103 = vsub.f32 %v4881, %v5100
      %v5104 = vsub.f32 %v4884, %v5100
      %v5105 = vsub.f32 %v4889, %v5100
      %v5106 = vsub.f32 %v4892, %v5100
      %v5107 = vsub.f32 %v4897, %v5100
      %v5108 = vsub.f32 %v4900, %v5100
      %v5109 = vsub.f32 %v4905, %v5100
      %v5110 = vsub.f32 %v4908, %v5100
      %v5111 = vsub.f32 %v4913, %v5100
      %v5112 = vsub.f32 %v4916, %v5100
      %v5113 = vsub.f32 %v4921, %v5100
      %v5114 = vsub.f32 %v4924, %v5100
      %v5115 = vsub.f32 %v4929, %v5100
      %v5116 = vsub.f32 %v4932, %v5100
      %v5117 = vsub.f32 %v4937, %v5100
      %v5118 = vsub.f32 %v4940, %v5100
      %v5119 = vsub.f32 %v4945, %v5100
      %v5120 = vsub.f32 %v4948, %v5100
      %v5121 = vsub.f32 %v4953, %v5100
      %v5122 = vsub.f32 %v4956, %v5100
      %v5123 = vsub.f32 %v4961, %v5100
      %v5124 = vsub.f32 %v4964, %v5100
      %v5125 = vsub.f32 %v4969, %v5100
      %v5126 = vsub.f32 %v4972, %v5100
      %v5127 = vsub.f32 %v4977, %v5100
      %v5128 = vsub.f32 %v4980, %v5100
      %v5129 = vsub.f32 %v4985, %v5100
      %v5130 = vsub.f32 %v4988, %v5100
      %v5131 = vsub.f32 %v4993, %v5100
      %v5132 = vsub.f32 %v4996, %v5100
      %v5133 = vmul.f32 %v5101, 1.442695
      %v5134 = vpow.pop %v5133
      %v5135 = vmul.f32 %v5102, 1.442695
      %v5136 = vpow.pop %v5135
      %v5137 = vmul.f32 %v5103, 1.442695
      %v5138 = vpow.pop %v5137
      %v5139 = vmul.f32 %v5104, 1.442695
      %v5140 = vpow.pop %v5139
      %v5141 = vmul.f32 %v5105, 1.442695
      %v5142 = vpow.pop %v5141
      %v5143 = vmul.f32 %v5106, 1.442695
      %v5144 = vpow.pop %v5143
      %v5145 = vmul.f32 %v5107, 1.442695
      %v5146 = vpow.pop %v5145
      %v5147 = vmul.f32 %v5108, 1.442695
      %v5148 = vpow.pop %v5147
      %v5149 = vmul.f32 %v5109, 1.442695
      %v5150 = vpow.pop %v5149
      %v5151 = vmul.f32 %v5110, 1.442695
      %v5152 = vpow.pop %v5151
      %v5153 = vmul.f32 %v5111, 1.442695
      %v5154 = vpow.pop %v5153
      %v5155 = vmul.f32 %v5112, 1.442695
      %v5156 = vpow.pop %v5155
      %v5157 = vmul.f32 %v5113, 1.442695
      %v5158 = vpow.pop %v5157
      %v5159 = vmul.f32 %v5114, 1.442695
      %v5160 = vpow.pop %v5159
      %v5161 = vmul.f32 %v5115, 1.442695
      %v5162 = vpow.pop %v5161
      %v5163 = vmul.f32 %v5116, 1.442695
      %v5164 = vpow.pop %v5163
      %v5165 = vmul.f32 %v5117, 1.442695
      %v5166 = vpow.pop %v5165
      %v5167 = vmul.f32 %v5118, 1.442695
      %v5168 = vpow.pop %v5167
      %v5169 = vmul.f32 %v5119, 1.442695
      %v5170 = vpow.pop %v5169
      %v5171 = vmul.f32 %v5120, 1.442695
      %v5172 = vpow.pop %v5171
      %v5173 = vmul.f32 %v5121, 1.442695
      %v5174 = vpow.pop %v5173
      %v5175 = vmul.f32 %v5122, 1.442695
      %v5176 = vpow.pop %v5175
      %v5177 = vmul.f32 %v5123, 1.442695
      %v5178 = vpow.pop %v5177
      %v5179 = vmul.f32 %v5124, 1.442695
      %v5180 = vpow.pop %v5179
      %v5181 = vmul.f32 %v5125, 1.442695
      %v5182 = vpow.pop %v5181
      %v5183 = vmul.f32 %v5126, 1.442695
      %v5184 = vpow.pop %v5183
      %v5185 = vmul.f32 %v5127, 1.442695
      %v5186 = vpow.pop %v5185
      %v5187 = vmul.f32 %v5128, 1.442695
      %v5188 = vpow.pop %v5187
      %v5189 = vmul.f32 %v5129, 1.442695
      %v5190 = vpow.pop %v5189
      %v5191 = vmul.f32 %v5130, 1.442695
      %v5192 = vpow.pop %v5191
      %v5193 = vmul.f32 %v5131, 1.442695
      %v5194 = vpow.pop %v5193
      %v5195 = vmul.f32 %v5132, 1.442695
      %v5196 = vpow.pop %v5195
      %v5197 = vsel %vm4999, %v5134, 0.0
      %v5198 = vsel %vm4999, %v5136, 0.0
      %v5199 = vadd.f32 %v5197, %v5198
      %v5200 = vsel %vm4999, %v5138, 0.0
      %v5201 = vadd.f32 %v5199, %v5200
      %v5202 = vsel %vm4999, %v5140, 0.0
      %v5203 = vadd.f32 %v5201, %v5202
      %v5204 = vsel %vm4999, %v5142, 0.0
      %v5205 = vadd.f32 %v5203, %v5204
      %v5206 = vsel %vm4999, %v5144, 0.0
      %v5207 = vadd.f32 %v5205, %v5206
      %v5208 = vsel %vm4999, %v5146, 0.0
      %v5209 = vadd.f32 %v5207, %v5208
      %v5210 = vsel %vm4999, %v5148, 0.0
      %v5211 = vadd.f32 %v5209, %v5210
      %v5212 = vsel %vm4999, %v5150, 0.0
      %v5213 = vadd.f32 %v5211, %v5212
      %v5214 = vsel %vm4999, %v5152, 0.0
      %v5215 = vadd.f32 %v5213, %v5214
      %v5216 = vsel %vm4999, %v5154, 0.0
      %v5217 = vadd.f32 %v5215, %v5216
      %v5218 = vsel %vm4999, %v5156, 0.0
      %v5219 = vadd.f32 %v5217, %v5218
      %v5220 = vsel %vm4999, %v5158, 0.0
      %v5221 = vadd.f32 %v5219, %v5220
      %v5222 = vsel %vm4999, %v5160, 0.0
      %v5223 = vadd.f32 %v5221, %v5222
      %v5224 = vsel %vm4999, %v5162, 0.0
      %v5225 = vadd.f32 %v5223, %v5224
      %v5226 = vsel %vm4999, %v5164, 0.0
      %v5227 = vadd.f32 %v5225, %v5226
      %v5228 = vsel %vm4999, %v5166, 0.0
      %v5229 = vadd.f32 %v5227, %v5228
      %v5230 = vsel %vm4999, %v5168, 0.0
      %v5231 = vadd.f32 %v5229, %v5230
      %v5232 = vsel %vm4999, %v5170, 0.0
      %v5233 = vadd.f32 %v5231, %v5232
      %v5234 = vsel %vm4999, %v5172, 0.0
      %v5235 = vadd.f32 %v5233, %v5234
      %v5236 = vsel %vm4999, %v5174, 0.0
      %v5237 = vadd.f32 %v5235, %v5236
      %v5238 = vsel %vm4999, %v5176, 0.0
      %v5239 = vadd.f32 %v5237, %v5238
      %v5240 = vsel %vm4999, %v5178, 0.0
      %v5241 = vadd.f32 %v5239, %v5240
      %v5242 = vsel %vm4999, %v5180, 0.0
      %v5243 = vadd.f32 %v5241, %v5242
      %v5244 = vsel %vm4999, %v5182, 0.0
      %v5245 = vadd.f32 %v5243, %v5244
      %v5246 = vsel %vm4999, %v5184, 0.0
      %v5247 = vadd.f32 %v5245, %v5246
      %v5248 = vsel %vm4999, %v5186, 0.0
      %v5249 = vadd.f32 %v5247, %v5248
      %v5250 = vsel %vm4999, %v5188, 0.0
      %v5251 = vadd.f32 %v5249, %v5250
      %v5252 = vsel %vm4999, %v5190, 0.0
      %v5253 = vadd.f32 %v5251, %v5252
      %v5254 = vsel %vm4999, %v5192, 0.0
      %v5255 = vadd.f32 %v5253, %v5254
      %v5256 = vsel %vm4999, %v5194, 0.0
      %v5257 = vadd.f32 %v5255, %v5256
      %v5258 = vsel %vm4999, %v5196, 0.0
      %v5259 = vadd.f32 %v5257, %v5258
      %v5260 = vrot.slane %v5259, 4
      %v5261 = vadd.f32 %v5259, %v5260
      %v5262 = vrot.slane %v5261, 2
      %v5263 = vadd.f32 %v5261, %v5262
      %v5264 = vrot.slane %v5263, 1
      %v5265 = vadd.f32 %v5263, %v5264
      %v5266 = vrcp.pop %v5265
      %v5267 = vmul.f32 %v5134, %v5266
      %v5268 = vmul.f32 %v5136, %v5266
      %v5269 = vmul.f32 %v5138, %v5266
      %v5270 = vmul.f32 %v5140, %v5266
      %v5271 = vmul.f32 %v5142, %v5266
      %v5272 = vmul.f32 %v5144, %v5266
      %v5273 = vmul.f32 %v5146, %v5266
      %v5274 = vmul.f32 %v5148, %v5266
      %v5275 = vmul.f32 %v5150, %v5266
      %v5276 = vmul.f32 %v5152, %v5266
      %v5277 = vmul.f32 %v5154, %v5266
      %v5278 = vmul.f32 %v5156, %v5266
      %v5279 = vmul.f32 %v5158, %v5266
      %v5280 = vmul.f32 %v5160, %v5266
      %v5281 = vmul.f32 %v5162, %v5266
      %v5282 = vmul.f32 %v5164, %v5266
      %v5283 = vmul.f32 %v5166, %v5266
      %v5284 = vmul.f32 %v5168, %v5266
      %v5285 = vmul.f32 %v5170, %v5266
      %v5286 = vmul.f32 %v5172, %v5266
      %v5287 = vmul.f32 %v5174, %v5266
      %v5288 = vmul.f32 %v5176, %v5266
      %v5289 = vmul.f32 %v5178, %v5266
      %v5290 = vmul.f32 %v5180, %v5266
      %v5291 = vmul.f32 %v5182, %v5266
      %v5292 = vmul.f32 %v5184, %v5266
      %v5293 = vmul.f32 %v5186, %v5266
      %v5294 = vmul.f32 %v5188, %v5266
      %v5295 = vmul.f32 %v5190, %v5266
      %v5296 = vmul.f32 %v5192, %v5266
      %v5297 = vmul.f32 %v5194, %v5266
      %v5298 = vmul.f32 %v5196, %v5266
      %5300 = vset.pattern.permute.xlu0 0
      %5301 = vperm.xlu0 %5300, %v5267
      %v5302 = vpop.permute.xlu0 %5301
      %5305 = vset.pattern.permute.xlu0 0
      %5306 = vperm.xlu0 %5305, %v5268
      %v5307 = vpop.permute.xlu0 %5306
      %5310 = vset.pattern.permute.xlu0 0
      %5311 = vperm.xlu0 %5310, %v5269
      %v5312 = vpop.permute.xlu0 %5311
      %5315 = vset.pattern.permute.xlu0 0
      %5316 = vperm.xlu0 %5315, %v5270
      %v5317 = vpop.permute.xlu0 %5316
      %5320 = vset.pattern.permute.xlu0 0
      %5321 = vperm.xlu0 %5320, %v5271
      %v5322 = vpop.permute.xlu0 %5321
      %5325 = vset.pattern.permute.xlu0 0
      %5326 = vperm.xlu0 %5325, %v5272
      %v5327 = vpop.permute.xlu0 %5326
      %5330 = vset.pattern.permute.xlu0 0
      %5331 = vperm.xlu0 %5330, %v5273
      %v5332 = vpop.permute.xlu0 %5331
      %5335 = vset.pattern.permute.xlu0 0
      %5336 = vperm.xlu0 %5335, %v5274
      %v5337 = vpop.permute.xlu0 %5336
      %5340 = vset.pattern.permute.xlu0 0
      %5341 = vperm.xlu0 %5340, %v5275
      %v5342 = vpop.permute.xlu0 %5341
      %5345 = vset.pattern.permute.xlu0 0
      %5346 = vperm.xlu0 %5345, %v5276
      %v5347 = vpop.permute.xlu0 %5346
      %5350 = vset.pattern.permute.xlu0 0
      %5351 = vperm.xlu0 %5350, %v5277
      %v5352 = vpop.permute.xlu0 %5351
      %5355 = vset.pattern.permute.xlu0 0
      %5356 = vperm.xlu0 %5355, %v5278
      %v5357 = vpop.permute.xlu0 %5356
      %5360 = vset.pattern.permute.xlu0 0
      %5361 = vperm.xlu0 %5360, %v5279
      %v5362 = vpop.permute.xlu0 %5361
      %5365 = vset.pattern.permute.xlu0 0
      %5366 = vperm.xlu0 %5365, %v5280
      %v5367 = vpop.permute.xlu0 %5366
      %5370 = vset.pattern.permute.xlu0 0
      %5371 = vperm.xlu0 %5370, %v5281
      %v5372 = vpop.permute.xlu0 %5371
      %5375 = vset.pattern.permute.xlu0 0
      %5376 = vperm.xlu0 %5375, %v5282
      %v5377 = vpop.permute.xlu0 %5376
      %5380 = vset.pattern.permute.xlu0 0
      %5381 = vperm.xlu0 %5380, %v5283
      %v5382 = vpop.permute.xlu0 %5381
      %5385 = vset.pattern.permute.xlu0 0
      %5386 = vperm.xlu0 %5385, %v5284
      %v5387 = vpop.permute.xlu0 %5386
      %5390 = vset.pattern.permute.xlu0 0
      %5391 = vperm.xlu0 %5390, %v5285
      %v5392 = vpop.permute.xlu0 %5391
      %5395 = vset.pattern.permute.xlu0 0
      %5396 = vperm.xlu0 %5395, %v5286
      %v5397 = vpop.permute.xlu0 %5396
      %5400 = vset.pattern.permute.xlu0 0
      %5401 = vperm.xlu0 %5400, %v5287
      %v5402 = vpop.permute.xlu0 %5401
      %5405 = vset.pattern.permute.xlu0 0
      %5406 = vperm.xlu0 %5405, %v5288
      %v5407 = vpop.permute.xlu0 %5406
      %5410 = vset.pattern.permute.xlu0 0
      %5411 = vperm.xlu0 %5410, %v5289
      %v5412 = vpop.permute.xlu0 %5411
      %5415 = vset.pattern.permute.xlu0 0
      %5416 = vperm.xlu0 %5415, %v5290
      %v5417 = vpop.permute.xlu0 %5416
      %5420 = vset.pattern.permute.xlu0 0
      %5421 = vperm.xlu0 %5420, %v5291
      %v5422 = vpop.permute.xlu0 %5421
      %5425 = vset.pattern.permute.xlu0 0
      %5426 = vperm.xlu0 %5425, %v5292
      %v5427 = vpop.permute.xlu0 %5426
      %5430 = vset.pattern.permute.xlu0 0
      %5431 = vperm.xlu0 %5430, %v5293
      %v5432 = vpop.permute.xlu0 %5431
      %5435 = vset.pattern.permute.xlu0 0
      %5436 = vperm.xlu0 %5435, %v5294
      %v5437 = vpop.permute.xlu0 %5436
      %5440 = vset.pattern.permute.xlu0 0
      %5441 = vperm.xlu0 %5440, %v5295
      %v5442 = vpop.permute.xlu0 %5441
      %5445 = vset.pattern.permute.xlu0 0
      %5446 = vperm.xlu0 %5445, %v5296
      %v5447 = vpop.permute.xlu0 %5446
      %5450 = vset.pattern.permute.xlu0 0
      %5451 = vperm.xlu0 %5450, %v5297
      %v5452 = vpop.permute.xlu0 %5451
      %5455 = vset.pattern.permute.xlu0 0
      %5456 = vperm.xlu0 %5455, %v5298
      %v5457 = vpop.permute.xlu0 %5456
      %v5459 = vmul.f32 %v5302, %v4247
      %v5460 = vmul.f32 %v5307, %v4248
      %v5461 = vmul.f32 %v5312, %v4249
      %v5462 = vmul.f32 %v5317, %v4250
      %v5463 = vmul.f32 %v5322, %v4251
      %v5464 = vmul.f32 %v5327, %v4252
      %v5465 = vmul.f32 %v5332, %v4253
      %v5466 = vmul.f32 %v5337, %v4254
      %v5467 = vmul.f32 %v5342, %v4255
      %v5468 = vmul.f32 %v5347, %v4256
      %v5469 = vmul.f32 %v5352, %v4257
      %v5470 = vmul.f32 %v5357, %v4258
      %v5471 = vmul.f32 %v5362, %v4259
      %v5472 = vmul.f32 %v5367, %v4260
      %v5473 = vmul.f32 %v5372, %v4261
      %v5474 = vmul.f32 %v5377, %v4262
      %v5475 = vmul.f32 %v5382, %v4263
      %v5476 = vmul.f32 %v5387, %v4264
      %v5477 = vmul.f32 %v5392, %v4265
      %v5478 = vmul.f32 %v5397, %v4266
      %v5479 = vmul.f32 %v5402, %v4267
      %v5480 = vmul.f32 %v5407, %v4268
      %v5481 = vmul.f32 %v5412, %v4269
      %v5482 = vmul.f32 %v5417, %v4270
      %v5483 = vmul.f32 %v5422, %v4271
      %v5484 = vmul.f32 %v5427, %v4272
      %v5485 = vmul.f32 %v5432, %v4273
      %v5486 = vmul.f32 %v5437, %v4274
      %v5487 = vmul.f32 %v5442, %v4275
      %v5488 = vmul.f32 %v5447, %v4276
      %v5489 = vmul.f32 %v5452, %v4277
      %v5490 = vmul.f32 %v5457, %v4278
      %v5491 = vadd.f32 %v5459, %v5460
      %v5492 = vadd.f32 %v5491, %v5461
      %v5493 = vadd.f32 %v5492, %v5462
      %v5494 = vadd.f32 %v5493, %v5463
      %v5495 = vadd.f32 %v5494, %v5464
      %v5496 = vadd.f32 %v5495, %v5465
      %v5497 = vadd.f32 %v5496, %v5466
      %v5498 = vadd.f32 %v5497, %v5467
      %v5499 = vadd.f32 %v5498, %v5468
      %v5500 = vadd.f32 %v5499, %v5469
      %v5501 = vadd.f32 %v5500, %v5470
      %v5502 = vadd.f32 %v5501, %v5471
      %v5503 = vadd.f32 %v5502, %v5472
      %v5504 = vadd.f32 %v5503, %v5473
      %v5505 = vadd.f32 %v5504, %v5474
      %v5506 = vadd.f32 %v5505, %v5475
      %v5507 = vadd.f32 %v5506, %v5476
      %v5508 = vadd.f32 %v5507, %v5477
      %v5509 = vadd.f32 %v5508, %v5478
      %v5510 = vadd.f32 %v5509, %v5479
      %v5511 = vadd.f32 %v5510, %v5480
      %v5512 = vadd.f32 %v5511, %v5481
      %v5513 = vadd.f32 %v5512, %v5482
      %v5514 = vadd.f32 %v5513, %v5483
      %v5515 = vadd.f32 %v5514, %v5484
      %v5516 = vadd.f32 %v5515, %v5485
      %v5517 = vadd.f32 %v5516, %v5486
      %v5518 = vadd.f32 %v5517, %v5487
      %v5519 = vadd.f32 %v5518, %v5488
      %v5520 = vadd.f32 %v5519, %v5489
      %v5521 = vadd.f32 %v5520, %v5490
      %v5522 = vrot.slane %v5521, 4
      %v5523 = vadd.f32 %v5521, %v5522
      %v5524 = vrot.slane %v5523, 2
      %v5525 = vadd.f32 %v5523, %v5524
      %v5526 = vrot.slane %v5525, 1
      %v5527 = vadd.f32 %v5525, %v5526
      %5528 = vset.pattern.permute.xlu0 1
      %5529 = vperm.xlu0 %5528, %v5267
      %v5530 = vpop.permute.xlu0 %5529
      %5532 = vset.pattern.permute.xlu0 1
      %5533 = vperm.xlu0 %5532, %v5268
      %v5534 = vpop.permute.xlu0 %5533
      %5536 = vset.pattern.permute.xlu0 1
      %5537 = vperm.xlu0 %5536, %v5269
      %v5538 = vpop.permute.xlu0 %5537
      %5540 = vset.pattern.permute.xlu0 1
      %5541 = vperm.xlu0 %5540, %v5270
      %v5542 = vpop.permute.xlu0 %5541
      %5544 = vset.pattern.permute.xlu0 1
      %5545 = vperm.xlu0 %5544, %v5271
      %v5546 = vpop.permute.xlu0 %5545
      %5548 = vset.pattern.permute.xlu0 1
      %5549 = vperm.xlu0 %5548, %v5272
      %v5550 = vpop.permute.xlu0 %5549
      %5552 = vset.pattern.permute.xlu0 1
      %5553 = vperm.xlu0 %5552, %v5273
      %v5554 = vpop.permute.xlu0 %5553
      %5556 = vset.pattern.permute.xlu0 1
      %5557 = vperm.xlu0 %5556, %v5274
      %v5558 = vpop.permute.xlu0 %5557
      %5560 = vset.pattern.permute.xlu0 1
      %5561 = vperm.xlu0 %5560, %v5275
      %v5562 = vpop.permute.xlu0 %5561
      %5564 = vset.pattern.permute.xlu0 1
      %5565 = vperm.xlu0 %5564, %v5276
      %v5566 = vpop.permute.xlu0 %5565
      %5568 = vset.pattern.permute.xlu0 1
      %5569 = vperm.xlu0 %5568, %v5277
      %v5570 = vpop.permute.xlu0 %5569
      %5572 = vset.pattern.permute.xlu0 1
      %5573 = vperm.xlu0 %5572, %v5278
      %v5574 = vpop.permute.xlu0 %5573
      %5576 = vset.pattern.permute.xlu0 1
      %5577 = vperm.xlu0 %5576, %v5279
      %v5578 = vpop.permute.xlu0 %5577
      %5580 = vset.pattern.permute.xlu0 1
      %5581 = vperm.xlu0 %5580, %v5280
      %v5582 = vpop.permute.xlu0 %5581
      %5584 = vset.pattern.permute.xlu0 1
      %5585 = vperm.xlu0 %5584, %v5281
      %v5586 = vpop.permute.xlu0 %5585
      %5588 = vset.pattern.permute.xlu0 1
      %5589 = vperm.xlu0 %5588, %v5282
      %v5590 = vpop.permute.xlu0 %5589
      %5592 = vset.pattern.permute.xlu0 1
      %5593 = vperm.xlu0 %5592, %v5283
      %v5594 = vpop.permute.xlu0 %5593
      %5596 = vset.pattern.permute.xlu0 1
      %5597 = vperm.xlu0 %5596, %v5284
      %v5598 = vpop.permute.xlu0 %5597
      %5600 = vset.pattern.permute.xlu0 1
      %5601 = vperm.xlu0 %5600, %v5285
      %v5602 = vpop.permute.xlu0 %5601
      %5604 = vset.pattern.permute.xlu0 1
      %5605 = vperm.xlu0 %5604, %v5286
      %v5606 = vpop.permute.xlu0 %5605
      %5608 = vset.pattern.permute.xlu0 1
      %5609 = vperm.xlu0 %5608, %v5287
      %v5610 = vpop.permute.xlu0 %5609
      %5612 = vset.pattern.permute.xlu0 1
      %5613 = vperm.xlu0 %5612, %v5288
      %v5614 = vpop.permute.xlu0 %5613
      %5616 = vset.pattern.permute.xlu0 1
      %5617 = vperm.xlu0 %5616, %v5289
      %v5618 = vpop.permute.xlu0 %5617
      %5620 = vset.pattern.permute.xlu0 1
      %5621 = vperm.xlu0 %5620, %v5290
      %v5622 = vpop.permute.xlu0 %5621
      %5624 = vset.pattern.permute.xlu0 1
      %5625 = vperm.xlu0 %5624, %v5291
      %v5626 = vpop.permute.xlu0 %5625
      %5628 = vset.pattern.permute.xlu0 1
      %5629 = vperm.xlu0 %5628, %v5292
      %v5630 = vpop.permute.xlu0 %5629
      %5632 = vset.pattern.permute.xlu0 1
      %5633 = vperm.xlu0 %5632, %v5293
      %v5634 = vpop.permute.xlu0 %5633
      %5636 = vset.pattern.permute.xlu0 1
      %5637 = vperm.xlu0 %5636, %v5294
      %v5638 = vpop.permute.xlu0 %5637
      %5640 = vset.pattern.permute.xlu0 1
      %5641 = vperm.xlu0 %5640, %v5295
      %v5642 = vpop.permute.xlu0 %5641
      %5644 = vset.pattern.permute.xlu0 1
      %5645 = vperm.xlu0 %5644, %v5296
      %v5646 = vpop.permute.xlu0 %5645
      %5648 = vset.pattern.permute.xlu0 1
      %5649 = vperm.xlu0 %5648, %v5297
      %v5650 = vpop.permute.xlu0 %5649
      %5652 = vset.pattern.permute.xlu0 1
      %5653 = vperm.xlu0 %5652, %v5298
      %v5654 = vpop.permute.xlu0 %5653
      %v5656 = vmul.f32 %v5530, %v4247
      %v5657 = vmul.f32 %v5534, %v4248
      %v5658 = vmul.f32 %v5538, %v4249
      %v5659 = vmul.f32 %v5542, %v4250
      %v5660 = vmul.f32 %v5546, %v4251
      %v5661 = vmul.f32 %v5550, %v4252
      %v5662 = vmul.f32 %v5554, %v4253
      %v5663 = vmul.f32 %v5558, %v4254
      %v5664 = vmul.f32 %v5562, %v4255
      %v5665 = vmul.f32 %v5566, %v4256
      %v5666 = vmul.f32 %v5570, %v4257
      %v5667 = vmul.f32 %v5574, %v4258
      %v5668 = vmul.f32 %v5578, %v4259
      %v5669 = vmul.f32 %v5582, %v4260
      %v5670 = vmul.f32 %v5586, %v4261
      %v5671 = vmul.f32 %v5590, %v4262
      %v5672 = vmul.f32 %v5594, %v4263
      %v5673 = vmul.f32 %v5598, %v4264
      %v5674 = vmul.f32 %v5602, %v4265
      %v5675 = vmul.f32 %v5606, %v4266
      %v5676 = vmul.f32 %v5610, %v4267
      %v5677 = vmul.f32 %v5614, %v4268
      %v5678 = vmul.f32 %v5618, %v4269
      %v5679 = vmul.f32 %v5622, %v4270
      %v5680 = vmul.f32 %v5626, %v4271
      %v5681 = vmul.f32 %v5630, %v4272
      %v5682 = vmul.f32 %v5634, %v4273
      %v5683 = vmul.f32 %v5638, %v4274
      %v5684 = vmul.f32 %v5642, %v4275
      %v5685 = vmul.f32 %v5646, %v4276
      %v5686 = vmul.f32 %v5650, %v4277
      %v5687 = vmul.f32 %v5654, %v4278
      %v5688 = vadd.f32 %v5656, %v5657
      %v5689 = vadd.f32 %v5688, %v5658
      %v5690 = vadd.f32 %v5689, %v5659
      %v5691 = vadd.f32 %v5690, %v5660
      %v5692 = vadd.f32 %v5691, %v5661
      %v5693 = vadd.f32 %v5692, %v5662
      %v5694 = vadd.f32 %v5693, %v5663
      %v5695 = vadd.f32 %v5694, %v5664
      %v5696 = vadd.f32 %v5695, %v5665
      %v5697 = vadd.f32 %v5696, %v5666
      %v5698 = vadd.f32 %v5697, %v5667
      %v5699 = vadd.f32 %v5698, %v5668
      %v5700 = vadd.f32 %v5699, %v5669
      %v5701 = vadd.f32 %v5700, %v5670
      %v5702 = vadd.f32 %v5701, %v5671
      %v5703 = vadd.f32 %v5702, %v5672
      %v5704 = vadd.f32 %v5703, %v5673
      %v5705 = vadd.f32 %v5704, %v5674
      %v5706 = vadd.f32 %v5705, %v5675
      %v5707 = vadd.f32 %v5706, %v5676
      %v5708 = vadd.f32 %v5707, %v5677
      %v5709 = vadd.f32 %v5708, %v5678
      %v5710 = vadd.f32 %v5709, %v5679
      %v5711 = vadd.f32 %v5710, %v5680
      %v5712 = vadd.f32 %v5711, %v5681
      %v5713 = vadd.f32 %v5712, %v5682
      %v5714 = vadd.f32 %v5713, %v5683
      %v5715 = vadd.f32 %v5714, %v5684
      %v5716 = vadd.f32 %v5715, %v5685
      %v5717 = vadd.f32 %v5716, %v5686
      %v5718 = vadd.f32 %v5717, %v5687
      %v5719 = vrot.slane %v5718, 4
      %v5720 = vadd.f32 %v5718, %v5719
      %v5721 = vrot.slane %v5720, 2
      %v5722 = vadd.f32 %v5720, %v5721
      %v5723 = vrot.slane %v5722, 1
      %v5724 = vadd.f32 %v5722, %v5723
      %5725 = vset.pattern.permute.xlu0 2
      %5726 = vperm.xlu0 %5725, %v5267
      %v5727 = vpop.permute.xlu0 %5726
      %5729 = vset.pattern.permute.xlu0 2
      %5730 = vperm.xlu0 %5729, %v5268
      %v5731 = vpop.permute.xlu0 %5730
      %5733 = vset.pattern.permute.xlu0 2
      %5734 = vperm.xlu0 %5733, %v5269
      %v5735 = vpop.permute.xlu0 %5734
      %5737 = vset.pattern.permute.xlu0 2
      %5738 = vperm.xlu0 %5737, %v5270
      %v5739 = vpop.permute.xlu0 %5738
      %5741 = vset.pattern.permute.xlu0 2
      %5742 = vperm.xlu0 %5741, %v5271
      %v5743 = vpop.permute.xlu0 %5742
      %5745 = vset.pattern.permute.xlu0 2
      %5746 = vperm.xlu0 %5745, %v5272
      %v5747 = vpop.permute.xlu0 %5746
      %5749 = vset.pattern.permute.xlu0 2
      %5750 = vperm.xlu0 %5749, %v5273
      %v5751 = vpop.permute.xlu0 %5750
      %5753 = vset.pattern.permute.xlu0 2
      %5754 = vperm.xlu0 %5753, %v5274
      %v5755 = vpop.permute.xlu0 %5754
      %5757 = vset.pattern.permute.xlu0 2
      %5758 = vperm.xlu0 %5757, %v5275
      %v5759 = vpop.permute.xlu0 %5758
      %5761 = vset.pattern.permute.xlu0 2
      %5762 = vperm.xlu0 %5761, %v5276
      %v5763 = vpop.permute.xlu0 %5762
      %5765 = vset.pattern.permute.xlu0 2
      %5766 = vperm.xlu0 %5765, %v5277
      %v5767 = vpop.permute.xlu0 %5766
      %5769 = vset.pattern.permute.xlu0 2
      %5770 = vperm.xlu0 %5769, %v5278
      %v5771 = vpop.permute.xlu0 %5770
      %5773 = vset.pattern.permute.xlu0 2
      %5774 = vperm.xlu0 %5773, %v5279
      %v5775 = vpop.permute.xlu0 %5774
      %5777 = vset.pattern.permute.xlu0 2
      %5778 = vperm.xlu0 %5777, %v5280
      %v5779 = vpop.permute.xlu0 %5778
      %5781 = vset.pattern.permute.xlu0 2
      %5782 = vperm.xlu0 %5781, %v5281
      %v5783 = vpop.permute.xlu0 %5782
      %5785 = vset.pattern.permute.xlu0 2
      %5786 = vperm.xlu0 %5785, %v5282
      %v5787 = vpop.permute.xlu0 %5786
      %5789 = vset.pattern.permute.xlu0 2
      %5790 = vperm.xlu0 %5789, %v5283
      %v5791 = vpop.permute.xlu0 %5790
      %5793 = vset.pattern.permute.xlu0 2
      %5794 = vperm.xlu0 %5793, %v5284
      %v5795 = vpop.permute.xlu0 %5794
      %5797 = vset.pattern.permute.xlu0 2
      %5798 = vperm.xlu0 %5797, %v5285
      %v5799 = vpop.permute.xlu0 %5798
      %5801 = vset.pattern.permute.xlu0 2
      %5802 = vperm.xlu0 %5801, %v5286
      %v5803 = vpop.permute.xlu0 %5802
      %5805 = vset.pattern.permute.xlu0 2
      %5806 = vperm.xlu0 %5805, %v5287
      %v5807 = vpop.permute.xlu0 %5806
      %5809 = vset.pattern.permute.xlu0 2
      %5810 = vperm.xlu0 %5809, %v5288
      %v5811 = vpop.permute.xlu0 %5810
      %5813 = vset.pattern.permute.xlu0 2
      %5814 = vperm.xlu0 %5813, %v5289
      %v5815 = vpop.permute.xlu0 %5814
      %5817 = vset.pattern.permute.xlu0 2
      %5818 = vperm.xlu0 %5817, %v5290
      %v5819 = vpop.permute.xlu0 %5818
      %5821 = vset.pattern.permute.xlu0 2
      %5822 = vperm.xlu0 %5821, %v5291
      %v5823 = vpop.permute.xlu0 %5822
      %5825 = vset.pattern.permute.xlu0 2
      %5826 = vperm.xlu0 %5825, %v5292
      %v5827 = vpop.permute.xlu0 %5826
      %5829 = vset.pattern.permute.xlu0 2
      %5830 = vperm.xlu0 %5829, %v5293
      %v5831 = vpop.permute.xlu0 %5830
      %5833 = vset.pattern.permute.xlu0 2
      %5834 = vperm.xlu0 %5833, %v5294
      %v5835 = vpop.permute.xlu0 %5834
      %5837 = vset.pattern.permute.xlu0 2
      %5838 = vperm.xlu0 %5837, %v5295
      %v5839 = vpop.permute.xlu0 %5838
      %5841 = vset.pattern.permute.xlu0 2
      %5842 = vperm.xlu0 %5841, %v5296
      %v5843 = vpop.permute.xlu0 %5842
      %5845 = vset.pattern.permute.xlu0 2
      %5846 = vperm.xlu0 %5845, %v5297
      %v5847 = vpop.permute.xlu0 %5846
      %5849 = vset.pattern.permute.xlu0 2
      %5850 = vperm.xlu0 %5849, %v5298
      %v5851 = vpop.permute.xlu0 %5850
      %v5853 = vmul.f32 %v5727, %v4247
      %v5854 = vmul.f32 %v5731, %v4248
      %v5855 = vmul.f32 %v5735, %v4249
      %v5856 = vmul.f32 %v5739, %v4250
      %v5857 = vmul.f32 %v5743, %v4251
      %v5858 = vmul.f32 %v5747, %v4252
      %v5859 = vmul.f32 %v5751, %v4253
      %v5860 = vmul.f32 %v5755, %v4254
      %v5861 = vmul.f32 %v5759, %v4255
      %v5862 = vmul.f32 %v5763, %v4256
      %v5863 = vmul.f32 %v5767, %v4257
      %v5864 = vmul.f32 %v5771, %v4258
      %v5865 = vmul.f32 %v5775, %v4259
      %v5866 = vmul.f32 %v5779, %v4260
      %v5867 = vmul.f32 %v5783, %v4261
      %v5868 = vmul.f32 %v5787, %v4262
      %v5869 = vmul.f32 %v5791, %v4263
      %v5870 = vmul.f32 %v5795, %v4264
      %v5871 = vmul.f32 %v5799, %v4265
      %v5872 = vmul.f32 %v5803, %v4266
      %v5873 = vmul.f32 %v5807, %v4267
      %v5874 = vmul.f32 %v5811, %v4268
      %v5875 = vmul.f32 %v5815, %v4269
      %v5876 = vmul.f32 %v5819, %v4270
      %v5877 = vmul.f32 %v5823, %v4271
      %v5878 = vmul.f32 %v5827, %v4272
      %v5879 = vmul.f32 %v5831, %v4273
      %v5880 = vmul.f32 %v5835, %v4274
      %v5881 = vmul.f32 %v5839, %v4275
      %v5882 = vmul.f32 %v5843, %v4276
      %v5883 = vmul.f32 %v5847, %v4277
      %v5884 = vmul.f32 %v5851, %v4278
      %v5885 = vadd.f32 %v5853, %v5854
      %v5886 = vadd.f32 %v5885, %v5855
      %v5887 = vadd.f32 %v5886, %v5856
      %v5888 = vadd.f32 %v5887, %v5857
      %v5889 = vadd.f32 %v5888, %v5858
      %v5890 = vadd.f32 %v5889, %v5859
      %v5891 = vadd.f32 %v5890, %v5860
      %v5892 = vadd.f32 %v5891, %v5861
      %v5893 = vadd.f32 %v5892, %v5862
      %v5894 = vadd.f32 %v5893, %v5863
      %v5895 = vadd.f32 %v5894, %v5864
      %v5896 = vadd.f32 %v5895, %v5865
      %v5897 = vadd.f32 %v5896, %v5866
      %v5898 = vadd.f32 %v5897, %v5867
      %v5899 = vadd.f32 %v5898, %v5868
      %v5900 = vadd.f32 %v5899, %v5869
      %v5901 = vadd.f32 %v5900, %v5870
      %v5902 = vadd.f32 %v5901, %v5871
      %v5903 = vadd.f32 %v5902, %v5872
      %v5904 = vadd.f32 %v5903, %v5873
      %v5905 = vadd.f32 %v5904, %v5874
      %v5906 = vadd.f32 %v5905, %v5875
      %v5907 = vadd.f32 %v5906, %v5876
      %v5908 = vadd.f32 %v5907, %v5877
      %v5909 = vadd.f32 %v5908, %v5878
      %v5910 = vadd.f32 %v5909, %v5879
      %v5911 = vadd.f32 %v5910, %v5880
      %v5912 = vadd.f32 %v5911, %v5881
      %v5913 = vadd.f32 %v5912, %v5882
      %v5914 = vadd.f32 %v5913, %v5883
      %v5915 = vadd.f32 %v5914, %v5884
      %v5916 = vrot.slane %v5915, 4
      %v5917 = vadd.f32 %v5915, %v5916
      %v5918 = vrot.slane %v5917, 2
      %v5919 = vadd.f32 %v5917, %v5918
      %v5920 = vrot.slane %v5919, 1
      %v5921 = vadd.f32 %v5919, %v5920
      %5922 = vset.pattern.permute.xlu0 3
      %5923 = vperm.xlu0 %5922, %v5267
      %v5924 = vpop.permute.xlu0 %5923
      %5926 = vset.pattern.permute.xlu0 3
      %5927 = vperm.xlu0 %5926, %v5268
      %v5928 = vpop.permute.xlu0 %5927
      %5930 = vset.pattern.permute.xlu0 3
      %5931 = vperm.xlu0 %5930, %v5269
      %v5932 = vpop.permute.xlu0 %5931
      %5934 = vset.pattern.permute.xlu0 3
      %5935 = vperm.xlu0 %5934, %v5270
      %v5936 = vpop.permute.xlu0 %5935
      %5938 = vset.pattern.permute.xlu0 3
      %5939 = vperm.xlu0 %5938, %v5271
      %v5940 = vpop.permute.xlu0 %5939
      %5942 = vset.pattern.permute.xlu0 3
      %5943 = vperm.xlu0 %5942, %v5272
      %v5944 = vpop.permute.xlu0 %5943
      %5946 = vset.pattern.permute.xlu0 3
      %5947 = vperm.xlu0 %5946, %v5273
      %v5948 = vpop.permute.xlu0 %5947
      %5950 = vset.pattern.permute.xlu0 3
      %5951 = vperm.xlu0 %5950, %v5274
      %v5952 = vpop.permute.xlu0 %5951
      %5954 = vset.pattern.permute.xlu0 3
      %5955 = vperm.xlu0 %5954, %v5275
      %v5956 = vpop.permute.xlu0 %5955
      %5958 = vset.pattern.permute.xlu0 3
      %5959 = vperm.xlu0 %5958, %v5276
      %v5960 = vpop.permute.xlu0 %5959
      %5962 = vset.pattern.permute.xlu0 3
      %5963 = vperm.xlu0 %5962, %v5277
      %v5964 = vpop.permute.xlu0 %5963
      %5966 = vset.pattern.permute.xlu0 3
      %5967 = vperm.xlu0 %5966, %v5278
      %v5968 = vpop.permute.xlu0 %5967
      %5970 = vset.pattern.permute.xlu0 3
      %5971 = vperm.xlu0 %5970, %v5279
      %v5972 = vpop.permute.xlu0 %5971
      %5974 = vset.pattern.permute.xlu0 3
      %5975 = vperm.xlu0 %5974, %v5280
      %v5976 = vpop.permute.xlu0 %5975
      %5978 = vset.pattern.permute.xlu0 3
      %5979 = vperm.xlu0 %5978, %v5281
      %v5980 = vpop.permute.xlu0 %5979
      %5982 = vset.pattern.permute.xlu0 3
      %5983 = vperm.xlu0 %5982, %v5282
      %v5984 = vpop.permute.xlu0 %5983
      %5986 = vset.pattern.permute.xlu0 3
      %5987 = vperm.xlu0 %5986, %v5283
      %v5988 = vpop.permute.xlu0 %5987
      %5990 = vset.pattern.permute.xlu0 3
      %5991 = vperm.xlu0 %5990, %v5284
      %v5992 = vpop.permute.xlu0 %5991
      %5994 = vset.pattern.permute.xlu0 3
      %5995 = vperm.xlu0 %5994, %v5285
      %v5996 = vpop.permute.xlu0 %5995
      %5998 = vset.pattern.permute.xlu0 3
      %5999 = vperm.xlu0 %5998, %v5286
      %v6000 = vpop.permute.xlu0 %5999
      %6002 = vset.pattern.permute.xlu0 3
      %6003 = vperm.xlu0 %6002, %v5287
      %v6004 = vpop.permute.xlu0 %6003
      %6006 = vset.pattern.permute.xlu0 3
      %6007 = vperm.xlu0 %6006, %v5288
      %v6008 = vpop.permute.xlu0 %6007
      %6010 = vset.pattern.permute.xlu0 3
      %6011 = vperm.xlu0 %6010, %v5289
      %v6012 = vpop.permute.xlu0 %6011
      %6014 = vset.pattern.permute.xlu0 3
      %6015 = vperm.xlu0 %6014, %v5290
      %v6016 = vpop.permute.xlu0 %6015
      %6018 = vset.pattern.permute.xlu0 3
      %6019 = vperm.xlu0 %6018, %v5291
      %v6020 = vpop.permute.xlu0 %6019
      %6022 = vset.pattern.permute.xlu0 3
      %6023 = vperm.xlu0 %6022, %v5292
      %v6024 = vpop.permute.xlu0 %6023
      %6026 = vset.pattern.permute.xlu0 3
      %6027 = vperm.xlu0 %6026, %v5293
      %v6028 = vpop.permute.xlu0 %6027
      %6030 = vset.pattern.permute.xlu0 3
      %6031 = vperm.xlu0 %6030, %v5294
      %v6032 = vpop.permute.xlu0 %6031
      %6034 = vset.pattern.permute.xlu0 3
      %6035 = vperm.xlu0 %6034, %v5295
      %v6036 = vpop.permute.xlu0 %6035
      %6038 = vset.pattern.permute.xlu0 3
      %6039 = vperm.xlu0 %6038, %v5296
      %v6040 = vpop.permute.xlu0 %6039
      %6042 = vset.pattern.permute.xlu0 3
      %6043 = vperm.xlu0 %6042, %v5297
      %v6044 = vpop.permute.xlu0 %6043
      %6046 = vset.pattern.permute.xlu0 3
      %6047 = vperm.xlu0 %6046, %v5298
      %v6048 = vpop.permute.xlu0 %6047
      %v6050 = vmul.f32 %v5924, %v4247
      %v6051 = vmul.f32 %v5928, %v4248
      %v6052 = vmul.f32 %v5932, %v4249
      %v6053 = vmul.f32 %v5936, %v4250
      %v6054 = vmul.f32 %v5940, %v4251
      %v6055 = vmul.f32 %v5944, %v4252
      %v6056 = vmul.f32 %v5948, %v4253
      %v6057 = vmul.f32 %v5952, %v4254
      %v6058 = vmul.f32 %v5956, %v4255
      %v6059 = vmul.f32 %v5960, %v4256
      %v6060 = vmul.f32 %v5964, %v4257
      %v6061 = vmul.f32 %v5968, %v4258
      %v6062 = vmul.f32 %v5972, %v4259
      %v6063 = vmul.f32 %v5976, %v4260
      %v6064 = vmul.f32 %v5980, %v4261
      %v6065 = vmul.f32 %v5984, %v4262
      %v6066 = vmul.f32 %v5988, %v4263
      %v6067 = vmul.f32 %v5992, %v4264
      %v6068 = vmul.f32 %v5996, %v4265
      %v6069 = vmul.f32 %v6000, %v4266
      %v6070 = vmul.f32 %v6004, %v4267
      %v6071 = vmul.f32 %v6008, %v4268
      %v6072 = vmul.f32 %v6012, %v4269
      %v6073 = vmul.f32 %v6016, %v4270
      %v6074 = vmul.f32 %v6020, %v4271
      %v6075 = vmul.f32 %v6024, %v4272
      %v6076 = vmul.f32 %v6028, %v4273
      %v6077 = vmul.f32 %v6032, %v4274
      %v6078 = vmul.f32 %v6036, %v4275
      %v6079 = vmul.f32 %v6040, %v4276
      %v6080 = vmul.f32 %v6044, %v4277
      %v6081 = vmul.f32 %v6048, %v4278
      %v6082 = vadd.f32 %v6050, %v6051
      %v6083 = vadd.f32 %v6082, %v6052
      %v6084 = vadd.f32 %v6083, %v6053
      %v6085 = vadd.f32 %v6084, %v6054
      %v6086 = vadd.f32 %v6085, %v6055
      %v6087 = vadd.f32 %v6086, %v6056
      %v6088 = vadd.f32 %v6087, %v6057
      %v6089 = vadd.f32 %v6088, %v6058
      %v6090 = vadd.f32 %v6089, %v6059
      %v6091 = vadd.f32 %v6090, %v6060
      %v6092 = vadd.f32 %v6091, %v6061
      %v6093 = vadd.f32 %v6092, %v6062
      %v6094 = vadd.f32 %v6093, %v6063
      %v6095 = vadd.f32 %v6094, %v6064
      %v6096 = vadd.f32 %v6095, %v6065
      %v6097 = vadd.f32 %v6096, %v6066
      %v6098 = vadd.f32 %v6097, %v6067
      %v6099 = vadd.f32 %v6098, %v6068
      %v6100 = vadd.f32 %v6099, %v6069
      %v6101 = vadd.f32 %v6100, %v6070
      %v6102 = vadd.f32 %v6101, %v6071
      %v6103 = vadd.f32 %v6102, %v6072
      %v6104 = vadd.f32 %v6103, %v6073
      %v6105 = vadd.f32 %v6104, %v6074
      %v6106 = vadd.f32 %v6105, %v6075
      %v6107 = vadd.f32 %v6106, %v6076
      %v6108 = vadd.f32 %v6107, %v6077
      %v6109 = vadd.f32 %v6108, %v6078
      %v6110 = vadd.f32 %v6109, %v6079
      %v6111 = vadd.f32 %v6110, %v6080
      %v6112 = vadd.f32 %v6111, %v6081
      %v6113 = vrot.slane %v6112, 4
      %v6114 = vadd.f32 %v6112, %v6113
      %v6115 = vrot.slane %v6114, 2
      %v6116 = vadd.f32 %v6114, %v6115
      %v6117 = vrot.slane %v6116, 1
      %v6118 = vadd.f32 %v6116, %v6117
      %vm6119 = vcmask 1040384
      %v6120 = vsel %vm6119, %v5527, %v5724
      %vm6121 = vcmask 1041408
      %v6122 = vsel %vm6121, %v6120, %v5921
      %vm6123 = vcmask 1042432
      %v6124 = vsel %vm6123, %v6122, %v6118
      %v6125 = vpack.c.bf16 %v6124, %v6124
      %v6126 = vld [vmem:[%s7] sm:$0xf]
      %v6127 = vld [vmem:[%s7 + $0x4] sm:$0xf]
      %v6128 = vld [vmem:[%s7 + $0x8] sm:$0xf]
      %v6129 = vld [vmem:[%s7 + $0xc] sm:$0xf]
      %v6130 = vld [vmem:[%s7 + $0x10] sm:$0xf]
      %v6131 = vld [vmem:[%s7 + $0x14] sm:$0xf]
      %v6132 = vld [vmem:[%s7 + $0x18] sm:$0xf]
      %v6133 = vld [vmem:[%s7 + $0x1c] sm:$0xf]
      %v6134 = vld [vmem:[%s7 + $0x20] sm:$0xf]
      %v6135 = vld [vmem:[%s7 + $0x24] sm:$0xf]
      %v6136 = vld [vmem:[%s7 + $0x28] sm:$0xf]
      %v6137 = vld [vmem:[%s7 + $0x2c] sm:$0xf]
      %v6138 = vld [vmem:[%s7 + $0x30] sm:$0xf]
      %v6139 = vld [vmem:[%s7 + $0x34] sm:$0xf]
      %v6140 = vld [vmem:[%s7 + $0x38] sm:$0xf]
      %v6141 = vld [vmem:[%s7 + $0x3c] sm:$0xf]
      %v6158 = vunpack.c.l.b16 %v6126
      %v6159 = vunpack.c.l.b16 %v6127
      %v6160 = vunpack.c.l.b16 %v6128
      %v6161 = vunpack.c.l.b16 %v6129
      %v6162 = vunpack.c.l.b16 %v6130
      %v6163 = vunpack.c.l.b16 %v6131
      %v6164 = vunpack.c.l.b16 %v6132
      %v6165 = vunpack.c.l.b16 %v6133
      %v6166 = vunpack.c.l.b16 %v6134
      %v6167 = vunpack.c.l.b16 %v6135
      %v6168 = vunpack.c.l.b16 %v6136
      %v6169 = vunpack.c.l.b16 %v6137
      %v6170 = vunpack.c.l.b16 %v6138
      %v6171 = vunpack.c.l.b16 %v6139
      %v6172 = vunpack.c.l.b16 %v6140
      %v6173 = vunpack.c.l.b16 %v6141
      %v6174 = vpack.c.b16 %v6159, %v6158
      %v6175 = vpack.c.b16 %v6161, %v6160
      %v6176 = vpack.c.b16 %v6163, %v6162
      %v6177 = vpack.c.b16 %v6165, %v6164
      %v6178 = vpack.c.b16 %v6167, %v6166
      %v6179 = vpack.c.b16 %v6169, %v6168
      %v6180 = vpack.c.b16 %v6171, %v6170
      %v6181 = vpack.c.b16 %v6173, %v6172
      %6190 = vmatprep.subr.bf16.mxu0 0
      %6191 = vmatpush1.bf16.msra.mxu0 %v6174
      %6192 = vmatprep.subr.bf16.mxu0 0
      %6193 = vmatpush1.bf16.msra.mxu0 %v6175
      %6194 = vmatprep.subr.bf16.mxu0 0
      %6195 = vmatpush1.bf16.msra.mxu0 %v6176
      %6196 = vmatprep.subr.bf16.mxu0 0
      %6197 = vmatpush1.bf16.msra.mxu0 %v6177
      %6198 = vmatprep.subr.bf16.mxu0 0
      %6199 = vmatpush1.bf16.msra.mxu0 %v6178
      %6200 = vmatprep.subr.bf16.mxu0 0
      %6201 = vmatpush1.bf16.msra.mxu0 %v6179
      %6202 = vmatprep.subr.bf16.mxu0 0
      %6203 = vmatpush1.bf16.msra.mxu0 %v6180
      %6204 = vmatprep.subr.bf16.mxu0 0
      %6205 = vmatpush1.bf16.msra.mxu0 %v6181
      %6206 = vmatprep.subr.bf16.mxu0 0
      %6207 = vmatpush1.bf16.msra.mxu0 0
      %6208 = vmatprep.subr.bf16.mxu0 0
      %6209 = vmatpush1.bf16.msra.mxu0 0
      %6210 = vmatprep.subr.bf16.mxu0 0
      %6211 = vmatpush1.bf16.msra.mxu0 0
      %6212 = vmatprep.subr.bf16.mxu0 0
      %6213 = vmatpush1.bf16.msra.mxu0 0
      %6214 = vmatprep.subr.bf16.mxu0 0
      %6215 = vmatpush1.bf16.msra.mxu0 0
      %6216 = vmatprep.subr.bf16.mxu0 0
      %6217 = vmatpush1.bf16.msra.mxu0 0
      %6218 = vmatprep.subr.bf16.mxu0 0
      %6219 = vmatpush1.bf16.msra.mxu0 0
      %6220 = vmatprep.subr.bf16.mxu0 0
      %6221 = vmatpush1.bf16.msra.mxu0 0
      %6222 = vmatprep.mubr.bf16.mxu0 0
      %6223 = vmatmul.mubr.bf16.gmra.mrb[0].mxu0 %v6125
      %v6224 = vpop.f32.mrb[0].mxu0
      %v6225 = vadd.f32 0.0, %v6224
      %v6226 = vpop.f32.mrb[0].mxu0
      %v6227 = vpop.f32.mrb[0].mxu0
      %v6228 = vpop.f32.mrb[0].mxu0
      %6229 = vdwg.mxu0
      %v6230 = vld [vmem:[%s8] sm:$0x1]
      %v6231 = vlaneseq
      %v6232 = vshrl.u32 %v6231, 7
      %v6233 = vsub.s32 0, %v6232
      %v6234 = vrot.slane %v6230, %v6233
      %v6235 = vmul.f32 %v6225, %v6234
      %v6236 = vld [vmem:[%s8 + $0x1] sm:$0x1]
      %v6237 = vlaneseq
      %v6238 = vshrl.u32 %v6237, 7
      %v6239 = vsub.s32 0, %v6238
      %v6240 = vrot.slane %v6236, %v6239
      %v6241 = vadd.f32 %v6235, %v6240
      %v6242 = vmax.f32 %v6241, 0.0
      %v6243 = vpack.c.bf16 %v6242, %v6242
      %v6244 = vld [vmem:[%s9] sm:$0xf]
      %v6245 = vld [vmem:[%s9 + $0x4] sm:$0xf]
      %v6246 = vld [vmem:[%s9 + $0x8] sm:$0xf]
      %v6247 = vld [vmem:[%s9 + $0xc] sm:$0xf]
      %v6248 = vld [vmem:[%s9 + $0x10] sm:$0xf]
      %v6249 = vld [vmem:[%s9 + $0x14] sm:$0xf]
      %v6250 = vld [vmem:[%s9 + $0x18] sm:$0xf]
      %v6251 = vld [vmem:[%s9 + $0x1c] sm:$0xf]
      %v6252 = vld [vmem:[%s9 + $0x20] sm:$0xf]
      %v6253 = vld [vmem:[%s9 + $0x24] sm:$0xf]
      %v6254 = vld [vmem:[%s9 + $0x28] sm:$0xf]
      %v6255 = vld [vmem:[%s9 + $0x2c] sm:$0xf]
      %v6256 = vld [vmem:[%s9 + $0x30] sm:$0xf]
      %v6257 = vld [vmem:[%s9 + $0x34] sm:$0xf]
      %v6258 = vld [vmem:[%s9 + $0x38] sm:$0xf]
      %v6259 = vld [vmem:[%s9 + $0x3c] sm:$0xf]
      %v6276 = vunpack.c.l.b16 %v6244
      %v6277 = vunpack.c.l.b16 %v6245
      %v6278 = vunpack.c.l.b16 %v6246
      %v6279 = vunpack.c.l.b16 %v6247
      %v6280 = vunpack.c.l.b16 %v6248
      %v6281 = vunpack.c.l.b16 %v6249
      %v6282 = vunpack.c.l.b16 %v6250
      %v6283 = vunpack.c.l.b16 %v6251
      %v6284 = vunpack.c.l.b16 %v6252
      %v6285 = vunpack.c.l.b16 %v6253
      %v6286 = vunpack.c.l.b16 %v6254
      %v6287 = vunpack.c.l.b16 %v6255
      %v6288 = vunpack.c.l.b16 %v6256
      %v6289 = vunpack.c.l.b16 %v6257
      %v6290 = vunpack.c.l.b16 %v6258
      %v6291 = vunpack.c.l.b16 %v6259
      %v6292 = vpack.c.b16 %v6277, %v6276
      %v6293 = vpack.c.b16 %v6279, %v6278
      %v6294 = vpack.c.b16 %v6281, %v6280
      %v6295 = vpack.c.b16 %v6283, %v6282
      %v6296 = vpack.c.b16 %v6285, %v6284
      %v6297 = vpack.c.b16 %v6287, %v6286
      %v6298 = vpack.c.b16 %v6289, %v6288
      %v6299 = vpack.c.b16 %v6291, %v6290
      %6308 = vmatprep.subr.bf16.mxu0 0
      %6309 = vmatpush1.bf16.msra.mxu0 %v6292
      %6310 = vmatprep.subr.bf16.mxu0 0
      %6311 = vmatpush1.bf16.msra.mxu0 %v6293
      %6312 = vmatprep.subr.bf16.mxu0 0
      %6313 = vmatpush1.bf16.msra.mxu0 %v6294
      %6314 = vmatprep.subr.bf16.mxu0 0
      %6315 = vmatpush1.bf16.msra.mxu0 %v6295
      %6316 = vmatprep.subr.bf16.mxu0 0
      %6317 = vmatpush1.bf16.msra.mxu0 %v6296
      %6318 = vmatprep.subr.bf16.mxu0 0
      %6319 = vmatpush1.bf16.msra.mxu0 %v6297
      %6320 = vmatprep.subr.bf16.mxu0 0
      %6321 = vmatpush1.bf16.msra.mxu0 %v6298
      %6322 = vmatprep.subr.bf16.mxu0 0
      %6323 = vmatpush1.bf16.msra.mxu0 %v6299
      %6324 = vmatprep.subr.bf16.mxu0 0
      %6325 = vmatpush1.bf16.msra.mxu0 0
      %6326 = vmatprep.subr.bf16.mxu0 0
      %6327 = vmatpush1.bf16.msra.mxu0 0
      %6328 = vmatprep.subr.bf16.mxu0 0
      %6329 = vmatpush1.bf16.msra.mxu0 0
      %6330 = vmatprep.subr.bf16.mxu0 0
      %6331 = vmatpush1.bf16.msra.mxu0 0
      %6332 = vmatprep.subr.bf16.mxu0 0
      %6333 = vmatpush1.bf16.msra.mxu0 0
      %6334 = vmatprep.subr.bf16.mxu0 0
      %6335 = vmatpush1.bf16.msra.mxu0 0
      %6336 = vmatprep.subr.bf16.mxu0 0
      %6337 = vmatpush1.bf16.msra.mxu0 0
      %6338 = vmatprep.subr.bf16.mxu0 0
      %6339 = vmatpush1.bf16.msra.mxu0 0
      %6340 = vmatprep.mubr.bf16.mxu0 0
      %6341 = vmatmul.mubr.bf16.gmra.mrb[0].mxu0 %v6243
      %v6342 = vpop.f32.mrb[0].mxu0
      %v6343 = vadd.f32 0.0, %v6342
      %v6344 = vpop.f32.mrb[0].mxu0
      %v6345 = vpop.f32.mrb[0].mxu0
      %v6346 = vpop.f32.mrb[0].mxu0
      %6347 = vdwg.mxu0
      %v6348 = vld [vmem:[%s10] sm:$0x1]
      %v6349 = vlaneseq
      %v6350 = vshrl.u32 %v6349, 7
      %v6351 = vsub.s32 0, %v6350
      %v6352 = vrot.slane %v6348, %v6351
      %v6353 = vmul.f32 %v6343, %v6352
      %v6354 = vld [vmem:[%s10 + $0x1] sm:$0x1]
      %v6355 = vlaneseq
      %v6356 = vshrl.u32 %v6355, 7
      %v6357 = vsub.s32 0, %v6356
      %v6358 = vrot.slane %v6354, %v6357
      %v6359 = vadd.f32 %v6353, %v6358
      %v6360 = vmax.f32 %v6359, 0.0
      %v6361 = vld [vmem:[%s11] sm:$0xf]
      %v6362 = vld [vmem:[%s11 + $0x4] sm:$0xf]
      %v6363 = vld [vmem:[%s11 + $0x8] sm:$0xf]
      %v6364 = vld [vmem:[%s11 + $0xc] sm:$0xf]
      %v6365 = vld [vmem:[%s11 + $0x10] sm:$0xf]
      %v6366 = vld [vmem:[%s11 + $0x14] sm:$0xf]
      %v6367 = vld [vmem:[%s11 + $0x18] sm:$0xf]
      %v6368 = vld [vmem:[%s11 + $0x1c] sm:$0xf]
      %v6369 = vld [vmem:[%s11 + $0x20] sm:$0xf]
      %v6370 = vld [vmem:[%s11 + $0x24] sm:$0xf]
      %v6371 = vld [vmem:[%s11 + $0x28] sm:$0xf]
      %v6372 = vld [vmem:[%s11 + $0x2c] sm:$0xf]
      %v6373 = vld [vmem:[%s11 + $0x30] sm:$0xf]
      %v6374 = vld [vmem:[%s11 + $0x34] sm:$0xf]
      %v6375 = vld [vmem:[%s11 + $0x38] sm:$0xf]
      %v6376 = vld [vmem:[%s11 + $0x3c] sm:$0xf]
      %v6393 = vunpack.c.l.b16 %v6361
      %v6394 = vunpack.c.l.b16 %v6362
      %v6395 = vunpack.c.l.b16 %v6363
      %v6396 = vunpack.c.l.b16 %v6364
      %v6397 = vunpack.c.l.b16 %v6365
      %v6398 = vunpack.c.l.b16 %v6366
      %v6399 = vunpack.c.l.b16 %v6367
      %v6400 = vunpack.c.l.b16 %v6368
      %v6401 = vunpack.c.l.b16 %v6369
      %v6402 = vunpack.c.l.b16 %v6370
      %v6403 = vunpack.c.l.b16 %v6371
      %v6404 = vunpack.c.l.b16 %v6372
      %v6405 = vunpack.c.l.b16 %v6373
      %v6406 = vunpack.c.l.b16 %v6374
      %v6407 = vunpack.c.l.b16 %v6375
      %v6408 = vunpack.c.l.b16 %v6376
      %v6409 = vpack.c.b16 %v6394, %v6393
      %v6410 = vpack.c.b16 %v6396, %v6395
      %v6411 = vpack.c.b16 %v6398, %v6397
      %v6412 = vpack.c.b16 %v6400, %v6399
      %v6413 = vpack.c.b16 %v6402, %v6401
      %v6414 = vpack.c.b16 %v6404, %v6403
      %v6415 = vpack.c.b16 %v6406, %v6405
      %v6416 = vpack.c.b16 %v6408, %v6407
      %6425 = vmatprep.subr.bf16.mxu0 0
      %6426 = vmatpush1.bf16.msra.mxu0 %v6409
      %6427 = vmatprep.subr.bf16.mxu0 0
      %6428 = vmatpush1.bf16.msra.mxu0 %v6410
      %6429 = vmatprep.subr.bf16.mxu0 0
      %6430 = vmatpush1.bf16.msra.mxu0 %v6411
      %6431 = vmatprep.subr.bf16.mxu0 0
      %6432 = vmatpush1.bf16.msra.mxu0 %v6412
      %6433 = vmatprep.subr.bf16.mxu0 0
      %6434 = vmatpush1.bf16.msra.mxu0 %v6413
      %6435 = vmatprep.subr.bf16.mxu0 0
      %6436 = vmatpush1.bf16.msra.mxu0 %v6414
      %6437 = vmatprep.subr.bf16.mxu0 0
      %6438 = vmatpush1.bf16.msra.mxu0 %v6415
      %6439 = vmatprep.subr.bf16.mxu0 0
      %6440 = vmatpush1.bf16.msra.mxu0 %v6416
      %6441 = vmatprep.subr.bf16.mxu0 0
      %6442 = vmatpush1.bf16.msra.mxu0 0
      %6443 = vmatprep.subr.bf16.mxu0 0
      %6444 = vmatpush1.bf16.msra.mxu0 0
      %6445 = vmatprep.subr.bf16.mxu0 0
      %6446 = vmatpush1.bf16.msra.mxu0 0
      %6447 = vmatprep.subr.bf16.mxu0 0
      %6448 = vmatpush1.bf16.msra.mxu0 0
      %6449 = vmatprep.subr.bf16.mxu0 0
      %6450 = vmatpush1.bf16.msra.mxu0 0
      %6451 = vmatprep.subr.bf16.mxu0 0
      %6452 = vmatpush1.bf16.msra.mxu0 0
      %6453 = vmatprep.subr.bf16.mxu0 0
      %6454 = vmatpush1.bf16.msra.mxu0 0
      %6455 = vmatprep.subr.bf16.mxu0 0
      %6456 = vmatpush1.bf16.msra.mxu0 0
      %6457 = vmatprep.mubr.bf16.mxu0 0
      %6458 = vmatmul.mubr.bf16.gmra.mrb[0].mxu0 %v6125
      %v6459 = vpop.f32.mrb[0].mxu0
      %v6460 = vadd.f32 0.0, %v6459
      %v6461 = vpop.f32.mrb[0].mxu0
      %v6462 = vpop.f32.mrb[0].mxu0
      %v6463 = vpop.f32.mrb[0].mxu0
      %6464 = vdwg.mxu0
      %v6465 = vld [vmem:[%s12] sm:$0x1]
      %v6466 = vlaneseq
      %v6467 = vshrl.u32 %v6466, 7
      %v6468 = vsub.s32 0, %v6467
      %v6469 = vrot.slane %v6465, %v6468
      %v6470 = vmul.f32 %v6460, %v6469
      %v6471 = vld [vmem:[%s12 + $0x1] sm:$0x1]
      %v6472 = vlaneseq
      %v6473 = vshrl.u32 %v6472, 7
      %v6474 = vsub.s32 0, %v6473
      %v6475 = vrot.slane %v6471, %v6474
      %v6476 = vadd.f32 %v6470, %v6475
      %v6477 = vmax.f32 %v6476, 0.0
      %v6478 = vpack.c.bf16 %v6360, %v6360
      %6479 = vst [vmem:[%s550] sm:$0x3] %v6478
      %v6480 = vpack.c.bf16 %v6477, %v6477
      %6481 = vst [vmem:[%s554] sm:$0x3] %v6480
      %p6482 = scmp.lt.s32.totalorder %s28, 1
      %s6483 = scalar_select %p6482, %s28, 1
      %s6484 = smul.addr %s6483, 32
      %s6485 = smul.addr %s6484, 8
      %s6486 = scalar_lea.vmem %s13, %s6485
      %p6487 = scmp.lt.s32.totalorder %s28, 1
      %s6488 = scalar_select %p6487, %s28, 1
      %s6489 = smul.addr %s6488, 32
      %s6490 = smul.addr %s6489, 4
      %s6491 = scalar_lea.vmem %s14, %s6490
      %p6492 = scmp.lt.s32.totalorder %s28, 1
      %s6493 = scalar_select %p6492, %s28, 1
      %s6494 = smul.addr %s6493, 2
      %s6495 = scalar_lea.vmem %s15, %s6494
      %p6496 = scmp.lt.s32.totalorder %s28, 1
      %s6497 = scalar_select %p6496, %s28, 1
      %s6498 = smul.addr %s6497, 2
      %s6499 = scalar_lea.vmem %s16, %s6498
      // Predicated region
      $region73: #{ocrnet_forward.2} parent=71 // pred_check
        %p6500 = pneg %p324
      $region74: #{ocrnet_forward.2} parent=71 // pred_check_branch
        %6502 = sbr.rel (%p6500) target = $region76
      $region75: #{ocrnet_forward.2} parent=71 // pred_region
        _
      $region76: #{ocrnet_forward.2} parent=71 // pred_fallthru
        _
      // Predicated region
      $region77: #{ocrnet_forward.2} parent=71 // pred_check
        %p6503 = pneg %p350
      $region78: #{ocrnet_forward.2} parent=71 // pred_check_branch
        %6505 = sbr.rel (%p6503) target = $region80
      $region79: #{ocrnet_forward.2} parent=71 // pred_region
        _
      $region80: #{ocrnet_forward.2} parent=71 // pred_fallthru
        _
      // Predicated region
      $region81: #{ocrnet_forward.2} parent=71 // pred_check
        %p6506 = pneg %p376
      $region82: #{ocrnet_forward.2} parent=71 // pred_check_branch
        %6508 = sbr.rel (%p6506) target = $region84
      $region83: #{ocrnet_forward.2} parent=71 // pred_region
        _
      $region84: #{ocrnet_forward.2} parent=71 // pred_fallthru
        _
      // Predicated region
      $region85: #{ocrnet_forward.2} parent=71 // pred_check
        %p6509 = pneg %p402
      $region86: #{ocrnet_forward.2} parent=71 // pred_check_branch
        %6511 = sbr.rel (%p6509) target = $region88
      $region87: #{ocrnet_forward.2} parent=71 // pred_region
        _
      $region88: #{ocrnet_forward.2} parent=71 // pred_fallthru
        _
    $region72: #{ocrnet_forward.2} parent=5 // pred_fallthru
      _
    %p6512 = scmp.le.s32.totalorder 2, %s23
    // Predicated region
    $region89: #{ocrnet_forward.2} parent=5 // pred_check
      %p6513 = pneg %p6512
    $region90: #{ocrnet_forward.2} parent=5 // pred_check_branch
      %6515 = sbr.rel (%p6513) target = $region92
    $region91: #{ocrnet_forward.2} parent=5 // pred_region
      %s6516 = ssub.s32 %s23, 2
      // Predicated region
      $region93: #{ocrnet_forward.2} parent=91 // pred_check
        %p6517 = pneg %p330
      $region94: #{ocrnet_forward.2} parent=91 // pred_check_branch
        %6519 = sbr.rel (%p6517) target = $region96
      $region95: #{ocrnet_forward.2} parent=91 // pred_region
        %p6520 = scmp.lt.s32.totalorder %s29, 1
        %s6521 = scalar_select %p6520, %s29, 1
        %s6522 = smul.addr %s6521, 32
        %s6523 = smul.addr %s6522, 8
        %s6524 = scalar_lea.vmem %s13, %s6523
      $region96: #{ocrnet_forward.2} parent=91 // pred_fallthru
        _
      // Predicated region
      $region97: #{ocrnet_forward.2} parent=91 // pred_check
        %p6525 = pneg %p356
      $region98: #{ocrnet_forward.2} parent=91 // pred_check_branch
        %6527 = sbr.rel (%p6525) target = $region100
      $region99: #{ocrnet_forward.2} parent=91 // pred_region
        %p6528 = scmp.lt.s32.totalorder %s29, 1
        %s6529 = scalar_select %p6528, %s29, 1
        %s6530 = smul.addr %s6529, 32
        %s6531 = smul.addr %s6530, 4
        %s6532 = scalar_lea.vmem %s14, %s6531
      $region100: #{ocrnet_forward.2} parent=91 // pred_fallthru
        _
      // Predicated region
      $region101: #{ocrnet_forward.2} parent=91 // pred_check
        %p6533 = pneg %p382
      $region102: #{ocrnet_forward.2} parent=91 // pred_check_branch
        %6535 = sbr.rel (%p6533) target = $region104
      $region103: #{ocrnet_forward.2} parent=91 // pred_region
        %p6536 = scmp.lt.s32.totalorder %s29, 1
        %s6537 = scalar_select %p6536, %s29, 1
        %s6538 = smul.addr %s6537, 2
        %s6539 = scalar_lea.vmem %s15, %s6538
      $region104: #{ocrnet_forward.2} parent=91 // pred_fallthru
        _
      // Predicated region
      $region105: #{ocrnet_forward.2} parent=91 // pred_check
        %p6540 = pneg %p408
      $region106: #{ocrnet_forward.2} parent=91 // pred_check_branch
        %6542 = sbr.rel (%p6540) target = $region108
      $region107: #{ocrnet_forward.2} parent=91 // pred_region
        %p6543 = scmp.lt.s32.totalorder %s29, 1
        %s6544 = scalar_select %p6543, %s29, 1
        %s6545 = smul.addr %s6544, 2
        %s6546 = scalar_lea.vmem %s16, %s6545
      $region108: #{ocrnet_forward.2} parent=91 // pred_fallthru
        _
    $region92: #{ocrnet_forward.2} parent=5 // pred_fallthru
      _
  $region6: #{ocrnet_forward.2} parent=0 // loop_footer
    %s27 = sadd.s32 1, %s23
  $region7: #{ocrnet_forward.2} parent=0 // loop_footer_branch
    %22 = sbr.rel target = $region3
  $region8: #{ocrnet_forward.2} parent=0 // loop_exit
    _

</llo_original>
